<compile_context>
chip_gen: v6e
topology: v6e:2x2x1
jax: 0.10.0
libtpu: 0.0.40
codegen_flags: <defaults>
</compile_context>

<pallas_src>
import functools

import jax
import jax.numpy as jnp
import numpy as np
from jax.experimental import pallas as pl
from jax.experimental.pallas import tpu as pltpu


def _round_up(n, m):
    return (n + m - 1) // m * m


def _pad_to(a, shape):
    pads = [(0, t - s) for s, t in zip(a.shape, shape)]
    if all(p == (0, 0) for p in pads):
        return a
    return jnp.pad(a, pads)


def transformer_block_kernel(x_ref, mask_ref,
                             wq_ref, bq_ref, wk_ref, bk_ref, wv_ref, bv_ref,
                             wo_ref, bo_ref, g1_ref, b1_ref,
                             wfc_ref, bfc_ref, wpr_ref, bpr_ref,
                             g2_ref, b2_ref, out_ref, *, num_heads, d_model):
    Bt, S, Dp = x_ref.shape
    H = num_heads
    Dhp = wq_ref.shape[2]
    M = Bt * S
    D = d_model                                   # true (unpadded) hidden size
    inv_scale = jnp.float32(1.0 / float(D // H) ** 0.5)
    cdt = wq_ref.dtype                            # MXU operand dtype (f32/bf16)

    # Fold the batch tile into the row (sublane) axis: all dense matmuls and
    # both LayerNorms run at M = Bt*S rows.  Padded lanes (>= D) are exactly 0.
    x = x_ref[...].reshape(M, Dp)                 # f32 residual stream
    xm = x.astype(cdt)
    mask = mask_ref[...]                          # (S, S) additive 0 / -1e30

    # Lane-validity mask so LayerNorm statistics cover only the true D lanes.
    lane_ok = jax.lax.broadcasted_iota(jnp.int32, (1, Dp), 1) < D
    inv_d = jnp.float32(1.0 / D)

    def layernorm(v, gamma, beta, eps=1e-5):
        vm = jnp.where(lane_ok, v, 0.0)
        mu = jnp.sum(vm, axis=-1, keepdims=True) * inv_d
        c = jnp.where(lane_ok, v - mu, 0.0)
        var = jnp.sum(c * c, axis=-1, keepdims=True) * inv_d
        # gamma/beta are zero-padded, so padded output lanes stay exactly 0.
        return (v - mu) * jax.lax.rsqrt(var + eps) * gamma + beta

    # --- causal multi-head attention ---------------------------------------
    # Static loop over heads only; batch is vectorized with batched einsums
    # (no kh.T transpose, no per-head lane slicing, no concat); the output
    # projection is distributed over heads into one f32 accumulator.
    acc = jnp.zeros((M, Dp), jnp.float32)
    for h in range(H):                            # static: H is small
        qh = (jnp.dot(xm, wq_ref[h], preferred_element_type=jnp.float32)
              + bq_ref[h]) * inv_scale            # scale folded into q once
        kh = jnp.dot(xm, wk_ref[h], preferred_element_type=jnp.float32) + bk_ref[h]
        vh = jnp.dot(xm, wv_ref[h], preferred_element_type=jnp.float32) + bv_ref[h]
        # (M, Dhp) -> (Bt, S, Dhp): split of the leading (sublane) axis only.
        qh = qh.reshape(Bt, S, Dhp).astype(cdt)
        kh = kh.reshape(Bt, S, Dhp).astype(cdt)
        vh = vh.reshape(Bt, S, Dhp).astype(cdt)
        s = jnp.einsum('bqd,bkd->bqk', qh, kh,
                       preferred_element_type=jnp.float32) + mask
        s = s - jnp.max(s, axis=-1, keepdims=True)
        p = jnp.exp(s)
        p = p * pl.reciprocal(jnp.sum(p, axis=-1, keepdims=True), approx=True)
        # attention dropout(p=0.1): identity in eval mode
        ctx = jnp.einsum('bqk,bkd->bqd', p.astype(cdt), vh,
                         preferred_element_type=jnp.float32)
        acc = acc + jnp.dot(ctx.reshape(M, Dhp).astype(cdt), wo_ref[h],
                            preferred_element_type=jnp.float32)
    attn = acc + bo_ref[...]

    # --- residual + LayerNorm 1 (f32 statistics) ----------------------------
    x1 = layernorm(x + attn, g1_ref[...], b1_ref[...])

    # --- MLP: Linear -> exact GELU -> Linear (dropout = identity) -----------
    # TODO(synk): at production I, tile along I with an "arbitrary" grid axis
    # and a pl.when-initialized accumulator (needed for v7x 64 MiB VMEM).
    h1 = jnp.dot(x1.astype(cdt), wfc_ref[...],
                 preferred_element_type=jnp.float32) + bfc_ref[...]
    h1 = 0.5 * h1 * (1.0 + jax.lax.erf(h1 * jnp.float32(0.7071067811865476)))
    ff = jnp.dot(h1.astype(cdt), wpr_ref[...],
                 preferred_element_type=jnp.float32) + bpr_ref[...]

    # --- residual + LayerNorm 2 ---------------------------------------------
    out = layernorm(x1 + ff, g2_ref[...], b2_ref[...])
    # Lane-dense store: Dp is a multiple of 128, so these are unmasked vst.
    out_ref[...] = out.reshape(Bt, S, Dp).astype(out_ref.dtype)


def _activation_bytes(bt, S, Dp, Dhp, Ip):
    m = bt * S
    # Rough f32 per-step intermediates: residual-stream copies, per-head
    # q/k/v, scores/probs, MLP hidden.
    return 4 * (6 * m * Dp + 3 * m * Dhp + 2 * bt * S * S + m * Ip)


def transformer_block(x, mask, params, num_heads, *, batch_tile=None,
                      compute_dtype=jnp.float32):
    """TransformerBlock forward as one Pallas kernel (grid over batch tiles).

    compute_dtype: dtype fed to the MXU for weights/activations (bf16 halves
    weight HBM/VMEM traffic and raises MXU throughput on all current TPU
    generations); accumulation, softmax and LayerNorm statistics stay f32.
    """
    B, S, D = x.shape
    H = num_heads
    Dh = D // H
    I = params["w_fc"].shape[1]

    # Pad every feature axis to a multiple of 128 so all loads/stores/matmuls
    # are lane-dense (no-op when already aligned, e.g. at production sizes).
    Dp, Dhp, Ip = _round_up(D, 128), _round_up(Dh, 128), _round_up(I, 128)

    if batch_tile is None:
        # Keep the grid >= 2 so v7x's two TensorCores both get work under
        # "parallel" semantics and x/out DMAs overlap compute; shrink further
        # if the per-step f32 activation working set exceeds the budget.
        budget = 8 << 20
        batch_tile = 1
        for cand in range(max(1, B // 2), 0, -1):
            if B % cand == 0 and _activation_bytes(cand, S, Dp, Dhp, Ip) <= budget:
                batch_tile = cand
                break
    assert B % batch_tile == 0
    grid = (B // batch_tile,)

    cast = lambda w: w.astype(compute_dtype)

    # masked_fill(mask == -inf) -> additive 0 / -1e30 mask.  Finite sentinel:
    # a fully-masked row yields a uniform distribution instead of NaN; for the
    # causal mask exp(-1e30 - rowmax) underflows to exactly 0 (same as -inf).
    add_mask = jnp.where(mask == -jnp.inf,
                         jnp.float32(-1e30), jnp.float32(0.0))

    def split_in(w, b):        # (D, D)/(1, D) -> (H, Dp, Dhp)/(H, 1, Dhp)
        wh = w.reshape(D, H, Dh).transpose(1, 0, 2)
        bh = b.reshape(H, Dh)[:, None, :]
        return cast(_pad_to(wh, (H, Dp, Dhp))), _pad_to(bh, (H, 1, Dhp))

    wq_h, bq_h = split_in(params["wq"], params["bq"])
    wk_h, bk_h = split_in(params["wk"], params["bk"])
    wv_h, bv_h = split_in(params["wv"], params["bv"])
    wo_h = cast(_pad_to(params["wo"].reshape(H, Dh, D), (H, Dhp, Dp)))

    x_p = _pad_to(x, (B, S, Dp))
    bo_p = _pad_to(params["bo"], (1, Dp))
    g1_p, b1_p = _pad_to(params["g1"], (1, Dp)), _pad_to(params["b1"], (1, Dp))
    g2_p, b2_p = _pad_to(params["g2"], (1, Dp)), _pad_to(params["b2"], (1, Dp))
    wfc_p = cast(_pad_to(params["w_fc"], (Dp, Ip)))
    bfc_p = _pad_to(params["b_fc"], (1, Ip))
    wpr_p = cast(_pad_to(params["w_pr"], (Ip, Dp)))
    bpr_p = _pad_to(params["b_pr"], (1, Dp))

    operands = (x_p, add_mask,
                wq_h, bq_h, wk_h, bk_h, wv_h, bv_h, wo_h, bo_p,
                g1_p, b1_p, wfc_p, bfc_p, wpr_p, bpr_p, g2_p, b2_p)

    # VMEM budget: weights (x2 in case single-buffering is unavailable),
    # double-buffered x/out tiles, plus the per-step activation estimate.
    weight_bytes = sum(int(np.prod(a.shape)) * a.dtype.itemsize
                       for a in operands[1:])
    io_bytes = 2 * 2 * batch_tile * S * Dp * 4
    vmem_limit = int(min(64 << 20,
                         max(32 << 20,
                             2 * weight_bytes + io_bytes
                             + 2 * _activation_bytes(batch_tile, S, Dp, Dhp, Ip))))

    kernel = functools.partial(transformer_block_kernel,
                               num_heads=H, d_model=D)

    def rep(shape):                       # replicated (grid-invariant) block
        return pl.BlockSpec(shape, lambda i: (0,) * len(shape))

    def wrep(shape, mode):                # grid-invariant weight-matrix block
        if mode is None:
            return rep(shape)
        return pl.BlockSpec(shape, lambda i: (0,) * len(shape),
                            pipeline_mode=mode)

    def call(wmode):
        in_specs = [
            pl.BlockSpec((batch_tile, S, Dp), lambda i: (i, 0, 0)),   # x
            rep((S, S)),                                              # mask
            wrep((H, Dp, Dhp), wmode), rep((H, 1, Dhp)),              # Wq, bq
            wrep((H, Dp, Dhp), wmode), rep((H, 1, Dhp)),              # Wk, bk
            wrep((H, Dp, Dhp), wmode), rep((H, 1, Dhp)),              # Wv, bv
            wrep((H, Dhp, Dp), wmode), rep((1, Dp)),                  # Wo, bo
            rep((1, Dp)), rep((1, Dp)),                               # ln1 gamma, beta
            wrep((Dp, Ip), wmode), rep((1, Ip)),                      # W_fc, b_fc
            wrep((Ip, Dp), wmode), rep((1, Dp)),                      # W_proj, b_proj
            rep((1, Dp)), rep((1, Dp)),                               # ln2 gamma, beta
        ]
        return pl.pallas_call(
            kernel,
            out_shape=jax.ShapeDtypeStruct((B, S, Dp), x.dtype),
            grid=grid,
            in_specs=in_specs,
            out_specs=pl.BlockSpec((batch_tile, S, Dp), lambda i: (i, 0, 0)),
            compiler_params=pltpu.CompilerParams(
                dimension_semantics=("parallel",),
                vmem_limit_bytes=vmem_limit),
        )(*operands)

    try:
        # Single-buffer the grid-invariant weight blocks: their block index
        # never changes, so double-buffering them only doubles weight VMEM.
        out_p = call(pl.Buffered(1))
    except Exception:
        # Fallback for jax versions without BlockSpec pipeline_mode support.
        out_p = call(None)

    return out_p[:, :, :D]


# ---------------------------- pure-JAX reference ----------------------------
def _layernorm_ref(v, gamma, beta, eps=1e-5):
    mu = jnp.mean(v, axis=-1, keepdims=True)
    var = jnp.mean((v - mu) ** 2, axis=-1, keepdims=True)
    return (v - mu) * jax.lax.rsqrt(var + eps) * gamma + beta


def reference_block(x, mask, p, num_heads):
    B, S, D = x.shape
    Dh = D // num_heads
    q = (x @ p["wq"] + p["bq"]).reshape(B, S, num_heads, Dh).transpose(0, 2, 1, 3)
    k = (x @ p["wk"] + p["bk"]).reshape(B, S, num_heads, Dh).transpose(0, 2, 1, 3)
    v = (x @ p["wv"] + p["bv"]).reshape(B, S, num_heads, Dh).transpose(0, 2, 1, 3)
    scores = (q @ k.transpose(0, 1, 3, 2)) / (Dh ** 0.5)
    scores = jnp.where(mask[None, None] == -jnp.inf, -jnp.inf, scores)
    w = jax.nn.softmax(scores, axis=-1)
    ctx = (w @ v).transpose(0, 2, 1, 3).reshape(B, S, D)
    attn = ctx @ p["wo"] + p["bo"]
    x1 = _layernorm_ref(x + attn, p["g1"], p["b1"])
    h = x1 @ p["w_fc"] + p["b_fc"]
    h = 0.5 * h * (1.0 + jax.lax.erf(h / jnp.sqrt(jnp.float32(2.0))))
    ff = h @ p["w_pr"] + p["b_pr"]
    return _layernorm_ref(x1 + ff, p["g2"], p["b2"])


if __name__ == "__main__":
    B, S, D, H, I = 2, 8, 32, 4, 64

    key = jax.random.PRNGKey(0)
    keys = jax.random.split(key, 16)

    def lin(kw, kb, fan_in, fan_out):
        # deterministic synthetic init (kaiming-uniform-ish scale)
        bound = 1.0 / np.sqrt(fan_in)
        w = jax.random.uniform(kw, (fan_in, fan_out), jnp.float32, -bound, bound)
        b = jax.random.uniform(kb, (1, fan_out), jnp.float32, -bound, bound)
        return w, b

    wq, bq = lin(keys[0], keys[1], D, D)
    wk, bk = lin(keys[2], keys[3], D, D)
    wv, bv = lin(keys[4], keys[5], D, D)
    wo, bo = lin(keys[6], keys[7], D, D)
    w_fc, b_fc = lin(keys[8], keys[9], D, I)
    w_pr, b_pr = lin(keys[10], keys[11], I, D)

    params = dict(
        wq=wq, bq=bq, wk=wk, bk=bk, wv=wv, bv=bv, wo=wo, bo=bo,
        g1=jnp.ones((1, D), jnp.float32), b1=jnp.zeros((1, D), jnp.float32),
        w_fc=w_fc, b_fc=b_fc, w_pr=w_pr, b_pr=b_pr,
        g2=jnp.ones((1, D), jnp.float32), b2=jnp.zeros((1, D), jnp.float32),
    )

    x = jax.random.normal(keys[12], (B, S, D), jnp.float32)
    # causal mask: -inf above the diagonal, 0 elsewhere (same convention as
    # the PyTorch module's mask used with masked_fill(mask == -inf, -inf)).
    causal = jnp.triu(jnp.ones((S, S), jnp.float32), k=1)
    mask = jnp.where(causal == 1, -jnp.inf, 0.0).astype(jnp.float32)

    ref = reference_block(x, mask, params, num_heads=H)

    # f32 MXU operands (matches the PyTorch forward; approx-reciprocal softmax
    # denominator -> slightly looser than 1e-4 tolerance).
    out = transformer_block(x, mask, params, num_heads=H)
    out = jax.block_until_ready(out)
    np.testing.assert_allclose(np.asarray(out), np.asarray(ref),
                               rtol=2e-3, atol=2e-3)

    # bf16 MXU operands (recommended on v5e/v6e/v7x): accumulation, softmax and
    # LayerNorm statistics stay f32; loose sanity bound only.
    out_bf16 = transformer_block(x, mask, params, num_heads=H,
                                 compute_dtype=jnp.bfloat16)
    out_bf16 = jax.block_until_ready(out_bf16)
    err = float(jnp.max(jnp.abs(out_bf16 - ref)))
    assert err < 0.2, f"bf16 path diverged: max abs err {err}"

    print("KERNEL_OK")
</pallas_src>

<mosaic_0001>
module attributes {stable_mosaic.version = 11 : i64} {
  func.func @transformer_block_kernel(%arg0: i32, %arg1: memref<1x8x128xf32, #tpu.memory_space<vmem>>, %arg2: memref<8x8xf32, #tpu.memory_space<vmem>>, %arg3: memref<4x128x128xf32, #tpu.memory_space<vmem>>, %arg4: memref<4x1x128xf32, #tpu.memory_space<vmem>>, %arg5: memref<4x128x128xf32, #tpu.memory_space<vmem>>, %arg6: memref<4x1x128xf32, #tpu.memory_space<vmem>>, %arg7: memref<4x128x128xf32, #tpu.memory_space<vmem>>, %arg8: memref<4x1x128xf32, #tpu.memory_space<vmem>>, %arg9: memref<4x128x128xf32, #tpu.memory_space<vmem>>, %arg10: memref<1x128xf32, #tpu.memory_space<vmem>>, %arg11: memref<1x128xf32, #tpu.memory_space<vmem>>, %arg12: memref<1x128xf32, #tpu.memory_space<vmem>>, %arg13: memref<128x128xf32, #tpu.memory_space<vmem>>, %arg14: memref<1x128xf32, #tpu.memory_space<vmem>>, %arg15: memref<128x128xf32, #tpu.memory_space<vmem>>, %arg16: memref<1x128xf32, #tpu.memory_space<vmem>>, %arg17: memref<1x128xf32, #tpu.memory_space<vmem>>, %arg18: memref<1x128xf32, #tpu.memory_space<vmem>>, %arg19: memref<1x8x128xf32, #tpu.memory_space<vmem>>) attributes {dimension_semantics = [#tpu.dimension_semantics<parallel>], iteration_bounds = array<i64: 2>, scalar_prefetch = 0 : i64, scratch_operands = 0 : i64, tpu.core_type = #tpu.core_type<tc>, window_params = [{transform_indices = @transform_0, window_bounds = array<i64: 1, 8, 128>}, {pipeline_mode = #tpu.pipeline_mode<synchronous>, transform_indices = @transform_1, window_bounds = array<i64: 8, 8>}, {pipeline_mode = #tpu.pipeline_mode<synchronous>, transform_indices = @transform_2, window_bounds = array<i64: 4, 128, 128>}, {pipeline_mode = #tpu.pipeline_mode<synchronous>, transform_indices = @transform_3, window_bounds = array<i64: 4, 1, 128>}, {pipeline_mode = #tpu.pipeline_mode<synchronous>, transform_indices = @transform_4, window_bounds = array<i64: 4, 128, 128>}, {pipeline_mode = #tpu.pipeline_mode<synchronous>, transform_indices = @transform_5, window_bounds = array<i64: 4, 1, 128>}, {pipeline_mode = #tpu.pipeline_mode<synchronous>, transform_indices = @transform_6, window_bounds = array<i64: 4, 128, 128>}, {pipeline_mode = #tpu.pipeline_mode<synchronous>, transform_indices = @transform_7, window_bounds = array<i64: 4, 1, 128>}, {pipeline_mode = #tpu.pipeline_mode<synchronous>, transform_indices = @transform_8, window_bounds = array<i64: 4, 128, 128>}, {pipeline_mode = #tpu.pipeline_mode<synchronous>, transform_indices = @transform_9, window_bounds = array<i64: 1, 128>}, {pipeline_mode = #tpu.pipeline_mode<synchronous>, transform_indices = @transform_10, window_bounds = array<i64: 1, 128>}, {pipeline_mode = #tpu.pipeline_mode<synchronous>, transform_indices = @transform_11, window_bounds = array<i64: 1, 128>}, {pipeline_mode = #tpu.pipeline_mode<synchronous>, transform_indices = @transform_12, window_bounds = array<i64: 128, 128>}, {pipeline_mode = #tpu.pipeline_mode<synchronous>, transform_indices = @transform_13, window_bounds = array<i64: 1, 128>}, {pipeline_mode = #tpu.pipeline_mode<synchronous>, transform_indices = @transform_14, window_bounds = array<i64: 128, 128>}, {pipeline_mode = #tpu.pipeline_mode<synchronous>, transform_indices = @transform_15, window_bounds = array<i64: 1, 128>}, {pipeline_mode = #tpu.pipeline_mode<synchronous>, transform_indices = @transform_16, window_bounds = array<i64: 1, 128>}, {pipeline_mode = #tpu.pipeline_mode<synchronous>, transform_indices = @transform_17, window_bounds = array<i64: 1, 128>}, {transform_indices = @transform_18, window_bounds = array<i64: 1, 8, 128>}]} {
    %c0 = arith.constant 0 : index
    %c0_0 = arith.constant 0 : index
    %c0_1 = arith.constant 0 : index
    %0 = vector.load %arg1[%c0, %c0_0, %c0_1] : memref<1x8x128xf32, #tpu.memory_space<vmem>>, vector<1x8x128xf32>
    %1 = vector.shape_cast %0 : vector<1x8x128xf32> to vector<8x128xf32>
    %c0_2 = arith.constant 0 : index
    %c0_3 = arith.constant 0 : index
    %2 = vector.load %arg2[%c0_2, %c0_3] : memref<8x8xf32, #tpu.memory_space<vmem>>, vector<8x8xf32>
    %3 = tpu.iota {dimensions = array<i32: 1>} : vector<1x128xi32>
    %c32_i32 = arith.constant 32 : i32
    %4 = vector.broadcast %c32_i32 : i32 to vector<1x128xi32>
    %5 = arith.cmpi slt, %3, %4 : vector<1x128xi32>
    %cst = arith.constant 0.000000e+00 : f32
    %6 = vector.broadcast %cst : f32 to vector<8x128xf32>
    %c0_4 = arith.constant 0 : index
    %c0_5 = arith.constant 0 : index
    %c0_6 = arith.constant 0 : index
    %7 = vector.load %arg3[%c0_4, %c0_5, %c0_6] : memref<4x128x128xf32, #tpu.memory_space<vmem>>, vector<1x128x128xf32>
    %8 = vector.shape_cast %7 : vector<1x128x128xf32> to vector<128x128xf32>
    %cst_7 = arith.constant dense<0.000000e+00> : vector<8x128xf32>
    %9 = tpu.matmul %1, %8, %cst_7 {dimension_numbers = #tpu.dot_dimension_numbers<[1], [0], [0], [1], [0, 0, 1, 1], [], []>} : vector<8x128xf32>, vector<128x128xf32>, vector<8x128xf32> -> vector<8x128xf32>
    %c0_8 = arith.constant 0 : index
    %c0_9 = arith.constant 0 : index
    %c0_10 = arith.constant 0 : index
    %10 = vector.load %arg4[%c0_8, %c0_9, %c0_10] : memref<4x1x128xf32, #tpu.memory_space<vmem>>, vector<1x1x128xf32>
    %11 = vector.shape_cast %10 : vector<1x1x128xf32> to vector<1x128xf32>
    %12 = vector.broadcast %11 : vector<1x128xf32> to vector<8x128xf32>
    %13 = arith.addf %9, %12 : vector<8x128xf32>
    %cst_11 = arith.constant 0.353553385 : f32
    %14 = vector.broadcast %cst_11 : f32 to vector<8x128xf32>
    %15 = arith.mulf %13, %14 : vector<8x128xf32>
    %c0_12 = arith.constant 0 : index
    %c0_13 = arith.constant 0 : index
    %c0_14 = arith.constant 0 : index
    %16 = vector.load %arg5[%c0_12, %c0_13, %c0_14] : memref<4x128x128xf32, #tpu.memory_space<vmem>>, vector<1x128x128xf32>
    %17 = vector.shape_cast %16 : vector<1x128x128xf32> to vector<128x128xf32>
    %cst_15 = arith.constant dense<0.000000e+00> : vector<8x128xf32>
    %18 = tpu.matmul %1, %17, %cst_15 {dimension_numbers = #tpu.dot_dimension_numbers<[1], [0], [0], [1], [0, 0, 1, 1], [], []>} : vector<8x128xf32>, vector<128x128xf32>, vector<8x128xf32> -> vector<8x128xf32>
    %c0_16 = arith.constant 0 : index
    %c0_17 = arith.constant 0 : index
    %c0_18 = arith.constant 0 : index
    %19 = vector.load %arg6[%c0_16, %c0_17, %c0_18] : memref<4x1x128xf32, #tpu.memory_space<vmem>>, vector<1x1x128xf32>
    %20 = vector.shape_cast %19 : vector<1x1x128xf32> to vector<1x128xf32>
    %21 = vector.broadcast %20 : vector<1x128xf32> to vector<8x128xf32>
    %22 = arith.addf %18, %21 : vector<8x128xf32>
    %c0_19 = arith.constant 0 : index
    %c0_20 = arith.constant 0 : index
    %c0_21 = arith.constant 0 : index
    %23 = vector.load %arg7[%c0_19, %c0_20, %c0_21] : memref<4x128x128xf32, #tpu.memory_space<vmem>>, vector<1x128x128xf32>
    %24 = vector.shape_cast %23 : vector<1x128x128xf32> to vector<128x128xf32>
    %cst_22 = arith.constant dense<0.000000e+00> : vector<8x128xf32>
    %25 = tpu.matmul %1, %24, %cst_22 {dimension_numbers = #tpu.dot_dimension_numbers<[1], [0], [0], [1], [0, 0, 1, 1], [], []>} : vector<8x128xf32>, vector<128x128xf32>, vector<8x128xf32> -> vector<8x128xf32>
    %c0_23 = arith.constant 0 : index
    %c0_24 = arith.constant 0 : index
    %c0_25 = arith.constant 0 : index
    %26 = vector.load %arg8[%c0_23, %c0_24, %c0_25] : memref<4x1x128xf32, #tpu.memory_space<vmem>>, vector<1x1x128xf32>
    %27 = vector.shape_cast %26 : vector<1x1x128xf32> to vector<1x128xf32>
    %28 = vector.broadcast %27 : vector<1x128xf32> to vector<8x128xf32>
    %29 = arith.addf %25, %28 : vector<8x128xf32>
    %30 = vector.shape_cast %15 : vector<8x128xf32> to vector<1x8x128xf32>
    %31 = vector.shape_cast %22 : vector<8x128xf32> to vector<1x8x128xf32>
    %32 = vector.shape_cast %29 : vector<8x128xf32> to vector<1x8x128xf32>
    "tpu.trace_start"() <{level = 10 : i32, message = "bqd,bkd->bqk"}> : () -> ()
    %cst_26 = arith.constant dense<0.000000e+00> : vector<1x8x8xf32>
    %33 = tpu.matmul %30, %31, %cst_26 {dimension_numbers = #tpu.dot_dimension_numbers<[2], [2], [1], [1], [0, 0, 0, 1, 1, 1], [0], [0]>} : vector<1x8x128xf32>, vector<1x8x128xf32>, vector<1x8x8xf32> -> vector<1x8x8xf32>
    "tpu.trace_stop"() : () -> ()
    %34 = vector.shape_cast %2 : vector<8x8xf32> to vector<1x8x8xf32>
    %35 = arith.addf %33, %34 : vector<1x8x8xf32>
    %cst_27 = arith.constant dense<0xFF800000> : vector<1x8xf32>
    %36 = vector.multi_reduction <maximumf>, %35, %cst_27 [2] : vector<1x8x8xf32> to vector<1x8xf32>
    %37 = vector.shape_cast %36 : vector<1x8xf32> to vector<1x8x1xf32>
    %38 = vector.broadcast %37 : vector<1x8x1xf32> to vector<1x8x8xf32>
    %39 = arith.subf %35, %38 : vector<1x8x8xf32>
    %40 = math.exp %39 : vector<1x8x8xf32>
    %cst_28 = arith.constant dense<0.000000e+00> : vector<1x8xf32>
    %41 = vector.multi_reduction <add>, %40, %cst_28 [2] : vector<1x8x8xf32> to vector<1x8xf32>
    %42 = vector.shape_cast %41 : vector<1x8xf32> to vector<1x8x1xf32>
    %43 = tpu.reciprocal %42 {approx = true} : vector<1x8x1xf32> -> vector<1x8x1xf32>
    %44 = vector.broadcast %43 : vector<1x8x1xf32> to vector<1x8x8xf32>
    %45 = arith.mulf %40, %44 : vector<1x8x8xf32>
    "tpu.trace_start"() <{level = 10 : i32, message = "bqk,bkd->bqd"}> : () -> ()
    %cst_29 = arith.constant dense<0.000000e+00> : vector<1x8x128xf32>
    %46 = tpu.matmul %45, %32, %cst_29 {dimension_numbers = #tpu.dot_dimension_numbers<[2], [1], [1], [2], [0, 0, 0, 1, 1, 2], [0], [0]>} : vector<1x8x8xf32>, vector<1x8x128xf32>, vector<1x8x128xf32> -> vector<1x8x128xf32>
    "tpu.trace_stop"() : () -> ()
    %47 = vector.shape_cast %46 : vector<1x8x128xf32> to vector<8x128xf32>
    %c0_30 = arith.constant 0 : index
    %c0_31 = arith.constant 0 : index
    %c0_32 = arith.constant 0 : index
    %48 = vector.load %arg9[%c0_30, %c0_31, %c0_32] : memref<4x128x128xf32, #tpu.memory_space<vmem>>, vector<1x128x128xf32>
    %49 = vector.shape_cast %48 : vector<1x128x128xf32> to vector<128x128xf32>
    %cst_33 = arith.constant dense<0.000000e+00> : vector<8x128xf32>
    %50 = tpu.matmul %47, %49, %cst_33 {dimension_numbers = #tpu.dot_dimension_numbers<[1], [0], [0], [1], [0, 0, 1, 1], [], []>} : vector<8x128xf32>, vector<128x128xf32>, vector<8x128xf32> -> vector<8x128xf32>
    %51 = arith.addf %6, %50 : vector<8x128xf32>
    %c1 = arith.constant 1 : index
    %c0_34 = arith.constant 0 : index
    %c0_35 = arith.constant 0 : index
    %52 = vector.load %arg3[%c1, %c0_34, %c0_35] : memref<4x128x128xf32, #tpu.memory_space<vmem>>, vector<1x128x128xf32>
    %53 = vector.shape_cast %52 : vector<1x128x128xf32> to vector<128x128xf32>
    %cst_36 = arith.constant dense<0.000000e+00> : vector<8x128xf32>
    %54 = tpu.matmul %1, %53, %cst_36 {dimension_numbers = #tpu.dot_dimension_numbers<[1], [0], [0], [1], [0, 0, 1, 1], [], []>} : vector<8x128xf32>, vector<128x128xf32>, vector<8x128xf32> -> vector<8x128xf32>
    %c1_37 = arith.constant 1 : index
    %c0_38 = arith.constant 0 : index
    %c0_39 = arith.constant 0 : index
    %55 = vector.load %arg4[%c1_37, %c0_38, %c0_39] : memref<4x1x128xf32, #tpu.memory_space<vmem>>, vector<1x1x128xf32>
    %56 = vector.shape_cast %55 : vector<1x1x128xf32> to vector<1x128xf32>
    %57 = vector.broadcast %56 : vector<1x128xf32> to vector<8x128xf32>
    %58 = arith.addf %54, %57 : vector<8x128xf32>
    %cst_40 = arith.constant 0.353553385 : f32
    %59 = vector.broadcast %cst_40 : f32 to vector<8x128xf32>
    %60 = arith.mulf %58, %59 : vector<8x128xf32>
    %c1_41 = arith.constant 1 : index
    %c0_42 = arith.constant 0 : index
    %c0_43 = arith.constant 0 : index
    %61 = vector.load %arg5[%c1_41, %c0_42, %c0_43] : memref<4x128x128xf32, #tpu.memory_space<vmem>>, vector<1x128x128xf32>
    %62 = vector.shape_cast %61 : vector<1x128x128xf32> to vector<128x128xf32>
    %cst_44 = arith.constant dense<0.000000e+00> : vector<8x128xf32>
    %63 = tpu.matmul %1, %62, %cst_44 {dimension_numbers = #tpu.dot_dimension_numbers<[1], [0], [0], [1], [0, 0, 1, 1], [], []>} : vector<8x128xf32>, vector<128x128xf32>, vector<8x128xf32> -> vector<8x128xf32>
    %c1_45 = arith.constant 1 : index
    %c0_46 = arith.constant 0 : index
    %c0_47 = arith.constant 0 : index
    %64 = vector.load %arg6[%c1_45, %c0_46, %c0_47] : memref<4x1x128xf32, #tpu.memory_space<vmem>>, vector<1x1x128xf32>
    %65 = vector.shape_cast %64 : vector<1x1x128xf32> to vector<1x128xf32>
    %66 = vector.broadcast %65 : vector<1x128xf32> to vector<8x128xf32>
    %67 = arith.addf %63, %66 : vector<8x128xf32>
    %c1_48 = arith.constant 1 : index
    %c0_49 = arith.constant 0 : index
    %c0_50 = arith.constant 0 : index
    %68 = vector.load %arg7[%c1_48, %c0_49, %c0_50] : memref<4x128x128xf32, #tpu.memory_space<vmem>>, vector<1x128x128xf32>
    %69 = vector.shape_cast %68 : vector<1x128x128xf32> to vector<128x128xf32>
    %cst_51 = arith.constant dense<0.000000e+00> : vector<8x128xf32>
    %70 = tpu.matmul %1, %69, %cst_51 {dimension_numbers = #tpu.dot_dimension_numbers<[1], [0], [0], [1], [0, 0, 1, 1], [], []>} : vector<8x128xf32>, vector<128x128xf32>, vector<8x128xf32> -> vector<8x128xf32>
    %c1_52 = arith.constant 1 : index
    %c0_53 = arith.constant 0 : index
    %c0_54 = arith.constant 0 : index
    %71 = vector.load %arg8[%c1_52, %c0_53, %c0_54] : memref<4x1x128xf32, #tpu.memory_space<vmem>>, vector<1x1x128xf32>
    %72 = vector.shape_cast %71 : vector<1x1x128xf32> to vector<1x128xf32>
    %73 = vector.broadcast %72 : vector<1x128xf32> to vector<8x128xf32>
    %74 = arith.addf %70, %73 : vector<8x128xf32>
    %75 = vector.shape_cast %60 : vector<8x128xf32> to vector<1x8x128xf32>
    %76 = vector.shape_cast %67 : vector<8x128xf32> to vector<1x8x128xf32>
    %77 = vector.shape_cast %74 : vector<8x128xf32> to vector<1x8x128xf32>
    "tpu.trace_start"() <{level = 10 : i32, message = "bqd,bkd->bqk"}> : () -> ()
    %cst_55 = arith.constant dense<0.000000e+00> : vector<1x8x8xf32>
    %78 = tpu.matmul %75, %76, %cst_55 {dimension_numbers = #tpu.dot_dimension_numbers<[2], [2], [1], [1], [0, 0, 0, 1, 1, 1], [0], [0]>} : vector<1x8x128xf32>, vector<1x8x128xf32>, vector<1x8x8xf32> -> vector<1x8x8xf32>
    "tpu.trace_stop"() : () -> ()
    %79 = vector.shape_cast %2 : vector<8x8xf32> to vector<1x8x8xf32>
    %80 = arith.addf %78, %79 : vector<1x8x8xf32>
    %cst_56 = arith.constant dense<0xFF800000> : vector<1x8xf32>
    %81 = vector.multi_reduction <maximumf>, %80, %cst_56 [2] : vector<1x8x8xf32> to vector<1x8xf32>
    %82 = vector.shape_cast %81 : vector<1x8xf32> to vector<1x8x1xf32>
    %83 = vector.broadcast %82 : vector<1x8x1xf32> to vector<1x8x8xf32>
    %84 = arith.subf %80, %83 : vector<1x8x8xf32>
    %85 = math.exp %84 : vector<1x8x8xf32>
    %cst_57 = arith.constant dense<0.000000e+00> : vector<1x8xf32>
    %86 = vector.multi_reduction <add>, %85, %cst_57 [2] : vector<1x8x8xf32> to vector<1x8xf32>
    %87 = vector.shape_cast %86 : vector<1x8xf32> to vector<1x8x1xf32>
    %88 = tpu.reciprocal %87 {approx = true} : vector<1x8x1xf32> -> vector<1x8x1xf32>
    %89 = vector.broadcast %88 : vector<1x8x1xf32> to vector<1x8x8xf32>
    %90 = arith.mulf %85, %89 : vector<1x8x8xf32>
    "tpu.trace_start"() <{level = 10 : i32, message = "bqk,bkd->bqd"}> : () -> ()
    %cst_58 = arith.constant dense<0.000000e+00> : vector<1x8x128xf32>
    %91 = tpu.matmul %90, %77, %cst_58 {dimension_numbers = #tpu.dot_dimension_numbers<[2], [1], [1], [2], [0, 0, 0, 1, 1, 2], [0], [0]>} : vector<1x8x8xf32>, vector<1x8x128xf32>, vector<1x8x128xf32> -> vector<1x8x128xf32>
    "tpu.trace_stop"() : () -> ()
    %92 = vector.shape_cast %91 : vector<1x8x128xf32> to vector<8x128xf32>
    %c1_59 = arith.constant 1 : index
    %c0_60 = arith.constant 0 : index
    %c0_61 = arith.constant 0 : index
    %93 = vector.load %arg9[%c1_59, %c0_60, %c0_61] : memref<4x128x128xf32, #tpu.memory_space<vmem>>, vector<1x128x128xf32>
    %94 = vector.shape_cast %93 : vector<1x128x128xf32> to vector<128x128xf32>
    %cst_62 = arith.constant dense<0.000000e+00> : vector<8x128xf32>
    %95 = tpu.matmul %92, %94, %cst_62 {dimension_numbers = #tpu.dot_dimension_numbers<[1], [0], [0], [1], [0, 0, 1, 1], [], []>} : vector<8x128xf32>, vector<128x128xf32>, vector<8x128xf32> -> vector<8x128xf32>
    %96 = arith.addf %51, %95 : vector<8x128xf32>
    %c2 = arith.constant 2 : index
    %c0_63 = arith.constant 0 : index
    %c0_64 = arith.constant 0 : index
    %97 = vector.load %arg3[%c2, %c0_63, %c0_64] : memref<4x128x128xf32, #tpu.memory_space<vmem>>, vector<1x128x128xf32>
    %98 = vector.shape_cast %97 : vector<1x128x128xf32> to vector<128x128xf32>
    %cst_65 = arith.constant dense<0.000000e+00> : vector<8x128xf32>
    %99 = tpu.matmul %1, %98, %cst_65 {dimension_numbers = #tpu.dot_dimension_numbers<[1], [0], [0], [1], [0, 0, 1, 1], [], []>} : vector<8x128xf32>, vector<128x128xf32>, vector<8x128xf32> -> vector<8x128xf32>
    %c2_66 = arith.constant 2 : index
    %c0_67 = arith.constant 0 : index
    %c0_68 = arith.constant 0 : index
    %100 = vector.load %arg4[%c2_66, %c0_67, %c0_68] : memref<4x1x128xf32, #tpu.memory_space<vmem>>, vector<1x1x128xf32>
    %101 = vector.shape_cast %100 : vector<1x1x128xf32> to vector<1x128xf32>
    %102 = vector.broadcast %101 : vector<1x128xf32> to vector<8x128xf32>
    %103 = arith.addf %99, %102 : vector<8x128xf32>
    %cst_69 = arith.constant 0.353553385 : f32
    %104 = vector.broadcast %cst_69 : f32 to vector<8x128xf32>
    %105 = arith.mulf %103, %104 : vector<8x128xf32>
    %c2_70 = arith.constant 2 : index
    %c0_71 = arith.constant 0 : index
    %c0_72 = arith.constant 0 : index
    %106 = vector.load %arg5[%c2_70, %c0_71, %c0_72] : memref<4x128x128xf32, #tpu.memory_space<vmem>>, vector<1x128x128xf32>
    %107 = vector.shape_cast %106 : vector<1x128x128xf32> to vector<128x128xf32>
    %cst_73 = arith.constant dense<0.000000e+00> : vector<8x128xf32>
    %108 = tpu.matmul %1, %107, %cst_73 {dimension_numbers = #tpu.dot_dimension_numbers<[1], [0], [0], [1], [0, 0, 1, 1], [], []>} : vector<8x128xf32>, vector<128x128xf32>, vector<8x128xf32> -> vector<8x128xf32>
    %c2_74 = arith.constant 2 : index
    %c0_75 = arith.constant 0 : index
    %c0_76 = arith.constant 0 : index
    %109 = vector.load %arg6[%c2_74, %c0_75, %c0_76] : memref<4x1x128xf32, #tpu.memory_space<vmem>>, vector<1x1x128xf32>
    %110 = vector.shape_cast %109 : vector<1x1x128xf32> to vector<1x128xf32>
    %111 = vector.broadcast %110 : vector<1x128xf32> to vector<8x128xf32>
    %112 = arith.addf %108, %111 : vector<8x128xf32>
    %c2_77 = arith.constant 2 : index
    %c0_78 = arith.constant 0 : index
    %c0_79 = arith.constant 0 : index
    %113 = vector.load %arg7[%c2_77, %c0_78, %c0_79] : memref<4x128x128xf32, #tpu.memory_space<vmem>>, vector<1x128x128xf32>
    %114 = vector.shape_cast %113 : vector<1x128x128xf32> to vector<128x128xf32>
    %cst_80 = arith.constant dense<0.000000e+00> : vector<8x128xf32>
    %115 = tpu.matmul %1, %114, %cst_80 {dimension_numbers = #tpu.dot_dimension_numbers<[1], [0], [0], [1], [0, 0, 1, 1], [], []>} : vector<8x128xf32>, vector<128x128xf32>, vector<8x128xf32> -> vector<8x128xf32>
    %c2_81 = arith.constant 2 : index
    %c0_82 = arith.constant 0 : index
    %c0_83 = arith.constant 0 : index
    %116 = vector.load %arg8[%c2_81, %c0_82, %c0_83] : memref<4x1x128xf32, #tpu.memory_space<vmem>>, vector<1x1x128xf32>
    %117 = vector.shape_cast %116 : vector<1x1x128xf32> to vector<1x128xf32>
    %118 = vector.broadcast %117 : vector<1x128xf32> to vector<8x128xf32>
    %119 = arith.addf %115, %118 : vector<8x128xf32>
    %120 = vector.shape_cast %105 : vector<8x128xf32> to vector<1x8x128xf32>
    %121 = vector.shape_cast %112 : vector<8x128xf32> to vector<1x8x128xf32>
    %122 = vector.shape_cast %119 : vector<8x128xf32> to vector<1x8x128xf32>
    "tpu.trace_start"() <{level = 10 : i32, message = "bqd,bkd->bqk"}> : () -> ()
    %cst_84 = arith.constant dense<0.000000e+00> : vector<1x8x8xf32>
    %123 = tpu.matmul %120, %121, %cst_84 {dimension_numbers = #tpu.dot_dimension_numbers<[2], [2], [1], [1], [0, 0, 0, 1, 1, 1], [0], [0]>} : vector<1x8x128xf32>, vector<1x8x128xf32>, vector<1x8x8xf32> -> vector<1x8x8xf32>
    "tpu.trace_stop"() : () -> ()
    %124 = vector.shape_cast %2 : vector<8x8xf32> to vector<1x8x8xf32>
    %125 = arith.addf %123, %124 : vector<1x8x8xf32>
    %cst_85 = arith.constant dense<0xFF800000> : vector<1x8xf32>
    %126 = vector.multi_reduction <maximumf>, %125, %cst_85 [2] : vector<1x8x8xf32> to vector<1x8xf32>
    %127 = vector.shape_cast %126 : vector<1x8xf32> to vector<1x8x1xf32>
    %128 = vector.broadcast %127 : vector<1x8x1xf32> to vector<1x8x8xf32>
    %129 = arith.subf %125, %128 : vector<1x8x8xf32>
    %130 = math.exp %129 : vector<1x8x8xf32>
    %cst_86 = arith.constant dense<0.000000e+00> : vector<1x8xf32>
    %131 = vector.multi_reduction <add>, %130, %cst_86 [2] : vector<1x8x8xf32> to vector<1x8xf32>
    %132 = vector.shape_cast %131 : vector<1x8xf32> to vector<1x8x1xf32>
    %133 = tpu.reciprocal %132 {approx = true} : vector<1x8x1xf32> -> vector<1x8x1xf32>
    %134 = vector.broadcast %133 : vector<1x8x1xf32> to vector<1x8x8xf32>
    %135 = arith.mulf %130, %134 : vector<1x8x8xf32>
    "tpu.trace_start"() <{level = 10 : i32, message = "bqk,bkd->bqd"}> : () -> ()
    %cst_87 = arith.constant dense<0.000000e+00> : vector<1x8x128xf32>
    %136 = tpu.matmul %135, %122, %cst_87 {dimension_numbers = #tpu.dot_dimension_numbers<[2], [1], [1], [2], [0, 0, 0, 1, 1, 2], [0], [0]>} : vector<1x8x8xf32>, vector<1x8x128xf32>, vector<1x8x128xf32> -> vector<1x8x128xf32>
    "tpu.trace_stop"() : () -> ()
    %137 = vector.shape_cast %136 : vector<1x8x128xf32> to vector<8x128xf32>
    %c2_88 = arith.constant 2 : index
    %c0_89 = arith.constant 0 : index
    %c0_90 = arith.constant 0 : index
    %138 = vector.load %arg9[%c2_88, %c0_89, %c0_90] : memref<4x128x128xf32, #tpu.memory_space<vmem>>, vector<1x128x128xf32>
    %139 = vector.shape_cast %138 : vector<1x128x128xf32> to vector<128x128xf32>
    %cst_91 = arith.constant dense<0.000000e+00> : vector<8x128xf32>
    %140 = tpu.matmul %137, %139, %cst_91 {dimension_numbers = #tpu.dot_dimension_numbers<[1], [0], [0], [1], [0, 0, 1, 1], [], []>} : vector<8x128xf32>, vector<128x128xf32>, vector<8x128xf32> -> vector<8x128xf32>
    %141 = arith.addf %96, %140 : vector<8x128xf32>
    %c3 = arith.constant 3 : index
    %c0_92 = arith.constant 0 : index
    %c0_93 = arith.constant 0 : index
    %142 = vector.load %arg3[%c3, %c0_92, %c0_93] : memref<4x128x128xf32, #tpu.memory_space<vmem>>, vector<1x128x128xf32>
    %143 = vector.shape_cast %142 : vector<1x128x128xf32> to vector<128x128xf32>
    %cst_94 = arith.constant dense<0.000000e+00> : vector<8x128xf32>
    %144 = tpu.matmul %1, %143, %cst_94 {dimension_numbers = #tpu.dot_dimension_numbers<[1], [0], [0], [1], [0, 0, 1, 1], [], []>} : vector<8x128xf32>, vector<128x128xf32>, vector<8x128xf32> -> vector<8x128xf32>
    %c3_95 = arith.constant 3 : index
    %c0_96 = arith.constant 0 : index
    %c0_97 = arith.constant 0 : index
    %145 = vector.load %arg4[%c3_95, %c0_96, %c0_97] : memref<4x1x128xf32, #tpu.memory_space<vmem>>, vector<1x1x128xf32>
    %146 = vector.shape_cast %145 : vector<1x1x128xf32> to vector<1x128xf32>
    %147 = vector.broadcast %146 : vector<1x128xf32> to vector<8x128xf32>
    %148 = arith.addf %144, %147 : vector<8x128xf32>
    %cst_98 = arith.constant 0.353553385 : f32
    %149 = vector.broadcast %cst_98 : f32 to vector<8x128xf32>
    %150 = arith.mulf %148, %149 : vector<8x128xf32>
    %c3_99 = arith.constant 3 : index
    %c0_100 = arith.constant 0 : index
    %c0_101 = arith.constant 0 : index
    %151 = vector.load %arg5[%c3_99, %c0_100, %c0_101] : memref<4x128x128xf32, #tpu.memory_space<vmem>>, vector<1x128x128xf32>
    %152 = vector.shape_cast %151 : vector<1x128x128xf32> to vector<128x128xf32>
    %cst_102 = arith.constant dense<0.000000e+00> : vector<8x128xf32>
    %153 = tpu.matmul %1, %152, %cst_102 {dimension_numbers = #tpu.dot_dimension_numbers<[1], [0], [0], [1], [0, 0, 1, 1], [], []>} : vector<8x128xf32>, vector<128x128xf32>, vector<8x128xf32> -> vector<8x128xf32>
    %c3_103 = arith.constant 3 : index
    %c0_104 = arith.constant 0 : index
    %c0_105 = arith.constant 0 : index
    %154 = vector.load %arg6[%c3_103, %c0_104, %c0_105] : memref<4x1x128xf32, #tpu.memory_space<vmem>>, vector<1x1x128xf32>
    %155 = vector.shape_cast %154 : vector<1x1x128xf32> to vector<1x128xf32>
    %156 = vector.broadcast %155 : vector<1x128xf32> to vector<8x128xf32>
    %157 = arith.addf %153, %156 : vector<8x128xf32>
    %c3_106 = arith.constant 3 : index
    %c0_107 = arith.constant 0 : index
    %c0_108 = arith.constant 0 : index
    %158 = vector.load %arg7[%c3_106, %c0_107, %c0_108] : memref<4x128x128xf32, #tpu.memory_space<vmem>>, vector<1x128x128xf32>
    %159 = vector.shape_cast %158 : vector<1x128x128xf32> to vector<128x128xf32>
    %cst_109 = arith.constant dense<0.000000e+00> : vector<8x128xf32>
    %160 = tpu.matmul %1, %159, %cst_109 {dimension_numbers = #tpu.dot_dimension_numbers<[1], [0], [0], [1], [0, 0, 1, 1], [], []>} : vector<8x128xf32>, vector<128x128xf32>, vector<8x128xf32> -> vector<8x128xf32>
    %c3_110 = arith.constant 3 : index
    %c0_111 = arith.constant 0 : index
    %c0_112 = arith.constant 0 : index
    %161 = vector.load %arg8[%c3_110, %c0_111, %c0_112] : memref<4x1x128xf32, #tpu.memory_space<vmem>>, vector<1x1x128xf32>
    %162 = vector.shape_cast %161 : vector<1x1x128xf32> to vector<1x128xf32>
    %163 = vector.broadcast %162 : vector<1x128xf32> to vector<8x128xf32>
    %164 = arith.addf %160, %163 : vector<8x128xf32>
    %165 = vector.shape_cast %150 : vector<8x128xf32> to vector<1x8x128xf32>
    %166 = vector.shape_cast %157 : vector<8x128xf32> to vector<1x8x128xf32>
    %167 = vector.shape_cast %164 : vector<8x128xf32> to vector<1x8x128xf32>
    "tpu.trace_start"() <{level = 10 : i32, message = "bqd,bkd->bqk"}> : () -> ()
    %cst_113 = arith.constant dense<0.000000e+00> : vector<1x8x8xf32>
    %168 = tpu.matmul %165, %166, %cst_113 {dimension_numbers = #tpu.dot_dimension_numbers<[2], [2], [1], [1], [0, 0, 0, 1, 1, 1], [0], [0]>} : vector<1x8x128xf32>, vector<1x8x128xf32>, vector<1x8x8xf32> -> vector<1x8x8xf32>
    "tpu.trace_stop"() : () -> ()
    %169 = vector.shape_cast %2 : vector<8x8xf32> to vector<1x8x8xf32>
    %170 = arith.addf %168, %169 : vector<1x8x8xf32>
    %cst_114 = arith.constant dense<0xFF800000> : vector<1x8xf32>
    %171 = vector.multi_reduction <maximumf>, %170, %cst_114 [2] : vector<1x8x8xf32> to vector<1x8xf32>
    %172 = vector.shape_cast %171 : vector<1x8xf32> to vector<1x8x1xf32>
    %173 = vector.broadcast %172 : vector<1x8x1xf32> to vector<1x8x8xf32>
    %174 = arith.subf %170, %173 : vector<1x8x8xf32>
    %175 = math.exp %174 : vector<1x8x8xf32>
    %cst_115 = arith.constant dense<0.000000e+00> : vector<1x8xf32>
    %176 = vector.multi_reduction <add>, %175, %cst_115 [2] : vector<1x8x8xf32> to vector<1x8xf32>
    %177 = vector.shape_cast %176 : vector<1x8xf32> to vector<1x8x1xf32>
    %178 = tpu.reciprocal %177 {approx = true} : vector<1x8x1xf32> -> vector<1x8x1xf32>
    %179 = vector.broadcast %178 : vector<1x8x1xf32> to vector<1x8x8xf32>
    %180 = arith.mulf %175, %179 : vector<1x8x8xf32>
    "tpu.trace_start"() <{level = 10 : i32, message = "bqk,bkd->bqd"}> : () -> ()
    %cst_116 = arith.constant dense<0.000000e+00> : vector<1x8x128xf32>
    %181 = tpu.matmul %180, %167, %cst_116 {dimension_numbers = #tpu.dot_dimension_numbers<[2], [1], [1], [2], [0, 0, 0, 1, 1, 2], [0], [0]>} : vector<1x8x8xf32>, vector<1x8x128xf32>, vector<1x8x128xf32> -> vector<1x8x128xf32>
    "tpu.trace_stop"() : () -> ()
    %182 = vector.shape_cast %181 : vector<1x8x128xf32> to vector<8x128xf32>
    %c3_117 = arith.constant 3 : index
    %c0_118 = arith.constant 0 : index
    %c0_119 = arith.constant 0 : index
    %183 = vector.load %arg9[%c3_117, %c0_118, %c0_119] : memref<4x128x128xf32, #tpu.memory_space<vmem>>, vector<1x128x128xf32>
    %184 = vector.shape_cast %183 : vector<1x128x128xf32> to vector<128x128xf32>
    %cst_120 = arith.constant dense<0.000000e+00> : vector<8x128xf32>
    %185 = tpu.matmul %182, %184, %cst_120 {dimension_numbers = #tpu.dot_dimension_numbers<[1], [0], [0], [1], [0, 0, 1, 1], [], []>} : vector<8x128xf32>, vector<128x128xf32>, vector<8x128xf32> -> vector<8x128xf32>
    %186 = arith.addf %141, %185 : vector<8x128xf32>
    %c0_121 = arith.constant 0 : index
    %c0_122 = arith.constant 0 : index
    %187 = vector.load %arg10[%c0_121, %c0_122] : memref<1x128xf32, #tpu.memory_space<vmem>>, vector<1x128xf32>
    %188 = vector.broadcast %187 : vector<1x128xf32> to vector<8x128xf32>
    %189 = arith.addf %186, %188 : vector<8x128xf32>
    %190 = arith.addf %1, %189 : vector<8x128xf32>
    %c0_123 = arith.constant 0 : index
    %c0_124 = arith.constant 0 : index
    %191 = vector.load %arg11[%c0_123, %c0_124] : memref<1x128xf32, #tpu.memory_space<vmem>>, vector<1x128xf32>
    %c0_125 = arith.constant 0 : index
    %c0_126 = arith.constant 0 : index
    %192 = vector.load %arg12[%c0_125, %c0_126] : memref<1x128xf32, #tpu.memory_space<vmem>>, vector<1x128xf32>
    %cst_127 = arith.constant 0.000000e+00 : f32
    %193 = vector.shape_cast %5 : vector<1x128xi1> to vector<1x128xi1>
    %194 = vector.broadcast %193 : vector<1x128xi1> to vector<8x128xi1>
    %195 = vector.broadcast %cst_127 : f32 to vector<8x128xf32>
    %196 = arith.select %194, %190, %195 : vector<8x128xi1>, vector<8x128xf32>
    %cst_128 = arith.constant dense<0.000000e+00> : vector<8xf32>
    %197 = vector.multi_reduction <add>, %196, %cst_128 [1] : vector<8x128xf32> to vector<8xf32>
    %198 = vector.shape_cast %197 : vector<8xf32> to vector<8x1xf32>
    %cst_129 = arith.constant 3.125000e-02 : f32
    %199 = vector.broadcast %cst_129 : f32 to vector<8x1xf32>
    %200 = arith.mulf %198, %199 : vector<8x1xf32>
    %201 = vector.broadcast %200 : vector<8x1xf32> to vector<8x128xf32>
    %202 = arith.subf %190, %201 : vector<8x128xf32>
    %cst_130 = arith.constant 0.000000e+00 : f32
    %203 = vector.shape_cast %5 : vector<1x128xi1> to vector<1x128xi1>
    %204 = vector.broadcast %203 : vector<1x128xi1> to vector<8x128xi1>
    %205 = vector.broadcast %cst_130 : f32 to vector<8x128xf32>
    %206 = arith.select %204, %202, %205 : vector<8x128xi1>, vector<8x128xf32>
    %207 = arith.mulf %206, %206 : vector<8x128xf32>
    %cst_131 = arith.constant dense<0.000000e+00> : vector<8xf32>
    %208 = vector.multi_reduction <add>, %207, %cst_131 [1] : vector<8x128xf32> to vector<8xf32>
    %209 = vector.shape_cast %208 : vector<8xf32> to vector<8x1xf32>
    %cst_132 = arith.constant 3.125000e-02 : f32
    %210 = vector.broadcast %cst_132 : f32 to vector<8x1xf32>
    %211 = arith.mulf %209, %210 : vector<8x1xf32>
    %212 = vector.broadcast %200 : vector<8x1xf32> to vector<8x128xf32>
    %213 = arith.subf %190, %212 : vector<8x128xf32>
    %cst_133 = arith.constant 9.99999974E-6 : f32
    %214 = vector.broadcast %cst_133 : f32 to vector<8x1xf32>
    %215 = arith.addf %211, %214 : vector<8x1xf32>
    %216 = math.rsqrt %215 : vector<8x1xf32>
    %217 = vector.broadcast %216 : vector<8x1xf32> to vector<8x128xf32>
    %218 = arith.mulf %213, %217 : vector<8x128xf32>
    %219 = vector.broadcast %191 : vector<1x128xf32> to vector<8x128xf32>
    %220 = arith.mulf %218, %219 : vector<8x128xf32>
    %221 = vector.broadcast %192 : vector<1x128xf32> to vector<8x128xf32>
    %222 = arith.addf %220, %221 : vector<8x128xf32>
    %c0_134 = arith.constant 0 : index
    %c0_135 = arith.constant 0 : index
    %223 = vector.load %arg13[%c0_134, %c0_135] : memref<128x128xf32, #tpu.memory_space<vmem>>, vector<128x128xf32>
    %cst_136 = arith.constant dense<0.000000e+00> : vector<8x128xf32>
    %224 = tpu.matmul %222, %223, %cst_136 {dimension_numbers = #tpu.dot_dimension_numbers<[1], [0], [0], [1], [0, 0, 1, 1], [], []>} : vector<8x128xf32>, vector<128x128xf32>, vector<8x128xf32> -> vector<8x128xf32>
    %c0_137 = arith.constant 0 : index
    %c0_138 = arith.constant 0 : index
    %225 = vector.load %arg14[%c0_137, %c0_138] : memref<1x128xf32, #tpu.memory_space<vmem>>, vector<1x128xf32>
    %226 = vector.broadcast %225 : vector<1x128xf32> to vector<8x128xf32>
    %227 = arith.addf %224, %226 : vector<8x128xf32>
    %cst_139 = arith.constant 5.000000e-01 : f32
    %228 = vector.broadcast %cst_139 : f32 to vector<8x128xf32>
    %229 = arith.mulf %228, %227 : vector<8x128xf32>
    %cst_140 = arith.constant 0.707106769 : f32
    %230 = vector.broadcast %cst_140 : f32 to vector<8x128xf32>
    %231 = arith.mulf %227, %230 : vector<8x128xf32>
    %232 = math.erf %231 : vector<8x128xf32>
    %cst_141 = arith.constant 1.000000e+00 : f32
    %233 = vector.broadcast %cst_141 : f32 to vector<8x128xf32>
    %234 = arith.addf %233, %232 : vector<8x128xf32>
    %235 = arith.mulf %229, %234 : vector<8x128xf32>
    %c0_142 = arith.constant 0 : index
    %c0_143 = arith.constant 0 : index
    %236 = vector.load %arg15[%c0_142, %c0_143] : memref<128x128xf32, #tpu.memory_space<vmem>>, vector<128x128xf32>
    %cst_144 = arith.constant dense<0.000000e+00> : vector<8x128xf32>
    %237 = tpu.matmul %235, %236, %cst_144 {dimension_numbers = #tpu.dot_dimension_numbers<[1], [0], [0], [1], [0, 0, 1, 1], [], []>} : vector<8x128xf32>, vector<128x128xf32>, vector<8x128xf32> -> vector<8x128xf32>
    %c0_145 = arith.constant 0 : index
    %c0_146 = arith.constant 0 : index
    %238 = vector.load %arg16[%c0_145, %c0_146] : memref<1x128xf32, #tpu.memory_space<vmem>>, vector<1x128xf32>
    %239 = vector.broadcast %238 : vector<1x128xf32> to vector<8x128xf32>
    %240 = arith.addf %237, %239 : vector<8x128xf32>
    %241 = arith.addf %222, %240 : vector<8x128xf32>
    %c0_147 = arith.constant 0 : index
    %c0_148 = arith.constant 0 : index
    %242 = vector.load %arg17[%c0_147, %c0_148] : memref<1x128xf32, #tpu.memory_space<vmem>>, vector<1x128xf32>
    %c0_149 = arith.constant 0 : index
    %c0_150 = arith.constant 0 : index
    %243 = vector.load %arg18[%c0_149, %c0_150] : memref<1x128xf32, #tpu.memory_space<vmem>>, vector<1x128xf32>
    %cst_151 = arith.constant 0.000000e+00 : f32
    %244 = vector.shape_cast %5 : vector<1x128xi1> to vector<1x128xi1>
    %245 = vector.broadcast %244 : vector<1x128xi1> to vector<8x128xi1>
    %246 = vector.broadcast %cst_151 : f32 to vector<8x128xf32>
    %247 = arith.select %245, %241, %246 : vector<8x128xi1>, vector<8x128xf32>
    %cst_152 = arith.constant dense<0.000000e+00> : vector<8xf32>
    %248 = vector.multi_reduction <add>, %247, %cst_152 [1] : vector<8x128xf32> to vector<8xf32>
    %249 = vector.shape_cast %248 : vector<8xf32> to vector<8x1xf32>
    %cst_153 = arith.constant 3.125000e-02 : f32
    %250 = vector.broadcast %cst_153 : f32 to vector<8x1xf32>
    %251 = arith.mulf %249, %250 : vector<8x1xf32>
    %252 = vector.broadcast %251 : vector<8x1xf32> to vector<8x128xf32>
    %253 = arith.subf %241, %252 : vector<8x128xf32>
    %cst_154 = arith.constant 0.000000e+00 : f32
    %254 = vector.shape_cast %5 : vector<1x128xi1> to vector<1x128xi1>
    %255 = vector.broadcast %254 : vector<1x128xi1> to vector<8x128xi1>
    %256 = vector.broadcast %cst_154 : f32 to vector<8x128xf32>
    %257 = arith.select %255, %253, %256 : vector<8x128xi1>, vector<8x128xf32>
    %258 = arith.mulf %257, %257 : vector<8x128xf32>
    %cst_155 = arith.constant dense<0.000000e+00> : vector<8xf32>
    %259 = vector.multi_reduction <add>, %258, %cst_155 [1] : vector<8x128xf32> to vector<8xf32>
    %260 = vector.shape_cast %259 : vector<8xf32> to vector<8x1xf32>
    %cst_156 = arith.constant 3.125000e-02 : f32
    %261 = vector.broadcast %cst_156 : f32 to vector<8x1xf32>
    %262 = arith.mulf %260, %261 : vector<8x1xf32>
    %263 = vector.broadcast %251 : vector<8x1xf32> to vector<8x128xf32>
    %264 = arith.subf %241, %263 : vector<8x128xf32>
    %cst_157 = arith.constant 9.99999974E-6 : f32
    %265 = vector.broadcast %cst_157 : f32 to vector<8x1xf32>
    %266 = arith.addf %262, %265 : vector<8x1xf32>
    %267 = math.rsqrt %266 : vector<8x1xf32>
    %268 = vector.broadcast %267 : vector<8x1xf32> to vector<8x128xf32>
    %269 = arith.mulf %264, %268 : vector<8x128xf32>
    %270 = vector.broadcast %242 : vector<1x128xf32> to vector<8x128xf32>
    %271 = arith.mulf %269, %270 : vector<8x128xf32>
    %272 = vector.broadcast %243 : vector<1x128xf32> to vector<8x128xf32>
    %273 = arith.addf %271, %272 : vector<8x128xf32>
    %274 = vector.shape_cast %273 : vector<8x128xf32> to vector<1x8x128xf32>
    %c0_158 = arith.constant 0 : index
    %c0_159 = arith.constant 0 : index
    %c0_160 = arith.constant 0 : index
    %275 = vector.load %arg19[%c0_158, %c0_159, %c0_160] : memref<1x8x128xf32, #tpu.memory_space<vmem>>, vector<1x8x128xf32>
    tpu.vector_store %arg19[%c0_158, %c0_159, %c0_160], %274 {strides = array<i32>} : memref<1x8x128xf32, #tpu.memory_space<vmem>>, vector<1x8x128xf32>,
    return
  }
  func.func @transform_0(%arg0: i32) -> (i32, i32, i32) {
    %c0_i32 = arith.constant 0 : i32
    %c0_i32_0 = arith.constant 0 : i32
    %c0_i32_1 = arith.constant 0 : i32
    return %arg0, %c0_i32, %c0_i32_0 : i32, i32, i32
  }
  func.func @transform_1(%arg0: i32) -> (i32, i32) {
    %c0_i32 = arith.constant 0 : i32
    %c0_i32_0 = arith.constant 0 : i32
    %c0_i32_1 = arith.constant 0 : i32
    return %c0_i32, %c0_i32_0 : i32, i32
  }
  func.func @transform_2(%arg0: i32) -> (i32, i32, i32) {
    %c0_i32 = arith.constant 0 : i32
    %c0_i32_0 = arith.constant 0 : i32
    %c0_i32_1 = arith.constant 0 : i32
    %c0_i32_2 = arith.constant 0 : i32
    return %c0_i32, %c0_i32_0, %c0_i32_1 : i32, i32, i32
  }
  func.func @transform_3(%arg0: i32) -> (i32, i32, i32) {
    %c0_i32 = arith.constant 0 : i32
    %c0_i32_0 = arith.constant 0 : i32
    %c0_i32_1 = arith.constant 0 : i32
    %c0_i32_2 = arith.constant 0 : i32
    return %c0_i32, %c0_i32_0, %c0_i32_1 : i32, i32, i32
  }
  func.func @transform_4(%arg0: i32) -> (i32, i32, i32) {
    %c0_i32 = arith.constant 0 : i32
    %c0_i32_0 = arith.constant 0 : i32
    %c0_i32_1 = arith.constant 0 : i32
    %c0_i32_2 = arith.constant 0 : i32
    return %c0_i32, %c0_i32_0, %c0_i32_1 : i32, i32, i32
  }
  func.func @transform_5(%arg0: i32) -> (i32, i32, i32) {
    %c0_i32 = arith.constant 0 : i32
    %c0_i32_0 = arith.constant 0 : i32
    %c0_i32_1 = arith.constant 0 : i32
    %c0_i32_2 = arith.constant 0 : i32
    return %c0_i32, %c0_i32_0, %c0_i32_1 : i32, i32, i32
  }
  func.func @transform_6(%arg0: i32) -> (i32, i32, i32) {
    %c0_i32 = arith.constant 0 : i32
    %c0_i32_0 = arith.constant 0 : i32
    %c0_i32_1 = arith.constant 0 : i32
    %c0_i32_2 = arith.constant 0 : i32
    return %c0_i32, %c0_i32_0, %c0_i32_1 : i32, i32, i32
  }
  func.func @transform_7(%arg0: i32) -> (i32, i32, i32) {
    %c0_i32 = arith.constant 0 : i32
    %c0_i32_0 = arith.constant 0 : i32
    %c0_i32_1 = arith.constant 0 : i32
    %c0_i32_2 = arith.constant 0 : i32
    return %c0_i32, %c0_i32_0, %c0_i32_1 : i32, i32, i32
  }
  func.func @transform_8(%arg0: i32) -> (i32, i32, i32) {
    %c0_i32 = arith.constant 0 : i32
    %c0_i32_0 = arith.constant 0 : i32
    %c0_i32_1 = arith.constant 0 : i32
    %c0_i32_2 = arith.constant 0 : i32
    return %c0_i32, %c0_i32_0, %c0_i32_1 : i32, i32, i32
  }
  func.func @transform_9(%arg0: i32) -> (i32, i32) {
    %c0_i32 = arith.constant 0 : i32
    %c0_i32_0 = arith.constant 0 : i32
    %c0_i32_1 = arith.constant 0 : i32
    return %c0_i32, %c0_i32_0 : i32, i32
  }
  func.func @transform_10(%arg0: i32) -> (i32, i32) {
    %c0_i32 = arith.constant 0 : i32
    %c0_i32_0 = arith.constant 0 : i32
    %c0_i32_1 = arith.constant 0 : i32
    return %c0_i32, %c0_i32_0 : i32, i32
  }
  func.func @transform_11(%arg0: i32) -> (i32, i32) {
    %c0_i32 = arith.constant 0 : i32
    %c0_i32_0 = arith.constant 0 : i32
    %c0_i32_1 = arith.constant 0 : i32
    return %c0_i32, %c0_i32_0 : i32, i32
  }
  func.func @transform_12(%arg0: i32) -> (i32, i32) {
    %c0_i32 = arith.constant 0 : i32
    %c0_i32_0 = arith.constant 0 : i32
    %c0_i32_1 = arith.constant 0 : i32
    return %c0_i32, %c0_i32_0 : i32, i32
  }
  func.func @transform_13(%arg0: i32) -> (i32, i32) {
    %c0_i32 = arith.constant 0 : i32
    %c0_i32_0 = arith.constant 0 : i32
    %c0_i32_1 = arith.constant 0 : i32
    return %c0_i32, %c0_i32_0 : i32, i32
  }
  func.func @transform_14(%arg0: i32) -> (i32, i32) {
    %c0_i32 = arith.constant 0 : i32
    %c0_i32_0 = arith.constant 0 : i32
    %c0_i32_1 = arith.constant 0 : i32
    return %c0_i32, %c0_i32_0 : i32, i32
  }
  func.func @transform_15(%arg0: i32) -> (i32, i32) {
    %c0_i32 = arith.constant 0 : i32
    %c0_i32_0 = arith.constant 0 : i32
    %c0_i32_1 = arith.constant 0 : i32
    return %c0_i32, %c0_i32_0 : i32, i32
  }
  func.func @transform_16(%arg0: i32) -> (i32, i32) {
    %c0_i32 = arith.constant 0 : i32
    %c0_i32_0 = arith.constant 0 : i32
    %c0_i32_1 = arith.constant 0 : i32
    return %c0_i32, %c0_i32_0 : i32, i32
  }
  func.func @transform_17(%arg0: i32) -> (i32, i32) {
    %c0_i32 = arith.constant 0 : i32
    %c0_i32_0 = arith.constant 0 : i32
    %c0_i32_1 = arith.constant 0 : i32
    return %c0_i32, %c0_i32_0 : i32, i32
  }
  func.func @transform_18(%arg0: i32) -> (i32, i32, i32) {
    %c0_i32 = arith.constant 0 : i32
    %c0_i32_0 = arith.constant 0 : i32
    %c0_i32_1 = arith.constant 0 : i32
    return %arg0, %c0_i32, %c0_i32_0 : i32, i32, i32
  }
}

module attributes {stable_mosaic.version = 11 : i64} {
  func.func @transformer_block_kernel(%arg0: i32, %arg1: memref<1x8x128xf32, #tpu.memory_space<vmem>>, %arg2: memref<8x8xf32, #tpu.memory_space<vmem>>, %arg3: memref<4x128x128xf32, #tpu.memory_space<vmem>>, %arg4: memref<4x1x128xf32, #tpu.memory_space<vmem>>, %arg5: memref<4x128x128xf32, #tpu.memory_space<vmem>>, %arg6: memref<4x1x128xf32, #tpu.memory_space<vmem>>, %arg7: memref<4x128x128xf32, #tpu.memory_space<vmem>>, %arg8: memref<4x1x128xf32, #tpu.memory_space<vmem>>, %arg9: memref<4x128x128xf32, #tpu.memory_space<vmem>>, %arg10: memref<1x128xf32, #tpu.memory_space<vmem>>, %arg11: memref<1x128xf32, #tpu.memory_space<vmem>>, %arg12: memref<1x128xf32, #tpu.memory_space<vmem>>, %arg13: memref<128x128xf32, #tpu.memory_space<vmem>>, %arg14: memref<1x128xf32, #tpu.memory_space<vmem>>, %arg15: memref<128x128xf32, #tpu.memory_space<vmem>>, %arg16: memref<1x128xf32, #tpu.memory_space<vmem>>, %arg17: memref<1x128xf32, #tpu.memory_space<vmem>>, %arg18: memref<1x128xf32, #tpu.memory_space<vmem>>, %arg19: memref<1x8x128xf32, #tpu.memory_space<vmem>>) attributes {dimension_semantics = [#tpu.dimension_semantics<parallel>], iteration_bounds = array<i64: 2>, scalar_prefetch = 0 : i64, scratch_operands = 0 : i64, tpu.core_type = #tpu.core_type<tc>, window_params = [{transform_indices = @transform_0, window_bounds = array<i64: 1, 8, 128>}, {pipeline_mode = #tpu.pipeline_mode<synchronous>, transform_indices = @transform_1, window_bounds = array<i64: 8, 8>}, {pipeline_mode = #tpu.pipeline_mode<synchronous>, transform_indices = @transform_2, window_bounds = array<i64: 4, 128, 128>}, {pipeline_mode = #tpu.pipeline_mode<synchronous>, transform_indices = @transform_3, window_bounds = array<i64: 4, 1, 128>}, {pipeline_mode = #tpu.pipeline_mode<synchronous>, transform_indices = @transform_4, window_bounds = array<i64: 4, 128, 128>}, {pipeline_mode = #tpu.pipeline_mode<synchronous>, transform_indices = @transform_5, window_bounds = array<i64: 4, 1, 128>}, {pipeline_mode = #tpu.pipeline_mode<synchronous>, transform_indices = @transform_6, window_bounds = array<i64: 4, 128, 128>}, {pipeline_mode = #tpu.pipeline_mode<synchronous>, transform_indices = @transform_7, window_bounds = array<i64: 4, 1, 128>}, {pipeline_mode = #tpu.pipeline_mode<synchronous>, transform_indices = @transform_8, window_bounds = array<i64: 4, 128, 128>}, {pipeline_mode = #tpu.pipeline_mode<synchronous>, transform_indices = @transform_9, window_bounds = array<i64: 1, 128>}, {pipeline_mode = #tpu.pipeline_mode<synchronous>, transform_indices = @transform_10, window_bounds = array<i64: 1, 128>}, {pipeline_mode = #tpu.pipeline_mode<synchronous>, transform_indices = @transform_11, window_bounds = array<i64: 1, 128>}, {pipeline_mode = #tpu.pipeline_mode<synchronous>, transform_indices = @transform_12, window_bounds = array<i64: 128, 128>}, {pipeline_mode = #tpu.pipeline_mode<synchronous>, transform_indices = @transform_13, window_bounds = array<i64: 1, 128>}, {pipeline_mode = #tpu.pipeline_mode<synchronous>, transform_indices = @transform_14, window_bounds = array<i64: 128, 128>}, {pipeline_mode = #tpu.pipeline_mode<synchronous>, transform_indices = @transform_15, window_bounds = array<i64: 1, 128>}, {pipeline_mode = #tpu.pipeline_mode<synchronous>, transform_indices = @transform_16, window_bounds = array<i64: 1, 128>}, {pipeline_mode = #tpu.pipeline_mode<synchronous>, transform_indices = @transform_17, window_bounds = array<i64: 1, 128>}, {transform_indices = @transform_18, window_bounds = array<i64: 1, 8, 128>}]} {
    %c0 = arith.constant 0 : index
    %c0_0 = arith.constant 0 : index
    %c0_1 = arith.constant 0 : index
    %0 = vector.load %arg1[%c0, %c0_0, %c0_1] : memref<1x8x128xf32, #tpu.memory_space<vmem>>, vector<1x8x128xf32>
    %1 = vector.shape_cast %0 : vector<1x8x128xf32> to vector<8x128xf32>
    %c0_2 = arith.constant 0 : index
    %c0_3 = arith.constant 0 : index
    %2 = vector.load %arg2[%c0_2, %c0_3] : memref<8x8xf32, #tpu.memory_space<vmem>>, vector<8x8xf32>
    %3 = tpu.iota {dimensions = array<i32: 1>} : vector<1x128xi32>
    %c32_i32 = arith.constant 32 : i32
    %4 = vector.broadcast %c32_i32 : i32 to vector<1x128xi32>
    %5 = arith.cmpi slt, %3, %4 : vector<1x128xi32>
    %cst = arith.constant 0.000000e+00 : f32
    %6 = vector.broadcast %cst : f32 to vector<8x128xf32>
    %c0_4 = arith.constant 0 : index
    %c0_5 = arith.constant 0 : index
    %c0_6 = arith.constant 0 : index
    %7 = vector.load %arg3[%c0_4, %c0_5, %c0_6] : memref<4x128x128xf32, #tpu.memory_space<vmem>>, vector<1x128x128xf32>
    %8 = vector.shape_cast %7 : vector<1x128x128xf32> to vector<128x128xf32>
    %cst_7 = arith.constant dense<0.000000e+00> : vector<8x128xf32>
    %9 = tpu.matmul %1, %8, %cst_7 {dimension_numbers = #tpu.dot_dimension_numbers<[1], [0], [0], [1], [0, 0, 1, 1], [], []>} : vector<8x128xf32>, vector<128x128xf32>, vector<8x128xf32> -> vector<8x128xf32>
    %c0_8 = arith.constant 0 : index
    %c0_9 = arith.constant 0 : index
    %c0_10 = arith.constant 0 : index
    %10 = vector.load %arg4[%c0_8, %c0_9, %c0_10] : memref<4x1x128xf32, #tpu.memory_space<vmem>>, vector<1x1x128xf32>
    %11 = vector.shape_cast %10 : vector<1x1x128xf32> to vector<1x128xf32>
    %12 = vector.broadcast %11 : vector<1x128xf32> to vector<8x128xf32>
    %13 = arith.addf %9, %12 : vector<8x128xf32>
    %cst_11 = arith.constant 0.353553385 : f32
    %14 = vector.broadcast %cst_11 : f32 to vector<8x128xf32>
    %15 = arith.mulf %13, %14 : vector<8x128xf32>
    %c0_12 = arith.constant 0 : index
    %c0_13 = arith.constant 0 : index
    %c0_14 = arith.constant 0 : index
    %16 = vector.load %arg5[%c0_12, %c0_13, %c0_14] : memref<4x128x128xf32, #tpu.memory_space<vmem>>, vector<1x128x128xf32>
    %17 = vector.shape_cast %16 : vector<1x128x128xf32> to vector<128x128xf32>
    %cst_15 = arith.constant dense<0.000000e+00> : vector<8x128xf32>
    %18 = tpu.matmul %1, %17, %cst_15 {dimension_numbers = #tpu.dot_dimension_numbers<[1], [0], [0], [1], [0, 0, 1, 1], [], []>} : vector<8x128xf32>, vector<128x128xf32>, vector<8x128xf32> -> vector<8x128xf32>
    %c0_16 = arith.constant 0 : index
    %c0_17 = arith.constant 0 : index
    %c0_18 = arith.constant 0 : index
    %19 = vector.load %arg6[%c0_16, %c0_17, %c0_18] : memref<4x1x128xf32, #tpu.memory_space<vmem>>, vector<1x1x128xf32>
    %20 = vector.shape_cast %19 : vector<1x1x128xf32> to vector<1x128xf32>
    %21 = vector.broadcast %20 : vector<1x128xf32> to vector<8x128xf32>
    %22 = arith.addf %18, %21 : vector<8x128xf32>
    %c0_19 = arith.constant 0 : index
    %c0_20 = arith.constant 0 : index
    %c0_21 = arith.constant 0 : index
    %23 = vector.load %arg7[%c0_19, %c0_20, %c0_21] : memref<4x128x128xf32, #tpu.memory_space<vmem>>, vector<1x128x128xf32>
    %24 = vector.shape_cast %23 : vector<1x128x128xf32> to vector<128x128xf32>
    %cst_22 = arith.constant dense<0.000000e+00> : vector<8x128xf32>
    %25 = tpu.matmul %1, %24, %cst_22 {dimension_numbers = #tpu.dot_dimension_numbers<[1], [0], [0], [1], [0, 0, 1, 1], [], []>} : vector<8x128xf32>, vector<128x128xf32>, vector<8x128xf32> -> vector<8x128xf32>
    %c0_23 = arith.constant 0 : index
    %c0_24 = arith.constant 0 : index
    %c0_25 = arith.constant 0 : index
    %26 = vector.load %arg8[%c0_23, %c0_24, %c0_25] : memref<4x1x128xf32, #tpu.memory_space<vmem>>, vector<1x1x128xf32>
    %27 = vector.shape_cast %26 : vector<1x1x128xf32> to vector<1x128xf32>
    %28 = vector.broadcast %27 : vector<1x128xf32> to vector<8x128xf32>
    %29 = arith.addf %25, %28 : vector<8x128xf32>
    %30 = vector.shape_cast %15 : vector<8x128xf32> to vector<1x8x128xf32>
    %31 = vector.shape_cast %22 : vector<8x128xf32> to vector<1x8x128xf32>
    %32 = vector.shape_cast %29 : vector<8x128xf32> to vector<1x8x128xf32>
    "tpu.trace_start"() <{level = 10 : i32, message = "bqd,bkd->bqk"}> : () -> ()
    %cst_26 = arith.constant dense<0.000000e+00> : vector<1x8x8xf32>
    %33 = tpu.matmul %30, %31, %cst_26 {dimension_numbers = #tpu.dot_dimension_numbers<[2], [2], [1], [1], [0, 0, 0, 1, 1, 1], [0], [0]>} : vector<1x8x128xf32>, vector<1x8x128xf32>, vector<1x8x8xf32> -> vector<1x8x8xf32>
    "tpu.trace_stop"() : () -> ()
    %34 = vector.shape_cast %2 : vector<8x8xf32> to vector<1x8x8xf32>
    %35 = arith.addf %33, %34 : vector<1x8x8xf32>
    %cst_27 = arith.constant dense<0xFF800000> : vector<1x8xf32>
    %36 = vector.multi_reduction <maximumf>, %35, %cst_27 [2] : vector<1x8x8xf32> to vector<1x8xf32>
    %37 = vector.shape_cast %36 : vector<1x8xf32> to vector<1x8x1xf32>
    %38 = vector.broadcast %37 : vector<1x8x1xf32> to vector<1x8x8xf32>
    %39 = arith.subf %35, %38 : vector<1x8x8xf32>
    %40 = math.exp %39 : vector<1x8x8xf32>
    %cst_28 = arith.constant dense<0.000000e+00> : vector<1x8xf32>
    %41 = vector.multi_reduction <add>, %40, %cst_28 [2] : vector<1x8x8xf32> to vector<1x8xf32>
    %42 = vector.shape_cast %41 : vector<1x8xf32> to vector<1x8x1xf32>
    %43 = tpu.reciprocal %42 {approx = true} : vector<1x8x1xf32> -> vector<1x8x1xf32>
    %44 = vector.broadcast %43 : vector<1x8x1xf32> to vector<1x8x8xf32>
    %45 = arith.mulf %40, %44 : vector<1x8x8xf32>
    "tpu.trace_start"() <{level = 10 : i32, message = "bqk,bkd->bqd"}> : () -> ()
    %cst_29 = arith.constant dense<0.000000e+00> : vector<1x8x128xf32>
    %46 = tpu.matmul %45, %32, %cst_29 {dimension_numbers = #tpu.dot_dimension_numbers<[2], [1], [1], [2], [0, 0, 0, 1, 1, 2], [0], [0]>} : vector<1x8x8xf32>, vector<1x8x128xf32>, vector<1x8x128xf32> -> vector<1x8x128xf32>
    "tpu.trace_stop"() : () -> ()
    %47 = vector.shape_cast %46 : vector<1x8x128xf32> to vector<8x128xf32>
    %c0_30 = arith.constant 0 : index
    %c0_31 = arith.constant 0 : index
    %c0_32 = arith.constant 0 : index
    %48 = vector.load %arg9[%c0_30, %c0_31, %c0_32] : memref<4x128x128xf32, #tpu.memory_space<vmem>>, vector<1x128x128xf32>
    %49 = vector.shape_cast %48 : vector<1x128x128xf32> to vector<128x128xf32>
    %cst_33 = arith.constant dense<0.000000e+00> : vector<8x128xf32>
    %50 = tpu.matmul %47, %49, %cst_33 {dimension_numbers = #tpu.dot_dimension_numbers<[1], [0], [0], [1], [0, 0, 1, 1], [], []>} : vector<8x128xf32>, vector<128x128xf32>, vector<8x128xf32> -> vector<8x128xf32>
    %51 = arith.addf %6, %50 : vector<8x128xf32>
    %c1 = arith.constant 1 : index
    %c0_34 = arith.constant 0 : index
    %c0_35 = arith.constant 0 : index
    %52 = vector.load %arg3[%c1, %c0_34, %c0_35] : memref<4x128x128xf32, #tpu.memory_space<vmem>>, vector<1x128x128xf32>
    %53 = vector.shape_cast %52 : vector<1x128x128xf32> to vector<128x128xf32>
    %cst_36 = arith.constant dense<0.000000e+00> : vector<8x128xf32>
    %54 = tpu.matmul %1, %53, %cst_36 {dimension_numbers = #tpu.dot_dimension_numbers<[1], [0], [0], [1], [0, 0, 1, 1], [], []>} : vector<8x128xf32>, vector<128x128xf32>, vector<8x128xf32> -> vector<8x128xf32>
    %c1_37 = arith.constant 1 : index
    %c0_38 = arith.constant 0 : index
    %c0_39 = arith.constant 0 : index
    %55 = vector.load %arg4[%c1_37, %c0_38, %c0_39] : memref<4x1x128xf32, #tpu.memory_space<vmem>>, vector<1x1x128xf32>
    %56 = vector.shape_cast %55 : vector<1x1x128xf32> to vector<1x128xf32>
    %57 = vector.broadcast %56 : vector<1x128xf32> to vector<8x128xf32>
    %58 = arith.addf %54, %57 : vector<8x128xf32>
    %cst_40 = arith.constant 0.353553385 : f32
    %59 = vector.broadcast %cst_40 : f32 to vector<8x128xf32>
    %60 = arith.mulf %58, %59 : vector<8x128xf32>
    %c1_41 = arith.constant 1 : index
    %c0_42 = arith.constant 0 : index
    %c0_43 = arith.constant 0 : index
    %61 = vector.load %arg5[%c1_41, %c0_42, %c0_43] : memref<4x128x128xf32, #tpu.memory_space<vmem>>, vector<1x128x128xf32>
    %62 = vector.shape_cast %61 : vector<1x128x128xf32> to vector<128x128xf32>
    %cst_44 = arith.constant dense<0.000000e+00> : vector<8x128xf32>
    %63 = tpu.matmul %1, %62, %cst_44 {dimension_numbers = #tpu.dot_dimension_numbers<[1], [0], [0], [1], [0, 0, 1, 1], [], []>} : vector<8x128xf32>, vector<128x128xf32>, vector<8x128xf32> -> vector<8x128xf32>
    %c1_45 = arith.constant 1 : index
    %c0_46 = arith.constant 0 : index
    %c0_47 = arith.constant 0 : index
    %64 = vector.load %arg6[%c1_45, %c0_46, %c0_47] : memref<4x1x128xf32, #tpu.memory_space<vmem>>, vector<1x1x128xf32>
    %65 = vector.shape_cast %64 : vector<1x1x128xf32> to vector<1x128xf32>
    %66 = vector.broadcast %65 : vector<1x128xf32> to vector<8x128xf32>
    %67 = arith.addf %63, %66 : vector<8x128xf32>
    %c1_48 = arith.constant 1 : index
    %c0_49 = arith.constant 0 : index
    %c0_50 = arith.constant 0 : index
    %68 = vector.load %arg7[%c1_48, %c0_49, %c0_50] : memref<4x128x128xf32, #tpu.memory_space<vmem>>, vector<1x128x128xf32>
    %69 = vector.shape_cast %68 : vector<1x128x128xf32> to vector<128x128xf32>
    %cst_51 = arith.constant dense<0.000000e+00> : vector<8x128xf32>
    %70 = tpu.matmul %1, %69, %cst_51 {dimension_numbers = #tpu.dot_dimension_numbers<[1], [0], [0], [1], [0, 0, 1, 1], [], []>} : vector<8x128xf32>, vector<128x128xf32>, vector<8x128xf32> -> vector<8x128xf32>
    %c1_52 = arith.constant 1 : index
    %c0_53 = arith.constant 0 : index
    %c0_54 = arith.constant 0 : index
    %71 = vector.load %arg8[%c1_52, %c0_53, %c0_54] : memref<4x1x128xf32, #tpu.memory_space<vmem>>, vector<1x1x128xf32>
    %72 = vector.shape_cast %71 : vector<1x1x128xf32> to vector<1x128xf32>
    %73 = vector.broadcast %72 : vector<1x128xf32> to vector<8x128xf32>
    %74 = arith.addf %70, %73 : vector<8x128xf32>
    %75 = vector.shape_cast %60 : vector<8x128xf32> to vector<1x8x128xf32>
    %76 = vector.shape_cast %67 : vector<8x128xf32> to vector<1x8x128xf32>
    %77 = vector.shape_cast %74 : vector<8x128xf32> to vector<1x8x128xf32>
    "tpu.trace_start"() <{level = 10 : i32, message = "bqd,bkd->bqk"}> : () -> ()
    %cst_55 = arith.constant dense<0.000000e+00> : vector<1x8x8xf32>
    %78 = tpu.matmul %75, %76, %cst_55 {dimension_numbers = #tpu.dot_dimension_numbers<[2], [2], [1], [1], [0, 0, 0, 1, 1, 1], [0], [0]>} : vector<1x8x128xf32>, vector<1x8x128xf32>, vector<1x8x8xf32> -> vector<1x8x8xf32>
    "tpu.trace_stop"() : () -> ()
    %79 = vector.shape_cast %2 : vector<8x8xf32> to vector<1x8x8xf32>
    %80 = arith.addf %78, %79 : vector<1x8x8xf32>
    %cst_56 = arith.constant dense<0xFF800000> : vector<1x8xf32>
    %81 = vector.multi_reduction <maximumf>, %80, %cst_56 [2] : vector<1x8x8xf32> to vector<1x8xf32>
    %82 = vector.shape_cast %81 : vector<1x8xf32> to vector<1x8x1xf32>
    %83 = vector.broadcast %82 : vector<1x8x1xf32> to vector<1x8x8xf32>
    %84 = arith.subf %80, %83 : vector<1x8x8xf32>
    %85 = math.exp %84 : vector<1x8x8xf32>
    %cst_57 = arith.constant dense<0.000000e+00> : vector<1x8xf32>
    %86 = vector.multi_reduction <add>, %85, %cst_57 [2] : vector<1x8x8xf32> to vector<1x8xf32>
    %87 = vector.shape_cast %86 : vector<1x8xf32> to vector<1x8x1xf32>
    %88 = tpu.reciprocal %87 {approx = true} : vector<1x8x1xf32> -> vector<1x8x1xf32>
    %89 = vector.broadcast %88 : vector<1x8x1xf32> to vector<1x8x8xf32>
    %90 = arith.mulf %85, %89 : vector<1x8x8xf32>
    "tpu.trace_start"() <{level = 10 : i32, message = "bqk,bkd->bqd"}> : () -> ()
    %cst_58 = arith.constant dense<0.000000e+00> : vector<1x8x128xf32>
    %91 = tpu.matmul %90, %77, %cst_58 {dimension_numbers = #tpu.dot_dimension_numbers<[2], [1], [1], [2], [0, 0, 0, 1, 1, 2], [0], [0]>} : vector<1x8x8xf32>, vector<1x8x128xf32>, vector<1x8x128xf32> -> vector<1x8x128xf32>
    "tpu.trace_stop"() : () -> ()
    %92 = vector.shape_cast %91 : vector<1x8x128xf32> to vector<8x128xf32>
    %c1_59 = arith.constant 1 : index
    %c0_60 = arith.constant 0 : index
    %c0_61 = arith.constant 0 : index
    %93 = vector.load %arg9[%c1_59, %c0_60, %c0_61] : memref<4x128x128xf32, #tpu.memory_space<vmem>>, vector<1x128x128xf32>
    %94 = vector.shape_cast %93 : vector<1x128x128xf32> to vector<128x128xf32>
    %cst_62 = arith.constant dense<0.000000e+00> : vector<8x128xf32>
    %95 = tpu.matmul %92, %94, %cst_62 {dimension_numbers = #tpu.dot_dimension_numbers<[1], [0], [0], [1], [0, 0, 1, 1], [], []>} : vector<8x128xf32>, vector<128x128xf32>, vector<8x128xf32> -> vector<8x128xf32>
    %96 = arith.addf %51, %95 : vector<8x128xf32>
    %c2 = arith.constant 2 : index
    %c0_63 = arith.constant 0 : index
    %c0_64 = arith.constant 0 : index
    %97 = vector.load %arg3[%c2, %c0_63, %c0_64] : memref<4x128x128xf32, #tpu.memory_space<vmem>>, vector<1x128x128xf32>
    %98 = vector.shape_cast %97 : vector<1x128x128xf32> to vector<128x128xf32>
    %cst_65 = arith.constant dense<0.000000e+00> : vector<8x128xf32>
    %99 = tpu.matmul %1, %98, %cst_65 {dimension_numbers = #tpu.dot_dimension_numbers<[1], [0], [0], [1], [0, 0, 1, 1], [], []>} : vector<8x128xf32>, vector<128x128xf32>, vector<8x128xf32> -> vector<8x128xf32>
    %c2_66 = arith.constant 2 : index
    %c0_67 = arith.constant 0 : index
    %c0_68 = arith.constant 0 : index
    %100 = vector.load %arg4[%c2_66, %c0_67, %c0_68] : memref<4x1x128xf32, #tpu.memory_space<vmem>>, vector<1x1x128xf32>
    %101 = vector.shape_cast %100 : vector<1x1x128xf32> to vector<1x128xf32>
    %102 = vector.broadcast %101 : vector<1x128xf32> to vector<8x128xf32>
    %103 = arith.addf %99, %102 : vector<8x128xf32>
    %cst_69 = arith.constant 0.353553385 : f32
    %104 = vector.broadcast %cst_69 : f32 to vector<8x128xf32>
    %105 = arith.mulf %103, %104 : vector<8x128xf32>
    %c2_70 = arith.constant 2 : index
    %c0_71 = arith.constant 0 : index
    %c0_72 = arith.constant 0 : index
    %106 = vector.load %arg5[%c2_70, %c0_71, %c0_72] : memref<4x128x128xf32, #tpu.memory_space<vmem>>, vector<1x128x128xf32>
    %107 = vector.shape_cast %106 : vector<1x128x128xf32> to vector<128x128xf32>
    %cst_73 = arith.constant dense<0.000000e+00> : vector<8x128xf32>
    %108 = tpu.matmul %1, %107, %cst_73 {dimension_numbers = #tpu.dot_dimension_numbers<[1], [0], [0], [1], [0, 0, 1, 1], [], []>} : vector<8x128xf32>, vector<128x128xf32>, vector<8x128xf32> -> vector<8x128xf32>
    %c2_74 = arith.constant 2 : index
    %c0_75 = arith.constant 0 : index
    %c0_76 = arith.constant 0 : index
    %109 = vector.load %arg6[%c2_74, %c0_75, %c0_76] : memref<4x1x128xf32, #tpu.memory_space<vmem>>, vector<1x1x128xf32>
    %110 = vector.shape_cast %109 : vector<1x1x128xf32> to vector<1x128xf32>
    %111 = vector.broadcast %110 : vector<1x128xf32> to vector<8x128xf32>
    %112 = arith.addf %108, %111 : vector<8x128xf32>
    %c2_77 = arith.constant 2 : index
    %c0_78 = arith.constant 0 : index
    %c0_79 = arith.constant 0 : index
    %113 = vector.load %arg7[%c2_77, %c0_78, %c0_79] : memref<4x128x128xf32, #tpu.memory_space<vmem>>, vector<1x128x128xf32>
    %114 = vector.shape_cast %113 : vector<1x128x128xf32> to vector<128x128xf32>
    %cst_80 = arith.constant dense<0.000000e+00> : vector<8x128xf32>
    %115 = tpu.matmul %1, %114, %cst_80 {dimension_numbers = #tpu.dot_dimension_numbers<[1], [0], [0], [1], [0, 0, 1, 1], [], []>} : vector<8x128xf32>, vector<128x128xf32>, vector<8x128xf32> -> vector<8x128xf32>
    %c2_81 = arith.constant 2 : index
    %c0_82 = arith.constant 0 : index
    %c0_83 = arith.constant 0 : index
    %116 = vector.load %arg8[%c2_81, %c0_82, %c0_83] : memref<4x1x128xf32, #tpu.memory_space<vmem>>, vector<1x1x128xf32>
    %117 = vector.shape_cast %116 : vector<1x1x128xf32> to vector<1x128xf32>
    %118 = vector.broadcast %117 : vector<1x128xf32> to vector<8x128xf32>
    %119 = arith.addf %115, %118 : vector<8x128xf32>
    %120 = vector.shape_cast %105 : vector<8x128xf32> to vector<1x8x128xf32>
    %121 = vector.shape_cast %112 : vector<8x128xf32> to vector<1x8x128xf32>
    %122 = vector.shape_cast %119 : vector<8x128xf32> to vector<1x8x128xf32>
    "tpu.trace_start"() <{level = 10 : i32, message = "bqd,bkd->bqk"}> : () -> ()
    %cst_84 = arith.constant dense<0.000000e+00> : vector<1x8x8xf32>
    %123 = tpu.matmul %120, %121, %cst_84 {dimension_numbers = #tpu.dot_dimension_numbers<[2], [2], [1], [1], [0, 0, 0, 1, 1, 1], [0], [0]>} : vector<1x8x128xf32>, vector<1x8x128xf32>, vector<1x8x8xf32> -> vector<1x8x8xf32>
    "tpu.trace_stop"() : () -> ()
    %124 = vector.shape_cast %2 : vector<8x8xf32> to vector<1x8x8xf32>
    %125 = arith.addf %123, %124 : vector<1x8x8xf32>
    %cst_85 = arith.constant dense<0xFF800000> : vector<1x8xf32>
    %126 = vector.multi_reduction <maximumf>, %125, %cst_85 [2] : vector<1x8x8xf32> to vector<1x8xf32>
    %127 = vector.shape_cast %126 : vector<1x8xf32> to vector<1x8x1xf32>
    %128 = vector.broadcast %127 : vector<1x8x1xf32> to vector<1x8x8xf32>
    %129 = arith.subf %125, %128 : vector<1x8x8xf32>
    %130 = math.exp %129 : vector<1x8x8xf32>
    %cst_86 = arith.constant dense<0.000000e+00> : vector<1x8xf32>
    %131 = vector.multi_reduction <add>, %130, %cst_86 [2] : vector<1x8x8xf32> to vector<1x8xf32>
    %132 = vector.shape_cast %131 : vector<1x8xf32> to vector<1x8x1xf32>
    %133 = tpu.reciprocal %132 {approx = true} : vector<1x8x1xf32> -> vector<1x8x1xf32>
    %134 = vector.broadcast %133 : vector<1x8x1xf32> to vector<1x8x8xf32>
    %135 = arith.mulf %130, %134 : vector<1x8x8xf32>
    "tpu.trace_start"() <{level = 10 : i32, message = "bqk,bkd->bqd"}> : () -> ()
    %cst_87 = arith.constant dense<0.000000e+00> : vector<1x8x128xf32>
    %136 = tpu.matmul %135, %122, %cst_87 {dimension_numbers = #tpu.dot_dimension_numbers<[2], [1], [1], [2], [0, 0, 0, 1, 1, 2], [0], [0]>} : vector<1x8x8xf32>, vector<1x8x128xf32>, vector<1x8x128xf32> -> vector<1x8x128xf32>
    "tpu.trace_stop"() : () -> ()
    %137 = vector.shape_cast %136 : vector<1x8x128xf32> to vector<8x128xf32>
    %c2_88 = arith.constant 2 : index
    %c0_89 = arith.constant 0 : index
    %c0_90 = arith.constant 0 : index
    %138 = vector.load %arg9[%c2_88, %c0_89, %c0_90] : memref<4x128x128xf32, #tpu.memory_space<vmem>>, vector<1x128x128xf32>
    %139 = vector.shape_cast %138 : vector<1x128x128xf32> to vector<128x128xf32>
    %cst_91 = arith.constant dense<0.000000e+00> : vector<8x128xf32>
    %140 = tpu.matmul %137, %139, %cst_91 {dimension_numbers = #tpu.dot_dimension_numbers<[1], [0], [0], [1], [0, 0, 1, 1], [], []>} : vector<8x128xf32>, vector<128x128xf32>, vector<8x128xf32> -> vector<8x128xf32>
    %141 = arith.addf %96, %140 : vector<8x128xf32>
    %c3 = arith.constant 3 : index
    %c0_92 = arith.constant 0 : index
    %c0_93 = arith.constant 0 : index
    %142 = vector.load %arg3[%c3, %c0_92, %c0_93] : memref<4x128x128xf32, #tpu.memory_space<vmem>>, vector<1x128x128xf32>
    %143 = vector.shape_cast %142 : vector<1x128x128xf32> to vector<128x128xf32>
    %cst_94 = arith.constant dense<0.000000e+00> : vector<8x128xf32>
    %144 = tpu.matmul %1, %143, %cst_94 {dimension_numbers = #tpu.dot_dimension_numbers<[1], [0], [0], [1], [0, 0, 1, 1], [], []>} : vector<8x128xf32>, vector<128x128xf32>, vector<8x128xf32> -> vector<8x128xf32>
    %c3_95 = arith.constant 3 : index
    %c0_96 = arith.constant 0 : index
    %c0_97 = arith.constant 0 : index
    %145 = vector.load %arg4[%c3_95, %c0_96, %c0_97] : memref<4x1x128xf32, #tpu.memory_space<vmem>>, vector<1x1x128xf32>
    %146 = vector.shape_cast %145 : vector<1x1x128xf32> to vector<1x128xf32>
    %147 = vector.broadcast %146 : vector<1x128xf32> to vector<8x128xf32>
    %148 = arith.addf %144, %147 : vector<8x128xf32>
    %cst_98 = arith.constant 0.353553385 : f32
    %149 = vector.broadcast %cst_98 : f32 to vector<8x128xf32>
    %150 = arith.mulf %148, %149 : vector<8x128xf32>
    %c3_99 = arith.constant 3 : index
    %c0_100 = arith.constant 0 : index
    %c0_101 = arith.constant 0 : index
    %151 = vector.load %arg5[%c3_99, %c0_100, %c0_101] : memref<4x128x128xf32, #tpu.memory_space<vmem>>, vector<1x128x128xf32>
    %152 = vector.shape_cast %151 : vector<1x128x128xf32> to vector<128x128xf32>
    %cst_102 = arith.constant dense<0.000000e+00> : vector<8x128xf32>
    %153 = tpu.matmul %1, %152, %cst_102 {dimension_numbers = #tpu.dot_dimension_numbers<[1], [0], [0], [1], [0, 0, 1, 1], [], []>} : vector<8x128xf32>, vector<128x128xf32>, vector<8x128xf32> -> vector<8x128xf32>
    %c3_103 = arith.constant 3 : index
    %c0_104 = arith.constant 0 : index
    %c0_105 = arith.constant 0 : index
    %154 = vector.load %arg6[%c3_103, %c0_104, %c0_105] : memref<4x1x128xf32, #tpu.memory_space<vmem>>, vector<1x1x128xf32>
    %155 = vector.shape_cast %154 : vector<1x1x128xf32> to vector<1x128xf32>
    %156 = vector.broadcast %155 : vector<1x128xf32> to vector<8x128xf32>
    %157 = arith.addf %153, %156 : vector<8x128xf32>
    %c3_106 = arith.constant 3 : index
    %c0_107 = arith.constant 0 : index
    %c0_108 = arith.constant 0 : index
    %158 = vector.load %arg7[%c3_106, %c0_107, %c0_108] : memref<4x128x128xf32, #tpu.memory_space<vmem>>, vector<1x128x128xf32>
    %159 = vector.shape_cast %158 : vector<1x128x128xf32> to vector<128x128xf32>
    %cst_109 = arith.constant dense<0.000000e+00> : vector<8x128xf32>
    %160 = tpu.matmul %1, %159, %cst_109 {dimension_numbers = #tpu.dot_dimension_numbers<[1], [0], [0], [1], [0, 0, 1, 1], [], []>} : vector<8x128xf32>, vector<128x128xf32>, vector<8x128xf32> -> vector<8x128xf32>
    %c3_110 = arith.constant 3 : index
    %c0_111 = arith.constant 0 : index
    %c0_112 = arith.constant 0 : index
    %161 = vector.load %arg8[%c3_110, %c0_111, %c0_112] : memref<4x1x128xf32, #tpu.memory_space<vmem>>, vector<1x1x128xf32>
    %162 = vector.shape_cast %161 : vector<1x1x128xf32> to vector<1x128xf32>
    %163 = vector.broadcast %162 : vector<1x128xf32> to vector<8x128xf32>
    %164 = arith.addf %160, %163 : vector<8x128xf32>
    %165 = vector.shape_cast %150 : vector<8x128xf32> to vector<1x8x128xf32>
    %166 = vector.shape_cast %157 : vector<8x128xf32> to vector<1x8x128xf32>
    %167 = vector.shape_cast %164 : vector<8x128xf32> to vector<1x8x128xf32>
    "tpu.trace_start"() <{level = 10 : i32, message = "bqd,bkd->bqk"}> : () -> ()
    %cst_113 = arith.constant dense<0.000000e+00> : vector<1x8x8xf32>
    %168 = tpu.matmul %165, %166, %cst_113 {dimension_numbers = #tpu.dot_dimension_numbers<[2], [2], [1], [1], [0, 0, 0, 1, 1, 1], [0], [0]>} : vector<1x8x128xf32>, vector<1x8x128xf32>, vector<1x8x8xf32> -> vector<1x8x8xf32>
    "tpu.trace_stop"() : () -> ()
    %169 = vector.shape_cast %2 : vector<8x8xf32> to vector<1x8x8xf32>
    %170 = arith.addf %168, %169 : vector<1x8x8xf32>
    %cst_114 = arith.constant dense<0xFF800000> : vector<1x8xf32>
    %171 = vector.multi_reduction <maximumf>, %170, %cst_114 [2] : vector<1x8x8xf32> to vector<1x8xf32>
    %172 = vector.shape_cast %171 : vector<1x8xf32> to vector<1x8x1xf32>
    %173 = vector.broadcast %172 : vector<1x8x1xf32> to vector<1x8x8xf32>
    %174 = arith.subf %170, %173 : vector<1x8x8xf32>
    %175 = math.exp %174 : vector<1x8x8xf32>
    %cst_115 = arith.constant dense<0.000000e+00> : vector<1x8xf32>
    %176 = vector.multi_reduction <add>, %175, %cst_115 [2] : vector<1x8x8xf32> to vector<1x8xf32>
    %177 = vector.shape_cast %176 : vector<1x8xf32> to vector<1x8x1xf32>
    %178 = tpu.reciprocal %177 {approx = true} : vector<1x8x1xf32> -> vector<1x8x1xf32>
    %179 = vector.broadcast %178 : vector<1x8x1xf32> to vector<1x8x8xf32>
    %180 = arith.mulf %175, %179 : vector<1x8x8xf32>
    "tpu.trace_start"() <{level = 10 : i32, message = "bqk,bkd->bqd"}> : () -> ()
    %cst_116 = arith.constant dense<0.000000e+00> : vector<1x8x128xf32>
    %181 = tpu.matmul %180, %167, %cst_116 {dimension_numbers = #tpu.dot_dimension_numbers<[2], [1], [1], [2], [0, 0, 0, 1, 1, 2], [0], [0]>} : vector<1x8x8xf32>, vector<1x8x128xf32>, vector<1x8x128xf32> -> vector<1x8x128xf32>
    "tpu.trace_stop"() : () -> ()
    %182 = vector.shape_cast %181 : vector<1x8x128xf32> to vector<8x128xf32>
    %c3_117 = arith.constant 3 : index
    %c0_118 = arith.constant 0 : index
    %c0_119 = arith.constant 0 : index
    %183 = vector.load %arg9[%c3_117, %c0_118, %c0_119] : memref<4x128x128xf32, #tpu.memory_space<vmem>>, vector<1x128x128xf32>
    %184 = vector.shape_cast %183 : vector<1x128x128xf32> to vector<128x128xf32>
    %cst_120 = arith.constant dense<0.000000e+00> : vector<8x128xf32>
    %185 = tpu.matmul %182, %184, %cst_120 {dimension_numbers = #tpu.dot_dimension_numbers<[1], [0], [0], [1], [0, 0, 1, 1], [], []>} : vector<8x128xf32>, vector<128x128xf32>, vector<8x128xf32> -> vector<8x128xf32>
    %186 = arith.addf %141, %185 : vector<8x128xf32>
    %c0_121 = arith.constant 0 : index
    %c0_122 = arith.constant 0 : index
    %187 = vector.load %arg10[%c0_121, %c0_122] : memref<1x128xf32, #tpu.memory_space<vmem>>, vector<1x128xf32>
    %188 = vector.broadcast %187 : vector<1x128xf32> to vector<8x128xf32>
    %189 = arith.addf %186, %188 : vector<8x128xf32>
    %190 = arith.addf %1, %189 : vector<8x128xf32>
    %c0_123 = arith.constant 0 : index
    %c0_124 = arith.constant 0 : index
    %191 = vector.load %arg11[%c0_123, %c0_124] : memref<1x128xf32, #tpu.memory_space<vmem>>, vector<1x128xf32>
    %c0_125 = arith.constant 0 : index
    %c0_126 = arith.constant 0 : index
    %192 = vector.load %arg12[%c0_125, %c0_126] : memref<1x128xf32, #tpu.memory_space<vmem>>, vector<1x128xf32>
    %cst_127 = arith.constant 0.000000e+00 : f32
    %193 = vector.shape_cast %5 : vector<1x128xi1> to vector<1x128xi1>
    %194 = vector.broadcast %193 : vector<1x128xi1> to vector<8x128xi1>
    %195 = vector.broadcast %cst_127 : f32 to vector<8x128xf32>
    %196 = arith.select %194, %190, %195 : vector<8x128xi1>, vector<8x128xf32>
    %cst_128 = arith.constant dense<0.000000e+00> : vector<8xf32>
    %197 = vector.multi_reduction <add>, %196, %cst_128 [1] : vector<8x128xf32> to vector<8xf32>
    %198 = vector.shape_cast %197 : vector<8xf32> to vector<8x1xf32>
    %cst_129 = arith.constant 3.125000e-02 : f32
    %199 = vector.broadcast %cst_129 : f32 to vector<8x1xf32>
    %200 = arith.mulf %198, %199 : vector<8x1xf32>
    %201 = vector.broadcast %200 : vector<8x1xf32> to vector<8x128xf32>
    %202 = arith.subf %190, %201 : vector<8x128xf32>
    %cst_130 = arith.constant 0.000000e+00 : f32
    %203 = vector.shape_cast %5 : vector<1x128xi1> to vector<1x128xi1>
    %204 = vector.broadcast %203 : vector<1x128xi1> to vector<8x128xi1>
    %205 = vector.broadcast %cst_130 : f32 to vector<8x128xf32>
    %206 = arith.select %204, %202, %205 : vector<8x128xi1>, vector<8x128xf32>
    %207 = arith.mulf %206, %206 : vector<8x128xf32>
    %cst_131 = arith.constant dense<0.000000e+00> : vector<8xf32>
    %208 = vector.multi_reduction <add>, %207, %cst_131 [1] : vector<8x128xf32> to vector<8xf32>
    %209 = vector.shape_cast %208 : vector<8xf32> to vector<8x1xf32>
    %cst_132 = arith.constant 3.125000e-02 : f32
    %210 = vector.broadcast %cst_132 : f32 to vector<8x1xf32>
    %211 = arith.mulf %209, %210 : vector<8x1xf32>
    %212 = vector.broadcast %200 : vector<8x1xf32> to vector<8x128xf32>
    %213 = arith.subf %190, %212 : vector<8x128xf32>
    %cst_133 = arith.constant 9.99999974E-6 : f32
    %214 = vector.broadcast %cst_133 : f32 to vector<8x1xf32>
    %215 = arith.addf %211, %214 : vector<8x1xf32>
    %216 = math.rsqrt %215 : vector<8x1xf32>
    %217 = vector.broadcast %216 : vector<8x1xf32> to vector<8x128xf32>
    %218 = arith.mulf %213, %217 : vector<8x128xf32>
    %219 = vector.broadcast %191 : vector<1x128xf32> to vector<8x128xf32>
    %220 = arith.mulf %218, %219 : vector<8x128xf32>
    %221 = vector.broadcast %192 : vector<1x128xf32> to vector<8x128xf32>
    %222 = arith.addf %220, %221 : vector<8x128xf32>
    %c0_134 = arith.constant 0 : index
    %c0_135 = arith.constant 0 : index
    %223 = vector.load %arg13[%c0_134, %c0_135] : memref<128x128xf32, #tpu.memory_space<vmem>>, vector<128x128xf32>
    %cst_136 = arith.constant dense<0.000000e+00> : vector<8x128xf32>
    %224 = tpu.matmul %222, %223, %cst_136 {dimension_numbers = #tpu.dot_dimension_numbers<[1], [0], [0], [1], [0, 0, 1, 1], [], []>} : vector<8x128xf32>, vector<128x128xf32>, vector<8x128xf32> -> vector<8x128xf32>
    %c0_137 = arith.constant 0 : index
    %c0_138 = arith.constant 0 : index
    %225 = vector.load %arg14[%c0_137, %c0_138] : memref<1x128xf32, #tpu.memory_space<vmem>>, vector<1x128xf32>
    %226 = vector.broadcast %225 : vector<1x128xf32> to vector<8x128xf32>
    %227 = arith.addf %224, %226 : vector<8x128xf32>
    %cst_139 = arith.constant 5.000000e-01 : f32
    %228 = vector.broadcast %cst_139 : f32 to vector<8x128xf32>
    %229 = arith.mulf %228, %227 : vector<8x128xf32>
    %cst_140 = arith.constant 0.707106769 : f32
    %230 = vector.broadcast %cst_140 : f32 to vector<8x128xf32>
    %231 = arith.mulf %227, %230 : vector<8x128xf32>
    %232 = math.erf %231 : vector<8x128xf32>
    %cst_141 = arith.constant 1.000000e+00 : f32
    %233 = vector.broadcast %cst_141 : f32 to vector<8x128xf32>
    %234 = arith.addf %233, %232 : vector<8x128xf32>
    %235 = arith.mulf %229, %234 : vector<8x128xf32>
    %c0_142 = arith.constant 0 : index
    %c0_143 = arith.constant 0 : index
    %236 = vector.load %arg15[%c0_142, %c0_143] : memref<128x128xf32, #tpu.memory_space<vmem>>, vector<128x128xf32>
    %cst_144 = arith.constant dense<0.000000e+00> : vector<8x128xf32>
    %237 = tpu.matmul %235, %236, %cst_144 {dimension_numbers = #tpu.dot_dimension_numbers<[1], [0], [0], [1], [0, 0, 1, 1], [], []>} : vector<8x128xf32>, vector<128x128xf32>, vector<8x128xf32> -> vector<8x128xf32>
    %c0_145 = arith.constant 0 : index
    %c0_146 = arith.constant 0 : index
    %238 = vector.load %arg16[%c0_145, %c0_146] : memref<1x128xf32, #tpu.memory_space<vmem>>, vector<1x128xf32>
    %239 = vector.broadcast %238 : vector<1x128xf32> to vector<8x128xf32>
    %240 = arith.addf %237, %239 : vector<8x128xf32>
    %241 = arith.addf %222, %240 : vector<8x128xf32>
    %c0_147 = arith.constant 0 : index
    %c0_148 = arith.constant 0 : index
    %242 = vector.load %arg17[%c0_147, %c0_148] : memref<1x128xf32, #tpu.memory_space<vmem>>, vector<1x128xf32>
    %c0_149 = arith.constant 0 : index
    %c0_150 = arith.constant 0 : index
    %243 = vector.load %arg18[%c0_149, %c0_150] : memref<1x128xf32, #tpu.memory_space<vmem>>, vector<1x128xf32>
    %cst_151 = arith.constant 0.000000e+00 : f32
    %244 = vector.shape_cast %5 : vector<1x128xi1> to vector<1x128xi1>
    %245 = vector.broadcast %244 : vector<1x128xi1> to vector<8x128xi1>
    %246 = vector.broadcast %cst_151 : f32 to vector<8x128xf32>
    %247 = arith.select %245, %241, %246 : vector<8x128xi1>, vector<8x128xf32>
    %cst_152 = arith.constant dense<0.000000e+00> : vector<8xf32>
    %248 = vector.multi_reduction <add>, %247, %cst_152 [1] : vector<8x128xf32> to vector<8xf32>
    %249 = vector.shape_cast %248 : vector<8xf32> to vector<8x1xf32>
    %cst_153 = arith.constant 3.125000e-02 : f32
    %250 = vector.broadcast %cst_153 : f32 to vector<8x1xf32>
    %251 = arith.mulf %249, %250 : vector<8x1xf32>
    %252 = vector.broadcast %251 : vector<8x1xf32> to vector<8x128xf32>
    %253 = arith.subf %241, %252 : vector<8x128xf32>
    %cst_154 = arith.constant 0.000000e+00 : f32
    %254 = vector.shape_cast %5 : vector<1x128xi1> to vector<1x128xi1>
    %255 = vector.broadcast %254 : vector<1x128xi1> to vector<8x128xi1>
    %256 = vector.broadcast %cst_154 : f32 to vector<8x128xf32>
    %257 = arith.select %255, %253, %256 : vector<8x128xi1>, vector<8x128xf32>
    %258 = arith.mulf %257, %257 : vector<8x128xf32>
    %cst_155 = arith.constant dense<0.000000e+00> : vector<8xf32>
    %259 = vector.multi_reduction <add>, %258, %cst_155 [1] : vector<8x128xf32> to vector<8xf32>
    %260 = vector.shape_cast %259 : vector<8xf32> to vector<8x1xf32>
    %cst_156 = arith.constant 3.125000e-02 : f32
    %261 = vector.broadcast %cst_156 : f32 to vector<8x1xf32>
    %262 = arith.mulf %260, %261 : vector<8x1xf32>
    %263 = vector.broadcast %251 : vector<8x1xf32> to vector<8x128xf32>
    %264 = arith.subf %241, %263 : vector<8x128xf32>
    %cst_157 = arith.constant 9.99999974E-6 : f32
    %265 = vector.broadcast %cst_157 : f32 to vector<8x1xf32>
    %266 = arith.addf %262, %265 : vector<8x1xf32>
    %267 = math.rsqrt %266 : vector<8x1xf32>
    %268 = vector.broadcast %267 : vector<8x1xf32> to vector<8x128xf32>
    %269 = arith.mulf %264, %268 : vector<8x128xf32>
    %270 = vector.broadcast %242 : vector<1x128xf32> to vector<8x128xf32>
    %271 = arith.mulf %269, %270 : vector<8x128xf32>
    %272 = vector.broadcast %243 : vector<1x128xf32> to vector<8x128xf32>
    %273 = arith.addf %271, %272 : vector<8x128xf32>
    %274 = vector.shape_cast %273 : vector<8x128xf32> to vector<1x8x128xf32>
    %c0_158 = arith.constant 0 : index
    %c0_159 = arith.constant 0 : index
    %c0_160 = arith.constant 0 : index
    %275 = vector.load %arg19[%c0_158, %c0_159, %c0_160] : memref<1x8x128xf32, #tpu.memory_space<vmem>>, vector<1x8x128xf32>
    tpu.vector_store %arg19[%c0_158, %c0_159, %c0_160], %274 {strides = array<i32>} : memref<1x8x128xf32, #tpu.memory_space<vmem>>, vector<1x8x128xf32>,
    return
  }
  func.func @transform_0(%arg0: i32) -> (i32, i32, i32) {
    %c0_i32 = arith.constant 0 : i32
    %c0_i32_0 = arith.constant 0 : i32
    %c0_i32_1 = arith.constant 0 : i32
    return %arg0, %c0_i32, %c0_i32_0 : i32, i32, i32
  }
  func.func @transform_1(%arg0: i32) -> (i32, i32) {
    %c0_i32 = arith.constant 0 : i32
    %c0_i32_0 = arith.constant 0 : i32
    %c0_i32_1 = arith.constant 0 : i32
    return %c0_i32, %c0_i32_0 : i32, i32
  }
  func.func @transform_2(%arg0: i32) -> (i32, i32, i32) {
    %c0_i32 = arith.constant 0 : i32
    %c0_i32_0 = arith.constant 0 : i32
    %c0_i32_1 = arith.constant 0 : i32
    %c0_i32_2 = arith.constant 0 : i32
    return %c0_i32, %c0_i32_0, %c0_i32_1 : i32, i32, i32
  }
  func.func @transform_3(%arg0: i32) -> (i32, i32, i32) {
    %c0_i32 = arith.constant 0 : i32
    %c0_i32_0 = arith.constant 0 : i32
    %c0_i32_1 = arith.constant 0 : i32
    %c0_i32_2 = arith.constant 0 : i32
    return %c0_i32, %c0_i32_0, %c0_i32_1 : i32, i32, i32
  }
  func.func @transform_4(%arg0: i32) -> (i32, i32, i32) {
    %c0_i32 = arith.constant 0 : i32
    %c0_i32_0 = arith.constant 0 : i32
    %c0_i32_1 = arith.constant 0 : i32
    %c0_i32_2 = arith.constant 0 : i32
    return %c0_i32, %c0_i32_0, %c0_i32_1 : i32, i32, i32
  }
  func.func @transform_5(%arg0: i32) -> (i32, i32, i32) {
    %c0_i32 = arith.constant 0 : i32
    %c0_i32_0 = arith.constant 0 : i32
    %c0_i32_1 = arith.constant 0 : i32
    %c0_i32_2 = arith.constant 0 : i32
    return %c0_i32, %c0_i32_0, %c0_i32_1 : i32, i32, i32
  }
  func.func @transform_6(%arg0: i32) -> (i32, i32, i32) {
    %c0_i32 = arith.constant 0 : i32
    %c0_i32_0 = arith.constant 0 : i32
    %c0_i32_1 = arith.constant 0 : i32
    %c0_i32_2 = arith.constant 0 : i32
    return %c0_i32, %c0_i32_0, %c0_i32_1 : i32, i32, i32
  }
  func.func @transform_7(%arg0: i32) -> (i32, i32, i32) {
    %c0_i32 = arith.constant 0 : i32
    %c0_i32_0 = arith.constant 0 : i32
    %c0_i32_1 = arith.constant 0 : i32
    %c0_i32_2 = arith.constant 0 : i32
    return %c0_i32, %c0_i32_0, %c0_i32_1 : i32, i32, i32
  }
  func.func @transform_8(%arg0: i32) -> (i32, i32, i32) {
    %c0_i32 = arith.constant 0 : i32
    %c0_i32_0 = arith.constant 0 : i32
    %c0_i32_1 = arith.constant 0 : i32
    %c0_i32_2 = arith.constant 0 : i32
    return %c0_i32, %c0_i32_0, %c0_i32_1 : i32, i32, i32
  }
  func.func @transform_9(%arg0: i32) -> (i32, i32) {
    %c0_i32 = arith.constant 0 : i32
    %c0_i32_0 = arith.constant 0 : i32
    %c0_i32_1 = arith.constant 0 : i32
    return %c0_i32, %c0_i32_0 : i32, i32
  }
  func.func @transform_10(%arg0: i32) -> (i32, i32) {
    %c0_i32 = arith.constant 0 : i32
    %c0_i32_0 = arith.constant 0 : i32
    %c0_i32_1 = arith.constant 0 : i32
    return %c0_i32, %c0_i32_0 : i32, i32
  }
  func.func @transform_11(%arg0: i32) -> (i32, i32) {
    %c0_i32 = arith.constant 0 : i32
    %c0_i32_0 = arith.constant 0 : i32
    %c0_i32_1 = arith.constant 0 : i32
    return %c0_i32, %c0_i32_0 : i32, i32
  }
  func.func @transform_12(%arg0: i32) -> (i32, i32) {
    %c0_i32 = arith.constant 0 : i32
    %c0_i32_0 = arith.constant 0 : i32
    %c0_i32_1 = arith.constant 0 : i32
    return %c0_i32, %c0_i32_0 : i32, i32
  }
  func.func @transform_13(%arg0: i32) -> (i32, i32) {
    %c0_i32 = arith.constant 0 : i32
    %c0_i32_0 = arith.constant 0 : i32
    %c0_i32_1 = arith.constant 0 : i32
    return %c0_i32, %c0_i32_0 : i32, i32
  }
  func.func @transform_14(%arg0: i32) -> (i32, i32) {
    %c0_i32 = arith.constant 0 : i32
    %c0_i32_0 = arith.constant 0 : i32
    %c0_i32_1 = arith.constant 0 : i32
    return %c0_i32, %c0_i32_0 : i32, i32
  }
  func.func @transform_15(%arg0: i32) -> (i32, i32) {
    %c0_i32 = arith.constant 0 : i32
    %c0_i32_0 = arith.constant 0 : i32
    %c0_i32_1 = arith.constant 0 : i32
    return %c0_i32, %c0_i32_0 : i32, i32
  }
  func.func @transform_16(%arg0: i32) -> (i32, i32) {
    %c0_i32 = arith.constant 0 : i32
    %c0_i32_0 = arith.constant 0 : i32
    %c0_i32_1 = arith.constant 0 : i32
    return %c0_i32, %c0_i32_0 : i32, i32
  }
  func.func @transform_17(%arg0: i32) -> (i32, i32) {
    %c0_i32 = arith.constant 0 : i32
    %c0_i32_0 = arith.constant 0 : i32
    %c0_i32_1 = arith.constant 0 : i32
    return %c0_i32, %c0_i32_0 : i32, i32
  }
  func.func @transform_18(%arg0: i32) -> (i32, i32, i32) {
    %c0_i32 = arith.constant 0 : i32
    %c0_i32_0 = arith.constant 0 : i32
    %c0_i32_1 = arith.constant 0 : i32
    return %arg0, %c0_i32, %c0_i32_0 : i32, i32, i32
  }
}

</mosaic_0001>

<llo_original>
// kernel: tpu_custom_call.1
$region0: #{tpu_custom_call.1}
  #allocation0 [shape = 'u32[]', space=smem, size = 0x4, offset = 0x4, fixed_abs, tag = 'smem constant byte address 0x4 - core index']
  #allocation1 [shape = 'u32[144,128]{1,0:T(1,128)}', space=vmem, size = 0x12000, scoped, tag = 'internal scratch']
  %s0 = inlined_call_operand.hbm [shape: f32[2,8,128], index: 0, kind: input, shape index: {}]
  %s1 = inlined_call_operand.hbm [shape: f32[8,8], index: 1, kind: input, shape index: {}]
  %s2 = inlined_call_operand.hbm [shape: f32[4,128,128], index: 2, kind: input, shape index: {}]
  %s3 = inlined_call_operand.vmem [shape: f32[4,1,128], index: 3, kind: input, shape index: {}]
  %s4 = inlined_call_operand.hbm [shape: f32[4,128,128], index: 4, kind: input, shape index: {}]
  %s5 = inlined_call_operand.vmem [shape: f32[4,1,128], index: 5, kind: input, shape index: {}]
  %s6 = inlined_call_operand.hbm [shape: f32[4,128,128], index: 6, kind: input, shape index: {}]
  %s7 = inlined_call_operand.vmem [shape: f32[4,1,128], index: 7, kind: input, shape index: {}]
  %s8 = inlined_call_operand.hbm [shape: f32[4,128,128], index: 8, kind: input, shape index: {}]
  %s9 = inlined_call_operand.vmem [shape: f32[1,128], index: 9, kind: input, shape index: {}]
  %s10 = inlined_call_operand.vmem [shape: f32[1,128], index: 10, kind: input, shape index: {}]
  %s11 = inlined_call_operand.vmem [shape: f32[1,128], index: 11, kind: input, shape index: {}]
  %s12 = inlined_call_operand.hbm [shape: f32[128,128], index: 12, kind: input, shape index: {}]
  %s13 = inlined_call_operand.vmem [shape: f32[1,128], index: 13, kind: input, shape index: {}]
  %s14 = inlined_call_operand.hbm [shape: f32[128,128], index: 14, kind: input, shape index: {}]
  %s15 = inlined_call_operand.vmem [shape: f32[1,128], index: 15, kind: input, shape index: {}]
  %s16 = inlined_call_operand.vmem [shape: f32[1,128], index: 16, kind: input, shape index: {}]
  %s17 = inlined_call_operand.vmem [shape: f32[1,128], index: 17, kind: input, shape index: {}]
  %s18 = inlined_call_operand.hbm [shape: f32[2,8,128], index: 18, kind: output, shape index: {}]
  %s19 = sld [smem:[#allocation0]]
  $region137: #{tpu_custom_call.1} parent=0
    _
  %s21 = ssub.s32 1, %s19
  %s22 = scalar_select 0, %s21, %s19
  $region1: #{tpu_custom_call.1} parent=0
    #allocation2 [shape = 'u8[8192]{0}', space=vmem, size = 0x2000, scoped, tag = 'input window, operand 0']
    #allocation3 [shape = 's32[2]{0}', space=sflag, size = 0x8, scoped, tag = 'scoped memory for tpu_custom_call.1']
    #allocation4 [shape = 's32[2]{0}', space=sflag, size = 0x8, scoped, tag = 'scoped memory for tpu_custom_call.1']
    #allocation5 [shape = 'u8[4096]{0}', space=vmem, size = 0x1000, scoped, tag = 'input window, operand 1, single buffered']
    #allocation6 [shape = 's32[1]{0}', space=sflag, size = 0x4, scoped, tag = 'scoped memory for tpu_custom_call.1']
    #allocation7 [shape = 'u8[262144]{0}', space=vmem, size = 0x40000, scoped, tag = 'input window, operand 2, single buffered']
    #allocation8 [shape = 'u8[262144]{0}', space=vmem, size = 0x40000, scoped, tag = 'input window, operand 4, single buffered']
    #allocation9 [shape = 's32[1]{0}', space=sflag, size = 0x4, scoped, tag = 'scoped memory for tpu_custom_call.1']
    #allocation10 [shape = 'u8[262144]{0}', space=vmem, size = 0x40000, scoped, tag = 'input window, operand 6, single buffered']
    #allocation11 [shape = 'u8[262144]{0}', space=vmem, size = 0x40000, scoped, tag = 'input window, operand 8, single buffered']
    #allocation12 [shape = 's32[1]{0}', space=sflag, size = 0x4, scoped, tag = 'scoped memory for tpu_custom_call.1']
    #allocation13 [shape = 'u8[65536]{0}', space=vmem, size = 0x10000, scoped, tag = 'input window, operand 12, single buffered']
    #allocation14 [shape = 'u8[65536]{0}', space=vmem, size = 0x10000, scoped, tag = 'input window, operand 14, single buffered']
    #allocation15 [shape = 's32[1]{0}', space=sflag, size = 0x4, scoped, tag = 'scoped memory for tpu_custom_call.1']
    #allocation16 [shape = 'u8[8192]{0}', space=vmem, size = 0x2000, scoped, tag = 'output window, operand 0']
    %23 = vsyncpa [#allocation3], 0
    %s24 = scalar_lea.sflag [#allocation3], 1
    %25 = vsyncpa %s24, 0
    %26 = vsyncpa [#allocation6], 0
    %27 = vsyncpa [#allocation9], 0
    %28 = vsyncpa [#allocation12], 0
    %29 = vsyncpa [#allocation15], 0
    %30 = vsyncpa [#allocation4], 0
    %s31 = scalar_lea.sflag [#allocation4], 1
    %32 = vsyncpa %s31, 0
    loop: start=0, step=1, limit=4
    $region2: #{tpu_custom_call.1} parent=1 // loop_pre_header
      _
    $region3: #{tpu_custom_call.1} parent=1 // loop_header
      %s34 = sphi 0, %s38
      %p35 = scmp.ge.s32.totalorder %s34, 4
      %s44 = sphi 0, %s46
      %s47 = sphi 0, %s44
      %s48 = sphi 0, %s47
      %s64 = sphi 0, %s48
      %s68 = sphi 0, %s68
      %s70 = sphi 0, %s68
      %s71 = sphi 0, %s70
      %s85 = sphi 0, %s71
      %s89 = sphi 0, %s89
      %s91 = sphi 0, %s89
      %s92 = sphi 0, %s91
      %s106 = sphi 0, %s92
      %s110 = sphi 0, %s110
      %s112 = sphi 0, %s110
      %s113 = sphi 0, %s112
      %s127 = sphi 0, %s113
      %s131 = sphi 0, %s131
      %s133 = sphi 0, %s131
      %s134 = sphi 0, %s133
      %s148 = sphi 0, %s134
      %s152 = sphi 0, %s152
      %s154 = sphi 0, %s152
      %s155 = sphi 0, %s154
      %s169 = sphi 0, %s155
      %s173 = sphi 0, %s173
      %s175 = sphi 0, %s173
      %s176 = sphi 0, %s175
      %s190 = sphi 0, %s176
      %s194 = sphi 0, %s194
      %s196 = sphi 0, %s194
      %s197 = sphi 0, %s196
      %s211 = sphi 0, %s197
      %s215 = sphi 0, %s215
      %s217 = sphi 0, %s215
      %s218 = sphi 0, %s217
      %s232 = sphi 0, %s218
      %s236 = sphi 0, %s236
      %s238 = sphi 0, %s236
      %s239 = sphi 0, %s238
      %s253 = sphi 0, %s239
      %s257 = sphi 0, %s257
      %s259 = sphi 0, %s257
      %s260 = sphi 0, %s259
      %s274 = sphi 0, %s260
      %s278 = sphi 0, %s278
      %s280 = sphi 0, %s278
      %s281 = sphi 0, %s280
      %s295 = sphi 0, %s281
      %s299 = sphi 0, %s299
      %s301 = sphi 0, %s299
      %s302 = sphi 0, %s301
      %s316 = sphi 0, %s302
      %s320 = sphi 0, %s320
      %s322 = sphi 0, %s320
      %s323 = sphi 0, %s322
      %s337 = sphi 0, %s323
      %s341 = sphi 0, %s341
      %s343 = sphi 0, %s341
      %s344 = sphi 0, %s343
      %s358 = sphi 0, %s344
      %s362 = sphi 0, %s362
      %s364 = sphi 0, %s362
      %s365 = sphi 0, %s364
      %s379 = sphi 0, %s365
      %s383 = sphi 0, %s383
      %s385 = sphi 0, %s383
      %s386 = sphi 0, %s385
      %s400 = sphi 0, %s386
      %s404 = sphi 0, %s404
      %s406 = sphi 0, %s404
      %s407 = sphi 0, %s406
      %s421 = sphi 0, %s407
      %s427 = sphi 0, %s429
      %s430 = sphi 0, %s427
      %s431 = sphi 0, %s430
      %s447 = sphi 0, %s431
    $region4: #{tpu_custom_call.1} parent=1 // loop_header_branch
      %37 = sbr.rel (%p35) target = $region8
    $region5: #{tpu_custom_call.1} parent=1 // loop_body
      %s39 = ssub.s32 %s34, 1
      %s40 = ssub.s32 %s34, 2
      %s41 = sadd.s32 %s34, 1
      %s42 = ssub.s32 %s34, %s41
      %p43 = scmp.eq.s32.totalorder %s42, 0
      %s45 = sadd.s32 %s44, 1
      %s46 = scalar_select %p43, %s44, %s45
      %p49 = pneg %p43
      %p50 = scmp.eq.s32.totalorder %s34, 1
      %p51 = por %p49, %p50
      %p52 = scmp.ne.s32.totalorder %s44, %s47
      %p53 = scmp.eq.s32.totalorder %s34, 0
      %p54 = por %p52, %p53
      %p55 = scmp.ne.s32.totalorder %s44, %s47
      %p56 = scmp.eq.s32.totalorder %s39, 1
      %p57 = por %p55, %p56
      %p58 = scmp.ne.s32.totalorder %s47, %s48
      %p59 = scmp.eq.s32.totalorder %s39, 0
      %p60 = por %p58, %p59
      %p61 = scmp.ne.s32.totalorder %s47, %s48
      %p62 = scmp.eq.s32.totalorder %s40, 1
      %p63 = por %p61, %p62
      %p65 = scmp.ne.s32.totalorder %s48, %s64
      %p66 = scmp.eq.s32.totalorder %s40, 0
      %p67 = por %p65, %p66
      %s69 = sadd.s32 %s68, 1
      %p72 = scmp.eq.s32.totalorder %s34, 1
      %p73 = scmp.ne.s32.totalorder %s68, %s70
      %p74 = scmp.eq.s32.totalorder %s34, 0
      %p75 = por %p73, %p74
      %p76 = scmp.ne.s32.totalorder %s68, %s70
      %p77 = scmp.eq.s32.totalorder %s39, 1
      %p78 = por %p76, %p77
      %p79 = scmp.ne.s32.totalorder %s70, %s71
      %p80 = scmp.eq.s32.totalorder %s39, 0
      %p81 = por %p79, %p80
      %p82 = scmp.ne.s32.totalorder %s70, %s71
      %p83 = scmp.eq.s32.totalorder %s40, 1
      %p84 = por %p82, %p83
      %p86 = scmp.ne.s32.totalorder %s71, %s85
      %p87 = scmp.eq.s32.totalorder %s40, 0
      %p88 = por %p86, %p87
      %s90 = sadd.s32 %s89, 1
      %p93 = scmp.eq.s32.totalorder %s34, 1
      %p94 = scmp.ne.s32.totalorder %s89, %s91
      %p95 = scmp.eq.s32.totalorder %s34, 0
      %p96 = por %p94, %p95
      %p97 = scmp.ne.s32.totalorder %s89, %s91
      %p98 = scmp.eq.s32.totalorder %s39, 1
      %p99 = por %p97, %p98
      %p100 = scmp.ne.s32.totalorder %s91, %s92
      %p101 = scmp.eq.s32.totalorder %s39, 0
      %p102 = por %p100, %p101
      %p103 = scmp.ne.s32.totalorder %s91, %s92
      %p104 = scmp.eq.s32.totalorder %s40, 1
      %p105 = por %p103, %p104
      %p107 = scmp.ne.s32.totalorder %s92, %s106
      %p108 = scmp.eq.s32.totalorder %s40, 0
      %p109 = por %p107, %p108
      %s111 = sadd.s32 %s110, 1
      %p114 = scmp.eq.s32.totalorder %s34, 1
      %p115 = scmp.ne.s32.totalorder %s110, %s112
      %p116 = scmp.eq.s32.totalorder %s34, 0
      %p117 = por %p115, %p116
      %p118 = scmp.ne.s32.totalorder %s110, %s112
      %p119 = scmp.eq.s32.totalorder %s39, 1
      %p120 = por %p118, %p119
      %p121 = scmp.ne.s32.totalorder %s112, %s113
      %p122 = scmp.eq.s32.totalorder %s39, 0
      %p123 = por %p121, %p122
      %p124 = scmp.ne.s32.totalorder %s112, %s113
      %p125 = scmp.eq.s32.totalorder %s40, 1
      %p126 = por %p124, %p125
      %p128 = scmp.ne.s32.totalorder %s113, %s127
      %p129 = scmp.eq.s32.totalorder %s40, 0
      %p130 = por %p128, %p129
      %s132 = sadd.s32 %s131, 1
      %p135 = scmp.eq.s32.totalorder %s34, 1
      %p136 = scmp.ne.s32.totalorder %s131, %s133
      %p137 = scmp.eq.s32.totalorder %s34, 0
      %p138 = por %p136, %p137
      %p139 = scmp.ne.s32.totalorder %s131, %s133
      %p140 = scmp.eq.s32.totalorder %s39, 1
      %p141 = por %p139, %p140
      %p142 = scmp.ne.s32.totalorder %s133, %s134
      %p143 = scmp.eq.s32.totalorder %s39, 0
      %p144 = por %p142, %p143
      %p145 = scmp.ne.s32.totalorder %s133, %s134
      %p146 = scmp.eq.s32.totalorder %s40, 1
      %p147 = por %p145, %p146
      %p149 = scmp.ne.s32.totalorder %s134, %s148
      %p150 = scmp.eq.s32.totalorder %s40, 0
      %p151 = por %p149, %p150
      %s153 = sadd.s32 %s152, 1
      %p156 = scmp.eq.s32.totalorder %s34, 1
      %p157 = scmp.ne.s32.totalorder %s152, %s154
      %p158 = scmp.eq.s32.totalorder %s34, 0
      %p159 = por %p157, %p158
      %p160 = scmp.ne.s32.totalorder %s152, %s154
      %p161 = scmp.eq.s32.totalorder %s39, 1
      %p162 = por %p160, %p161
      %p163 = scmp.ne.s32.totalorder %s154, %s155
      %p164 = scmp.eq.s32.totalorder %s39, 0
      %p165 = por %p163, %p164
      %p166 = scmp.ne.s32.totalorder %s154, %s155
      %p167 = scmp.eq.s32.totalorder %s40, 1
      %p168 = por %p166, %p167
      %p170 = scmp.ne.s32.totalorder %s155, %s169
      %p171 = scmp.eq.s32.totalorder %s40, 0
      %p172 = por %p170, %p171
      %s174 = sadd.s32 %s173, 1
      %p177 = scmp.eq.s32.totalorder %s34, 1
      %p178 = scmp.ne.s32.totalorder %s173, %s175
      %p179 = scmp.eq.s32.totalorder %s34, 0
      %p180 = por %p178, %p179
      %p181 = scmp.ne.s32.totalorder %s173, %s175
      %p182 = scmp.eq.s32.totalorder %s39, 1
      %p183 = por %p181, %p182
      %p184 = scmp.ne.s32.totalorder %s175, %s176
      %p185 = scmp.eq.s32.totalorder %s39, 0
      %p186 = por %p184, %p185
      %p187 = scmp.ne.s32.totalorder %s175, %s176
      %p188 = scmp.eq.s32.totalorder %s40, 1
      %p189 = por %p187, %p188
      %p191 = scmp.ne.s32.totalorder %s176, %s190
      %p192 = scmp.eq.s32.totalorder %s40, 0
      %p193 = por %p191, %p192
      %s195 = sadd.s32 %s194, 1
      %p198 = scmp.eq.s32.totalorder %s34, 1
      %p199 = scmp.ne.s32.totalorder %s194, %s196
      %p200 = scmp.eq.s32.totalorder %s34, 0
      %p201 = por %p199, %p200
      %p202 = scmp.ne.s32.totalorder %s194, %s196
      %p203 = scmp.eq.s32.totalorder %s39, 1
      %p204 = por %p202, %p203
      %p205 = scmp.ne.s32.totalorder %s196, %s197
      %p206 = scmp.eq.s32.totalorder %s39, 0
      %p207 = por %p205, %p206
      %p208 = scmp.ne.s32.totalorder %s196, %s197
      %p209 = scmp.eq.s32.totalorder %s40, 1
      %p210 = por %p208, %p209
      %p212 = scmp.ne.s32.totalorder %s197, %s211
      %p213 = scmp.eq.s32.totalorder %s40, 0
      %p214 = por %p212, %p213
      %s216 = sadd.s32 %s215, 1
      %p219 = scmp.eq.s32.totalorder %s34, 1
      %p220 = scmp.ne.s32.totalorder %s215, %s217
      %p221 = scmp.eq.s32.totalorder %s34, 0
      %p222 = por %p220, %p221
      %p223 = scmp.ne.s32.totalorder %s215, %s217
      %p224 = scmp.eq.s32.totalorder %s39, 1
      %p225 = por %p223, %p224
      %p226 = scmp.ne.s32.totalorder %s217, %s218
      %p227 = scmp.eq.s32.totalorder %s39, 0
      %p228 = por %p226, %p227
      %p229 = scmp.ne.s32.totalorder %s217, %s218
      %p230 = scmp.eq.s32.totalorder %s40, 1
      %p231 = por %p229, %p230
      %p233 = scmp.ne.s32.totalorder %s218, %s232
      %p234 = scmp.eq.s32.totalorder %s40, 0
      %p235 = por %p233, %p234
      %s237 = sadd.s32 %s236, 1
      %p240 = scmp.eq.s32.totalorder %s34, 1
      %p241 = scmp.ne.s32.totalorder %s236, %s238
      %p242 = scmp.eq.s32.totalorder %s34, 0
      %p243 = por %p241, %p242
      %p244 = scmp.ne.s32.totalorder %s236, %s238
      %p245 = scmp.eq.s32.totalorder %s39, 1
      %p246 = por %p244, %p245
      %p247 = scmp.ne.s32.totalorder %s238, %s239
      %p248 = scmp.eq.s32.totalorder %s39, 0
      %p249 = por %p247, %p248
      %p250 = scmp.ne.s32.totalorder %s238, %s239
      %p251 = scmp.eq.s32.totalorder %s40, 1
      %p252 = por %p250, %p251
      %p254 = scmp.ne.s32.totalorder %s239, %s253
      %p255 = scmp.eq.s32.totalorder %s40, 0
      %p256 = por %p254, %p255
      %s258 = sadd.s32 %s257, 1
      %p261 = scmp.eq.s32.totalorder %s34, 1
      %p262 = scmp.ne.s32.totalorder %s257, %s259
      %p263 = scmp.eq.s32.totalorder %s34, 0
      %p264 = por %p262, %p263
      %p265 = scmp.ne.s32.totalorder %s257, %s259
      %p266 = scmp.eq.s32.totalorder %s39, 1
      %p267 = por %p265, %p266
      %p268 = scmp.ne.s32.totalorder %s259, %s260
      %p269 = scmp.eq.s32.totalorder %s39, 0
      %p270 = por %p268, %p269
      %p271 = scmp.ne.s32.totalorder %s259, %s260
      %p272 = scmp.eq.s32.totalorder %s40, 1
      %p273 = por %p271, %p272
      %p275 = scmp.ne.s32.totalorder %s260, %s274
      %p276 = scmp.eq.s32.totalorder %s40, 0
      %p277 = por %p275, %p276
      %s279 = sadd.s32 %s278, 1
      %p282 = scmp.eq.s32.totalorder %s34, 1
      %p283 = scmp.ne.s32.totalorder %s278, %s280
      %p284 = scmp.eq.s32.totalorder %s34, 0
      %p285 = por %p283, %p284
      %p286 = scmp.ne.s32.totalorder %s278, %s280
      %p287 = scmp.eq.s32.totalorder %s39, 1
      %p288 = por %p286, %p287
      %p289 = scmp.ne.s32.totalorder %s280, %s281
      %p290 = scmp.eq.s32.totalorder %s39, 0
      %p291 = por %p289, %p290
      %p292 = scmp.ne.s32.totalorder %s280, %s281
      %p293 = scmp.eq.s32.totalorder %s40, 1
      %p294 = por %p292, %p293
      %p296 = scmp.ne.s32.totalorder %s281, %s295
      %p297 = scmp.eq.s32.totalorder %s40, 0
      %p298 = por %p296, %p297
      %s300 = sadd.s32 %s299, 1
      %p303 = scmp.eq.s32.totalorder %s34, 1
      %p304 = scmp.ne.s32.totalorder %s299, %s301
      %p305 = scmp.eq.s32.totalorder %s34, 0
      %p306 = por %p304, %p305
      %p307 = scmp.ne.s32.totalorder %s299, %s301
      %p308 = scmp.eq.s32.totalorder %s39, 1
      %p309 = por %p307, %p308
      %p310 = scmp.ne.s32.totalorder %s301, %s302
      %p311 = scmp.eq.s32.totalorder %s39, 0
      %p312 = por %p310, %p311
      %p313 = scmp.ne.s32.totalorder %s301, %s302
      %p314 = scmp.eq.s32.totalorder %s40, 1
      %p315 = por %p313, %p314
      %p317 = scmp.ne.s32.totalorder %s302, %s316
      %p318 = scmp.eq.s32.totalorder %s40, 0
      %p319 = por %p317, %p318
      %s321 = sadd.s32 %s320, 1
      %p324 = scmp.eq.s32.totalorder %s34, 1
      %p325 = scmp.ne.s32.totalorder %s320, %s322
      %p326 = scmp.eq.s32.totalorder %s34, 0
      %p327 = por %p325, %p326
      %p328 = scmp.ne.s32.totalorder %s320, %s322
      %p329 = scmp.eq.s32.totalorder %s39, 1
      %p330 = por %p328, %p329
      %p331 = scmp.ne.s32.totalorder %s322, %s323
      %p332 = scmp.eq.s32.totalorder %s39, 0
      %p333 = por %p331, %p332
      %p334 = scmp.ne.s32.totalorder %s322, %s323
      %p335 = scmp.eq.s32.totalorder %s40, 1
      %p336 = por %p334, %p335
      %p338 = scmp.ne.s32.totalorder %s323, %s337
      %p339 = scmp.eq.s32.totalorder %s40, 0
      %p340 = por %p338, %p339
      %s342 = sadd.s32 %s341, 1
      %p345 = scmp.eq.s32.totalorder %s34, 1
      %p346 = scmp.ne.s32.totalorder %s341, %s343
      %p347 = scmp.eq.s32.totalorder %s34, 0
      %p348 = por %p346, %p347
      %p349 = scmp.ne.s32.totalorder %s341, %s343
      %p350 = scmp.eq.s32.totalorder %s39, 1
      %p351 = por %p349, %p350
      %p352 = scmp.ne.s32.totalorder %s343, %s344
      %p353 = scmp.eq.s32.totalorder %s39, 0
      %p354 = por %p352, %p353
      %p355 = scmp.ne.s32.totalorder %s343, %s344
      %p356 = scmp.eq.s32.totalorder %s40, 1
      %p357 = por %p355, %p356
      %p359 = scmp.ne.s32.totalorder %s344, %s358
      %p360 = scmp.eq.s32.totalorder %s40, 0
      %p361 = por %p359, %p360
      %s363 = sadd.s32 %s362, 1
      %p366 = scmp.eq.s32.totalorder %s34, 1
      %p367 = scmp.ne.s32.totalorder %s362, %s364
      %p368 = scmp.eq.s32.totalorder %s34, 0
      %p369 = por %p367, %p368
      %p370 = scmp.ne.s32.totalorder %s362, %s364
      %p371 = scmp.eq.s32.totalorder %s39, 1
      %p372 = por %p370, %p371
      %p373 = scmp.ne.s32.totalorder %s364, %s365
      %p374 = scmp.eq.s32.totalorder %s39, 0
      %p375 = por %p373, %p374
      %p376 = scmp.ne.s32.totalorder %s364, %s365
      %p377 = scmp.eq.s32.totalorder %s40, 1
      %p378 = por %p376, %p377
      %p380 = scmp.ne.s32.totalorder %s365, %s379
      %p381 = scmp.eq.s32.totalorder %s40, 0
      %p382 = por %p380, %p381
      %s384 = sadd.s32 %s383, 1
      %p387 = scmp.eq.s32.totalorder %s34, 1
      %p388 = scmp.ne.s32.totalorder %s383, %s385
      %p389 = scmp.eq.s32.totalorder %s34, 0
      %p390 = por %p388, %p389
      %p391 = scmp.ne.s32.totalorder %s383, %s385
      %p392 = scmp.eq.s32.totalorder %s39, 1
      %p393 = por %p391, %p392
      %p394 = scmp.ne.s32.totalorder %s385, %s386
      %p395 = scmp.eq.s32.totalorder %s39, 0
      %p396 = por %p394, %p395
      %p397 = scmp.ne.s32.totalorder %s385, %s386
      %p398 = scmp.eq.s32.totalorder %s40, 1
      %p399 = por %p397, %p398
      %p401 = scmp.ne.s32.totalorder %s386, %s400
      %p402 = scmp.eq.s32.totalorder %s40, 0
      %p403 = por %p401, %p402
      %s405 = sadd.s32 %s404, 1
      %p408 = scmp.eq.s32.totalorder %s34, 1
      %p409 = scmp.ne.s32.totalorder %s404, %s406
      %p410 = scmp.eq.s32.totalorder %s34, 0
      %p411 = por %p409, %p410
      %p412 = scmp.ne.s32.totalorder %s404, %s406
      %p413 = scmp.eq.s32.totalorder %s39, 1
      %p414 = por %p412, %p413
      %p415 = scmp.ne.s32.totalorder %s406, %s407
      %p416 = scmp.eq.s32.totalorder %s39, 0
      %p417 = por %p415, %p416
      %p418 = scmp.ne.s32.totalorder %s406, %s407
      %p419 = scmp.eq.s32.totalorder %s40, 1
      %p420 = por %p418, %p419
      %p422 = scmp.ne.s32.totalorder %s407, %s421
      %p423 = scmp.eq.s32.totalorder %s40, 0
      %p424 = por %p422, %p423
      %s425 = ssub.s32 %s34, %s41
      %p426 = scmp.eq.s32.totalorder %s425, 0
      %s428 = sadd.s32 %s427, 1
      %s429 = scalar_select %p426, %s427, %s428
      %p432 = pneg %p426
      %p433 = scmp.eq.s32.totalorder %s34, 1
      %p434 = por %p432, %p433
      %p435 = scmp.ne.s32.totalorder %s427, %s430
      %p436 = scmp.eq.s32.totalorder %s34, 0
      %p437 = por %p435, %p436
      %p438 = scmp.ne.s32.totalorder %s427, %s430
      %p439 = scmp.eq.s32.totalorder %s39, 1
      %p440 = por %p438, %p439
      %p441 = scmp.ne.s32.totalorder %s430, %s431
      %p442 = scmp.eq.s32.totalorder %s39, 0
      %p443 = por %p441, %p442
      %p444 = scmp.ne.s32.totalorder %s430, %s431
      %p445 = scmp.eq.s32.totalorder %s40, 1
      %p446 = por %p444, %p445
      %p448 = scmp.ne.s32.totalorder %s431, %s447
      %p449 = scmp.eq.s32.totalorder %s40, 0
      %p450 = por %p448, %p449
      %p451 = scmp.le.s32.totalorder 1, %s34
      %p452 = scmp.lt.s32.totalorder %s34, 3
      %p453 = pnand %p451, %p452
      %p454 = pneg %p453
      // Predicated region
      $region9: #{tpu_custom_call.1} parent=5 // pred_check
        _
      $region10: #{tpu_custom_call.1} parent=5 // pred_check_branch
        %456 = sbr.rel (%p453) target = $region12
      $region11: #{tpu_custom_call.1} parent=5 // pred_region
        %s457 = ssub.s32 %s34, 1
        // Predicated region
        $region13: #{tpu_custom_call.1} parent=11 // pred_check
          %p458 = pneg %p81
        $region14: #{tpu_custom_call.1} parent=11 // pred_check_branch
          %460 = sbr.rel (%p458) target = $region16
        $region15: #{tpu_custom_call.1} parent=11 // pred_region
          %s462 = ssub.s32 128, 128
          %463 = vsyncadd [#allocation6], %s462
          %s465 = sshll.u32 [#allocation5], 4
          %s466 = int_to_ptr.vmem [resolvable:$true] %s465
          %468 = dma.hbm_to_vmem [thread:$0]  %s1, 128, %s466, [#allocation6]
        $region16: #{tpu_custom_call.1} parent=11 // pred_fallthru
          _
        // Predicated region
        $region17: #{tpu_custom_call.1} parent=11 // pred_check
          %p469 = pneg %p102
        $region18: #{tpu_custom_call.1} parent=11 // pred_check_branch
          %471 = sbr.rel (%p469) target = $region20
        $region19: #{tpu_custom_call.1} parent=11 // pred_region
          %s473 = ssub.s32 8192, 8192
          %474 = vsyncadd [#allocation6], %s473
          %s475 = sshll.u32 [#allocation7], 4
          %s476 = int_to_ptr.vmem [resolvable:$true] %s475
          %481 = dma.hbm_to_vmem [thread:$0]  %s2, 8192, %s476, [#allocation6], 128, 128, 8
        $region20: #{tpu_custom_call.1} parent=11 // pred_fallthru
          _
        // Predicated region
        $region21: #{tpu_custom_call.1} parent=11 // pred_check
          %p482 = pneg %p123
        $region22: #{tpu_custom_call.1} parent=11 // pred_check_branch
          %484 = sbr.rel (%p482) target = $region24
        $region23: #{tpu_custom_call.1} parent=11 // pred_region
          _
        $region24: #{tpu_custom_call.1} parent=11 // pred_fallthru
          _
        // Predicated region
        $region25: #{tpu_custom_call.1} parent=11 // pred_check
          %p485 = pneg %p144
        $region26: #{tpu_custom_call.1} parent=11 // pred_check_branch
          %487 = sbr.rel (%p485) target = $region28
        $region27: #{tpu_custom_call.1} parent=11 // pred_region
          %s489 = ssub.s32 8192, 8192
          %490 = vsyncadd [#allocation9], %s489
          %s491 = sshll.u32 [#allocation8], 4
          %s492 = int_to_ptr.vmem [resolvable:$true] %s491
          %497 = dma.hbm_to_vmem [thread:$0]  %s4, 8192, %s492, [#allocation9], 128, 128, 8
        $region28: #{tpu_custom_call.1} parent=11 // pred_fallthru
          _
        // Predicated region
        $region29: #{tpu_custom_call.1} parent=11 // pred_check
          %p498 = pneg %p165
        $region30: #{tpu_custom_call.1} parent=11 // pred_check_branch
          %500 = sbr.rel (%p498) target = $region32
        $region31: #{tpu_custom_call.1} parent=11 // pred_region
          _
        $region32: #{tpu_custom_call.1} parent=11 // pred_fallthru
          _
        // Predicated region
        $region33: #{tpu_custom_call.1} parent=11 // pred_check
          %p501 = pneg %p186
        $region34: #{tpu_custom_call.1} parent=11 // pred_check_branch
          %503 = sbr.rel (%p501) target = $region36
        $region35: #{tpu_custom_call.1} parent=11 // pred_region
          %s505 = ssub.s32 8192, 8192
          %506 = vsyncadd [#allocation9], %s505
          %s507 = sshll.u32 [#allocation10], 4
          %s508 = int_to_ptr.vmem [resolvable:$true] %s507
          %513 = dma.hbm_to_vmem [thread:$0]  %s6, 8192, %s508, [#allocation9], 128, 128, 8
        $region36: #{tpu_custom_call.1} parent=11 // pred_fallthru
          _
        // Predicated region
        $region37: #{tpu_custom_call.1} parent=11 // pred_check
          %p514 = pneg %p207
        $region38: #{tpu_custom_call.1} parent=11 // pred_check_branch
          %516 = sbr.rel (%p514) target = $region40
        $region39: #{tpu_custom_call.1} parent=11 // pred_region
          _
        $region40: #{tpu_custom_call.1} parent=11 // pred_fallthru
          _
        // Predicated region
        $region41: #{tpu_custom_call.1} parent=11 // pred_check
          %p517 = pneg %p228
        $region42: #{tpu_custom_call.1} parent=11 // pred_check_branch
          %519 = sbr.rel (%p517) target = $region44
        $region43: #{tpu_custom_call.1} parent=11 // pred_region
          %s521 = ssub.s32 8192, 8192
          %522 = vsyncadd [#allocation12], %s521
          %s523 = sshll.u32 [#allocation11], 4
          %s524 = int_to_ptr.vmem [resolvable:$true] %s523
          %529 = dma.hbm_to_vmem [thread:$0]  %s8, 8192, %s524, [#allocation12], 128, 128, 8
        $region44: #{tpu_custom_call.1} parent=11 // pred_fallthru
          _
        // Predicated region
        $region45: #{tpu_custom_call.1} parent=11 // pred_check
          %p530 = pneg %p249
        $region46: #{tpu_custom_call.1} parent=11 // pred_check_branch
          %532 = sbr.rel (%p530) target = $region48
        $region47: #{tpu_custom_call.1} parent=11 // pred_region
          _
        $region48: #{tpu_custom_call.1} parent=11 // pred_fallthru
          _
        // Predicated region
        $region49: #{tpu_custom_call.1} parent=11 // pred_check
          %p533 = pneg %p270
        $region50: #{tpu_custom_call.1} parent=11 // pred_check_branch
          %535 = sbr.rel (%p533) target = $region52
        $region51: #{tpu_custom_call.1} parent=11 // pred_region
          _
        $region52: #{tpu_custom_call.1} parent=11 // pred_fallthru
          _
        // Predicated region
        $region53: #{tpu_custom_call.1} parent=11 // pred_check
          %p536 = pneg %p291
        $region54: #{tpu_custom_call.1} parent=11 // pred_check_branch
          %538 = sbr.rel (%p536) target = $region56
        $region55: #{tpu_custom_call.1} parent=11 // pred_region
          _
        $region56: #{tpu_custom_call.1} parent=11 // pred_fallthru
          _
        // Predicated region
        $region57: #{tpu_custom_call.1} parent=11 // pred_check
          %p539 = pneg %p312
        $region58: #{tpu_custom_call.1} parent=11 // pred_check_branch
          %541 = sbr.rel (%p539) target = $region60
        $region59: #{tpu_custom_call.1} parent=11 // pred_region
          %s543 = ssub.s32 2048, 2048
          %544 = vsyncadd [#allocation12], %s543
          %s545 = sshll.u32 [#allocation13], 4
          %s546 = int_to_ptr.vmem [resolvable:$true] %s545
          %551 = dma.hbm_to_vmem [thread:$0]  %s12, 2048, %s546, [#allocation12], 128, 128, 8
        $region60: #{tpu_custom_call.1} parent=11 // pred_fallthru
          _
        // Predicated region
        $region61: #{tpu_custom_call.1} parent=11 // pred_check
          %p552 = pneg %p333
        $region62: #{tpu_custom_call.1} parent=11 // pred_check_branch
          %554 = sbr.rel (%p552) target = $region64
        $region63: #{tpu_custom_call.1} parent=11 // pred_region
          _
        $region64: #{tpu_custom_call.1} parent=11 // pred_fallthru
          _
        // Predicated region
        $region65: #{tpu_custom_call.1} parent=11 // pred_check
          %p555 = pneg %p354
        $region66: #{tpu_custom_call.1} parent=11 // pred_check_branch
          %557 = sbr.rel (%p555) target = $region68
        $region67: #{tpu_custom_call.1} parent=11 // pred_region
          %s559 = ssub.s32 2048, 2048
          %560 = vsyncadd [#allocation15], %s559
          %s561 = sshll.u32 [#allocation14], 4
          %s562 = int_to_ptr.vmem [resolvable:$true] %s561
          %567 = dma.hbm_to_vmem [thread:$0]  %s14, 2048, %s562, [#allocation15], 128, 128, 8
        $region68: #{tpu_custom_call.1} parent=11 // pred_fallthru
          _
        // Predicated region
        $region69: #{tpu_custom_call.1} parent=11 // pred_check
          %p568 = pneg %p375
        $region70: #{tpu_custom_call.1} parent=11 // pred_check_branch
          %570 = sbr.rel (%p568) target = $region72
        $region71: #{tpu_custom_call.1} parent=11 // pred_region
          _
        $region72: #{tpu_custom_call.1} parent=11 // pred_fallthru
          _
        // Predicated region
        $region73: #{tpu_custom_call.1} parent=11 // pred_check
          %p571 = pneg %p396
        $region74: #{tpu_custom_call.1} parent=11 // pred_check_branch
          %573 = sbr.rel (%p571) target = $region76
        $region75: #{tpu_custom_call.1} parent=11 // pred_region
          _
        $region76: #{tpu_custom_call.1} parent=11 // pred_fallthru
          _
        // Predicated region
        $region77: #{tpu_custom_call.1} parent=11 // pred_check
          %p574 = pneg %p417
        $region78: #{tpu_custom_call.1} parent=11 // pred_check_branch
          %576 = sbr.rel (%p574) target = $region80
        $region79: #{tpu_custom_call.1} parent=11 // pred_region
          _
        $region80: #{tpu_custom_call.1} parent=11 // pred_fallthru
          _
      $region12: #{tpu_custom_call.1} parent=5 // pred_fallthru
        _
      %p577 = scmp.lt.s32.totalorder %s34, 2
      // Predicated region
      $region81: #{tpu_custom_call.1} parent=5 // pred_check
        %p578 = pneg %p577
      $region82: #{tpu_custom_call.1} parent=5 // pred_check_branch
        %580 = sbr.rel (%p578) target = $region84
      $region83: #{tpu_custom_call.1} parent=5 // pred_region
        // Predicated region
        $region85: #{tpu_custom_call.1} parent=83 // pred_check
          %p581 = pneg %p54
        $region86: #{tpu_custom_call.1} parent=83 // pred_check_branch
          %583 = sbr.rel (%p581) target = $region88
        $region87: #{tpu_custom_call.1} parent=83 // pred_region
          %s584 = sand.u32 %s44, 1
          %s585 = scalar_lea.sflag [#allocation3], %s584
          %s586 = sand.u32 %s44, 1
          %s587 = smul.addr %s586, 8
          %s588 = scalar_lea.vmem [#allocation2], %s587
          %s590 = ssub.s32 128, 128
          %591 = vsyncadd %s585, %s590
          %s592 = smul.addr %s34, 128
          %s593 = scalar_lea.hbm %s0, %s592
          %s595 = sshll.u32 %s588, 4
          %s596 = int_to_ptr.vmem [resolvable:$true] %s595
          %598 = dma.hbm_to_vmem [thread:$0]  %s593, 128, %s596, %s585
        $region88: #{tpu_custom_call.1} parent=83 // pred_fallthru
          _
      $region84: #{tpu_custom_call.1} parent=5 // pred_fallthru
        _
      %p599 = scmp.le.s32.totalorder 1, %s34
      %p600 = scmp.lt.s32.totalorder %s34, 3
      %p601 = pnand %p599, %p600
      %p602 = pneg %p601
      // Predicated region
      $region89: #{tpu_custom_call.1} parent=5 // pred_check
        _
      $region90: #{tpu_custom_call.1} parent=5 // pred_check_branch
        %604 = sbr.rel (%p601) target = $region92
      $region91: #{tpu_custom_call.1} parent=5 // pred_region
        %s605 = ssub.s32 %s34, 1
        %s606 = sand.u32 %s47, 1
        %s607 = scalar_lea.sflag [#allocation3], %s606
        %s608 = sand.u32 %s47, 1
        %s609 = smul.addr %s608, 8
        %s610 = scalar_lea.vmem [#allocation2], %s609
        // Predicated region
        $region93: #{tpu_custom_call.1} parent=91 // pred_check
          %p611 = pneg %p60
        $region94: #{tpu_custom_call.1} parent=91 // pred_check_branch
          %613 = sbr.rel (%p611) target = $region96
        $region95: #{tpu_custom_call.1} parent=91 // pred_region
          %614 = dma.done %s607, 128
        $region96: #{tpu_custom_call.1} parent=91 // pred_fallthru
          _
        // Predicated region
        $region97: #{tpu_custom_call.1} parent=91 // pred_check
          %p615 = pneg %p81
        $region98: #{tpu_custom_call.1} parent=91 // pred_check_branch
          %617 = sbr.rel (%p615) target = $region100
        $region99: #{tpu_custom_call.1} parent=91 // pred_region
          %618 = dma.done [#allocation6], 128
        $region100: #{tpu_custom_call.1} parent=91 // pred_fallthru
          _
        // Predicated region
        $region101: #{tpu_custom_call.1} parent=91 // pred_check
          %p619 = pneg %p102
        $region102: #{tpu_custom_call.1} parent=91 // pred_check_branch
          %621 = sbr.rel (%p619) target = $region104
        $region103: #{tpu_custom_call.1} parent=91 // pred_region
          %622 = dma.done [#allocation6], 8192
        $region104: #{tpu_custom_call.1} parent=91 // pred_fallthru
          _
        // Predicated region
        $region105: #{tpu_custom_call.1} parent=91 // pred_check
          %p623 = pneg %p144
        $region106: #{tpu_custom_call.1} parent=91 // pred_check_branch
          %625 = sbr.rel (%p623) target = $region108
        $region107: #{tpu_custom_call.1} parent=91 // pred_region
          %626 = dma.done [#allocation9], 8192
        $region108: #{tpu_custom_call.1} parent=91 // pred_fallthru
          _
        // Predicated region
        $region109: #{tpu_custom_call.1} parent=91 // pred_check
          %p627 = pneg %p186
        $region110: #{tpu_custom_call.1} parent=91 // pred_check_branch
          %629 = sbr.rel (%p627) target = $region112
        $region111: #{tpu_custom_call.1} parent=91 // pred_region
          %630 = dma.done [#allocation9], 8192
        $region112: #{tpu_custom_call.1} parent=91 // pred_fallthru
          _
        // Predicated region
        $region113: #{tpu_custom_call.1} parent=91 // pred_check
          %p631 = pneg %p228
        $region114: #{tpu_custom_call.1} parent=91 // pred_check_branch
          %633 = sbr.rel (%p631) target = $region116
        $region115: #{tpu_custom_call.1} parent=91 // pred_region
          %634 = dma.done [#allocation12], 8192
        $region116: #{tpu_custom_call.1} parent=91 // pred_fallthru
          _
        // Predicated region
        $region117: #{tpu_custom_call.1} parent=91 // pred_check
          %p635 = pneg %p312
        $region118: #{tpu_custom_call.1} parent=91 // pred_check_branch
          %637 = sbr.rel (%p635) target = $region120
        $region119: #{tpu_custom_call.1} parent=91 // pred_region
          %638 = dma.done [#allocation12], 2048
        $region120: #{tpu_custom_call.1} parent=91 // pred_fallthru
          _
        // Predicated region
        $region121: #{tpu_custom_call.1} parent=91 // pred_check
          %p639 = pneg %p354
        $region122: #{tpu_custom_call.1} parent=91 // pred_check_branch
          %641 = sbr.rel (%p639) target = $region124
        $region123: #{tpu_custom_call.1} parent=91 // pred_region
          %642 = dma.done [#allocation15], 2048
        $region124: #{tpu_custom_call.1} parent=91 // pred_fallthru
          _
        %s643 = sand.u32 %s47, 1
        %s644 = scalar_lea.sflag [#allocation3], %s643
        %s645 = sand.u32 %s47, 1
        %s646 = smul.addr %s645, 8
        %s647 = scalar_lea.vmem [#allocation2], %s646
        %p648 = pneg %p60
        %p649 = pneg %p57
        %p650 = pneg %p81
        %p651 = pneg %p78
        %p652 = pneg %p102
        %p653 = pneg %p99
        %p654 = pneg %p123
        %p655 = pneg %p120
        %p656 = pneg %p144
        %p657 = pneg %p141
        %p658 = pneg %p165
        %p659 = pneg %p162
        %p660 = pneg %p186
        %p661 = pneg %p183
        %p662 = pneg %p207
        %p663 = pneg %p204
        %p664 = pneg %p228
        %p665 = pneg %p225
        %p666 = pneg %p249
        %p667 = pneg %p246
        %p668 = pneg %p270
        %p669 = pneg %p267
        %p670 = pneg %p291
        %p671 = pneg %p288
        %p672 = pneg %p312
        %p673 = pneg %p309
        %p674 = pneg %p333
        %p675 = pneg %p330
        %p676 = pneg %p354
        %p677 = pneg %p351
        %p678 = pneg %p375
        %p679 = pneg %p372
        %p680 = pneg %p396
        %p681 = pneg %p393
        %p682 = pneg %p417
        %p683 = pneg %p414
        %p684 = pneg %p443
        %p685 = pneg %p440
        %s686 = sand.u32 %s430, 1
        %s687 = scalar_lea.sflag [#allocation4], %s686
        %s688 = sand.u32 %s430, 1
        %s689 = smul.addr %s688, 8
        %s690 = scalar_lea.vmem [#allocation16], %s689
        %v691 = vld [vmem:[%s610] sm:$0xff]
        %v692 = vld [vmem:[#allocation5] sm:$0xff]
        %v693 = vlaneseq
        %v694 = vand.u32 %v693, 127
        %vm695 = vcmp.lt.s32.totalorder %v694, 32
        %v696 = vld [vmem:[#allocation7] sm:$0xff]
        %v697 = vld [vmem:[#allocation7 + $0x8] sm:$0xff]
        %v698 = vld [vmem:[#allocation7 + $0x10] sm:$0xff]
        %v699 = vld [vmem:[#allocation7 + $0x18] sm:$0xff]
        %v700 = vld [vmem:[#allocation7 + $0x20] sm:$0xff]
        %v701 = vld [vmem:[#allocation7 + $0x28] sm:$0xff]
        %v702 = vld [vmem:[#allocation7 + $0x30] sm:$0xff]
        %v703 = vld [vmem:[#allocation7 + $0x38] sm:$0xff]
        %v704 = vld [vmem:[#allocation7 + $0x40] sm:$0xff]
        %v705 = vld [vmem:[#allocation7 + $0x48] sm:$0xff]
        %v706 = vld [vmem:[#allocation7 + $0x50] sm:$0xff]
        %v707 = vld [vmem:[#allocation7 + $0x58] sm:$0xff]
        %v708 = vld [vmem:[#allocation7 + $0x60] sm:$0xff]
        %v709 = vld [vmem:[#allocation7 + $0x68] sm:$0xff]
        %v710 = vld [vmem:[#allocation7 + $0x70] sm:$0xff]
        %v711 = vld [vmem:[#allocation7 + $0x78] sm:$0xff]
        %v712 = vld [vmem:[%s3] sm:$0x1]
        %v714 = vlaneseq
        %v715 = vshrl.u32 %v714, 7
        %v716 = vsub.s32 0, %v715
        %v717 = vrot.slane %v712, %v716
        %719 = vmatprep.subr.mxu0 0.0
        %720 = vmatpush1.msra.mxu0 %v711
        %721 = vmatprep.subr.mxu0 0.0
        %722 = vmatpush1.msra.mxu0 %v710
        %723 = vmatprep.subr.mxu0 0.0
        %724 = vmatpush1.msra.mxu0 %v709
        %725 = vmatprep.subr.mxu0 0.0
        %726 = vmatpush1.msra.mxu0 %v708
        %727 = vmatprep.subr.mxu0 0.0
        %728 = vmatpush1.msra.mxu0 %v707
        %729 = vmatprep.subr.mxu0 0.0
        %730 = vmatpush1.msra.mxu0 %v706
        %731 = vmatprep.subr.mxu0 0.0
        %732 = vmatpush1.msra.mxu0 %v705
        %733 = vmatprep.subr.mxu0 0.0
        %734 = vmatpush1.msra.mxu0 %v704
        %735 = vmatprep.subr.mxu0 0.0
        %736 = vmatpush1.msra.mxu0 %v703
        %737 = vmatprep.subr.mxu0 0.0
        %738 = vmatpush1.msra.mxu0 %v702
        %739 = vmatprep.subr.mxu0 0.0
        %740 = vmatpush1.msra.mxu0 %v701
        %741 = vmatprep.subr.mxu0 0.0
        %742 = vmatpush1.msra.mxu0 %v700
        %743 = vmatprep.subr.mxu0 0.0
        %744 = vmatpush1.msra.mxu0 %v699
        %745 = vmatprep.subr.mxu0 0.0
        %746 = vmatpush1.msra.mxu0 %v698
        %747 = vmatprep.subr.mxu0 0.0
        %748 = vmatpush1.msra.mxu0 %v697
        %749 = vmatprep.subr.mxu0 0.0
        %750 = vmatpush1.msra.mxu0 %v696
        %751 = vmatprep.subr.mxu0 0.0
        %752 = vmatpush2.msra.mxu0 0.0
        %753 = vmatprep.subr.mxu0 0.0
        %754 = vmatpush2.msra.mxu0 0.0
        %755 = vmatprep.subr.mxu0 0.0
        %756 = vmatpush2.msra.mxu0 0.0
        %757 = vmatprep.subr.mxu0 0.0
        %758 = vmatpush2.msra.mxu0 0.0
        %759 = vmatprep.subr.mxu0 0.0
        %760 = vmatpush2.msra.mxu0 0.0
        %761 = vmatprep.subr.mxu0 0.0
        %762 = vmatpush2.msra.mxu0 0.0
        %763 = vmatprep.subr.mxu0 0.0
        %764 = vmatpush2.msra.mxu0 0.0
        %765 = vmatprep.subr.mxu0 0.0
        %766 = vmatpush2.msra.mxu0 0.0
        %767 = vmatprep.subr.mxu0 0.0
        %768 = vmatpush2.msra.mxu0 0.0
        %769 = vmatprep.subr.mxu0 0.0
        %770 = vmatpush2.msra.mxu0 0.0
        %771 = vmatprep.subr.mxu0 0.0
        %772 = vmatpush2.msra.mxu0 0.0
        %773 = vmatprep.subr.mxu0 0.0
        %774 = vmatpush2.msra.mxu0 0.0
        %775 = vmatprep.subr.mxu0 0.0
        %776 = vmatpush2.msra.mxu0 0.0
        %777 = vmatprep.subr.mxu0 0.0
        %778 = vmatpush2.msra.mxu0 0.0
        %779 = vmatprep.subr.mxu0 0.0
        %780 = vmatpush2.msra.mxu0 0.0
        %781 = vmatprep.subr.mxu0 0.0
        %782 = vmatpush2.msra.mxu0 0.0
        %783 = vmatprep.mubr.f32.mxu0 0.0
        %784 = vmatmul.mubr.f32.gmra.mxu0 %v691
        %v785 = vpop.f32.mrf.mxu0
        %v786 = vadd.f32 %v717, %v785
        %v787 = vpop.f32.mrf.mxu0
        %788 = vdwg.mxu0
        %v789 = vmul.f32 %v786, 0.35355338
        %v790 = vld [vmem:[#allocation8] sm:$0xff]
        %v791 = vld [vmem:[#allocation8 + $0x8] sm:$0xff]
        %v792 = vld [vmem:[#allocation8 + $0x10] sm:$0xff]
        %v793 = vld [vmem:[#allocation8 + $0x18] sm:$0xff]
        %v794 = vld [vmem:[#allocation8 + $0x20] sm:$0xff]
        %v795 = vld [vmem:[#allocation8 + $0x28] sm:$0xff]
        %v796 = vld [vmem:[#allocation8 + $0x30] sm:$0xff]
        %v797 = vld [vmem:[#allocation8 + $0x38] sm:$0xff]
        %v798 = vld [vmem:[#allocation8 + $0x40] sm:$0xff]
        %v799 = vld [vmem:[#allocation8 + $0x48] sm:$0xff]
        %v800 = vld [vmem:[#allocation8 + $0x50] sm:$0xff]
        %v801 = vld [vmem:[#allocation8 + $0x58] sm:$0xff]
        %v802 = vld [vmem:[#allocation8 + $0x60] sm:$0xff]
        %v803 = vld [vmem:[#allocation8 + $0x68] sm:$0xff]
        %v804 = vld [vmem:[#allocation8 + $0x70] sm:$0xff]
        %v805 = vld [vmem:[#allocation8 + $0x78] sm:$0xff]
        %v806 = vld [vmem:[%s5] sm:$0x1]
        %v808 = vlaneseq
        %v809 = vshrl.u32 %v808, 7
        %v810 = vsub.s32 0, %v809
        %v811 = vrot.slane %v806, %v810
        %813 = vmatprep.subr.mxu0 0.0
        %814 = vmatpush1.msra.mxu0 %v805
        %815 = vmatprep.subr.mxu0 0.0
        %816 = vmatpush1.msra.mxu0 %v804
        %817 = vmatprep.subr.mxu0 0.0
        %818 = vmatpush1.msra.mxu0 %v803
        %819 = vmatprep.subr.mxu0 0.0
        %820 = vmatpush1.msra.mxu0 %v802
        %821 = vmatprep.subr.mxu0 0.0
        %822 = vmatpush1.msra.mxu0 %v801
        %823 = vmatprep.subr.mxu0 0.0
        %824 = vmatpush1.msra.mxu0 %v800
        %825 = vmatprep.subr.mxu0 0.0
        %826 = vmatpush1.msra.mxu0 %v799
        %827 = vmatprep.subr.mxu0 0.0
        %828 = vmatpush1.msra.mxu0 %v798
        %829 = vmatprep.subr.mxu0 0.0
        %830 = vmatpush1.msra.mxu0 %v797
        %831 = vmatprep.subr.mxu0 0.0
        %832 = vmatpush1.msra.mxu0 %v796
        %833 = vmatprep.subr.mxu0 0.0
        %834 = vmatpush1.msra.mxu0 %v795
        %835 = vmatprep.subr.mxu0 0.0
        %836 = vmatpush1.msra.mxu0 %v794
        %837 = vmatprep.subr.mxu0 0.0
        %838 = vmatpush1.msra.mxu0 %v793
        %839 = vmatprep.subr.mxu0 0.0
        %840 = vmatpush1.msra.mxu0 %v792
        %841 = vmatprep.subr.mxu0 0.0
        %842 = vmatpush1.msra.mxu0 %v791
        %843 = vmatprep.subr.mxu0 0.0
        %844 = vmatpush1.msra.mxu0 %v790
        %845 = vmatprep.subr.mxu0 0.0
        %846 = vmatpush2.msra.mxu0 0.0
        %847 = vmatprep.subr.mxu0 0.0
        %848 = vmatpush2.msra.mxu0 0.0
        %849 = vmatprep.subr.mxu0 0.0
        %850 = vmatpush2.msra.mxu0 0.0
        %851 = vmatprep.subr.mxu0 0.0
        %852 = vmatpush2.msra.mxu0 0.0
        %853 = vmatprep.subr.mxu0 0.0
        %854 = vmatpush2.msra.mxu0 0.0
        %855 = vmatprep.subr.mxu0 0.0
        %856 = vmatpush2.msra.mxu0 0.0
        %857 = vmatprep.subr.mxu0 0.0
        %858 = vmatpush2.msra.mxu0 0.0
        %859 = vmatprep.subr.mxu0 0.0
        %860 = vmatpush2.msra.mxu0 0.0
        %861 = vmatprep.subr.mxu0 0.0
        %862 = vmatpush2.msra.mxu0 0.0
        %863 = vmatprep.subr.mxu0 0.0
        %864 = vmatpush2.msra.mxu0 0.0
        %865 = vmatprep.subr.mxu0 0.0
        %866 = vmatpush2.msra.mxu0 0.0
        %867 = vmatprep.subr.mxu0 0.0
        %868 = vmatpush2.msra.mxu0 0.0
        %869 = vmatprep.subr.mxu0 0.0
        %870 = vmatpush2.msra.mxu0 0.0
        %871 = vmatprep.subr.mxu0 0.0
        %872 = vmatpush2.msra.mxu0 0.0
        %873 = vmatprep.subr.mxu0 0.0
        %874 = vmatpush2.msra.mxu0 0.0
        %875 = vmatprep.subr.mxu0 0.0
        %876 = vmatpush2.msra.mxu0 0.0
        %877 = vmatprep.mubr.f32.mxu0 0.0
        %878 = vmatmul.mubr.f32.gmra.mxu0 %v691
        %v879 = vpop.f32.mrf.mxu0
        %v880 = vadd.f32 %v811, %v879
        %v881 = vpop.f32.mrf.mxu0
        %882 = vdwg.mxu0
        %v883 = vld [vmem:[#allocation10] sm:$0xff]
        %v884 = vld [vmem:[#allocation10 + $0x8] sm:$0xff]
        %v885 = vld [vmem:[#allocation10 + $0x10] sm:$0xff]
        %v886 = vld [vmem:[#allocation10 + $0x18] sm:$0xff]
        %v887 = vld [vmem:[#allocation10 + $0x20] sm:$0xff]
        %v888 = vld [vmem:[#allocation10 + $0x28] sm:$0xff]
        %v889 = vld [vmem:[#allocation10 + $0x30] sm:$0xff]
        %v890 = vld [vmem:[#allocation10 + $0x38] sm:$0xff]
        %v891 = vld [vmem:[#allocation10 + $0x40] sm:$0xff]
        %v892 = vld [vmem:[#allocation10 + $0x48] sm:$0xff]
        %v893 = vld [vmem:[#allocation10 + $0x50] sm:$0xff]
        %v894 = vld [vmem:[#allocation10 + $0x58] sm:$0xff]
        %v895 = vld [vmem:[#allocation10 + $0x60] sm:$0xff]
        %v896 = vld [vmem:[#allocation10 + $0x68] sm:$0xff]
        %v897 = vld [vmem:[#allocation10 + $0x70] sm:$0xff]
        %v898 = vld [vmem:[#allocation10 + $0x78] sm:$0xff]
        %v899 = vld [vmem:[%s7] sm:$0x1]
        %v901 = vlaneseq
        %v902 = vshrl.u32 %v901, 7
        %v903 = vsub.s32 0, %v902
        %v904 = vrot.slane %v899, %v903
        %906 = vmatprep.subr.mxu0 0.0
        %907 = vmatpush1.msra.mxu0 %v898
        %908 = vmatprep.subr.mxu0 0.0
        %909 = vmatpush1.msra.mxu0 %v897
        %910 = vmatprep.subr.mxu0 0.0
        %911 = vmatpush1.msra.mxu0 %v896
        %912 = vmatprep.subr.mxu0 0.0
        %913 = vmatpush1.msra.mxu0 %v895
        %914 = vmatprep.subr.mxu0 0.0
        %915 = vmatpush1.msra.mxu0 %v894
        %916 = vmatprep.subr.mxu0 0.0
        %917 = vmatpush1.msra.mxu0 %v893
        %918 = vmatprep.subr.mxu0 0.0
        %919 = vmatpush1.msra.mxu0 %v892
        %920 = vmatprep.subr.mxu0 0.0
        %921 = vmatpush1.msra.mxu0 %v891
        %922 = vmatprep.subr.mxu0 0.0
        %923 = vmatpush1.msra.mxu0 %v890
        %924 = vmatprep.subr.mxu0 0.0
        %925 = vmatpush1.msra.mxu0 %v889
        %926 = vmatprep.subr.mxu0 0.0
        %927 = vmatpush1.msra.mxu0 %v888
        %928 = vmatprep.subr.mxu0 0.0
        %929 = vmatpush1.msra.mxu0 %v887
        %930 = vmatprep.subr.mxu0 0.0
        %931 = vmatpush1.msra.mxu0 %v886
        %932 = vmatprep.subr.mxu0 0.0
        %933 = vmatpush1.msra.mxu0 %v885
        %934 = vmatprep.subr.mxu0 0.0
        %935 = vmatpush1.msra.mxu0 %v884
        %936 = vmatprep.subr.mxu0 0.0
        %937 = vmatpush1.msra.mxu0 %v883
        %938 = vmatprep.subr.mxu0 0.0
        %939 = vmatpush2.msra.mxu0 0.0
        %940 = vmatprep.subr.mxu0 0.0
        %941 = vmatpush2.msra.mxu0 0.0
        %942 = vmatprep.subr.mxu0 0.0
        %943 = vmatpush2.msra.mxu0 0.0
        %944 = vmatprep.subr.mxu0 0.0
        %945 = vmatpush2.msra.mxu0 0.0
        %946 = vmatprep.subr.mxu0 0.0
        %947 = vmatpush2.msra.mxu0 0.0
        %948 = vmatprep.subr.mxu0 0.0
        %949 = vmatpush2.msra.mxu0 0.0
        %950 = vmatprep.subr.mxu0 0.0
        %951 = vmatpush2.msra.mxu0 0.0
        %952 = vmatprep.subr.mxu0 0.0
        %953 = vmatpush2.msra.mxu0 0.0
        %954 = vmatprep.subr.mxu0 0.0
        %955 = vmatpush2.msra.mxu0 0.0
        %956 = vmatprep.subr.mxu0 0.0
        %957 = vmatpush2.msra.mxu0 0.0
        %958 = vmatprep.subr.mxu0 0.0
        %959 = vmatpush2.msra.mxu0 0.0
        %960 = vmatprep.subr.mxu0 0.0
        %961 = vmatpush2.msra.mxu0 0.0
        %962 = vmatprep.subr.mxu0 0.0
        %963 = vmatpush2.msra.mxu0 0.0
        %964 = vmatprep.subr.mxu0 0.0
        %965 = vmatpush2.msra.mxu0 0.0
        %966 = vmatprep.subr.mxu0 0.0
        %967 = vmatpush2.msra.mxu0 0.0
        %968 = vmatprep.subr.mxu0 0.0
        %969 = vmatpush2.msra.mxu0 0.0
        %970 = vmatprep.mubr.f32.mxu0 0.0
        %971 = vmatmul.mubr.f32.gmra.mxu0 %v691
        %v972 = vpop.f32.mrf.mxu0
        %v973 = vadd.f32 %v904, %v972
        %v974 = vpop.f32.mrf.mxu0
        %975 = vdwg.mxu0
        %976 = vmatprep.subr.mxu0 0.0
        %977 = vmatpush1.xpose.msra.mxu0 0.0
        %978 = vmatprep.subr.mxu0 0.0
        %979 = vmatpush1.xpose.msra.mxu0 0.0
        %980 = vmatprep.subr.mxu0 0.0
        %981 = vmatpush1.xpose.msra.mxu0 0.0
        %982 = vmatprep.subr.mxu0 0.0
        %983 = vmatpush1.xpose.msra.mxu0 0.0
        %984 = vmatprep.subr.mxu0 0.0
        %985 = vmatpush1.xpose.msra.mxu0 0.0
        %986 = vmatprep.subr.mxu0 0.0
        %987 = vmatpush1.xpose.msra.mxu0 0.0
        %988 = vmatprep.subr.mxu0 0.0
        %989 = vmatpush1.xpose.msra.mxu0 0.0
        %990 = vmatprep.subr.mxu0 0.0
        %991 = vmatpush1.xpose.msra.mxu0 0.0
        %992 = vmatprep.subr.mxu0 0.0
        %993 = vmatpush1.xpose.msra.mxu0 0.0
        %994 = vmatprep.subr.mxu0 0.0
        %995 = vmatpush1.xpose.msra.mxu0 0.0
        %996 = vmatprep.subr.mxu0 0.0
        %997 = vmatpush1.xpose.msra.mxu0 0.0
        %998 = vmatprep.subr.mxu0 0.0
        %999 = vmatpush1.xpose.msra.mxu0 0.0
        %1000 = vmatprep.subr.mxu0 0.0
        %1001 = vmatpush1.xpose.msra.mxu0 0.0
        %1002 = vmatprep.subr.mxu0 0.0
        %1003 = vmatpush1.xpose.msra.mxu0 0.0
        %1004 = vmatprep.subr.mxu0 0.0
        %1005 = vmatpush1.xpose.msra.mxu0 0.0
        %1006 = vmatprep.subr.mxu0 0.0
        %1007 = vmatpush1.xpose.msra.mxu0 %v880
        %1008 = vmatprep.subr.mxu0 0.0
        %1009 = vmatpush2.xpose.msra.mxu0 0.0
        %1010 = vmatprep.subr.mxu0 0.0
        %1011 = vmatpush2.xpose.msra.mxu0 0.0
        %1012 = vmatprep.subr.mxu0 0.0
        %1013 = vmatpush2.xpose.msra.mxu0 0.0
        %1014 = vmatprep.subr.mxu0 0.0
        %1015 = vmatpush2.xpose.msra.mxu0 0.0
        %1016 = vmatprep.subr.mxu0 0.0
        %1017 = vmatpush2.xpose.msra.mxu0 0.0
        %1018 = vmatprep.subr.mxu0 0.0
        %1019 = vmatpush2.xpose.msra.mxu0 0.0
        %1020 = vmatprep.subr.mxu0 0.0
        %1021 = vmatpush2.xpose.msra.mxu0 0.0
        %1022 = vmatprep.subr.mxu0 0.0
        %1023 = vmatpush2.xpose.msra.mxu0 0.0
        %1024 = vmatprep.subr.mxu0 0.0
        %1025 = vmatpush2.xpose.msra.mxu0 0.0
        %1026 = vmatprep.subr.mxu0 0.0
        %1027 = vmatpush2.xpose.msra.mxu0 0.0
        %1028 = vmatprep.subr.mxu0 0.0
        %1029 = vmatpush2.xpose.msra.mxu0 0.0
        %1030 = vmatprep.subr.mxu0 0.0
        %1031 = vmatpush2.xpose.msra.mxu0 0.0
        %1032 = vmatprep.subr.mxu0 0.0
        %1033 = vmatpush2.xpose.msra.mxu0 0.0
        %1034 = vmatprep.subr.mxu0 0.0
        %1035 = vmatpush2.xpose.msra.mxu0 0.0
        %1036 = vmatprep.subr.mxu0 0.0
        %1037 = vmatpush2.xpose.msra.mxu0 0.0
        %1038 = vmatprep.subr.mxu0 0.0
        %1039 = vmatpush2.xpose.msra.mxu0 0.0
        %1040 = vmatprep.mubr.f32.mxu0 0.0
        %1041 = vmatmul.mubr.f32.gmra.mxu0 %v789
        %v1042 = vpop.f32.mrf.mxu0
        %v1043 = vadd.f32 %v692, %v1042
        %v1044 = vpop.f32.mrf.mxu0
        %1045 = vdwg.mxu0
        %vm1046 = vcmask 64512
        %v1047 = vsel %vm1046, %v1043, -inf
        %1048 = vmax.xlane.f32.xlu0 %v1047
        %v1049 = vpop.xlane.xlu0 %1048
        %v1050 = vsub.f32 %v1043, %v1049
        %v1051 = vmul.f32 %v1050, 1.442695
        %v1052 = vpow.pop %v1051
        %v1053 = vsel %vm1046, %v1052, 0.0
        %1054 = vadd.xlane.f32.xlu0 %v1053
        %v1055 = vpop.xlane.xlu0 %1054
        %v1056 = vrcp.pop %v1055
        %v1057 = vmul.f32 %v1052, %v1056
        %v1059 = vsel %vm1046, %v1057, 0
        %1061 = vmatprep.subr.mxu0 0.0
        %1062 = vmatpush1.msra.mxu0 0.0
        %1063 = vmatprep.subr.mxu0 0.0
        %1064 = vmatpush1.msra.mxu0 0.0
        %1065 = vmatprep.subr.mxu0 0.0
        %1066 = vmatpush1.msra.mxu0 0.0
        %1067 = vmatprep.subr.mxu0 0.0
        %1068 = vmatpush1.msra.mxu0 0.0
        %1069 = vmatprep.subr.mxu0 0.0
        %1070 = vmatpush1.msra.mxu0 0.0
        %1071 = vmatprep.subr.mxu0 0.0
        %1072 = vmatpush1.msra.mxu0 0.0
        %1073 = vmatprep.subr.mxu0 0.0
        %1074 = vmatpush1.msra.mxu0 0.0
        %1075 = vmatprep.subr.mxu0 0.0
        %1076 = vmatpush1.msra.mxu0 0.0
        %1077 = vmatprep.subr.mxu0 0.0
        %1078 = vmatpush1.msra.mxu0 0.0
        %1079 = vmatprep.subr.mxu0 0.0
        %1080 = vmatpush1.msra.mxu0 0.0
        %1081 = vmatprep.subr.mxu0 0.0
        %1082 = vmatpush1.msra.mxu0 0.0
        %1083 = vmatprep.subr.mxu0 0.0
        %1084 = vmatpush1.msra.mxu0 0.0
        %1085 = vmatprep.subr.mxu0 0.0
        %1086 = vmatpush1.msra.mxu0 0.0
        %1087 = vmatprep.subr.mxu0 0.0
        %1088 = vmatpush1.msra.mxu0 0.0
        %1089 = vmatprep.subr.mxu0 0.0
        %1090 = vmatpush1.msra.mxu0 0.0
        %1091 = vmatprep.subr.mxu0 0.0
        %1092 = vmatpush1.msra.mxu0 %v973
        %1093 = vmatprep.subr.mxu0 0.0
        %1094 = vmatpush2.msra.mxu0 0.0
        %1095 = vmatprep.subr.mxu0 0.0
        %1096 = vmatpush2.msra.mxu0 0.0
        %1097 = vmatprep.subr.mxu0 0.0
        %1098 = vmatpush2.msra.mxu0 0.0
        %1099 = vmatprep.subr.mxu0 0.0
        %1100 = vmatpush2.msra.mxu0 0.0
        %1101 = vmatprep.subr.mxu0 0.0
        %1102 = vmatpush2.msra.mxu0 0.0
        %1103 = vmatprep.subr.mxu0 0.0
        %1104 = vmatpush2.msra.mxu0 0.0
        %1105 = vmatprep.subr.mxu0 0.0
        %1106 = vmatpush2.msra.mxu0 0.0
        %1107 = vmatprep.subr.mxu0 0.0
        %1108 = vmatpush2.msra.mxu0 0.0
        %1109 = vmatprep.subr.mxu0 0.0
        %1110 = vmatpush2.msra.mxu0 0.0
        %1111 = vmatprep.subr.mxu0 0.0
        %1112 = vmatpush2.msra.mxu0 0.0
        %1113 = vmatprep.subr.mxu0 0.0
        %1114 = vmatpush2.msra.mxu0 0.0
        %1115 = vmatprep.subr.mxu0 0.0
        %1116 = vmatpush2.msra.mxu0 0.0
        %1117 = vmatprep.subr.mxu0 0.0
        %1118 = vmatpush2.msra.mxu0 0.0
        %1119 = vmatprep.subr.mxu0 0.0
        %1120 = vmatpush2.msra.mxu0 0.0
        %1121 = vmatprep.subr.mxu0 0.0
        %1122 = vmatpush2.msra.mxu0 0.0
        %1123 = vmatprep.subr.mxu0 0.0
        %1124 = vmatpush2.msra.mxu0 0.0
        %1125 = vmatprep.mubr.f32.mxu0 0.0
        %1126 = vmatmul.mubr.f32.gmra.mxu0 %v1059
        %v1127 = vpop.f32.mrf.mxu0
        %v1128 = vadd.f32 0.0, %v1127
        %v1129 = vpop.f32.mrf.mxu0
        %1130 = vdwg.mxu0
        %v1131 = vld [vmem:[#allocation11] sm:$0xff]
        %v1132 = vld [vmem:[#allocation11 + $0x8] sm:$0xff]
        %v1133 = vld [vmem:[#allocation11 + $0x10] sm:$0xff]
        %v1134 = vld [vmem:[#allocation11 + $0x18] sm:$0xff]
        %v1135 = vld [vmem:[#allocation11 + $0x20] sm:$0xff]
        %v1136 = vld [vmem:[#allocation11 + $0x28] sm:$0xff]
        %v1137 = vld [vmem:[#allocation11 + $0x30] sm:$0xff]
        %v1138 = vld [vmem:[#allocation11 + $0x38] sm:$0xff]
        %v1139 = vld [vmem:[#allocation11 + $0x40] sm:$0xff]
        %v1140 = vld [vmem:[#allocation11 + $0x48] sm:$0xff]
        %v1141 = vld [vmem:[#allocation11 + $0x50] sm:$0xff]
        %v1142 = vld [vmem:[#allocation11 + $0x58] sm:$0xff]
        %v1143 = vld [vmem:[#allocation11 + $0x60] sm:$0xff]
        %v1144 = vld [vmem:[#allocation11 + $0x68] sm:$0xff]
        %v1145 = vld [vmem:[#allocation11 + $0x70] sm:$0xff]
        %v1146 = vld [vmem:[#allocation11 + $0x78] sm:$0xff]
        %s1147 = scalar_lea.vmem [#allocation7], 128
        %v1148 = vld [vmem:[%s1147] sm:$0xff]
        %v1149 = vld [vmem:[%s1147 + $0x8] sm:$0xff]
        %v1150 = vld [vmem:[%s1147 + $0x10] sm:$0xff]
        %v1151 = vld [vmem:[%s1147 + $0x18] sm:$0xff]
        %v1152 = vld [vmem:[%s1147 + $0x20] sm:$0xff]
        %v1153 = vld [vmem:[%s1147 + $0x28] sm:$0xff]
        %v1154 = vld [vmem:[%s1147 + $0x30] sm:$0xff]
        %v1155 = vld [vmem:[%s1147 + $0x38] sm:$0xff]
        %v1156 = vld [vmem:[%s1147 + $0x40] sm:$0xff]
        %v1157 = vld [vmem:[%s1147 + $0x48] sm:$0xff]
        %v1158 = vld [vmem:[%s1147 + $0x50] sm:$0xff]
        %v1159 = vld [vmem:[%s1147 + $0x58] sm:$0xff]
        %v1160 = vld [vmem:[%s1147 + $0x60] sm:$0xff]
        %v1161 = vld [vmem:[%s1147 + $0x68] sm:$0xff]
        %v1162 = vld [vmem:[%s1147 + $0x70] sm:$0xff]
        %v1163 = vld [vmem:[%s1147 + $0x78] sm:$0xff]
        %s1164 = scalar_lea.vmem %s3, 1
        %v1165 = vld [vmem:[%s1164] sm:$0x1]
        %v1167 = vlaneseq
        %v1168 = vshrl.u32 %v1167, 7
        %v1169 = vsub.s32 0, %v1168
        %v1170 = vrot.slane %v1165, %v1169
        %1172 = vmatprep.subr.mxu0 0.0
        %1173 = vmatpush1.msra.mxu0 %v1163
        %1174 = vmatprep.subr.mxu0 0.0
        %1175 = vmatpush1.msra.mxu0 %v1162
        %1176 = vmatprep.subr.mxu0 0.0
        %1177 = vmatpush1.msra.mxu0 %v1161
        %1178 = vmatprep.subr.mxu0 0.0
        %1179 = vmatpush1.msra.mxu0 %v1160
        %1180 = vmatprep.subr.mxu0 0.0
        %1181 = vmatpush1.msra.mxu0 %v1159
        %1182 = vmatprep.subr.mxu0 0.0
        %1183 = vmatpush1.msra.mxu0 %v1158
        %1184 = vmatprep.subr.mxu0 0.0
        %1185 = vmatpush1.msra.mxu0 %v1157
        %1186 = vmatprep.subr.mxu0 0.0
        %1187 = vmatpush1.msra.mxu0 %v1156
        %1188 = vmatprep.subr.mxu0 0.0
        %1189 = vmatpush1.msra.mxu0 %v1155
        %1190 = vmatprep.subr.mxu0 0.0
        %1191 = vmatpush1.msra.mxu0 %v1154
        %1192 = vmatprep.subr.mxu0 0.0
        %1193 = vmatpush1.msra.mxu0 %v1153
        %1194 = vmatprep.subr.mxu0 0.0
        %1195 = vmatpush1.msra.mxu0 %v1152
        %1196 = vmatprep.subr.mxu0 0.0
        %1197 = vmatpush1.msra.mxu0 %v1151
        %1198 = vmatprep.subr.mxu0 0.0
        %1199 = vmatpush1.msra.mxu0 %v1150
        %1200 = vmatprep.subr.mxu0 0.0
        %1201 = vmatpush1.msra.mxu0 %v1149
        %1202 = vmatprep.subr.mxu0 0.0
        %1203 = vmatpush1.msra.mxu0 %v1148
        %1204 = vmatprep.subr.mxu0 0.0
        %1205 = vmatpush2.msra.mxu0 0.0
        %1206 = vmatprep.subr.mxu0 0.0
        %1207 = vmatpush2.msra.mxu0 0.0
        %1208 = vmatprep.subr.mxu0 0.0
        %1209 = vmatpush2.msra.mxu0 0.0
        %1210 = vmatprep.subr.mxu0 0.0
        %1211 = vmatpush2.msra.mxu0 0.0
        %1212 = vmatprep.subr.mxu0 0.0
        %1213 = vmatpush2.msra.mxu0 0.0
        %1214 = vmatprep.subr.mxu0 0.0
        %1215 = vmatpush2.msra.mxu0 0.0
        %1216 = vmatprep.subr.mxu0 0.0
        %1217 = vmatpush2.msra.mxu0 0.0
        %1218 = vmatprep.subr.mxu0 0.0
        %1219 = vmatpush2.msra.mxu0 0.0
        %1220 = vmatprep.subr.mxu0 0.0
        %1221 = vmatpush2.msra.mxu0 0.0
        %1222 = vmatprep.subr.mxu0 0.0
        %1223 = vmatpush2.msra.mxu0 0.0
        %1224 = vmatprep.subr.mxu0 0.0
        %1225 = vmatpush2.msra.mxu0 0.0
        %1226 = vmatprep.subr.mxu0 0.0
        %1227 = vmatpush2.msra.mxu0 0.0
        %1228 = vmatprep.subr.mxu0 0.0
        %1229 = vmatpush2.msra.mxu0 0.0
        %1230 = vmatprep.subr.mxu0 0.0
        %1231 = vmatpush2.msra.mxu0 0.0
        %1232 = vmatprep.subr.mxu0 0.0
        %1233 = vmatpush2.msra.mxu0 0.0
        %1234 = vmatprep.subr.mxu0 0.0
        %1235 = vmatpush2.msra.mxu0 0.0
        %1236 = vmatprep.mubr.f32.mxu0 0.0
        %1237 = vmatmul.mubr.f32.gmra.mxu0 %v691
        %v1238 = vpop.f32.mrf.mxu0
        %v1239 = vadd.f32 %v1170, %v1238
        %v1240 = vpop.f32.mrf.mxu0
        %1241 = vdwg.mxu0
        %v1242 = vmul.f32 %v1239, 0.35355338
        %s1243 = scalar_lea.vmem [#allocation8], 128
        %v1244 = vld [vmem:[%s1243] sm:$0xff]
        %v1245 = vld [vmem:[%s1243 + $0x8] sm:$0xff]
        %v1246 = vld [vmem:[%s1243 + $0x10] sm:$0xff]
        %v1247 = vld [vmem:[%s1243 + $0x18] sm:$0xff]
        %v1248 = vld [vmem:[%s1243 + $0x20] sm:$0xff]
        %v1249 = vld [vmem:[%s1243 + $0x28] sm:$0xff]
        %v1250 = vld [vmem:[%s1243 + $0x30] sm:$0xff]
        %v1251 = vld [vmem:[%s1243 + $0x38] sm:$0xff]
        %v1252 = vld [vmem:[%s1243 + $0x40] sm:$0xff]
        %v1253 = vld [vmem:[%s1243 + $0x48] sm:$0xff]
        %v1254 = vld [vmem:[%s1243 + $0x50] sm:$0xff]
        %v1255 = vld [vmem:[%s1243 + $0x58] sm:$0xff]
        %v1256 = vld [vmem:[%s1243 + $0x60] sm:$0xff]
        %v1257 = vld [vmem:[%s1243 + $0x68] sm:$0xff]
        %v1258 = vld [vmem:[%s1243 + $0x70] sm:$0xff]
        %v1259 = vld [vmem:[%s1243 + $0x78] sm:$0xff]
        %s1260 = scalar_lea.vmem %s5, 1
        %v1261 = vld [vmem:[%s1260] sm:$0x1]
        %v1263 = vlaneseq
        %v1264 = vshrl.u32 %v1263, 7
        %v1265 = vsub.s32 0, %v1264
        %v1266 = vrot.slane %v1261, %v1265
        %1268 = vmatprep.subr.mxu0 0.0
        %1269 = vmatpush1.msra.mxu0 %v1259
        %1270 = vmatprep.subr.mxu0 0.0
        %1271 = vmatpush1.msra.mxu0 %v1258
        %1272 = vmatprep.subr.mxu0 0.0
        %1273 = vmatpush1.msra.mxu0 %v1257
        %1274 = vmatprep.subr.mxu0 0.0
        %1275 = vmatpush1.msra.mxu0 %v1256
        %1276 = vmatprep.subr.mxu0 0.0
        %1277 = vmatpush1.msra.mxu0 %v1255
        %1278 = vmatprep.subr.mxu0 0.0
        %1279 = vmatpush1.msra.mxu0 %v1254
        %1280 = vmatprep.subr.mxu0 0.0
        %1281 = vmatpush1.msra.mxu0 %v1253
        %1282 = vmatprep.subr.mxu0 0.0
        %1283 = vmatpush1.msra.mxu0 %v1252
        %1284 = vmatprep.subr.mxu0 0.0
        %1285 = vmatpush1.msra.mxu0 %v1251
        %1286 = vmatprep.subr.mxu0 0.0
        %1287 = vmatpush1.msra.mxu0 %v1250
        %1288 = vmatprep.subr.mxu0 0.0
        %1289 = vmatpush1.msra.mxu0 %v1249
        %1290 = vmatprep.subr.mxu0 0.0
        %1291 = vmatpush1.msra.mxu0 %v1248
        %1292 = vmatprep.subr.mxu0 0.0
        %1293 = vmatpush1.msra.mxu0 %v1247
        %1294 = vmatprep.subr.mxu0 0.0
        %1295 = vmatpush1.msra.mxu0 %v1246
        %1296 = vmatprep.subr.mxu0 0.0
        %1297 = vmatpush1.msra.mxu0 %v1245
        %1298 = vmatprep.subr.mxu0 0.0
        %1299 = vmatpush1.msra.mxu0 %v1244
        %1300 = vmatprep.subr.mxu0 0.0
        %1301 = vmatpush2.msra.mxu0 0.0
        %1302 = vmatprep.subr.mxu0 0.0
        %1303 = vmatpush2.msra.mxu0 0.0
        %1304 = vmatprep.subr.mxu0 0.0
        %1305 = vmatpush2.msra.mxu0 0.0
        %1306 = vmatprep.subr.mxu0 0.0
        %1307 = vmatpush2.msra.mxu0 0.0
        %1308 = vmatprep.subr.mxu0 0.0
        %1309 = vmatpush2.msra.mxu0 0.0
        %1310 = vmatprep.subr.mxu0 0.0
        %1311 = vmatpush2.msra.mxu0 0.0
        %1312 = vmatprep.subr.mxu0 0.0
        %1313 = vmatpush2.msra.mxu0 0.0
        %1314 = vmatprep.subr.mxu0 0.0
        %1315 = vmatpush2.msra.mxu0 0.0
        %1316 = vmatprep.subr.mxu0 0.0
        %1317 = vmatpush2.msra.mxu0 0.0
        %1318 = vmatprep.subr.mxu0 0.0
        %1319 = vmatpush2.msra.mxu0 0.0
        %1320 = vmatprep.subr.mxu0 0.0
        %1321 = vmatpush2.msra.mxu0 0.0
        %1322 = vmatprep.subr.mxu0 0.0
        %1323 = vmatpush2.msra.mxu0 0.0
        %1324 = vmatprep.subr.mxu0 0.0
        %1325 = vmatpush2.msra.mxu0 0.0
        %1326 = vmatprep.subr.mxu0 0.0
        %1327 = vmatpush2.msra.mxu0 0.0
        %1328 = vmatprep.subr.mxu0 0.0
        %1329 = vmatpush2.msra.mxu0 0.0
        %1330 = vmatprep.subr.mxu0 0.0
        %1331 = vmatpush2.msra.mxu0 0.0
        %1332 = vmatprep.mubr.f32.mxu0 0.0
        %1333 = vmatmul.mubr.f32.gmra.mxu0 %v691
        %v1334 = vpop.f32.mrf.mxu0
        %v1335 = vadd.f32 %v1266, %v1334
        %v1336 = vpop.f32.mrf.mxu0
        %1337 = vdwg.mxu0
        %s1338 = scalar_lea.vmem [#allocation10], 128
        %v1339 = vld [vmem:[%s1338] sm:$0xff]
        %v1340 = vld [vmem:[%s1338 + $0x8] sm:$0xff]
        %v1341 = vld [vmem:[%s1338 + $0x10] sm:$0xff]
        %v1342 = vld [vmem:[%s1338 + $0x18] sm:$0xff]
        %v1343 = vld [vmem:[%s1338 + $0x20] sm:$0xff]
        %v1344 = vld [vmem:[%s1338 + $0x28] sm:$0xff]
        %v1345 = vld [vmem:[%s1338 + $0x30] sm:$0xff]
        %v1346 = vld [vmem:[%s1338 + $0x38] sm:$0xff]
        %v1347 = vld [vmem:[%s1338 + $0x40] sm:$0xff]
        %v1348 = vld [vmem:[%s1338 + $0x48] sm:$0xff]
        %v1349 = vld [vmem:[%s1338 + $0x50] sm:$0xff]
        %v1350 = vld [vmem:[%s1338 + $0x58] sm:$0xff]
        %v1351 = vld [vmem:[%s1338 + $0x60] sm:$0xff]
        %v1352 = vld [vmem:[%s1338 + $0x68] sm:$0xff]
        %v1353 = vld [vmem:[%s1338 + $0x70] sm:$0xff]
        %v1354 = vld [vmem:[%s1338 + $0x78] sm:$0xff]
        %s1355 = scalar_lea.vmem %s7, 1
        %v1356 = vld [vmem:[%s1355] sm:$0x1]
        %v1358 = vlaneseq
        %v1359 = vshrl.u32 %v1358, 7
        %v1360 = vsub.s32 0, %v1359
        %v1361 = vrot.slane %v1356, %v1360
        %1363 = vmatprep.subr.mxu0 0.0
        %1364 = vmatpush1.msra.mxu0 %v1354
        %1365 = vmatprep.subr.mxu0 0.0
        %1366 = vmatpush1.msra.mxu0 %v1353
        %1367 = vmatprep.subr.mxu0 0.0
        %1368 = vmatpush1.msra.mxu0 %v1352
        %1369 = vmatprep.subr.mxu0 0.0
        %1370 = vmatpush1.msra.mxu0 %v1351
        %1371 = vmatprep.subr.mxu0 0.0
        %1372 = vmatpush1.msra.mxu0 %v1350
        %1373 = vmatprep.subr.mxu0 0.0
        %1374 = vmatpush1.msra.mxu0 %v1349
        %1375 = vmatprep.subr.mxu0 0.0
        %1376 = vmatpush1.msra.mxu0 %v1348
        %1377 = vmatprep.subr.mxu0 0.0
        %1378 = vmatpush1.msra.mxu0 %v1347
        %1379 = vmatprep.subr.mxu0 0.0
        %1380 = vmatpush1.msra.mxu0 %v1346
        %1381 = vmatprep.subr.mxu0 0.0
        %1382 = vmatpush1.msra.mxu0 %v1345
        %1383 = vmatprep.subr.mxu0 0.0
        %1384 = vmatpush1.msra.mxu0 %v1344
        %1385 = vmatprep.subr.mxu0 0.0
        %1386 = vmatpush1.msra.mxu0 %v1343
        %1387 = vmatprep.subr.mxu0 0.0
        %1388 = vmatpush1.msra.mxu0 %v1342
        %1389 = vmatprep.subr.mxu0 0.0
        %1390 = vmatpush1.msra.mxu0 %v1341
        %1391 = vmatprep.subr.mxu0 0.0
        %1392 = vmatpush1.msra.mxu0 %v1340
        %1393 = vmatprep.subr.mxu0 0.0
        %1394 = vmatpush1.msra.mxu0 %v1339
        %1395 = vmatprep.subr.mxu0 0.0
        %1396 = vmatpush2.msra.mxu0 0.0
        %1397 = vmatprep.subr.mxu0 0.0
        %1398 = vmatpush2.msra.mxu0 0.0
        %1399 = vmatprep.subr.mxu0 0.0
        %1400 = vmatpush2.msra.mxu0 0.0
        %1401 = vmatprep.subr.mxu0 0.0
        %1402 = vmatpush2.msra.mxu0 0.0
        %1403 = vmatprep.subr.mxu0 0.0
        %1404 = vmatpush2.msra.mxu0 0.0
        %1405 = vmatprep.subr.mxu0 0.0
        %1406 = vmatpush2.msra.mxu0 0.0
        %1407 = vmatprep.subr.mxu0 0.0
        %1408 = vmatpush2.msra.mxu0 0.0
        %1409 = vmatprep.subr.mxu0 0.0
        %1410 = vmatpush2.msra.mxu0 0.0
        %1411 = vmatprep.subr.mxu0 0.0
        %1412 = vmatpush2.msra.mxu0 0.0
        %1413 = vmatprep.subr.mxu0 0.0
        %1414 = vmatpush2.msra.mxu0 0.0
        %1415 = vmatprep.subr.mxu0 0.0
        %1416 = vmatpush2.msra.mxu0 0.0
        %1417 = vmatprep.subr.mxu0 0.0
        %1418 = vmatpush2.msra.mxu0 0.0
        %1419 = vmatprep.subr.mxu0 0.0
        %1420 = vmatpush2.msra.mxu0 0.0
        %1421 = vmatprep.subr.mxu0 0.0
        %1422 = vmatpush2.msra.mxu0 0.0
        %1423 = vmatprep.subr.mxu0 0.0
        %1424 = vmatpush2.msra.mxu0 0.0
        %1425 = vmatprep.subr.mxu0 0.0
        %1426 = vmatpush2.msra.mxu0 0.0
        %1427 = vmatprep.mubr.f32.mxu0 0.0
        %1428 = vmatmul.mubr.f32.gmra.mxu0 %v691
        %v1429 = vpop.f32.mrf.mxu0
        %v1430 = vadd.f32 %v1361, %v1429
        %v1431 = vpop.f32.mrf.mxu0
        %1432 = vdwg.mxu0
        %1433 = vmatprep.subr.mxu0 0.0
        %1434 = vmatpush1.xpose.msra.mxu0 0.0
        %1435 = vmatprep.subr.mxu0 0.0
        %1436 = vmatpush1.xpose.msra.mxu0 0.0
        %1437 = vmatprep.subr.mxu0 0.0
        %1438 = vmatpush1.xpose.msra.mxu0 0.0
        %1439 = vmatprep.subr.mxu0 0.0
        %1440 = vmatpush1.xpose.msra.mxu0 0.0
        %1441 = vmatprep.subr.mxu0 0.0
        %1442 = vmatpush1.xpose.msra.mxu0 0.0
        %1443 = vmatprep.subr.mxu0 0.0
        %1444 = vmatpush1.xpose.msra.mxu0 0.0
        %1445 = vmatprep.subr.mxu0 0.0
        %1446 = vmatpush1.xpose.msra.mxu0 0.0
        %1447 = vmatprep.subr.mxu0 0.0
        %1448 = vmatpush1.xpose.msra.mxu0 0.0
        %1449 = vmatprep.subr.mxu0 0.0
        %1450 = vmatpush1.xpose.msra.mxu0 0.0
        %1451 = vmatprep.subr.mxu0 0.0
        %1452 = vmatpush1.xpose.msra.mxu0 0.0
        %1453 = vmatprep.subr.mxu0 0.0
        %1454 = vmatpush1.xpose.msra.mxu0 0.0
        %1455 = vmatprep.subr.mxu0 0.0
        %1456 = vmatpush1.xpose.msra.mxu0 0.0
        %1457 = vmatprep.subr.mxu0 0.0
        %1458 = vmatpush1.xpose.msra.mxu0 0.0
        %1459 = vmatprep.subr.mxu0 0.0
        %1460 = vmatpush1.xpose.msra.mxu0 0.0
        %1461 = vmatprep.subr.mxu0 0.0
        %1462 = vmatpush1.xpose.msra.mxu0 0.0
        %1463 = vmatprep.subr.mxu0 0.0
        %1464 = vmatpush1.xpose.msra.mxu0 %v1335
        %1465 = vmatprep.subr.mxu0 0.0
        %1466 = vmatpush2.xpose.msra.mxu0 0.0
        %1467 = vmatprep.subr.mxu0 0.0
        %1468 = vmatpush2.xpose.msra.mxu0 0.0
        %1469 = vmatprep.subr.mxu0 0.0
        %1470 = vmatpush2.xpose.msra.mxu0 0.0
        %1471 = vmatprep.subr.mxu0 0.0
        %1472 = vmatpush2.xpose.msra.mxu0 0.0
        %1473 = vmatprep.subr.mxu0 0.0
        %1474 = vmatpush2.xpose.msra.mxu0 0.0
        %1475 = vmatprep.subr.mxu0 0.0
        %1476 = vmatpush2.xpose.msra.mxu0 0.0
        %1477 = vmatprep.subr.mxu0 0.0
        %1478 = vmatpush2.xpose.msra.mxu0 0.0
        %1479 = vmatprep.subr.mxu0 0.0
        %1480 = vmatpush2.xpose.msra.mxu0 0.0
        %1481 = vmatprep.subr.mxu0 0.0
        %1482 = vmatpush2.xpose.msra.mxu0 0.0
        %1483 = vmatprep.subr.mxu0 0.0
        %1484 = vmatpush2.xpose.msra.mxu0 0.0
        %1485 = vmatprep.subr.mxu0 0.0
        %1486 = vmatpush2.xpose.msra.mxu0 0.0
        %1487 = vmatprep.subr.mxu0 0.0
        %1488 = vmatpush2.xpose.msra.mxu0 0.0
        %1489 = vmatprep.subr.mxu0 0.0
        %1490 = vmatpush2.xpose.msra.mxu0 0.0
        %1491 = vmatprep.subr.mxu0 0.0
        %1492 = vmatpush2.xpose.msra.mxu0 0.0
        %1493 = vmatprep.subr.mxu0 0.0
        %1494 = vmatpush2.xpose.msra.mxu0 0.0
        %1495 = vmatprep.subr.mxu0 0.0
        %1496 = vmatpush2.xpose.msra.mxu0 0.0
        %1497 = vmatprep.mubr.f32.mxu0 0.0
        %1498 = vmatmul.mubr.f32.gmra.mxu0 %v1242
        %v1499 = vpop.f32.mrf.mxu0
        %v1500 = vadd.f32 %v692, %v1499
        %v1501 = vpop.f32.mrf.mxu0
        %1502 = vdwg.mxu0
        %v1503 = vsel %vm1046, %v1500, -inf
        %1504 = vmax.xlane.f32.xlu0 %v1503
        %v1505 = vpop.xlane.xlu0 %1504
        %v1506 = vsub.f32 %v1500, %v1505
        %v1507 = vmul.f32 %v1506, 1.442695
        %v1508 = vpow.pop %v1507
        %v1509 = vsel %vm1046, %v1508, 0.0
        %1510 = vadd.xlane.f32.xlu0 %v1509
        %v1511 = vpop.xlane.xlu0 %1510
        %v1512 = vrcp.pop %v1511
        %v1513 = vmul.f32 %v1508, %v1512
        %v1515 = vsel %vm1046, %v1513, 0
        %1517 = vmatprep.subr.mxu0 0.0
        %1518 = vmatpush1.msra.mxu0 0.0
        %1519 = vmatprep.subr.mxu0 0.0
        %1520 = vmatpush1.msra.mxu0 0.0
        %1521 = vmatprep.subr.mxu0 0.0
        %1522 = vmatpush1.msra.mxu0 0.0
        %1523 = vmatprep.subr.mxu0 0.0
        %1524 = vmatpush1.msra.mxu0 0.0
        %1525 = vmatprep.subr.mxu0 0.0
        %1526 = vmatpush1.msra.mxu0 0.0
        %1527 = vmatprep.subr.mxu0 0.0
        %1528 = vmatpush1.msra.mxu0 0.0
        %1529 = vmatprep.subr.mxu0 0.0
        %1530 = vmatpush1.msra.mxu0 0.0
        %1531 = vmatprep.subr.mxu0 0.0
        %1532 = vmatpush1.msra.mxu0 0.0
        %1533 = vmatprep.subr.mxu0 0.0
        %1534 = vmatpush1.msra.mxu0 0.0
        %1535 = vmatprep.subr.mxu0 0.0
        %1536 = vmatpush1.msra.mxu0 0.0
        %1537 = vmatprep.subr.mxu0 0.0
        %1538 = vmatpush1.msra.mxu0 0.0
        %1539 = vmatprep.subr.mxu0 0.0
        %1540 = vmatpush1.msra.mxu0 0.0
        %1541 = vmatprep.subr.mxu0 0.0
        %1542 = vmatpush1.msra.mxu0 0.0
        %1543 = vmatprep.subr.mxu0 0.0
        %1544 = vmatpush1.msra.mxu0 0.0
        %1545 = vmatprep.subr.mxu0 0.0
        %1546 = vmatpush1.msra.mxu0 0.0
        %1547 = vmatprep.subr.mxu0 0.0
        %1548 = vmatpush1.msra.mxu0 %v1430
        %1549 = vmatprep.subr.mxu0 0.0
        %1550 = vmatpush2.msra.mxu0 0.0
        %1551 = vmatprep.subr.mxu0 0.0
        %1552 = vmatpush2.msra.mxu0 0.0
        %1553 = vmatprep.subr.mxu0 0.0
        %1554 = vmatpush2.msra.mxu0 0.0
        %1555 = vmatprep.subr.mxu0 0.0
        %1556 = vmatpush2.msra.mxu0 0.0
        %1557 = vmatprep.subr.mxu0 0.0
        %1558 = vmatpush2.msra.mxu0 0.0
        %1559 = vmatprep.subr.mxu0 0.0
        %1560 = vmatpush2.msra.mxu0 0.0
        %1561 = vmatprep.subr.mxu0 0.0
        %1562 = vmatpush2.msra.mxu0 0.0
        %1563 = vmatprep.subr.mxu0 0.0
        %1564 = vmatpush2.msra.mxu0 0.0
        %1565 = vmatprep.subr.mxu0 0.0
        %1566 = vmatpush2.msra.mxu0 0.0
        %1567 = vmatprep.subr.mxu0 0.0
        %1568 = vmatpush2.msra.mxu0 0.0
        %1569 = vmatprep.subr.mxu0 0.0
        %1570 = vmatpush2.msra.mxu0 0.0
        %1571 = vmatprep.subr.mxu0 0.0
        %1572 = vmatpush2.msra.mxu0 0.0
        %1573 = vmatprep.subr.mxu0 0.0
        %1574 = vmatpush2.msra.mxu0 0.0
        %1575 = vmatprep.subr.mxu0 0.0
        %1576 = vmatpush2.msra.mxu0 0.0
        %1577 = vmatprep.subr.mxu0 0.0
        %1578 = vmatpush2.msra.mxu0 0.0
        %1579 = vmatprep.subr.mxu0 0.0
        %1580 = vmatpush2.msra.mxu0 0.0
        %1581 = vmatprep.mubr.f32.mxu0 0.0
        %1582 = vmatmul.mubr.f32.gmra.mxu0 %v1515
        %v1583 = vpop.f32.mrf.mxu0
        %v1584 = vadd.f32 0.0, %v1583
        %v1585 = vpop.f32.mrf.mxu0
        %1586 = vdwg.mxu0
        %s1587 = scalar_lea.vmem [#allocation11], 128
        %v1588 = vld [vmem:[%s1587] sm:$0xff]
        %v1589 = vld [vmem:[%s1587 + $0x8] sm:$0xff]
        %v1590 = vld [vmem:[%s1587 + $0x10] sm:$0xff]
        %v1591 = vld [vmem:[%s1587 + $0x18] sm:$0xff]
        %v1592 = vld [vmem:[%s1587 + $0x20] sm:$0xff]
        %v1593 = vld [vmem:[%s1587 + $0x28] sm:$0xff]
        %v1594 = vld [vmem:[%s1587 + $0x30] sm:$0xff]
        %v1595 = vld [vmem:[%s1587 + $0x38] sm:$0xff]
        %v1596 = vld [vmem:[%s1587 + $0x40] sm:$0xff]
        %v1597 = vld [vmem:[%s1587 + $0x48] sm:$0xff]
        %v1598 = vld [vmem:[%s1587 + $0x50] sm:$0xff]
        %v1599 = vld [vmem:[%s1587 + $0x58] sm:$0xff]
        %v1600 = vld [vmem:[%s1587 + $0x60] sm:$0xff]
        %v1601 = vld [vmem:[%s1587 + $0x68] sm:$0xff]
        %v1602 = vld [vmem:[%s1587 + $0x70] sm:$0xff]
        %v1603 = vld [vmem:[%s1587 + $0x78] sm:$0xff]
        %1604 = vmatprep.subr.mxu0 0.0
        %1605 = vmatpush1.msra.mxu0 %v1603
        %1606 = vmatprep.subr.mxu0 0.0
        %1607 = vmatpush1.msra.mxu0 %v1602
        %1608 = vmatprep.subr.mxu0 0.0
        %1609 = vmatpush1.msra.mxu0 %v1601
        %1610 = vmatprep.subr.mxu0 0.0
        %1611 = vmatpush1.msra.mxu0 %v1600
        %1612 = vmatprep.subr.mxu0 0.0
        %1613 = vmatpush1.msra.mxu0 %v1599
        %1614 = vmatprep.subr.mxu0 0.0
        %1615 = vmatpush1.msra.mxu0 %v1598
        %1616 = vmatprep.subr.mxu0 0.0
        %1617 = vmatpush1.msra.mxu0 %v1597
        %1618 = vmatprep.subr.mxu0 0.0
        %1619 = vmatpush1.msra.mxu0 %v1596
        %1620 = vmatprep.subr.mxu0 0.0
        %1621 = vmatpush1.msra.mxu0 %v1595
        %1622 = vmatprep.subr.mxu0 0.0
        %1623 = vmatpush1.msra.mxu0 %v1594
        %1624 = vmatprep.subr.mxu0 0.0
        %1625 = vmatpush1.msra.mxu0 %v1593
        %1626 = vmatprep.subr.mxu0 0.0
        %1627 = vmatpush1.msra.mxu0 %v1592
        %1628 = vmatprep.subr.mxu0 0.0
        %1629 = vmatpush1.msra.mxu0 %v1591
        %1630 = vmatprep.subr.mxu0 0.0
        %1631 = vmatpush1.msra.mxu0 %v1590
        %1632 = vmatprep.subr.mxu0 0.0
        %1633 = vmatpush1.msra.mxu0 %v1589
        %1634 = vmatprep.subr.mxu0 0.0
        %1635 = vmatpush1.msra.mxu0 %v1588
        %1636 = vmatprep.subr.mxu0 0.0
        %1637 = vmatpush2.msra.mxu0 0.0
        %1638 = vmatprep.subr.mxu0 0.0
        %1639 = vmatpush2.msra.mxu0 0.0
        %1640 = vmatprep.subr.mxu0 0.0
        %1641 = vmatpush2.msra.mxu0 0.0
        %1642 = vmatprep.subr.mxu0 0.0
        %1643 = vmatpush2.msra.mxu0 0.0
        %1644 = vmatprep.subr.mxu0 0.0
        %1645 = vmatpush2.msra.mxu0 0.0
        %1646 = vmatprep.subr.mxu0 0.0
        %1647 = vmatpush2.msra.mxu0 0.0
        %1648 = vmatprep.subr.mxu0 0.0
        %1649 = vmatpush2.msra.mxu0 0.0
        %1650 = vmatprep.subr.mxu0 0.0
        %1651 = vmatpush2.msra.mxu0 0.0
        %1652 = vmatprep.subr.mxu0 0.0
        %1653 = vmatpush2.msra.mxu0 0.0
        %1654 = vmatprep.subr.mxu0 0.0
        %1655 = vmatpush2.msra.mxu0 0.0
        %1656 = vmatprep.subr.mxu0 0.0
        %1657 = vmatpush2.msra.mxu0 0.0
        %1658 = vmatprep.subr.mxu0 0.0
        %1659 = vmatpush2.msra.mxu0 0.0
        %1660 = vmatprep.subr.mxu0 0.0
        %1661 = vmatpush2.msra.mxu0 0.0
        %1662 = vmatprep.subr.mxu0 0.0
        %1663 = vmatpush2.msra.mxu0 0.0
        %1664 = vmatprep.subr.mxu0 0.0
        %1665 = vmatpush2.msra.mxu0 0.0
        %1666 = vmatprep.subr.mxu0 0.0
        %1667 = vmatpush2.msra.mxu0 0.0
        %1668 = vmatprep.mubr.f32.mxu0 0.0
        %1669 = vmatmul.mubr.f32.gmra.mxu0 %v1584
        %v1670 = vpop.f32.mrf.mxu0
        %v1671 = vadd.f32 0.0, %v1670
        %v1672 = vpop.f32.mrf.mxu0
        %1673 = vdwg.mxu0
        %1674 = vmatprep.subr.mxu0 0.0
        %1675 = vmatpush1.msra.mxu0 %v1146
        %1676 = vmatprep.subr.mxu0 0.0
        %1677 = vmatpush1.msra.mxu0 %v1145
        %1678 = vmatprep.subr.mxu0 0.0
        %1679 = vmatpush1.msra.mxu0 %v1144
        %1680 = vmatprep.subr.mxu0 0.0
        %1681 = vmatpush1.msra.mxu0 %v1143
        %1682 = vmatprep.subr.mxu0 0.0
        %1683 = vmatpush1.msra.mxu0 %v1142
        %1684 = vmatprep.subr.mxu0 0.0
        %1685 = vmatpush1.msra.mxu0 %v1141
        %1686 = vmatprep.subr.mxu0 0.0
        %1687 = vmatpush1.msra.mxu0 %v1140
        %1688 = vmatprep.subr.mxu0 0.0
        %1689 = vmatpush1.msra.mxu0 %v1139
        %1690 = vmatprep.subr.mxu0 0.0
        %1691 = vmatpush1.msra.mxu0 %v1138
        %1692 = vmatprep.subr.mxu0 0.0
        %1693 = vmatpush1.msra.mxu0 %v1137
        %1694 = vmatprep.subr.mxu0 0.0
        %1695 = vmatpush1.msra.mxu0 %v1136
        %1696 = vmatprep.subr.mxu0 0.0
        %1697 = vmatpush1.msra.mxu0 %v1135
        %1698 = vmatprep.subr.mxu0 0.0
        %1699 = vmatpush1.msra.mxu0 %v1134
        %1700 = vmatprep.subr.mxu0 0.0
        %1701 = vmatpush1.msra.mxu0 %v1133
        %1702 = vmatprep.subr.mxu0 0.0
        %1703 = vmatpush1.msra.mxu0 %v1132
        %1704 = vmatprep.subr.mxu0 0.0
        %1705 = vmatpush1.msra.mxu0 %v1131
        %1706 = vmatprep.subr.mxu0 0.0
        %1707 = vmatpush2.msra.mxu0 0.0
        %1708 = vmatprep.subr.mxu0 0.0
        %1709 = vmatpush2.msra.mxu0 0.0
        %1710 = vmatprep.subr.mxu0 0.0
        %1711 = vmatpush2.msra.mxu0 0.0
        %1712 = vmatprep.subr.mxu0 0.0
        %1713 = vmatpush2.msra.mxu0 0.0
        %1714 = vmatprep.subr.mxu0 0.0
        %1715 = vmatpush2.msra.mxu0 0.0
        %1716 = vmatprep.subr.mxu0 0.0
        %1717 = vmatpush2.msra.mxu0 0.0
        %1718 = vmatprep.subr.mxu0 0.0
        %1719 = vmatpush2.msra.mxu0 0.0
        %1720 = vmatprep.subr.mxu0 0.0
        %1721 = vmatpush2.msra.mxu0 0.0
        %1722 = vmatprep.subr.mxu0 0.0
        %1723 = vmatpush2.msra.mxu0 0.0
        %1724 = vmatprep.subr.mxu0 0.0
        %1725 = vmatpush2.msra.mxu0 0.0
        %1726 = vmatprep.subr.mxu0 0.0
        %1727 = vmatpush2.msra.mxu0 0.0
        %1728 = vmatprep.subr.mxu0 0.0
        %1729 = vmatpush2.msra.mxu0 0.0
        %1730 = vmatprep.subr.mxu0 0.0
        %1731 = vmatpush2.msra.mxu0 0.0
        %1732 = vmatprep.subr.mxu0 0.0
        %1733 = vmatpush2.msra.mxu0 0.0
        %1734 = vmatprep.subr.mxu0 0.0
        %1735 = vmatpush2.msra.mxu0 0.0
        %1736 = vmatprep.subr.mxu0 0.0
        %1737 = vmatpush2.msra.mxu0 0.0
        %1738 = vmatprep.mubr.f32.mxu0 0.0
        %1739 = vmatmul.mubr.f32.gmra.mxu0 %v1128
        %v1740 = vpop.f32.mrf.mxu0
        %v1741 = vadd.f32 %v1671, %v1740
        %v1742 = vpop.f32.mrf.mxu0
        %1743 = vdwg.mxu0
        %s1744 = scalar_lea.vmem [#allocation7], 256
        %v1745 = vld [vmem:[%s1744] sm:$0xff]
        %v1746 = vld [vmem:[%s1744 + $0x8] sm:$0xff]
        %v1747 = vld [vmem:[%s1744 + $0x10] sm:$0xff]
        %v1748 = vld [vmem:[%s1744 + $0x18] sm:$0xff]
        %v1749 = vld [vmem:[%s1744 + $0x20] sm:$0xff]
        %v1750 = vld [vmem:[%s1744 + $0x28] sm:$0xff]
        %v1751 = vld [vmem:[%s1744 + $0x30] sm:$0xff]
        %v1752 = vld [vmem:[%s1744 + $0x38] sm:$0xff]
        %v1753 = vld [vmem:[%s1744 + $0x40] sm:$0xff]
        %v1754 = vld [vmem:[%s1744 + $0x48] sm:$0xff]
        %v1755 = vld [vmem:[%s1744 + $0x50] sm:$0xff]
        %v1756 = vld [vmem:[%s1744 + $0x58] sm:$0xff]
        %v1757 = vld [vmem:[%s1744 + $0x60] sm:$0xff]
        %v1758 = vld [vmem:[%s1744 + $0x68] sm:$0xff]
        %v1759 = vld [vmem:[%s1744 + $0x70] sm:$0xff]
        %v1760 = vld [vmem:[%s1744 + $0x78] sm:$0xff]
        %s1761 = scalar_lea.vmem %s3, 2
        %v1762 = vld [vmem:[%s1761] sm:$0x1]
        %v1764 = vlaneseq
        %v1765 = vshrl.u32 %v1764, 7
        %v1766 = vsub.s32 0, %v1765
        %v1767 = vrot.slane %v1762, %v1766
        %1769 = vmatprep.subr.mxu0 0.0
        %1770 = vmatpush1.msra.mxu0 %v1760
        %1771 = vmatprep.subr.mxu0 0.0
        %1772 = vmatpush1.msra.mxu0 %v1759
        %1773 = vmatprep.subr.mxu0 0.0
        %1774 = vmatpush1.msra.mxu0 %v1758
        %1775 = vmatprep.subr.mxu0 0.0
        %1776 = vmatpush1.msra.mxu0 %v1757
        %1777 = vmatprep.subr.mxu0 0.0
        %1778 = vmatpush1.msra.mxu0 %v1756
        %1779 = vmatprep.subr.mxu0 0.0
        %1780 = vmatpush1.msra.mxu0 %v1755
        %1781 = vmatprep.subr.mxu0 0.0
        %1782 = vmatpush1.msra.mxu0 %v1754
        %1783 = vmatprep.subr.mxu0 0.0
        %1784 = vmatpush1.msra.mxu0 %v1753
        %1785 = vmatprep.subr.mxu0 0.0
        %1786 = vmatpush1.msra.mxu0 %v1752
        %1787 = vmatprep.subr.mxu0 0.0
        %1788 = vmatpush1.msra.mxu0 %v1751
        %1789 = vmatprep.subr.mxu0 0.0
        %1790 = vmatpush1.msra.mxu0 %v1750
        %1791 = vmatprep.subr.mxu0 0.0
        %1792 = vmatpush1.msra.mxu0 %v1749
        %1793 = vmatprep.subr.mxu0 0.0
        %1794 = vmatpush1.msra.mxu0 %v1748
        %1795 = vmatprep.subr.mxu0 0.0
        %1796 = vmatpush1.msra.mxu0 %v1747
        %1797 = vmatprep.subr.mxu0 0.0
        %1798 = vmatpush1.msra.mxu0 %v1746
        %1799 = vmatprep.subr.mxu0 0.0
        %1800 = vmatpush1.msra.mxu0 %v1745
        %1801 = vmatprep.subr.mxu0 0.0
        %1802 = vmatpush2.msra.mxu0 0.0
        %1803 = vmatprep.subr.mxu0 0.0
        %1804 = vmatpush2.msra.mxu0 0.0
        %1805 = vmatprep.subr.mxu0 0.0
        %1806 = vmatpush2.msra.mxu0 0.0
        %1807 = vmatprep.subr.mxu0 0.0
        %1808 = vmatpush2.msra.mxu0 0.0
        %1809 = vmatprep.subr.mxu0 0.0
        %1810 = vmatpush2.msra.mxu0 0.0
        %1811 = vmatprep.subr.mxu0 0.0
        %1812 = vmatpush2.msra.mxu0 0.0
        %1813 = vmatprep.subr.mxu0 0.0
        %1814 = vmatpush2.msra.mxu0 0.0
        %1815 = vmatprep.subr.mxu0 0.0
        %1816 = vmatpush2.msra.mxu0 0.0
        %1817 = vmatprep.subr.mxu0 0.0
        %1818 = vmatpush2.msra.mxu0 0.0
        %1819 = vmatprep.subr.mxu0 0.0
        %1820 = vmatpush2.msra.mxu0 0.0
        %1821 = vmatprep.subr.mxu0 0.0
        %1822 = vmatpush2.msra.mxu0 0.0
        %1823 = vmatprep.subr.mxu0 0.0
        %1824 = vmatpush2.msra.mxu0 0.0
        %1825 = vmatprep.subr.mxu0 0.0
        %1826 = vmatpush2.msra.mxu0 0.0
        %1827 = vmatprep.subr.mxu0 0.0
        %1828 = vmatpush2.msra.mxu0 0.0
        %1829 = vmatprep.subr.mxu0 0.0
        %1830 = vmatpush2.msra.mxu0 0.0
        %1831 = vmatprep.subr.mxu0 0.0
        %1832 = vmatpush2.msra.mxu0 0.0
        %1833 = vmatprep.mubr.f32.mxu0 0.0
        %1834 = vmatmul.mubr.f32.gmra.mxu0 %v691
        %v1835 = vpop.f32.mrf.mxu0
        %v1836 = vadd.f32 %v1767, %v1835
        %v1837 = vpop.f32.mrf.mxu0
        %1838 = vdwg.mxu0
        %v1839 = vmul.f32 %v1836, 0.35355338
        %s1840 = scalar_lea.vmem [#allocation8], 256
        %v1841 = vld [vmem:[%s1840] sm:$0xff]
        %v1842 = vld [vmem:[%s1840 + $0x8] sm:$0xff]
        %v1843 = vld [vmem:[%s1840 + $0x10] sm:$0xff]
        %v1844 = vld [vmem:[%s1840 + $0x18] sm:$0xff]
        %v1845 = vld [vmem:[%s1840 + $0x20] sm:$0xff]
        %v1846 = vld [vmem:[%s1840 + $0x28] sm:$0xff]
        %v1847 = vld [vmem:[%s1840 + $0x30] sm:$0xff]
        %v1848 = vld [vmem:[%s1840 + $0x38] sm:$0xff]
        %v1849 = vld [vmem:[%s1840 + $0x40] sm:$0xff]
        %v1850 = vld [vmem:[%s1840 + $0x48] sm:$0xff]
        %v1851 = vld [vmem:[%s1840 + $0x50] sm:$0xff]
        %v1852 = vld [vmem:[%s1840 + $0x58] sm:$0xff]
        %v1853 = vld [vmem:[%s1840 + $0x60] sm:$0xff]
        %v1854 = vld [vmem:[%s1840 + $0x68] sm:$0xff]
        %v1855 = vld [vmem:[%s1840 + $0x70] sm:$0xff]
        %v1856 = vld [vmem:[%s1840 + $0x78] sm:$0xff]
        %s1857 = scalar_lea.vmem %s5, 2
        %v1858 = vld [vmem:[%s1857] sm:$0x1]
        %v1860 = vlaneseq
        %v1861 = vshrl.u32 %v1860, 7
        %v1862 = vsub.s32 0, %v1861
        %v1863 = vrot.slane %v1858, %v1862
        %1865 = vmatprep.subr.mxu0 0.0
        %1866 = vmatpush1.msra.mxu0 %v1856
        %1867 = vmatprep.subr.mxu0 0.0
        %1868 = vmatpush1.msra.mxu0 %v1855
        %1869 = vmatprep.subr.mxu0 0.0
        %1870 = vmatpush1.msra.mxu0 %v1854
        %1871 = vmatprep.subr.mxu0 0.0
        %1872 = vmatpush1.msra.mxu0 %v1853
        %1873 = vmatprep.subr.mxu0 0.0
        %1874 = vmatpush1.msra.mxu0 %v1852
        %1875 = vmatprep.subr.mxu0 0.0
        %1876 = vmatpush1.msra.mxu0 %v1851
        %1877 = vmatprep.subr.mxu0 0.0
        %1878 = vmatpush1.msra.mxu0 %v1850
        %1879 = vmatprep.subr.mxu0 0.0
        %1880 = vmatpush1.msra.mxu0 %v1849
        %1881 = vmatprep.subr.mxu0 0.0
        %1882 = vmatpush1.msra.mxu0 %v1848
        %1883 = vmatprep.subr.mxu0 0.0
        %1884 = vmatpush1.msra.mxu0 %v1847
        %1885 = vmatprep.subr.mxu0 0.0
        %1886 = vmatpush1.msra.mxu0 %v1846
        %1887 = vmatprep.subr.mxu0 0.0
        %1888 = vmatpush1.msra.mxu0 %v1845
        %1889 = vmatprep.subr.mxu0 0.0
        %1890 = vmatpush1.msra.mxu0 %v1844
        %1891 = vmatprep.subr.mxu0 0.0
        %1892 = vmatpush1.msra.mxu0 %v1843
        %1893 = vmatprep.subr.mxu0 0.0
        %1894 = vmatpush1.msra.mxu0 %v1842
        %1895 = vmatprep.subr.mxu0 0.0
        %1896 = vmatpush1.msra.mxu0 %v1841
        %1897 = vmatprep.subr.mxu0 0.0
        %1898 = vmatpush2.msra.mxu0 0.0
        %1899 = vmatprep.subr.mxu0 0.0
        %1900 = vmatpush2.msra.mxu0 0.0
        %1901 = vmatprep.subr.mxu0 0.0
        %1902 = vmatpush2.msra.mxu0 0.0
        %1903 = vmatprep.subr.mxu0 0.0
        %1904 = vmatpush2.msra.mxu0 0.0
        %1905 = vmatprep.subr.mxu0 0.0
        %1906 = vmatpush2.msra.mxu0 0.0
        %1907 = vmatprep.subr.mxu0 0.0
        %1908 = vmatpush2.msra.mxu0 0.0
        %1909 = vmatprep.subr.mxu0 0.0
        %1910 = vmatpush2.msra.mxu0 0.0
        %1911 = vmatprep.subr.mxu0 0.0
        %1912 = vmatpush2.msra.mxu0 0.0
        %1913 = vmatprep.subr.mxu0 0.0
        %1914 = vmatpush2.msra.mxu0 0.0
        %1915 = vmatprep.subr.mxu0 0.0
        %1916 = vmatpush2.msra.mxu0 0.0
        %1917 = vmatprep.subr.mxu0 0.0
        %1918 = vmatpush2.msra.mxu0 0.0
        %1919 = vmatprep.subr.mxu0 0.0
        %1920 = vmatpush2.msra.mxu0 0.0
        %1921 = vmatprep.subr.mxu0 0.0
        %1922 = vmatpush2.msra.mxu0 0.0
        %1923 = vmatprep.subr.mxu0 0.0
        %1924 = vmatpush2.msra.mxu0 0.0
        %1925 = vmatprep.subr.mxu0 0.0
        %1926 = vmatpush2.msra.mxu0 0.0
        %1927 = vmatprep.subr.mxu0 0.0
        %1928 = vmatpush2.msra.mxu0 0.0
        %1929 = vmatprep.mubr.f32.mxu0 0.0
        %1930 = vmatmul.mubr.f32.gmra.mxu0 %v691
        %v1931 = vpop.f32.mrf.mxu0
        %v1932 = vadd.f32 %v1863, %v1931
        %v1933 = vpop.f32.mrf.mxu0
        %1934 = vdwg.mxu0
        %s1935 = scalar_lea.vmem [#allocation10], 256
        %v1936 = vld [vmem:[%s1935] sm:$0xff]
        %v1937 = vld [vmem:[%s1935 + $0x8] sm:$0xff]
        %v1938 = vld [vmem:[%s1935 + $0x10] sm:$0xff]
        %v1939 = vld [vmem:[%s1935 + $0x18] sm:$0xff]
        %v1940 = vld [vmem:[%s1935 + $0x20] sm:$0xff]
        %v1941 = vld [vmem:[%s1935 + $0x28] sm:$0xff]
        %v1942 = vld [vmem:[%s1935 + $0x30] sm:$0xff]
        %v1943 = vld [vmem:[%s1935 + $0x38] sm:$0xff]
        %v1944 = vld [vmem:[%s1935 + $0x40] sm:$0xff]
        %v1945 = vld [vmem:[%s1935 + $0x48] sm:$0xff]
        %v1946 = vld [vmem:[%s1935 + $0x50] sm:$0xff]
        %v1947 = vld [vmem:[%s1935 + $0x58] sm:$0xff]
        %v1948 = vld [vmem:[%s1935 + $0x60] sm:$0xff]
        %v1949 = vld [vmem:[%s1935 + $0x68] sm:$0xff]
        %v1950 = vld [vmem:[%s1935 + $0x70] sm:$0xff]
        %v1951 = vld [vmem:[%s1935 + $0x78] sm:$0xff]
        %s1952 = scalar_lea.vmem %s7, 2
        %v1953 = vld [vmem:[%s1952] sm:$0x1]
        %v1955 = vlaneseq
        %v1956 = vshrl.u32 %v1955, 7
        %v1957 = vsub.s32 0, %v1956
        %v1958 = vrot.slane %v1953, %v1957
        %1960 = vmatprep.subr.mxu0 0.0
        %1961 = vmatpush1.msra.mxu0 %v1951
        %1962 = vmatprep.subr.mxu0 0.0
        %1963 = vmatpush1.msra.mxu0 %v1950
        %1964 = vmatprep.subr.mxu0 0.0
        %1965 = vmatpush1.msra.mxu0 %v1949
        %1966 = vmatprep.subr.mxu0 0.0
        %1967 = vmatpush1.msra.mxu0 %v1948
        %1968 = vmatprep.subr.mxu0 0.0
        %1969 = vmatpush1.msra.mxu0 %v1947
        %1970 = vmatprep.subr.mxu0 0.0
        %1971 = vmatpush1.msra.mxu0 %v1946
        %1972 = vmatprep.subr.mxu0 0.0
        %1973 = vmatpush1.msra.mxu0 %v1945
        %1974 = vmatprep.subr.mxu0 0.0
        %1975 = vmatpush1.msra.mxu0 %v1944
        %1976 = vmatprep.subr.mxu0 0.0
        %1977 = vmatpush1.msra.mxu0 %v1943
        %1978 = vmatprep.subr.mxu0 0.0
        %1979 = vmatpush1.msra.mxu0 %v1942
        %1980 = vmatprep.subr.mxu0 0.0
        %1981 = vmatpush1.msra.mxu0 %v1941
        %1982 = vmatprep.subr.mxu0 0.0
        %1983 = vmatpush1.msra.mxu0 %v1940
        %1984 = vmatprep.subr.mxu0 0.0
        %1985 = vmatpush1.msra.mxu0 %v1939
        %1986 = vmatprep.subr.mxu0 0.0
        %1987 = vmatpush1.msra.mxu0 %v1938
        %1988 = vmatprep.subr.mxu0 0.0
        %1989 = vmatpush1.msra.mxu0 %v1937
        %1990 = vmatprep.subr.mxu0 0.0
        %1991 = vmatpush1.msra.mxu0 %v1936
        %1992 = vmatprep.subr.mxu0 0.0
        %1993 = vmatpush2.msra.mxu0 0.0
        %1994 = vmatprep.subr.mxu0 0.0
        %1995 = vmatpush2.msra.mxu0 0.0
        %1996 = vmatprep.subr.mxu0 0.0
        %1997 = vmatpush2.msra.mxu0 0.0
        %1998 = vmatprep.subr.mxu0 0.0
        %1999 = vmatpush2.msra.mxu0 0.0
        %2000 = vmatprep.subr.mxu0 0.0
        %2001 = vmatpush2.msra.mxu0 0.0
        %2002 = vmatprep.subr.mxu0 0.0
        %2003 = vmatpush2.msra.mxu0 0.0
        %2004 = vmatprep.subr.mxu0 0.0
        %2005 = vmatpush2.msra.mxu0 0.0
        %2006 = vmatprep.subr.mxu0 0.0
        %2007 = vmatpush2.msra.mxu0 0.0
        %2008 = vmatprep.subr.mxu0 0.0
        %2009 = vmatpush2.msra.mxu0 0.0
        %2010 = vmatprep.subr.mxu0 0.0
        %2011 = vmatpush2.msra.mxu0 0.0
        %2012 = vmatprep.subr.mxu0 0.0
        %2013 = vmatpush2.msra.mxu0 0.0
        %2014 = vmatprep.subr.mxu0 0.0
        %2015 = vmatpush2.msra.mxu0 0.0
        %2016 = vmatprep.subr.mxu0 0.0
        %2017 = vmatpush2.msra.mxu0 0.0
        %2018 = vmatprep.subr.mxu0 0.0
        %2019 = vmatpush2.msra.mxu0 0.0
        %2020 = vmatprep.subr.mxu0 0.0
        %2021 = vmatpush2.msra.mxu0 0.0
        %2022 = vmatprep.subr.mxu0 0.0
        %2023 = vmatpush2.msra.mxu0 0.0
        %2024 = vmatprep.mubr.f32.mxu0 0.0
        %2025 = vmatmul.mubr.f32.gmra.mxu0 %v691
        %v2026 = vpop.f32.mrf.mxu0
        %v2027 = vadd.f32 %v1958, %v2026
        %v2028 = vpop.f32.mrf.mxu0
        %2029 = vdwg.mxu0
        %2030 = vmatprep.subr.mxu0 0.0
        %2031 = vmatpush1.xpose.msra.mxu0 0.0
        %2032 = vmatprep.subr.mxu0 0.0
        %2033 = vmatpush1.xpose.msra.mxu0 0.0
        %2034 = vmatprep.subr.mxu0 0.0
        %2035 = vmatpush1.xpose.msra.mxu0 0.0
        %2036 = vmatprep.subr.mxu0 0.0
        %2037 = vmatpush1.xpose.msra.mxu0 0.0
        %2038 = vmatprep.subr.mxu0 0.0
        %2039 = vmatpush1.xpose.msra.mxu0 0.0
        %2040 = vmatprep.subr.mxu0 0.0
        %2041 = vmatpush1.xpose.msra.mxu0 0.0
        %2042 = vmatprep.subr.mxu0 0.0
        %2043 = vmatpush1.xpose.msra.mxu0 0.0
        %2044 = vmatprep.subr.mxu0 0.0
        %2045 = vmatpush1.xpose.msra.mxu0 0.0
        %2046 = vmatprep.subr.mxu0 0.0
        %2047 = vmatpush1.xpose.msra.mxu0 0.0
        %2048 = vmatprep.subr.mxu0 0.0
        %2049 = vmatpush1.xpose.msra.mxu0 0.0
        %2050 = vmatprep.subr.mxu0 0.0
        %2051 = vmatpush1.xpose.msra.mxu0 0.0
        %2052 = vmatprep.subr.mxu0 0.0
        %2053 = vmatpush1.xpose.msra.mxu0 0.0
        %2054 = vmatprep.subr.mxu0 0.0
        %2055 = vmatpush1.xpose.msra.mxu0 0.0
        %2056 = vmatprep.subr.mxu0 0.0
        %2057 = vmatpush1.xpose.msra.mxu0 0.0
        %2058 = vmatprep.subr.mxu0 0.0
        %2059 = vmatpush1.xpose.msra.mxu0 0.0
        %2060 = vmatprep.subr.mxu0 0.0
        %2061 = vmatpush1.xpose.msra.mxu0 %v1932
        %2062 = vmatprep.subr.mxu0 0.0
        %2063 = vmatpush2.xpose.msra.mxu0 0.0
        %2064 = vmatprep.subr.mxu0 0.0
        %2065 = vmatpush2.xpose.msra.mxu0 0.0
        %2066 = vmatprep.subr.mxu0 0.0
        %2067 = vmatpush2.xpose.msra.mxu0 0.0
        %2068 = vmatprep.subr.mxu0 0.0
        %2069 = vmatpush2.xpose.msra.mxu0 0.0
        %2070 = vmatprep.subr.mxu0 0.0
        %2071 = vmatpush2.xpose.msra.mxu0 0.0
        %2072 = vmatprep.subr.mxu0 0.0
        %2073 = vmatpush2.xpose.msra.mxu0 0.0
        %2074 = vmatprep.subr.mxu0 0.0
        %2075 = vmatpush2.xpose.msra.mxu0 0.0
        %2076 = vmatprep.subr.mxu0 0.0
        %2077 = vmatpush2.xpose.msra.mxu0 0.0
        %2078 = vmatprep.subr.mxu0 0.0
        %2079 = vmatpush2.xpose.msra.mxu0 0.0
        %2080 = vmatprep.subr.mxu0 0.0
        %2081 = vmatpush2.xpose.msra.mxu0 0.0
        %2082 = vmatprep.subr.mxu0 0.0
        %2083 = vmatpush2.xpose.msra.mxu0 0.0
        %2084 = vmatprep.subr.mxu0 0.0
        %2085 = vmatpush2.xpose.msra.mxu0 0.0
        %2086 = vmatprep.subr.mxu0 0.0
        %2087 = vmatpush2.xpose.msra.mxu0 0.0
        %2088 = vmatprep.subr.mxu0 0.0
        %2089 = vmatpush2.xpose.msra.mxu0 0.0
        %2090 = vmatprep.subr.mxu0 0.0
        %2091 = vmatpush2.xpose.msra.mxu0 0.0
        %2092 = vmatprep.subr.mxu0 0.0
        %2093 = vmatpush2.xpose.msra.mxu0 0.0
        %2094 = vmatprep.mubr.f32.mxu0 0.0
        %2095 = vmatmul.mubr.f32.gmra.mxu0 %v1839
        %v2096 = vpop.f32.mrf.mxu0
        %v2097 = vadd.f32 %v692, %v2096
        %v2098 = vpop.f32.mrf.mxu0
        %2099 = vdwg.mxu0
        %v2100 = vsel %vm1046, %v2097, -inf
        %2101 = vmax.xlane.f32.xlu0 %v2100
        %v2102 = vpop.xlane.xlu0 %2101
        %v2103 = vsub.f32 %v2097, %v2102
        %v2104 = vmul.f32 %v2103, 1.442695
        %v2105 = vpow.pop %v2104
        %v2106 = vsel %vm1046, %v2105, 0.0
        %2107 = vadd.xlane.f32.xlu0 %v2106
        %v2108 = vpop.xlane.xlu0 %2107
        %v2109 = vrcp.pop %v2108
        %v2110 = vmul.f32 %v2105, %v2109
        %v2112 = vsel %vm1046, %v2110, 0
        %2114 = vmatprep.subr.mxu0 0.0
        %2115 = vmatpush1.msra.mxu0 0.0
        %2116 = vmatprep.subr.mxu0 0.0
        %2117 = vmatpush1.msra.mxu0 0.0
        %2118 = vmatprep.subr.mxu0 0.0
        %2119 = vmatpush1.msra.mxu0 0.0
        %2120 = vmatprep.subr.mxu0 0.0
        %2121 = vmatpush1.msra.mxu0 0.0
        %2122 = vmatprep.subr.mxu0 0.0
        %2123 = vmatpush1.msra.mxu0 0.0
        %2124 = vmatprep.subr.mxu0 0.0
        %2125 = vmatpush1.msra.mxu0 0.0
        %2126 = vmatprep.subr.mxu0 0.0
        %2127 = vmatpush1.msra.mxu0 0.0
        %2128 = vmatprep.subr.mxu0 0.0
        %2129 = vmatpush1.msra.mxu0 0.0
        %2130 = vmatprep.subr.mxu0 0.0
        %2131 = vmatpush1.msra.mxu0 0.0
        %2132 = vmatprep.subr.mxu0 0.0
        %2133 = vmatpush1.msra.mxu0 0.0
        %2134 = vmatprep.subr.mxu0 0.0
        %2135 = vmatpush1.msra.mxu0 0.0
        %2136 = vmatprep.subr.mxu0 0.0
        %2137 = vmatpush1.msra.mxu0 0.0
        %2138 = vmatprep.subr.mxu0 0.0
        %2139 = vmatpush1.msra.mxu0 0.0
        %2140 = vmatprep.subr.mxu0 0.0
        %2141 = vmatpush1.msra.mxu0 0.0
        %2142 = vmatprep.subr.mxu0 0.0
        %2143 = vmatpush1.msra.mxu0 0.0
        %2144 = vmatprep.subr.mxu0 0.0
        %2145 = vmatpush1.msra.mxu0 %v2027
        %2146 = vmatprep.subr.mxu0 0.0
        %2147 = vmatpush2.msra.mxu0 0.0
        %2148 = vmatprep.subr.mxu0 0.0
        %2149 = vmatpush2.msra.mxu0 0.0
        %2150 = vmatprep.subr.mxu0 0.0
        %2151 = vmatpush2.msra.mxu0 0.0
        %2152 = vmatprep.subr.mxu0 0.0
        %2153 = vmatpush2.msra.mxu0 0.0
        %2154 = vmatprep.subr.mxu0 0.0
        %2155 = vmatpush2.msra.mxu0 0.0
        %2156 = vmatprep.subr.mxu0 0.0
        %2157 = vmatpush2.msra.mxu0 0.0
        %2158 = vmatprep.subr.mxu0 0.0
        %2159 = vmatpush2.msra.mxu0 0.0
        %2160 = vmatprep.subr.mxu0 0.0
        %2161 = vmatpush2.msra.mxu0 0.0
        %2162 = vmatprep.subr.mxu0 0.0
        %2163 = vmatpush2.msra.mxu0 0.0
        %2164 = vmatprep.subr.mxu0 0.0
        %2165 = vmatpush2.msra.mxu0 0.0
        %2166 = vmatprep.subr.mxu0 0.0
        %2167 = vmatpush2.msra.mxu0 0.0
        %2168 = vmatprep.subr.mxu0 0.0
        %2169 = vmatpush2.msra.mxu0 0.0
        %2170 = vmatprep.subr.mxu0 0.0
        %2171 = vmatpush2.msra.mxu0 0.0
        %2172 = vmatprep.subr.mxu0 0.0
        %2173 = vmatpush2.msra.mxu0 0.0
        %2174 = vmatprep.subr.mxu0 0.0
        %2175 = vmatpush2.msra.mxu0 0.0
        %2176 = vmatprep.subr.mxu0 0.0
        %2177 = vmatpush2.msra.mxu0 0.0
        %2178 = vmatprep.mubr.f32.mxu0 0.0
        %2179 = vmatmul.mubr.f32.gmra.mxu0 %v2112
        %v2180 = vpop.f32.mrf.mxu0
        %v2181 = vadd.f32 0.0, %v2180
        %v2182 = vpop.f32.mrf.mxu0
        %2183 = vdwg.mxu0
        %s2184 = scalar_lea.vmem [#allocation11], 256
        %v2185 = vld [vmem:[%s2184] sm:$0xff]
        %v2186 = vld [vmem:[%s2184 + $0x8] sm:$0xff]
        %v2187 = vld [vmem:[%s2184 + $0x10] sm:$0xff]
        %v2188 = vld [vmem:[%s2184 + $0x18] sm:$0xff]
        %v2189 = vld [vmem:[%s2184 + $0x20] sm:$0xff]
        %v2190 = vld [vmem:[%s2184 + $0x28] sm:$0xff]
        %v2191 = vld [vmem:[%s2184 + $0x30] sm:$0xff]
        %v2192 = vld [vmem:[%s2184 + $0x38] sm:$0xff]
        %v2193 = vld [vmem:[%s2184 + $0x40] sm:$0xff]
        %v2194 = vld [vmem:[%s2184 + $0x48] sm:$0xff]
        %v2195 = vld [vmem:[%s2184 + $0x50] sm:$0xff]
        %v2196 = vld [vmem:[%s2184 + $0x58] sm:$0xff]
        %v2197 = vld [vmem:[%s2184 + $0x60] sm:$0xff]
        %v2198 = vld [vmem:[%s2184 + $0x68] sm:$0xff]
        %v2199 = vld [vmem:[%s2184 + $0x70] sm:$0xff]
        %v2200 = vld [vmem:[%s2184 + $0x78] sm:$0xff]
        %2201 = vmatprep.subr.mxu0 0.0
        %2202 = vmatpush1.msra.mxu0 %v2200
        %2203 = vmatprep.subr.mxu0 0.0
        %2204 = vmatpush1.msra.mxu0 %v2199
        %2205 = vmatprep.subr.mxu0 0.0
        %2206 = vmatpush1.msra.mxu0 %v2198
        %2207 = vmatprep.subr.mxu0 0.0
        %2208 = vmatpush1.msra.mxu0 %v2197
        %2209 = vmatprep.subr.mxu0 0.0
        %2210 = vmatpush1.msra.mxu0 %v2196
        %2211 = vmatprep.subr.mxu0 0.0
        %2212 = vmatpush1.msra.mxu0 %v2195
        %2213 = vmatprep.subr.mxu0 0.0
        %2214 = vmatpush1.msra.mxu0 %v2194
        %2215 = vmatprep.subr.mxu0 0.0
        %2216 = vmatpush1.msra.mxu0 %v2193
        %2217 = vmatprep.subr.mxu0 0.0
        %2218 = vmatpush1.msra.mxu0 %v2192
        %2219 = vmatprep.subr.mxu0 0.0
        %2220 = vmatpush1.msra.mxu0 %v2191
        %2221 = vmatprep.subr.mxu0 0.0
        %2222 = vmatpush1.msra.mxu0 %v2190
        %2223 = vmatprep.subr.mxu0 0.0
        %2224 = vmatpush1.msra.mxu0 %v2189
        %2225 = vmatprep.subr.mxu0 0.0
        %2226 = vmatpush1.msra.mxu0 %v2188
        %2227 = vmatprep.subr.mxu0 0.0
        %2228 = vmatpush1.msra.mxu0 %v2187
        %2229 = vmatprep.subr.mxu0 0.0
        %2230 = vmatpush1.msra.mxu0 %v2186
        %2231 = vmatprep.subr.mxu0 0.0
        %2232 = vmatpush1.msra.mxu0 %v2185
        %2233 = vmatprep.subr.mxu0 0.0
        %2234 = vmatpush2.msra.mxu0 0.0
        %2235 = vmatprep.subr.mxu0 0.0
        %2236 = vmatpush2.msra.mxu0 0.0
        %2237 = vmatprep.subr.mxu0 0.0
        %2238 = vmatpush2.msra.mxu0 0.0
        %2239 = vmatprep.subr.mxu0 0.0
        %2240 = vmatpush2.msra.mxu0 0.0
        %2241 = vmatprep.subr.mxu0 0.0
        %2242 = vmatpush2.msra.mxu0 0.0
        %2243 = vmatprep.subr.mxu0 0.0
        %2244 = vmatpush2.msra.mxu0 0.0
        %2245 = vmatprep.subr.mxu0 0.0
        %2246 = vmatpush2.msra.mxu0 0.0
        %2247 = vmatprep.subr.mxu0 0.0
        %2248 = vmatpush2.msra.mxu0 0.0
        %2249 = vmatprep.subr.mxu0 0.0
        %2250 = vmatpush2.msra.mxu0 0.0
        %2251 = vmatprep.subr.mxu0 0.0
        %2252 = vmatpush2.msra.mxu0 0.0
        %2253 = vmatprep.subr.mxu0 0.0
        %2254 = vmatpush2.msra.mxu0 0.0
        %2255 = vmatprep.subr.mxu0 0.0
        %2256 = vmatpush2.msra.mxu0 0.0
        %2257 = vmatprep.subr.mxu0 0.0
        %2258 = vmatpush2.msra.mxu0 0.0
        %2259 = vmatprep.subr.mxu0 0.0
        %2260 = vmatpush2.msra.mxu0 0.0
        %2261 = vmatprep.subr.mxu0 0.0
        %2262 = vmatpush2.msra.mxu0 0.0
        %2263 = vmatprep.subr.mxu0 0.0
        %2264 = vmatpush2.msra.mxu0 0.0
        %2265 = vmatprep.mubr.f32.mxu0 0.0
        %2266 = vmatmul.mubr.f32.gmra.mxu0 %v2181
        %v2267 = vpop.f32.mrf.mxu0
        %v2268 = vadd.f32 0.0, %v2267
        %v2269 = vpop.f32.mrf.mxu0
        %2270 = vdwg.mxu0
        %v2271 = vadd.f32 %v1741, %v2268
        %s2272 = scalar_lea.vmem [#allocation7], 384
        %v2273 = vld [vmem:[%s2272] sm:$0xff]
        %v2274 = vld [vmem:[%s2272 + $0x8] sm:$0xff]
        %v2275 = vld [vmem:[%s2272 + $0x10] sm:$0xff]
        %v2276 = vld [vmem:[%s2272 + $0x18] sm:$0xff]
        %v2277 = vld [vmem:[%s2272 + $0x20] sm:$0xff]
        %v2278 = vld [vmem:[%s2272 + $0x28] sm:$0xff]
        %v2279 = vld [vmem:[%s2272 + $0x30] sm:$0xff]
        %v2280 = vld [vmem:[%s2272 + $0x38] sm:$0xff]
        %v2281 = vld [vmem:[%s2272 + $0x40] sm:$0xff]
        %v2282 = vld [vmem:[%s2272 + $0x48] sm:$0xff]
        %v2283 = vld [vmem:[%s2272 + $0x50] sm:$0xff]
        %v2284 = vld [vmem:[%s2272 + $0x58] sm:$0xff]
        %v2285 = vld [vmem:[%s2272 + $0x60] sm:$0xff]
        %v2286 = vld [vmem:[%s2272 + $0x68] sm:$0xff]
        %v2287 = vld [vmem:[%s2272 + $0x70] sm:$0xff]
        %v2288 = vld [vmem:[%s2272 + $0x78] sm:$0xff]
        %s2289 = scalar_lea.vmem %s3, 3
        %v2290 = vld [vmem:[%s2289] sm:$0x1]
        %v2292 = vlaneseq
        %v2293 = vshrl.u32 %v2292, 7
        %v2294 = vsub.s32 0, %v2293
        %v2295 = vrot.slane %v2290, %v2294
        %2297 = vmatprep.subr.mxu0 0.0
        %2298 = vmatpush1.msra.mxu0 %v2288
        %2299 = vmatprep.subr.mxu0 0.0
        %2300 = vmatpush1.msra.mxu0 %v2287
        %2301 = vmatprep.subr.mxu0 0.0
        %2302 = vmatpush1.msra.mxu0 %v2286
        %2303 = vmatprep.subr.mxu0 0.0
        %2304 = vmatpush1.msra.mxu0 %v2285
        %2305 = vmatprep.subr.mxu0 0.0
        %2306 = vmatpush1.msra.mxu0 %v2284
        %2307 = vmatprep.subr.mxu0 0.0
        %2308 = vmatpush1.msra.mxu0 %v2283
        %2309 = vmatprep.subr.mxu0 0.0
        %2310 = vmatpush1.msra.mxu0 %v2282
        %2311 = vmatprep.subr.mxu0 0.0
        %2312 = vmatpush1.msra.mxu0 %v2281
        %2313 = vmatprep.subr.mxu0 0.0
        %2314 = vmatpush1.msra.mxu0 %v2280
        %2315 = vmatprep.subr.mxu0 0.0
        %2316 = vmatpush1.msra.mxu0 %v2279
        %2317 = vmatprep.subr.mxu0 0.0
        %2318 = vmatpush1.msra.mxu0 %v2278
        %2319 = vmatprep.subr.mxu0 0.0
        %2320 = vmatpush1.msra.mxu0 %v2277
        %2321 = vmatprep.subr.mxu0 0.0
        %2322 = vmatpush1.msra.mxu0 %v2276
        %2323 = vmatprep.subr.mxu0 0.0
        %2324 = vmatpush1.msra.mxu0 %v2275
        %2325 = vmatprep.subr.mxu0 0.0
        %2326 = vmatpush1.msra.mxu0 %v2274
        %2327 = vmatprep.subr.mxu0 0.0
        %2328 = vmatpush1.msra.mxu0 %v2273
        %2329 = vmatprep.subr.mxu0 0.0
        %2330 = vmatpush2.msra.mxu0 0.0
        %2331 = vmatprep.subr.mxu0 0.0
        %2332 = vmatpush2.msra.mxu0 0.0
        %2333 = vmatprep.subr.mxu0 0.0
        %2334 = vmatpush2.msra.mxu0 0.0
        %2335 = vmatprep.subr.mxu0 0.0
        %2336 = vmatpush2.msra.mxu0 0.0
        %2337 = vmatprep.subr.mxu0 0.0
        %2338 = vmatpush2.msra.mxu0 0.0
        %2339 = vmatprep.subr.mxu0 0.0
        %2340 = vmatpush2.msra.mxu0 0.0
        %2341 = vmatprep.subr.mxu0 0.0
        %2342 = vmatpush2.msra.mxu0 0.0
        %2343 = vmatprep.subr.mxu0 0.0
        %2344 = vmatpush2.msra.mxu0 0.0
        %2345 = vmatprep.subr.mxu0 0.0
        %2346 = vmatpush2.msra.mxu0 0.0
        %2347 = vmatprep.subr.mxu0 0.0
        %2348 = vmatpush2.msra.mxu0 0.0
        %2349 = vmatprep.subr.mxu0 0.0
        %2350 = vmatpush2.msra.mxu0 0.0
        %2351 = vmatprep.subr.mxu0 0.0
        %2352 = vmatpush2.msra.mxu0 0.0
        %2353 = vmatprep.subr.mxu0 0.0
        %2354 = vmatpush2.msra.mxu0 0.0
        %2355 = vmatprep.subr.mxu0 0.0
        %2356 = vmatpush2.msra.mxu0 0.0
        %2357 = vmatprep.subr.mxu0 0.0
        %2358 = vmatpush2.msra.mxu0 0.0
        %2359 = vmatprep.subr.mxu0 0.0
        %2360 = vmatpush2.msra.mxu0 0.0
        %2361 = vmatprep.mubr.f32.mxu0 0.0
        %2362 = vmatmul.mubr.f32.gmra.mxu0 %v691
        %v2363 = vpop.f32.mrf.mxu0
        %v2364 = vadd.f32 %v2295, %v2363
        %v2365 = vpop.f32.mrf.mxu0
        %2366 = vdwg.mxu0
        %v2367 = vmul.f32 %v2364, 0.35355338
        %s2368 = scalar_lea.vmem [#allocation8], 384
        %v2369 = vld [vmem:[%s2368] sm:$0xff]
        %v2370 = vld [vmem:[%s2368 + $0x8] sm:$0xff]
        %v2371 = vld [vmem:[%s2368 + $0x10] sm:$0xff]
        %v2372 = vld [vmem:[%s2368 + $0x18] sm:$0xff]
        %v2373 = vld [vmem:[%s2368 + $0x20] sm:$0xff]
        %v2374 = vld [vmem:[%s2368 + $0x28] sm:$0xff]
        %v2375 = vld [vmem:[%s2368 + $0x30] sm:$0xff]
        %v2376 = vld [vmem:[%s2368 + $0x38] sm:$0xff]
        %v2377 = vld [vmem:[%s2368 + $0x40] sm:$0xff]
        %v2378 = vld [vmem:[%s2368 + $0x48] sm:$0xff]
        %v2379 = vld [vmem:[%s2368 + $0x50] sm:$0xff]
        %v2380 = vld [vmem:[%s2368 + $0x58] sm:$0xff]
        %v2381 = vld [vmem:[%s2368 + $0x60] sm:$0xff]
        %v2382 = vld [vmem:[%s2368 + $0x68] sm:$0xff]
        %v2383 = vld [vmem:[%s2368 + $0x70] sm:$0xff]
        %v2384 = vld [vmem:[%s2368 + $0x78] sm:$0xff]
        %s2385 = scalar_lea.vmem %s5, 3
        %v2386 = vld [vmem:[%s2385] sm:$0x1]
        %v2388 = vlaneseq
        %v2389 = vshrl.u32 %v2388, 7
        %v2390 = vsub.s32 0, %v2389
        %v2391 = vrot.slane %v2386, %v2390
        %2393 = vmatprep.subr.mxu0 0.0
        %2394 = vmatpush1.msra.mxu0 %v2384
        %2395 = vmatprep.subr.mxu0 0.0
        %2396 = vmatpush1.msra.mxu0 %v2383
        %2397 = vmatprep.subr.mxu0 0.0
        %2398 = vmatpush1.msra.mxu0 %v2382
        %2399 = vmatprep.subr.mxu0 0.0
        %2400 = vmatpush1.msra.mxu0 %v2381
        %2401 = vmatprep.subr.mxu0 0.0
        %2402 = vmatpush1.msra.mxu0 %v2380
        %2403 = vmatprep.subr.mxu0 0.0
        %2404 = vmatpush1.msra.mxu0 %v2379
        %2405 = vmatprep.subr.mxu0 0.0
        %2406 = vmatpush1.msra.mxu0 %v2378
        %2407 = vmatprep.subr.mxu0 0.0
        %2408 = vmatpush1.msra.mxu0 %v2377
        %2409 = vmatprep.subr.mxu0 0.0
        %2410 = vmatpush1.msra.mxu0 %v2376
        %2411 = vmatprep.subr.mxu0 0.0
        %2412 = vmatpush1.msra.mxu0 %v2375
        %2413 = vmatprep.subr.mxu0 0.0
        %2414 = vmatpush1.msra.mxu0 %v2374
        %2415 = vmatprep.subr.mxu0 0.0
        %2416 = vmatpush1.msra.mxu0 %v2373
        %2417 = vmatprep.subr.mxu0 0.0
        %2418 = vmatpush1.msra.mxu0 %v2372
        %2419 = vmatprep.subr.mxu0 0.0
        %2420 = vmatpush1.msra.mxu0 %v2371
        %2421 = vmatprep.subr.mxu0 0.0
        %2422 = vmatpush1.msra.mxu0 %v2370
        %2423 = vmatprep.subr.mxu0 0.0
        %2424 = vmatpush1.msra.mxu0 %v2369
        %2425 = vmatprep.subr.mxu0 0.0
        %2426 = vmatpush2.msra.mxu0 0.0
        %2427 = vmatprep.subr.mxu0 0.0
        %2428 = vmatpush2.msra.mxu0 0.0
        %2429 = vmatprep.subr.mxu0 0.0
        %2430 = vmatpush2.msra.mxu0 0.0
        %2431 = vmatprep.subr.mxu0 0.0
        %2432 = vmatpush2.msra.mxu0 0.0
        %2433 = vmatprep.subr.mxu0 0.0
        %2434 = vmatpush2.msra.mxu0 0.0
        %2435 = vmatprep.subr.mxu0 0.0
        %2436 = vmatpush2.msra.mxu0 0.0
        %2437 = vmatprep.subr.mxu0 0.0
        %2438 = vmatpush2.msra.mxu0 0.0
        %2439 = vmatprep.subr.mxu0 0.0
        %2440 = vmatpush2.msra.mxu0 0.0
        %2441 = vmatprep.subr.mxu0 0.0
        %2442 = vmatpush2.msra.mxu0 0.0
        %2443 = vmatprep.subr.mxu0 0.0
        %2444 = vmatpush2.msra.mxu0 0.0
        %2445 = vmatprep.subr.mxu0 0.0
        %2446 = vmatpush2.msra.mxu0 0.0
        %2447 = vmatprep.subr.mxu0 0.0
        %2448 = vmatpush2.msra.mxu0 0.0
        %2449 = vmatprep.subr.mxu0 0.0
        %2450 = vmatpush2.msra.mxu0 0.0
        %2451 = vmatprep.subr.mxu0 0.0
        %2452 = vmatpush2.msra.mxu0 0.0
        %2453 = vmatprep.subr.mxu0 0.0
        %2454 = vmatpush2.msra.mxu0 0.0
        %2455 = vmatprep.subr.mxu0 0.0
        %2456 = vmatpush2.msra.mxu0 0.0
        %2457 = vmatprep.mubr.f32.mxu0 0.0
        %2458 = vmatmul.mubr.f32.gmra.mxu0 %v691
        %v2459 = vpop.f32.mrf.mxu0
        %v2460 = vadd.f32 %v2391, %v2459
        %v2461 = vpop.f32.mrf.mxu0
        %2462 = vdwg.mxu0
        %s2463 = scalar_lea.vmem [#allocation10], 384
        %v2464 = vld [vmem:[%s2463] sm:$0xff]
        %v2465 = vld [vmem:[%s2463 + $0x8] sm:$0xff]
        %v2466 = vld [vmem:[%s2463 + $0x10] sm:$0xff]
        %v2467 = vld [vmem:[%s2463 + $0x18] sm:$0xff]
        %v2468 = vld [vmem:[%s2463 + $0x20] sm:$0xff]
        %v2469 = vld [vmem:[%s2463 + $0x28] sm:$0xff]
        %v2470 = vld [vmem:[%s2463 + $0x30] sm:$0xff]
        %v2471 = vld [vmem:[%s2463 + $0x38] sm:$0xff]
        %v2472 = vld [vmem:[%s2463 + $0x40] sm:$0xff]
        %v2473 = vld [vmem:[%s2463 + $0x48] sm:$0xff]
        %v2474 = vld [vmem:[%s2463 + $0x50] sm:$0xff]
        %v2475 = vld [vmem:[%s2463 + $0x58] sm:$0xff]
        %v2476 = vld [vmem:[%s2463 + $0x60] sm:$0xff]
        %v2477 = vld [vmem:[%s2463 + $0x68] sm:$0xff]
        %v2478 = vld [vmem:[%s2463 + $0x70] sm:$0xff]
        %v2479 = vld [vmem:[%s2463 + $0x78] sm:$0xff]
        %s2480 = scalar_lea.vmem %s7, 3
        %v2481 = vld [vmem:[%s2480] sm:$0x1]
        %v2483 = vlaneseq
        %v2484 = vshrl.u32 %v2483, 7
        %v2485 = vsub.s32 0, %v2484
        %v2486 = vrot.slane %v2481, %v2485
        %2488 = vmatprep.subr.mxu0 0.0
        %2489 = vmatpush1.msra.mxu0 %v2479
        %2490 = vmatprep.subr.mxu0 0.0
        %2491 = vmatpush1.msra.mxu0 %v2478
        %2492 = vmatprep.subr.mxu0 0.0
        %2493 = vmatpush1.msra.mxu0 %v2477
        %2494 = vmatprep.subr.mxu0 0.0
        %2495 = vmatpush1.msra.mxu0 %v2476
        %2496 = vmatprep.subr.mxu0 0.0
        %2497 = vmatpush1.msra.mxu0 %v2475
        %2498 = vmatprep.subr.mxu0 0.0
        %2499 = vmatpush1.msra.mxu0 %v2474
        %2500 = vmatprep.subr.mxu0 0.0
        %2501 = vmatpush1.msra.mxu0 %v2473
        %2502 = vmatprep.subr.mxu0 0.0
        %2503 = vmatpush1.msra.mxu0 %v2472
        %2504 = vmatprep.subr.mxu0 0.0
        %2505 = vmatpush1.msra.mxu0 %v2471
        %2506 = vmatprep.subr.mxu0 0.0
        %2507 = vmatpush1.msra.mxu0 %v2470
        %2508 = vmatprep.subr.mxu0 0.0
        %2509 = vmatpush1.msra.mxu0 %v2469
        %2510 = vmatprep.subr.mxu0 0.0
        %2511 = vmatpush1.msra.mxu0 %v2468
        %2512 = vmatprep.subr.mxu0 0.0
        %2513 = vmatpush1.msra.mxu0 %v2467
        %2514 = vmatprep.subr.mxu0 0.0
        %2515 = vmatpush1.msra.mxu0 %v2466
        %2516 = vmatprep.subr.mxu0 0.0
        %2517 = vmatpush1.msra.mxu0 %v2465
        %2518 = vmatprep.subr.mxu0 0.0
        %2519 = vmatpush1.msra.mxu0 %v2464
        %2520 = vmatprep.subr.mxu0 0.0
        %2521 = vmatpush2.msra.mxu0 0.0
        %2522 = vmatprep.subr.mxu0 0.0
        %2523 = vmatpush2.msra.mxu0 0.0
        %2524 = vmatprep.subr.mxu0 0.0
        %2525 = vmatpush2.msra.mxu0 0.0
        %2526 = vmatprep.subr.mxu0 0.0
        %2527 = vmatpush2.msra.mxu0 0.0
        %2528 = vmatprep.subr.mxu0 0.0
        %2529 = vmatpush2.msra.mxu0 0.0
        %2530 = vmatprep.subr.mxu0 0.0
        %2531 = vmatpush2.msra.mxu0 0.0
        %2532 = vmatprep.subr.mxu0 0.0
        %2533 = vmatpush2.msra.mxu0 0.0
        %2534 = vmatprep.subr.mxu0 0.0
        %2535 = vmatpush2.msra.mxu0 0.0
        %2536 = vmatprep.subr.mxu0 0.0
        %2537 = vmatpush2.msra.mxu0 0.0
        %2538 = vmatprep.subr.mxu0 0.0
        %2539 = vmatpush2.msra.mxu0 0.0
        %2540 = vmatprep.subr.mxu0 0.0
        %2541 = vmatpush2.msra.mxu0 0.0
        %2542 = vmatprep.subr.mxu0 0.0
        %2543 = vmatpush2.msra.mxu0 0.0
        %2544 = vmatprep.subr.mxu0 0.0
        %2545 = vmatpush2.msra.mxu0 0.0
        %2546 = vmatprep.subr.mxu0 0.0
        %2547 = vmatpush2.msra.mxu0 0.0
        %2548 = vmatprep.subr.mxu0 0.0
        %2549 = vmatpush2.msra.mxu0 0.0
        %2550 = vmatprep.subr.mxu0 0.0
        %2551 = vmatpush2.msra.mxu0 0.0
        %2552 = vmatprep.mubr.f32.mxu0 0.0
        %2553 = vmatmul.mubr.f32.gmra.mxu0 %v691
        %v2554 = vpop.f32.mrf.mxu0
        %v2555 = vadd.f32 %v2486, %v2554
        %v2556 = vpop.f32.mrf.mxu0
        %2557 = vdwg.mxu0
        %2558 = vmatprep.subr.mxu0 0.0
        %2559 = vmatpush1.xpose.msra.mxu0 0.0
        %2560 = vmatprep.subr.mxu0 0.0
        %2561 = vmatpush1.xpose.msra.mxu0 0.0
        %2562 = vmatprep.subr.mxu0 0.0
        %2563 = vmatpush1.xpose.msra.mxu0 0.0
        %2564 = vmatprep.subr.mxu0 0.0
        %2565 = vmatpush1.xpose.msra.mxu0 0.0
        %2566 = vmatprep.subr.mxu0 0.0
        %2567 = vmatpush1.xpose.msra.mxu0 0.0
        %2568 = vmatprep.subr.mxu0 0.0
        %2569 = vmatpush1.xpose.msra.mxu0 0.0
        %2570 = vmatprep.subr.mxu0 0.0
        %2571 = vmatpush1.xpose.msra.mxu0 0.0
        %2572 = vmatprep.subr.mxu0 0.0
        %2573 = vmatpush1.xpose.msra.mxu0 0.0
        %2574 = vmatprep.subr.mxu0 0.0
        %2575 = vmatpush1.xpose.msra.mxu0 0.0
        %2576 = vmatprep.subr.mxu0 0.0
        %2577 = vmatpush1.xpose.msra.mxu0 0.0
        %2578 = vmatprep.subr.mxu0 0.0
        %2579 = vmatpush1.xpose.msra.mxu0 0.0
        %2580 = vmatprep.subr.mxu0 0.0
        %2581 = vmatpush1.xpose.msra.mxu0 0.0
        %2582 = vmatprep.subr.mxu0 0.0
        %2583 = vmatpush1.xpose.msra.mxu0 0.0
        %2584 = vmatprep.subr.mxu0 0.0
        %2585 = vmatpush1.xpose.msra.mxu0 0.0
        %2586 = vmatprep.subr.mxu0 0.0
        %2587 = vmatpush1.xpose.msra.mxu0 0.0
        %2588 = vmatprep.subr.mxu0 0.0
        %2589 = vmatpush1.xpose.msra.mxu0 %v2460
        %2590 = vmatprep.subr.mxu0 0.0
        %2591 = vmatpush2.xpose.msra.mxu0 0.0
        %2592 = vmatprep.subr.mxu0 0.0
        %2593 = vmatpush2.xpose.msra.mxu0 0.0
        %2594 = vmatprep.subr.mxu0 0.0
        %2595 = vmatpush2.xpose.msra.mxu0 0.0
        %2596 = vmatprep.subr.mxu0 0.0
        %2597 = vmatpush2.xpose.msra.mxu0 0.0
        %2598 = vmatprep.subr.mxu0 0.0
        %2599 = vmatpush2.xpose.msra.mxu0 0.0
        %2600 = vmatprep.subr.mxu0 0.0
        %2601 = vmatpush2.xpose.msra.mxu0 0.0
        %2602 = vmatprep.subr.mxu0 0.0
        %2603 = vmatpush2.xpose.msra.mxu0 0.0
        %2604 = vmatprep.subr.mxu0 0.0
        %2605 = vmatpush2.xpose.msra.mxu0 0.0
        %2606 = vmatprep.subr.mxu0 0.0
        %2607 = vmatpush2.xpose.msra.mxu0 0.0
        %2608 = vmatprep.subr.mxu0 0.0
        %2609 = vmatpush2.xpose.msra.mxu0 0.0
        %2610 = vmatprep.subr.mxu0 0.0
        %2611 = vmatpush2.xpose.msra.mxu0 0.0
        %2612 = vmatprep.subr.mxu0 0.0
        %2613 = vmatpush2.xpose.msra.mxu0 0.0
        %2614 = vmatprep.subr.mxu0 0.0
        %2615 = vmatpush2.xpose.msra.mxu0 0.0
        %2616 = vmatprep.subr.mxu0 0.0
        %2617 = vmatpush2.xpose.msra.mxu0 0.0
        %2618 = vmatprep.subr.mxu0 0.0
        %2619 = vmatpush2.xpose.msra.mxu0 0.0
        %2620 = vmatprep.subr.mxu0 0.0
        %2621 = vmatpush2.xpose.msra.mxu0 0.0
        %2622 = vmatprep.mubr.f32.mxu0 0.0
        %2623 = vmatmul.mubr.f32.gmra.mxu0 %v2367
        %v2624 = vpop.f32.mrf.mxu0
        %v2625 = vadd.f32 %v692, %v2624
        %v2626 = vpop.f32.mrf.mxu0
        %2627 = vdwg.mxu0
        %v2628 = vsel %vm1046, %v2625, -inf
        %2629 = vmax.xlane.f32.xlu0 %v2628
        %v2630 = vpop.xlane.xlu0 %2629
        %v2631 = vsub.f32 %v2625, %v2630
        %v2632 = vmul.f32 %v2631, 1.442695
        %v2633 = vpow.pop %v2632
        %v2634 = vsel %vm1046, %v2633, 0.0
        %2635 = vadd.xlane.f32.xlu0 %v2634
        %v2636 = vpop.xlane.xlu0 %2635
        %v2637 = vrcp.pop %v2636
        %v2638 = vmul.f32 %v2633, %v2637
        %v2640 = vsel %vm1046, %v2638, 0
        %2642 = vmatprep.subr.mxu0 0.0
        %2643 = vmatpush1.msra.mxu0 0.0
        %2644 = vmatprep.subr.mxu0 0.0
        %2645 = vmatpush1.msra.mxu0 0.0
        %2646 = vmatprep.subr.mxu0 0.0
        %2647 = vmatpush1.msra.mxu0 0.0
        %2648 = vmatprep.subr.mxu0 0.0
        %2649 = vmatpush1.msra.mxu0 0.0
        %2650 = vmatprep.subr.mxu0 0.0
        %2651 = vmatpush1.msra.mxu0 0.0
        %2652 = vmatprep.subr.mxu0 0.0
        %2653 = vmatpush1.msra.mxu0 0.0
        %2654 = vmatprep.subr.mxu0 0.0
        %2655 = vmatpush1.msra.mxu0 0.0
        %2656 = vmatprep.subr.mxu0 0.0
        %2657 = vmatpush1.msra.mxu0 0.0
        %2658 = vmatprep.subr.mxu0 0.0
        %2659 = vmatpush1.msra.mxu0 0.0
        %2660 = vmatprep.subr.mxu0 0.0
        %2661 = vmatpush1.msra.mxu0 0.0
        %2662 = vmatprep.subr.mxu0 0.0
        %2663 = vmatpush1.msra.mxu0 0.0
        %2664 = vmatprep.subr.mxu0 0.0
        %2665 = vmatpush1.msra.mxu0 0.0
        %2666 = vmatprep.subr.mxu0 0.0
        %2667 = vmatpush1.msra.mxu0 0.0
        %2668 = vmatprep.subr.mxu0 0.0
        %2669 = vmatpush1.msra.mxu0 0.0
        %2670 = vmatprep.subr.mxu0 0.0
        %2671 = vmatpush1.msra.mxu0 0.0
        %2672 = vmatprep.subr.mxu0 0.0
        %2673 = vmatpush1.msra.mxu0 %v2555
        %2674 = vmatprep.subr.mxu0 0.0
        %2675 = vmatpush2.msra.mxu0 0.0
        %2676 = vmatprep.subr.mxu0 0.0
        %2677 = vmatpush2.msra.mxu0 0.0
        %2678 = vmatprep.subr.mxu0 0.0
        %2679 = vmatpush2.msra.mxu0 0.0
        %2680 = vmatprep.subr.mxu0 0.0
        %2681 = vmatpush2.msra.mxu0 0.0
        %2682 = vmatprep.subr.mxu0 0.0
        %2683 = vmatpush2.msra.mxu0 0.0
        %2684 = vmatprep.subr.mxu0 0.0
        %2685 = vmatpush2.msra.mxu0 0.0
        %2686 = vmatprep.subr.mxu0 0.0
        %2687 = vmatpush2.msra.mxu0 0.0
        %2688 = vmatprep.subr.mxu0 0.0
        %2689 = vmatpush2.msra.mxu0 0.0
        %2690 = vmatprep.subr.mxu0 0.0
        %2691 = vmatpush2.msra.mxu0 0.0
        %2692 = vmatprep.subr.mxu0 0.0
        %2693 = vmatpush2.msra.mxu0 0.0
        %2694 = vmatprep.subr.mxu0 0.0
        %2695 = vmatpush2.msra.mxu0 0.0
        %2696 = vmatprep.subr.mxu0 0.0
        %2697 = vmatpush2.msra.mxu0 0.0
        %2698 = vmatprep.subr.mxu0 0.0
        %2699 = vmatpush2.msra.mxu0 0.0
        %2700 = vmatprep.subr.mxu0 0.0
        %2701 = vmatpush2.msra.mxu0 0.0
        %2702 = vmatprep.subr.mxu0 0.0
        %2703 = vmatpush2.msra.mxu0 0.0
        %2704 = vmatprep.subr.mxu0 0.0
        %2705 = vmatpush2.msra.mxu0 0.0
        %2706 = vmatprep.mubr.f32.mxu0 0.0
        %2707 = vmatmul.mubr.f32.gmra.mxu0 %v2640
        %v2708 = vpop.f32.mrf.mxu0
        %v2709 = vadd.f32 0.0, %v2708
        %v2710 = vpop.f32.mrf.mxu0
        %2711 = vdwg.mxu0
        %s2712 = scalar_lea.vmem [#allocation11], 384
        %v2713 = vld [vmem:[%s2712] sm:$0xff]
        %v2714 = vld [vmem:[%s2712 + $0x8] sm:$0xff]
        %v2715 = vld [vmem:[%s2712 + $0x10] sm:$0xff]
        %v2716 = vld [vmem:[%s2712 + $0x18] sm:$0xff]
        %v2717 = vld [vmem:[%s2712 + $0x20] sm:$0xff]
        %v2718 = vld [vmem:[%s2712 + $0x28] sm:$0xff]
        %v2719 = vld [vmem:[%s2712 + $0x30] sm:$0xff]
        %v2720 = vld [vmem:[%s2712 + $0x38] sm:$0xff]
        %v2721 = vld [vmem:[%s2712 + $0x40] sm:$0xff]
        %v2722 = vld [vmem:[%s2712 + $0x48] sm:$0xff]
        %v2723 = vld [vmem:[%s2712 + $0x50] sm:$0xff]
        %v2724 = vld [vmem:[%s2712 + $0x58] sm:$0xff]
        %v2725 = vld [vmem:[%s2712 + $0x60] sm:$0xff]
        %v2726 = vld [vmem:[%s2712 + $0x68] sm:$0xff]
        %v2727 = vld [vmem:[%s2712 + $0x70] sm:$0xff]
        %v2728 = vld [vmem:[%s2712 + $0x78] sm:$0xff]
        %2729 = vmatprep.subr.mxu0 0.0
        %2730 = vmatpush1.msra.mxu0 %v2728
        %2731 = vmatprep.subr.mxu0 0.0
        %2732 = vmatpush1.msra.mxu0 %v2727
        %2733 = vmatprep.subr.mxu0 0.0
        %2734 = vmatpush1.msra.mxu0 %v2726
        %2735 = vmatprep.subr.mxu0 0.0
        %2736 = vmatpush1.msra.mxu0 %v2725
        %2737 = vmatprep.subr.mxu0 0.0
        %2738 = vmatpush1.msra.mxu0 %v2724
        %2739 = vmatprep.subr.mxu0 0.0
        %2740 = vmatpush1.msra.mxu0 %v2723
        %2741 = vmatprep.subr.mxu0 0.0
        %2742 = vmatpush1.msra.mxu0 %v2722
        %2743 = vmatprep.subr.mxu0 0.0
        %2744 = vmatpush1.msra.mxu0 %v2721
        %2745 = vmatprep.subr.mxu0 0.0
        %2746 = vmatpush1.msra.mxu0 %v2720
        %2747 = vmatprep.subr.mxu0 0.0
        %2748 = vmatpush1.msra.mxu0 %v2719
        %2749 = vmatprep.subr.mxu0 0.0
        %2750 = vmatpush1.msra.mxu0 %v2718
        %2751 = vmatprep.subr.mxu0 0.0
        %2752 = vmatpush1.msra.mxu0 %v2717
        %2753 = vmatprep.subr.mxu0 0.0
        %2754 = vmatpush1.msra.mxu0 %v2716
        %2755 = vmatprep.subr.mxu0 0.0
        %2756 = vmatpush1.msra.mxu0 %v2715
        %2757 = vmatprep.subr.mxu0 0.0
        %2758 = vmatpush1.msra.mxu0 %v2714
        %2759 = vmatprep.subr.mxu0 0.0
        %2760 = vmatpush1.msra.mxu0 %v2713
        %2761 = vmatprep.subr.mxu0 0.0
        %2762 = vmatpush2.msra.mxu0 0.0
        %2763 = vmatprep.subr.mxu0 0.0
        %2764 = vmatpush2.msra.mxu0 0.0
        %2765 = vmatprep.subr.mxu0 0.0
        %2766 = vmatpush2.msra.mxu0 0.0
        %2767 = vmatprep.subr.mxu0 0.0
        %2768 = vmatpush2.msra.mxu0 0.0
        %2769 = vmatprep.subr.mxu0 0.0
        %2770 = vmatpush2.msra.mxu0 0.0
        %2771 = vmatprep.subr.mxu0 0.0
        %2772 = vmatpush2.msra.mxu0 0.0
        %2773 = vmatprep.subr.mxu0 0.0
        %2774 = vmatpush2.msra.mxu0 0.0
        %2775 = vmatprep.subr.mxu0 0.0
        %2776 = vmatpush2.msra.mxu0 0.0
        %2777 = vmatprep.subr.mxu0 0.0
        %2778 = vmatpush2.msra.mxu0 0.0
        %2779 = vmatprep.subr.mxu0 0.0
        %2780 = vmatpush2.msra.mxu0 0.0
        %2781 = vmatprep.subr.mxu0 0.0
        %2782 = vmatpush2.msra.mxu0 0.0
        %2783 = vmatprep.subr.mxu0 0.0
        %2784 = vmatpush2.msra.mxu0 0.0
        %2785 = vmatprep.subr.mxu0 0.0
        %2786 = vmatpush2.msra.mxu0 0.0
        %2787 = vmatprep.subr.mxu0 0.0
        %2788 = vmatpush2.msra.mxu0 0.0
        %2789 = vmatprep.subr.mxu0 0.0
        %2790 = vmatpush2.msra.mxu0 0.0
        %2791 = vmatprep.subr.mxu0 0.0
        %2792 = vmatpush2.msra.mxu0 0.0
        %2793 = vmatprep.mubr.f32.mxu0 0.0
        %2794 = vmatmul.mubr.f32.gmra.mxu0 %v2709
        %v2795 = vpop.f32.mrf.mxu0
        %v2796 = vadd.f32 0.0, %v2795
        %v2797 = vpop.f32.mrf.mxu0
        %2798 = vdwg.mxu0
        %v2799 = vadd.f32 %v2271, %v2796
        %v2800 = vld [vmem:[%s9] sm:$0x1]
        %v2802 = vlaneseq
        %v2803 = vshrl.u32 %v2802, 7
        %v2804 = vsub.s32 0, %v2803
        %v2805 = vrot.slane %v2800, %v2804
        %v2807 = vadd.f32 %v2799, %v2805
        %v2808 = vadd.f32 %v691, %v2807
        %v2809 = vld [vmem:[%s10] sm:$0x1]
        %v2810 = vld [vmem:[%s11] sm:$0x1]
        %v2811 = vsel %vm695, 1, 0
        %vm2812 = vcmp.eq.s32.totalorder %v2811, 1
        %v2813 = vsel %vm2812, %v2808, 0.0
        %2814 = vadd.xlane.f32.xlu0 %v2813
        %v2815 = vpop.xlane.xlu0 %2814
        %v2816 = vmul.f32 %v2815, 0.03125
        %v2817 = vsub.f32 %v2808, %v2816
        %v2818 = vsel %vm2812, %v2817, 0.0
        %v2819 = vmul.f32 %v2818, %v2818
        %2820 = vadd.xlane.f32.xlu0 %v2819
        %v2821 = vpop.xlane.xlu0 %2820
        %v2822 = vmul.f32 %v2821, 0.03125
        %v2823 = vadd.f32 %v2822, 1e-05
        %v2824 = vrsqrt.pop %v2823
        %v2825 = vmul.f32 %v2817, %v2824
        %v2827 = vlaneseq
        %v2828 = vshrl.u32 %v2827, 7
        %v2829 = vsub.s32 0, %v2828
        %v2830 = vrot.slane %v2809, %v2829
        %v2832 = vmul.f32 %v2825, %v2830
        %v2834 = vlaneseq
        %v2835 = vshrl.u32 %v2834, 7
        %v2836 = vsub.s32 0, %v2835
        %v2837 = vrot.slane %v2810, %v2836
        %v2839 = vadd.f32 %v2832, %v2837
        %v2840 = vld [vmem:[#allocation13] sm:$0xff]
        %v2841 = vld [vmem:[#allocation13 + $0x8] sm:$0xff]
        %v2842 = vld [vmem:[#allocation13 + $0x10] sm:$0xff]
        %v2843 = vld [vmem:[#allocation13 + $0x18] sm:$0xff]
        %v2844 = vld [vmem:[#allocation13 + $0x20] sm:$0xff]
        %v2845 = vld [vmem:[#allocation13 + $0x28] sm:$0xff]
        %v2846 = vld [vmem:[#allocation13 + $0x30] sm:$0xff]
        %v2847 = vld [vmem:[#allocation13 + $0x38] sm:$0xff]
        %v2848 = vld [vmem:[#allocation13 + $0x40] sm:$0xff]
        %v2849 = vld [vmem:[#allocation13 + $0x48] sm:$0xff]
        %v2850 = vld [vmem:[#allocation13 + $0x50] sm:$0xff]
        %v2851 = vld [vmem:[#allocation13 + $0x58] sm:$0xff]
        %v2852 = vld [vmem:[#allocation13 + $0x60] sm:$0xff]
        %v2853 = vld [vmem:[#allocation13 + $0x68] sm:$0xff]
        %v2854 = vld [vmem:[#allocation13 + $0x70] sm:$0xff]
        %v2855 = vld [vmem:[#allocation13 + $0x78] sm:$0xff]
        %v2856 = vld [vmem:[%s13] sm:$0x1]
        %v2858 = vlaneseq
        %v2859 = vshrl.u32 %v2858, 7
        %v2860 = vsub.s32 0, %v2859
        %v2861 = vrot.slane %v2856, %v2860
        %2863 = vmatprep.subr.mxu0 0.0
        %2864 = vmatpush1.msra.mxu0 %v2855
        %2865 = vmatprep.subr.mxu0 0.0
        %2866 = vmatpush1.msra.mxu0 %v2854
        %2867 = vmatprep.subr.mxu0 0.0
        %2868 = vmatpush1.msra.mxu0 %v2853
        %2869 = vmatprep.subr.mxu0 0.0
        %2870 = vmatpush1.msra.mxu0 %v2852
        %2871 = vmatprep.subr.mxu0 0.0
        %2872 = vmatpush1.msra.mxu0 %v2851
        %2873 = vmatprep.subr.mxu0 0.0
        %2874 = vmatpush1.msra.mxu0 %v2850
        %2875 = vmatprep.subr.mxu0 0.0
        %2876 = vmatpush1.msra.mxu0 %v2849
        %2877 = vmatprep.subr.mxu0 0.0
        %2878 = vmatpush1.msra.mxu0 %v2848
        %2879 = vmatprep.subr.mxu0 0.0
        %2880 = vmatpush1.msra.mxu0 %v2847
        %2881 = vmatprep.subr.mxu0 0.0
        %2882 = vmatpush1.msra.mxu0 %v2846
        %2883 = vmatprep.subr.mxu0 0.0
        %2884 = vmatpush1.msra.mxu0 %v2845
        %2885 = vmatprep.subr.mxu0 0.0
        %2886 = vmatpush1.msra.mxu0 %v2844
        %2887 = vmatprep.subr.mxu0 0.0
        %2888 = vmatpush1.msra.mxu0 %v2843
        %2889 = vmatprep.subr.mxu0 0.0
        %2890 = vmatpush1.msra.mxu0 %v2842
        %2891 = vmatprep.subr.mxu0 0.0
        %2892 = vmatpush1.msra.mxu0 %v2841
        %2893 = vmatprep.subr.mxu0 0.0
        %2894 = vmatpush1.msra.mxu0 %v2840
        %2895 = vmatprep.subr.mxu0 0.0
        %2896 = vmatpush2.msra.mxu0 0.0
        %2897 = vmatprep.subr.mxu0 0.0
        %2898 = vmatpush2.msra.mxu0 0.0
        %2899 = vmatprep.subr.mxu0 0.0
        %2900 = vmatpush2.msra.mxu0 0.0
        %2901 = vmatprep.subr.mxu0 0.0
        %2902 = vmatpush2.msra.mxu0 0.0
        %2903 = vmatprep.subr.mxu0 0.0
        %2904 = vmatpush2.msra.mxu0 0.0
        %2905 = vmatprep.subr.mxu0 0.0
        %2906 = vmatpush2.msra.mxu0 0.0
        %2907 = vmatprep.subr.mxu0 0.0
        %2908 = vmatpush2.msra.mxu0 0.0
        %2909 = vmatprep.subr.mxu0 0.0
        %2910 = vmatpush2.msra.mxu0 0.0
        %2911 = vmatprep.subr.mxu0 0.0
        %2912 = vmatpush2.msra.mxu0 0.0
        %2913 = vmatprep.subr.mxu0 0.0
        %2914 = vmatpush2.msra.mxu0 0.0
        %2915 = vmatprep.subr.mxu0 0.0
        %2916 = vmatpush2.msra.mxu0 0.0
        %2917 = vmatprep.subr.mxu0 0.0
        %2918 = vmatpush2.msra.mxu0 0.0
        %2919 = vmatprep.subr.mxu0 0.0
        %2920 = vmatpush2.msra.mxu0 0.0
        %2921 = vmatprep.subr.mxu0 0.0
        %2922 = vmatpush2.msra.mxu0 0.0
        %2923 = vmatprep.subr.mxu0 0.0
        %2924 = vmatpush2.msra.mxu0 0.0
        %2925 = vmatprep.subr.mxu0 0.0
        %2926 = vmatpush2.msra.mxu0 0.0
        %2927 = vmatprep.mubr.f32.mxu0 0.0
        %2928 = vmatmul.mubr.f32.gmra.mxu0 %v2839
        %v2929 = vpop.f32.mrf.mxu0
        %v2930 = vadd.f32 %v2861, %v2929
        %v2931 = vpop.f32.mrf.mxu0
        %2932 = vdwg.mxu0
        %v2933 = vmul.f32 %v2930, 0.5
        %v2934 = vmul.f32 %v2930, 0.70710677
        %v2935 = verf.f32.pop %v2934
        %v2936 = vadd.f32 %v2935, 1.0
        %v2937 = vmul.f32 %v2933, %v2936
        %v2938 = vld [vmem:[#allocation14] sm:$0xff]
        %v2939 = vld [vmem:[#allocation14 + $0x8] sm:$0xff]
        %v2940 = vld [vmem:[#allocation14 + $0x10] sm:$0xff]
        %v2941 = vld [vmem:[#allocation14 + $0x18] sm:$0xff]
        %v2942 = vld [vmem:[#allocation14 + $0x20] sm:$0xff]
        %v2943 = vld [vmem:[#allocation14 + $0x28] sm:$0xff]
        %v2944 = vld [vmem:[#allocation14 + $0x30] sm:$0xff]
        %v2945 = vld [vmem:[#allocation14 + $0x38] sm:$0xff]
        %v2946 = vld [vmem:[#allocation14 + $0x40] sm:$0xff]
        %v2947 = vld [vmem:[#allocation14 + $0x48] sm:$0xff]
        %v2948 = vld [vmem:[#allocation14 + $0x50] sm:$0xff]
        %v2949 = vld [vmem:[#allocation14 + $0x58] sm:$0xff]
        %v2950 = vld [vmem:[#allocation14 + $0x60] sm:$0xff]
        %v2951 = vld [vmem:[#allocation14 + $0x68] sm:$0xff]
        %v2952 = vld [vmem:[#allocation14 + $0x70] sm:$0xff]
        %v2953 = vld [vmem:[#allocation14 + $0x78] sm:$0xff]
        %v2954 = vld [vmem:[%s15] sm:$0x1]
        %v2956 = vlaneseq
        %v2957 = vshrl.u32 %v2956, 7
        %v2958 = vsub.s32 0, %v2957
        %v2959 = vrot.slane %v2954, %v2958
        %2961 = vmatprep.subr.mxu0 0.0
        %2962 = vmatpush1.msra.mxu0 %v2953
        %2963 = vmatprep.subr.mxu0 0.0
        %2964 = vmatpush1.msra.mxu0 %v2952
        %2965 = vmatprep.subr.mxu0 0.0
        %2966 = vmatpush1.msra.mxu0 %v2951
        %2967 = vmatprep.subr.mxu0 0.0
        %2968 = vmatpush1.msra.mxu0 %v2950
        %2969 = vmatprep.subr.mxu0 0.0
        %2970 = vmatpush1.msra.mxu0 %v2949
        %2971 = vmatprep.subr.mxu0 0.0
        %2972 = vmatpush1.msra.mxu0 %v2948
        %2973 = vmatprep.subr.mxu0 0.0
        %2974 = vmatpush1.msra.mxu0 %v2947
        %2975 = vmatprep.subr.mxu0 0.0
        %2976 = vmatpush1.msra.mxu0 %v2946
        %2977 = vmatprep.subr.mxu0 0.0
        %2978 = vmatpush1.msra.mxu0 %v2945
        %2979 = vmatprep.subr.mxu0 0.0
        %2980 = vmatpush1.msra.mxu0 %v2944
        %2981 = vmatprep.subr.mxu0 0.0
        %2982 = vmatpush1.msra.mxu0 %v2943
        %2983 = vmatprep.subr.mxu0 0.0
        %2984 = vmatpush1.msra.mxu0 %v2942
        %2985 = vmatprep.subr.mxu0 0.0
        %2986 = vmatpush1.msra.mxu0 %v2941
        %2987 = vmatprep.subr.mxu0 0.0
        %2988 = vmatpush1.msra.mxu0 %v2940
        %2989 = vmatprep.subr.mxu0 0.0
        %2990 = vmatpush1.msra.mxu0 %v2939
        %2991 = vmatprep.subr.mxu0 0.0
        %2992 = vmatpush1.msra.mxu0 %v2938
        %2993 = vmatprep.subr.mxu0 0.0
        %2994 = vmatpush2.msra.mxu0 0.0
        %2995 = vmatprep.subr.mxu0 0.0
        %2996 = vmatpush2.msra.mxu0 0.0
        %2997 = vmatprep.subr.mxu0 0.0
        %2998 = vmatpush2.msra.mxu0 0.0
        %2999 = vmatprep.subr.mxu0 0.0
        %3000 = vmatpush2.msra.mxu0 0.0
        %3001 = vmatprep.subr.mxu0 0.0
        %3002 = vmatpush2.msra.mxu0 0.0
        %3003 = vmatprep.subr.mxu0 0.0
        %3004 = vmatpush2.msra.mxu0 0.0
        %3005 = vmatprep.subr.mxu0 0.0
        %3006 = vmatpush2.msra.mxu0 0.0
        %3007 = vmatprep.subr.mxu0 0.0
        %3008 = vmatpush2.msra.mxu0 0.0
        %3009 = vmatprep.subr.mxu0 0.0
        %3010 = vmatpush2.msra.mxu0 0.0
        %3011 = vmatprep.subr.mxu0 0.0
        %3012 = vmatpush2.msra.mxu0 0.0
        %3013 = vmatprep.subr.mxu0 0.0
        %3014 = vmatpush2.msra.mxu0 0.0
        %3015 = vmatprep.subr.mxu0 0.0
        %3016 = vmatpush2.msra.mxu0 0.0
        %3017 = vmatprep.subr.mxu0 0.0
        %3018 = vmatpush2.msra.mxu0 0.0
        %3019 = vmatprep.subr.mxu0 0.0
        %3020 = vmatpush2.msra.mxu0 0.0
        %3021 = vmatprep.subr.mxu0 0.0
        %3022 = vmatpush2.msra.mxu0 0.0
        %3023 = vmatprep.subr.mxu0 0.0
        %3024 = vmatpush2.msra.mxu0 0.0
        %3025 = vmatprep.mubr.f32.mxu0 0.0
        %3026 = vmatmul.mubr.f32.gmra.mxu0 %v2937
        %v3027 = vpop.f32.mrf.mxu0
        %v3028 = vadd.f32 %v2959, %v3027
        %v3029 = vpop.f32.mrf.mxu0
        %3030 = vdwg.mxu0
        %v3031 = vadd.f32 %v2839, %v3028
        %v3032 = vld [vmem:[%s16] sm:$0x1]
        %v3033 = vld [vmem:[%s17] sm:$0x1]
        %v3034 = vsel %vm2812, %v3031, 0.0
        %3035 = vadd.xlane.f32.xlu0 %v3034
        %v3036 = vpop.xlane.xlu0 %3035
        %v3037 = vmul.f32 %v3036, 0.03125
        %v3038 = vsub.f32 %v3031, %v3037
        %v3039 = vsel %vm2812, %v3038, 0.0
        %v3040 = vmul.f32 %v3039, %v3039
        %3041 = vadd.xlane.f32.xlu0 %v3040
        %v3042 = vpop.xlane.xlu0 %3041
        %v3043 = vmul.f32 %v3042, 0.03125
        %v3044 = vadd.f32 %v3043, 1e-05
        %v3045 = vrsqrt.pop %v3044
        %v3046 = vmul.f32 %v3038, %v3045
        %v3048 = vlaneseq
        %v3049 = vshrl.u32 %v3048, 7
        %v3050 = vsub.s32 0, %v3049
        %v3051 = vrot.slane %v3032, %v3050
        %v3053 = vmul.f32 %v3046, %v3051
        %v3055 = vlaneseq
        %v3056 = vshrl.u32 %v3055, 7
        %v3057 = vsub.s32 0, %v3056
        %v3058 = vrot.slane %v3033, %v3057
        %v3060 = vadd.f32 %v3053, %v3058
        %3061 = vst [vmem:[%s690] sm:$0xff] %v3060
        %s3062 = sand.u32 %s430, 1
        %s3063 = scalar_lea.sflag [#allocation4], %s3062
        %s3064 = sand.u32 %s430, 1
        %s3065 = smul.addr %s3064, 8
        %s3066 = scalar_lea.vmem [#allocation16], %s3065
        // Predicated region
        $region125: #{tpu_custom_call.1} parent=91 // pred_check
          %p3067 = pneg %p440
        $region126: #{tpu_custom_call.1} parent=91 // pred_check_branch
          %3069 = sbr.rel (%p3067) target = $region128
        $region127: #{tpu_custom_call.1} parent=91 // pred_region
          %s3071 = ssub.s32 128, 128
          %3072 = vsyncadd %s3063, %s3071
          %s3073 = smul.addr %s39, 128
          %s3074 = scalar_lea.hbm %s18, %s3073
          %s3076 = sshll.u32 %s3066, 4
          %s3077 = int_to_ptr.vmem [resolvable:$true] %s3076
          %3079 = dma.vmem_to_hbm [thread:$0]  %s3077, 128, %s3074, %s3063
        $region128: #{tpu_custom_call.1} parent=91 // pred_fallthru
          _
      $region92: #{tpu_custom_call.1} parent=5 // pred_fallthru
        _
      %p3080 = scmp.le.s32.totalorder 2, %s34
      // Predicated region
      $region129: #{tpu_custom_call.1} parent=5 // pred_check
        %p3081 = pneg %p3080
      $region130: #{tpu_custom_call.1} parent=5 // pred_check_branch
        %3083 = sbr.rel (%p3081) target = $region132
      $region131: #{tpu_custom_call.1} parent=5 // pred_region
        %s3084 = ssub.s32 %s34, 2
        // Predicated region
        $region133: #{tpu_custom_call.1} parent=131 // pred_check
          %p3085 = pneg %p446
        $region134: #{tpu_custom_call.1} parent=131 // pred_check_branch
          %3087 = sbr.rel (%p3085) target = $region136
        $region135: #{tpu_custom_call.1} parent=131 // pred_region
          %s3088 = sand.u32 %s431, 1
          %s3089 = scalar_lea.sflag [#allocation4], %s3088
          %s3090 = sand.u32 %s431, 1
          %s3091 = smul.addr %s3090, 8
          %s3092 = scalar_lea.vmem [#allocation16], %s3091
          %3093 = dma.done %s3089, 128
        $region136: #{tpu_custom_call.1} parent=131 // pred_fallthru
          _
      $region132: #{tpu_custom_call.1} parent=5 // pred_fallthru
        _
    $region6: #{tpu_custom_call.1} parent=1 // loop_footer
      %s38 = sadd.s32 1, %s34
    $region7: #{tpu_custom_call.1} parent=1 // loop_footer_branch
      %33 = sbr.rel target = $region3
    $region8: #{tpu_custom_call.1} parent=1 // loop_exit
      _
    %3094 = vsyncpa [#allocation3], 1
    %s3095 = scalar_lea.sflag [#allocation3], 1
    %3096 = vsyncpa %s3095, 1
    %3097 = vsyncpa [#allocation6], 1
    %3098 = vsyncpa [#allocation9], 1
    %3099 = vsyncpa [#allocation12], 1
    %3100 = vsyncpa [#allocation15], 1
    %3101 = vsyncpa [#allocation4], 1
    %s3102 = scalar_lea.sflag [#allocation4], 1
    %3103 = vsyncpa %s3102, 1

// kernel: tpu_custom_call.1
$region0: #{tpu_custom_call.1}
  #allocation0 [shape = 'u32[]', space=smem, size = 0x4, offset = 0x4, fixed_abs, tag = 'smem constant byte address 0x4 - core index']
  #allocation1 [shape = 'u32[144,128]{1,0:T(1,128)}', space=vmem, size = 0x12000, scoped, tag = 'internal scratch']
  %s0 = inlined_call_operand.hbm [shape: f32[2,8,128], index: 0, kind: input, shape index: {}]
  %s1 = inlined_call_operand.hbm [shape: f32[8,8], index: 1, kind: input, shape index: {}]
  %s2 = inlined_call_operand.hbm [shape: f32[4,128,128], index: 2, kind: input, shape index: {}]
  %s3 = inlined_call_operand.vmem [shape: f32[4,1,128], index: 3, kind: input, shape index: {}]
  %s4 = inlined_call_operand.hbm [shape: f32[4,128,128], index: 4, kind: input, shape index: {}]
  %s5 = inlined_call_operand.vmem [shape: f32[4,1,128], index: 5, kind: input, shape index: {}]
  %s6 = inlined_call_operand.hbm [shape: f32[4,128,128], index: 6, kind: input, shape index: {}]
  %s7 = inlined_call_operand.vmem [shape: f32[4,1,128], index: 7, kind: input, shape index: {}]
  %s8 = inlined_call_operand.hbm [shape: f32[4,128,128], index: 8, kind: input, shape index: {}]
  %s9 = inlined_call_operand.vmem [shape: f32[1,128], index: 9, kind: input, shape index: {}]
  %s10 = inlined_call_operand.vmem [shape: f32[1,128], index: 10, kind: input, shape index: {}]
  %s11 = inlined_call_operand.vmem [shape: f32[1,128], index: 11, kind: input, shape index: {}]
  %s12 = inlined_call_operand.hbm [shape: f32[128,128], index: 12, kind: input, shape index: {}]
  %s13 = inlined_call_operand.vmem [shape: f32[1,128], index: 13, kind: input, shape index: {}]
  %s14 = inlined_call_operand.hbm [shape: f32[128,128], index: 14, kind: input, shape index: {}]
  %s15 = inlined_call_operand.vmem [shape: f32[1,128], index: 15, kind: input, shape index: {}]
  %s16 = inlined_call_operand.vmem [shape: f32[1,128], index: 16, kind: input, shape index: {}]
  %s17 = inlined_call_operand.vmem [shape: f32[1,128], index: 17, kind: input, shape index: {}]
  %s18 = inlined_call_operand.hbm [shape: f32[2,8,128], index: 18, kind: output, shape index: {}]
  %s19 = sld [smem:[#allocation0]]
  $region137: #{tpu_custom_call.1} parent=0
    _
  %s21 = ssub.s32 1, %s19
  %s22 = scalar_select 0, %s21, %s19
  $region1: #{tpu_custom_call.1} parent=0
    #allocation2 [shape = 'u8[8192]{0}', space=vmem, size = 0x2000, scoped, tag = 'input window, operand 0']
    #allocation3 [shape = 's32[2]{0}', space=sflag, size = 0x8, scoped, tag = 'scoped memory for tpu_custom_call.1']
    #allocation4 [shape = 's32[2]{0}', space=sflag, size = 0x8, scoped, tag = 'scoped memory for tpu_custom_call.1']
    #allocation5 [shape = 'u8[4096]{0}', space=vmem, size = 0x1000, scoped, tag = 'input window, operand 1, single buffered']
    #allocation6 [shape = 's32[1]{0}', space=sflag, size = 0x4, scoped, tag = 'scoped memory for tpu_custom_call.1']
    #allocation7 [shape = 'u8[262144]{0}', space=vmem, size = 0x40000, scoped, tag = 'input window, operand 2, single buffered']
    #allocation8 [shape = 'u8[262144]{0}', space=vmem, size = 0x40000, scoped, tag = 'input window, operand 4, single buffered']
    #allocation9 [shape = 's32[1]{0}', space=sflag, size = 0x4, scoped, tag = 'scoped memory for tpu_custom_call.1']
    #allocation10 [shape = 'u8[262144]{0}', space=vmem, size = 0x40000, scoped, tag = 'input window, operand 6, single buffered']
    #allocation11 [shape = 'u8[262144]{0}', space=vmem, size = 0x40000, scoped, tag = 'input window, operand 8, single buffered']
    #allocation12 [shape = 's32[1]{0}', space=sflag, size = 0x4, scoped, tag = 'scoped memory for tpu_custom_call.1']
    #allocation13 [shape = 'u8[65536]{0}', space=vmem, size = 0x10000, scoped, tag = 'input window, operand 12, single buffered']
    #allocation14 [shape = 'u8[65536]{0}', space=vmem, size = 0x10000, scoped, tag = 'input window, operand 14, single buffered']
    #allocation15 [shape = 's32[1]{0}', space=sflag, size = 0x4, scoped, tag = 'scoped memory for tpu_custom_call.1']
    #allocation16 [shape = 'u8[8192]{0}', space=vmem, size = 0x2000, scoped, tag = 'output window, operand 0']
    %23 = vsyncpa [#allocation3], 0
    %s24 = scalar_lea.sflag [#allocation3], 1
    %25 = vsyncpa %s24, 0
    %26 = vsyncpa [#allocation6], 0
    %27 = vsyncpa [#allocation9], 0
    %28 = vsyncpa [#allocation12], 0
    %29 = vsyncpa [#allocation15], 0
    %30 = vsyncpa [#allocation4], 0
    %s31 = scalar_lea.sflag [#allocation4], 1
    %32 = vsyncpa %s31, 0
    loop: start=0, step=1, limit=4
    $region2: #{tpu_custom_call.1} parent=1 // loop_pre_header
      _
    $region3: #{tpu_custom_call.1} parent=1 // loop_header
      %s34 = sphi 0, %s38
      %p35 = scmp.ge.s32.totalorder %s34, 4
      %s44 = sphi 0, %s46
      %s47 = sphi 0, %s44
      %s48 = sphi 0, %s47
      %s64 = sphi 0, %s48
      %s68 = sphi 0, %s68
      %s70 = sphi 0, %s68
      %s71 = sphi 0, %s70
      %s85 = sphi 0, %s71
      %s89 = sphi 0, %s89
      %s91 = sphi 0, %s89
      %s92 = sphi 0, %s91
      %s106 = sphi 0, %s92
      %s110 = sphi 0, %s110
      %s112 = sphi 0, %s110
      %s113 = sphi 0, %s112
      %s127 = sphi 0, %s113
      %s131 = sphi 0, %s131
      %s133 = sphi 0, %s131
      %s134 = sphi 0, %s133
      %s148 = sphi 0, %s134
      %s152 = sphi 0, %s152
      %s154 = sphi 0, %s152
      %s155 = sphi 0, %s154
      %s169 = sphi 0, %s155
      %s173 = sphi 0, %s173
      %s175 = sphi 0, %s173
      %s176 = sphi 0, %s175
      %s190 = sphi 0, %s176
      %s194 = sphi 0, %s194
      %s196 = sphi 0, %s194
      %s197 = sphi 0, %s196
      %s211 = sphi 0, %s197
      %s215 = sphi 0, %s215
      %s217 = sphi 0, %s215
      %s218 = sphi 0, %s217
      %s232 = sphi 0, %s218
      %s236 = sphi 0, %s236
      %s238 = sphi 0, %s236
      %s239 = sphi 0, %s238
      %s253 = sphi 0, %s239
      %s257 = sphi 0, %s257
      %s259 = sphi 0, %s257
      %s260 = sphi 0, %s259
      %s274 = sphi 0, %s260
      %s278 = sphi 0, %s278
      %s280 = sphi 0, %s278
      %s281 = sphi 0, %s280
      %s295 = sphi 0, %s281
      %s299 = sphi 0, %s299
      %s301 = sphi 0, %s299
      %s302 = sphi 0, %s301
      %s316 = sphi 0, %s302
      %s320 = sphi 0, %s320
      %s322 = sphi 0, %s320
      %s323 = sphi 0, %s322
      %s337 = sphi 0, %s323
      %s341 = sphi 0, %s341
      %s343 = sphi 0, %s341
      %s344 = sphi 0, %s343
      %s358 = sphi 0, %s344
      %s362 = sphi 0, %s362
      %s364 = sphi 0, %s362
      %s365 = sphi 0, %s364
      %s379 = sphi 0, %s365
      %s383 = sphi 0, %s383
      %s385 = sphi 0, %s383
      %s386 = sphi 0, %s385
      %s400 = sphi 0, %s386
      %s404 = sphi 0, %s404
      %s406 = sphi 0, %s404
      %s407 = sphi 0, %s406
      %s421 = sphi 0, %s407
      %s427 = sphi 0, %s429
      %s430 = sphi 0, %s427
      %s431 = sphi 0, %s430
      %s447 = sphi 0, %s431
    $region4: #{tpu_custom_call.1} parent=1 // loop_header_branch
      %37 = sbr.rel (%p35) target = $region8
    $region5: #{tpu_custom_call.1} parent=1 // loop_body
      %s39 = ssub.s32 %s34, 1
      %s40 = ssub.s32 %s34, 2
      %s41 = sadd.s32 %s34, 1
      %s42 = ssub.s32 %s34, %s41
      %p43 = scmp.eq.s32.totalorder %s42, 0
      %s45 = sadd.s32 %s44, 1
      %s46 = scalar_select %p43, %s44, %s45
      %p49 = pneg %p43
      %p50 = scmp.eq.s32.totalorder %s34, 1
      %p51 = por %p49, %p50
      %p52 = scmp.ne.s32.totalorder %s44, %s47
      %p53 = scmp.eq.s32.totalorder %s34, 0
      %p54 = por %p52, %p53
      %p55 = scmp.ne.s32.totalorder %s44, %s47
      %p56 = scmp.eq.s32.totalorder %s39, 1
      %p57 = por %p55, %p56
      %p58 = scmp.ne.s32.totalorder %s47, %s48
      %p59 = scmp.eq.s32.totalorder %s39, 0
      %p60 = por %p58, %p59
      %p61 = scmp.ne.s32.totalorder %s47, %s48
      %p62 = scmp.eq.s32.totalorder %s40, 1
      %p63 = por %p61, %p62
      %p65 = scmp.ne.s32.totalorder %s48, %s64
      %p66 = scmp.eq.s32.totalorder %s40, 0
      %p67 = por %p65, %p66
      %s69 = sadd.s32 %s68, 1
      %p72 = scmp.eq.s32.totalorder %s34, 1
      %p73 = scmp.ne.s32.totalorder %s68, %s70
      %p74 = scmp.eq.s32.totalorder %s34, 0
      %p75 = por %p73, %p74
      %p76 = scmp.ne.s32.totalorder %s68, %s70
      %p77 = scmp.eq.s32.totalorder %s39, 1
      %p78 = por %p76, %p77
      %p79 = scmp.ne.s32.totalorder %s70, %s71
      %p80 = scmp.eq.s32.totalorder %s39, 0
      %p81 = por %p79, %p80
      %p82 = scmp.ne.s32.totalorder %s70, %s71
      %p83 = scmp.eq.s32.totalorder %s40, 1
      %p84 = por %p82, %p83
      %p86 = scmp.ne.s32.totalorder %s71, %s85
      %p87 = scmp.eq.s32.totalorder %s40, 0
      %p88 = por %p86, %p87
      %s90 = sadd.s32 %s89, 1
      %p93 = scmp.eq.s32.totalorder %s34, 1
      %p94 = scmp.ne.s32.totalorder %s89, %s91
      %p95 = scmp.eq.s32.totalorder %s34, 0
      %p96 = por %p94, %p95
      %p97 = scmp.ne.s32.totalorder %s89, %s91
      %p98 = scmp.eq.s32.totalorder %s39, 1
      %p99 = por %p97, %p98
      %p100 = scmp.ne.s32.totalorder %s91, %s92
      %p101 = scmp.eq.s32.totalorder %s39, 0
      %p102 = por %p100, %p101
      %p103 = scmp.ne.s32.totalorder %s91, %s92
      %p104 = scmp.eq.s32.totalorder %s40, 1
      %p105 = por %p103, %p104
      %p107 = scmp.ne.s32.totalorder %s92, %s106
      %p108 = scmp.eq.s32.totalorder %s40, 0
      %p109 = por %p107, %p108
      %s111 = sadd.s32 %s110, 1
      %p114 = scmp.eq.s32.totalorder %s34, 1
      %p115 = scmp.ne.s32.totalorder %s110, %s112
      %p116 = scmp.eq.s32.totalorder %s34, 0
      %p117 = por %p115, %p116
      %p118 = scmp.ne.s32.totalorder %s110, %s112
      %p119 = scmp.eq.s32.totalorder %s39, 1
      %p120 = por %p118, %p119
      %p121 = scmp.ne.s32.totalorder %s112, %s113
      %p122 = scmp.eq.s32.totalorder %s39, 0
      %p123 = por %p121, %p122
      %p124 = scmp.ne.s32.totalorder %s112, %s113
      %p125 = scmp.eq.s32.totalorder %s40, 1
      %p126 = por %p124, %p125
      %p128 = scmp.ne.s32.totalorder %s113, %s127
      %p129 = scmp.eq.s32.totalorder %s40, 0
      %p130 = por %p128, %p129
      %s132 = sadd.s32 %s131, 1
      %p135 = scmp.eq.s32.totalorder %s34, 1
      %p136 = scmp.ne.s32.totalorder %s131, %s133
      %p137 = scmp.eq.s32.totalorder %s34, 0
      %p138 = por %p136, %p137
      %p139 = scmp.ne.s32.totalorder %s131, %s133
      %p140 = scmp.eq.s32.totalorder %s39, 1
      %p141 = por %p139, %p140
      %p142 = scmp.ne.s32.totalorder %s133, %s134
      %p143 = scmp.eq.s32.totalorder %s39, 0
      %p144 = por %p142, %p143
      %p145 = scmp.ne.s32.totalorder %s133, %s134
      %p146 = scmp.eq.s32.totalorder %s40, 1
      %p147 = por %p145, %p146
      %p149 = scmp.ne.s32.totalorder %s134, %s148
      %p150 = scmp.eq.s32.totalorder %s40, 0
      %p151 = por %p149, %p150
      %s153 = sadd.s32 %s152, 1
      %p156 = scmp.eq.s32.totalorder %s34, 1
      %p157 = scmp.ne.s32.totalorder %s152, %s154
      %p158 = scmp.eq.s32.totalorder %s34, 0
      %p159 = por %p157, %p158
      %p160 = scmp.ne.s32.totalorder %s152, %s154
      %p161 = scmp.eq.s32.totalorder %s39, 1
      %p162 = por %p160, %p161
      %p163 = scmp.ne.s32.totalorder %s154, %s155
      %p164 = scmp.eq.s32.totalorder %s39, 0
      %p165 = por %p163, %p164
      %p166 = scmp.ne.s32.totalorder %s154, %s155
      %p167 = scmp.eq.s32.totalorder %s40, 1
      %p168 = por %p166, %p167
      %p170 = scmp.ne.s32.totalorder %s155, %s169
      %p171 = scmp.eq.s32.totalorder %s40, 0
      %p172 = por %p170, %p171
      %s174 = sadd.s32 %s173, 1
      %p177 = scmp.eq.s32.totalorder %s34, 1
      %p178 = scmp.ne.s32.totalorder %s173, %s175
      %p179 = scmp.eq.s32.totalorder %s34, 0
      %p180 = por %p178, %p179
      %p181 = scmp.ne.s32.totalorder %s173, %s175
      %p182 = scmp.eq.s32.totalorder %s39, 1
      %p183 = por %p181, %p182
      %p184 = scmp.ne.s32.totalorder %s175, %s176
      %p185 = scmp.eq.s32.totalorder %s39, 0
      %p186 = por %p184, %p185
      %p187 = scmp.ne.s32.totalorder %s175, %s176
      %p188 = scmp.eq.s32.totalorder %s40, 1
      %p189 = por %p187, %p188
      %p191 = scmp.ne.s32.totalorder %s176, %s190
      %p192 = scmp.eq.s32.totalorder %s40, 0
      %p193 = por %p191, %p192
      %s195 = sadd.s32 %s194, 1
      %p198 = scmp.eq.s32.totalorder %s34, 1
      %p199 = scmp.ne.s32.totalorder %s194, %s196
      %p200 = scmp.eq.s32.totalorder %s34, 0
      %p201 = por %p199, %p200
      %p202 = scmp.ne.s32.totalorder %s194, %s196
      %p203 = scmp.eq.s32.totalorder %s39, 1
      %p204 = por %p202, %p203
      %p205 = scmp.ne.s32.totalorder %s196, %s197
      %p206 = scmp.eq.s32.totalorder %s39, 0
      %p207 = por %p205, %p206
      %p208 = scmp.ne.s32.totalorder %s196, %s197
      %p209 = scmp.eq.s32.totalorder %s40, 1
      %p210 = por %p208, %p209
      %p212 = scmp.ne.s32.totalorder %s197, %s211
      %p213 = scmp.eq.s32.totalorder %s40, 0
      %p214 = por %p212, %p213
      %s216 = sadd.s32 %s215, 1
      %p219 = scmp.eq.s32.totalorder %s34, 1
      %p220 = scmp.ne.s32.totalorder %s215, %s217
      %p221 = scmp.eq.s32.totalorder %s34, 0
      %p222 = por %p220, %p221
      %p223 = scmp.ne.s32.totalorder %s215, %s217
      %p224 = scmp.eq.s32.totalorder %s39, 1
      %p225 = por %p223, %p224
      %p226 = scmp.ne.s32.totalorder %s217, %s218
      %p227 = scmp.eq.s32.totalorder %s39, 0
      %p228 = por %p226, %p227
      %p229 = scmp.ne.s32.totalorder %s217, %s218
      %p230 = scmp.eq.s32.totalorder %s40, 1
      %p231 = por %p229, %p230
      %p233 = scmp.ne.s32.totalorder %s218, %s232
      %p234 = scmp.eq.s32.totalorder %s40, 0
      %p235 = por %p233, %p234
      %s237 = sadd.s32 %s236, 1
      %p240 = scmp.eq.s32.totalorder %s34, 1
      %p241 = scmp.ne.s32.totalorder %s236, %s238
      %p242 = scmp.eq.s32.totalorder %s34, 0
      %p243 = por %p241, %p242
      %p244 = scmp.ne.s32.totalorder %s236, %s238
      %p245 = scmp.eq.s32.totalorder %s39, 1
      %p246 = por %p244, %p245
      %p247 = scmp.ne.s32.totalorder %s238, %s239
      %p248 = scmp.eq.s32.totalorder %s39, 0
      %p249 = por %p247, %p248
      %p250 = scmp.ne.s32.totalorder %s238, %s239
      %p251 = scmp.eq.s32.totalorder %s40, 1
      %p252 = por %p250, %p251
      %p254 = scmp.ne.s32.totalorder %s239, %s253
      %p255 = scmp.eq.s32.totalorder %s40, 0
      %p256 = por %p254, %p255
      %s258 = sadd.s32 %s257, 1
      %p261 = scmp.eq.s32.totalorder %s34, 1
      %p262 = scmp.ne.s32.totalorder %s257, %s259
      %p263 = scmp.eq.s32.totalorder %s34, 0
      %p264 = por %p262, %p263
      %p265 = scmp.ne.s32.totalorder %s257, %s259
      %p266 = scmp.eq.s32.totalorder %s39, 1
      %p267 = por %p265, %p266
      %p268 = scmp.ne.s32.totalorder %s259, %s260
      %p269 = scmp.eq.s32.totalorder %s39, 0
      %p270 = por %p268, %p269
      %p271 = scmp.ne.s32.totalorder %s259, %s260
      %p272 = scmp.eq.s32.totalorder %s40, 1
      %p273 = por %p271, %p272
      %p275 = scmp.ne.s32.totalorder %s260, %s274
      %p276 = scmp.eq.s32.totalorder %s40, 0
      %p277 = por %p275, %p276
      %s279 = sadd.s32 %s278, 1
      %p282 = scmp.eq.s32.totalorder %s34, 1
      %p283 = scmp.ne.s32.totalorder %s278, %s280
      %p284 = scmp.eq.s32.totalorder %s34, 0
      %p285 = por %p283, %p284
      %p286 = scmp.ne.s32.totalorder %s278, %s280
      %p287 = scmp.eq.s32.totalorder %s39, 1
      %p288 = por %p286, %p287
      %p289 = scmp.ne.s32.totalorder %s280, %s281
      %p290 = scmp.eq.s32.totalorder %s39, 0
      %p291 = por %p289, %p290
      %p292 = scmp.ne.s32.totalorder %s280, %s281
      %p293 = scmp.eq.s32.totalorder %s40, 1
      %p294 = por %p292, %p293
      %p296 = scmp.ne.s32.totalorder %s281, %s295
      %p297 = scmp.eq.s32.totalorder %s40, 0
      %p298 = por %p296, %p297
      %s300 = sadd.s32 %s299, 1
      %p303 = scmp.eq.s32.totalorder %s34, 1
      %p304 = scmp.ne.s32.totalorder %s299, %s301
      %p305 = scmp.eq.s32.totalorder %s34, 0
      %p306 = por %p304, %p305
      %p307 = scmp.ne.s32.totalorder %s299, %s301
      %p308 = scmp.eq.s32.totalorder %s39, 1
      %p309 = por %p307, %p308
      %p310 = scmp.ne.s32.totalorder %s301, %s302
      %p311 = scmp.eq.s32.totalorder %s39, 0
      %p312 = por %p310, %p311
      %p313 = scmp.ne.s32.totalorder %s301, %s302
      %p314 = scmp.eq.s32.totalorder %s40, 1
      %p315 = por %p313, %p314
      %p317 = scmp.ne.s32.totalorder %s302, %s316
      %p318 = scmp.eq.s32.totalorder %s40, 0
      %p319 = por %p317, %p318
      %s321 = sadd.s32 %s320, 1
      %p324 = scmp.eq.s32.totalorder %s34, 1
      %p325 = scmp.ne.s32.totalorder %s320, %s322
      %p326 = scmp.eq.s32.totalorder %s34, 0
      %p327 = por %p325, %p326
      %p328 = scmp.ne.s32.totalorder %s320, %s322
      %p329 = scmp.eq.s32.totalorder %s39, 1
      %p330 = por %p328, %p329
      %p331 = scmp.ne.s32.totalorder %s322, %s323
      %p332 = scmp.eq.s32.totalorder %s39, 0
      %p333 = por %p331, %p332
      %p334 = scmp.ne.s32.totalorder %s322, %s323
      %p335 = scmp.eq.s32.totalorder %s40, 1
      %p336 = por %p334, %p335
      %p338 = scmp.ne.s32.totalorder %s323, %s337
      %p339 = scmp.eq.s32.totalorder %s40, 0
      %p340 = por %p338, %p339
      %s342 = sadd.s32 %s341, 1
      %p345 = scmp.eq.s32.totalorder %s34, 1
      %p346 = scmp.ne.s32.totalorder %s341, %s343
      %p347 = scmp.eq.s32.totalorder %s34, 0
      %p348 = por %p346, %p347
      %p349 = scmp.ne.s32.totalorder %s341, %s343
      %p350 = scmp.eq.s32.totalorder %s39, 1
      %p351 = por %p349, %p350
      %p352 = scmp.ne.s32.totalorder %s343, %s344
      %p353 = scmp.eq.s32.totalorder %s39, 0
      %p354 = por %p352, %p353
      %p355 = scmp.ne.s32.totalorder %s343, %s344
      %p356 = scmp.eq.s32.totalorder %s40, 1
      %p357 = por %p355, %p356
      %p359 = scmp.ne.s32.totalorder %s344, %s358
      %p360 = scmp.eq.s32.totalorder %s40, 0
      %p361 = por %p359, %p360
      %s363 = sadd.s32 %s362, 1
      %p366 = scmp.eq.s32.totalorder %s34, 1
      %p367 = scmp.ne.s32.totalorder %s362, %s364
      %p368 = scmp.eq.s32.totalorder %s34, 0
      %p369 = por %p367, %p368
      %p370 = scmp.ne.s32.totalorder %s362, %s364
      %p371 = scmp.eq.s32.totalorder %s39, 1
      %p372 = por %p370, %p371
      %p373 = scmp.ne.s32.totalorder %s364, %s365
      %p374 = scmp.eq.s32.totalorder %s39, 0
      %p375 = por %p373, %p374
      %p376 = scmp.ne.s32.totalorder %s364, %s365
      %p377 = scmp.eq.s32.totalorder %s40, 1
      %p378 = por %p376, %p377
      %p380 = scmp.ne.s32.totalorder %s365, %s379
      %p381 = scmp.eq.s32.totalorder %s40, 0
      %p382 = por %p380, %p381
      %s384 = sadd.s32 %s383, 1
      %p387 = scmp.eq.s32.totalorder %s34, 1
      %p388 = scmp.ne.s32.totalorder %s383, %s385
      %p389 = scmp.eq.s32.totalorder %s34, 0
      %p390 = por %p388, %p389
      %p391 = scmp.ne.s32.totalorder %s383, %s385
      %p392 = scmp.eq.s32.totalorder %s39, 1
      %p393 = por %p391, %p392
      %p394 = scmp.ne.s32.totalorder %s385, %s386
      %p395 = scmp.eq.s32.totalorder %s39, 0
      %p396 = por %p394, %p395
      %p397 = scmp.ne.s32.totalorder %s385, %s386
      %p398 = scmp.eq.s32.totalorder %s40, 1
      %p399 = por %p397, %p398
      %p401 = scmp.ne.s32.totalorder %s386, %s400
      %p402 = scmp.eq.s32.totalorder %s40, 0
      %p403 = por %p401, %p402
      %s405 = sadd.s32 %s404, 1
      %p408 = scmp.eq.s32.totalorder %s34, 1
      %p409 = scmp.ne.s32.totalorder %s404, %s406
      %p410 = scmp.eq.s32.totalorder %s34, 0
      %p411 = por %p409, %p410
      %p412 = scmp.ne.s32.totalorder %s404, %s406
      %p413 = scmp.eq.s32.totalorder %s39, 1
      %p414 = por %p412, %p413
      %p415 = scmp.ne.s32.totalorder %s406, %s407
      %p416 = scmp.eq.s32.totalorder %s39, 0
      %p417 = por %p415, %p416
      %p418 = scmp.ne.s32.totalorder %s406, %s407
      %p419 = scmp.eq.s32.totalorder %s40, 1
      %p420 = por %p418, %p419
      %p422 = scmp.ne.s32.totalorder %s407, %s421
      %p423 = scmp.eq.s32.totalorder %s40, 0
      %p424 = por %p422, %p423
      %s425 = ssub.s32 %s34, %s41
      %p426 = scmp.eq.s32.totalorder %s425, 0
      %s428 = sadd.s32 %s427, 1
      %s429 = scalar_select %p426, %s427, %s428
      %p432 = pneg %p426
      %p433 = scmp.eq.s32.totalorder %s34, 1
      %p434 = por %p432, %p433
      %p435 = scmp.ne.s32.totalorder %s427, %s430
      %p436 = scmp.eq.s32.totalorder %s34, 0
      %p437 = por %p435, %p436
      %p438 = scmp.ne.s32.totalorder %s427, %s430
      %p439 = scmp.eq.s32.totalorder %s39, 1
      %p440 = por %p438, %p439
      %p441 = scmp.ne.s32.totalorder %s430, %s431
      %p442 = scmp.eq.s32.totalorder %s39, 0
      %p443 = por %p441, %p442
      %p444 = scmp.ne.s32.totalorder %s430, %s431
      %p445 = scmp.eq.s32.totalorder %s40, 1
      %p446 = por %p444, %p445
      %p448 = scmp.ne.s32.totalorder %s431, %s447
      %p449 = scmp.eq.s32.totalorder %s40, 0
      %p450 = por %p448, %p449
      %p451 = scmp.le.s32.totalorder 1, %s34
      %p452 = scmp.lt.s32.totalorder %s34, 3
      %p453 = pnand %p451, %p452
      %p454 = pneg %p453
      // Predicated region
      $region9: #{tpu_custom_call.1} parent=5 // pred_check
        _
      $region10: #{tpu_custom_call.1} parent=5 // pred_check_branch
        %456 = sbr.rel (%p453) target = $region12
      $region11: #{tpu_custom_call.1} parent=5 // pred_region
        %s457 = ssub.s32 %s34, 1
        // Predicated region
        $region13: #{tpu_custom_call.1} parent=11 // pred_check
          %p458 = pneg %p81
        $region14: #{tpu_custom_call.1} parent=11 // pred_check_branch
          %460 = sbr.rel (%p458) target = $region16
        $region15: #{tpu_custom_call.1} parent=11 // pred_region
          %s462 = ssub.s32 128, 128
          %463 = vsyncadd [#allocation6], %s462
          %s465 = sshll.u32 [#allocation5], 4
          %s466 = int_to_ptr.vmem [resolvable:$true] %s465
          %468 = dma.hbm_to_vmem [thread:$0]  %s1, 128, %s466, [#allocation6]
        $region16: #{tpu_custom_call.1} parent=11 // pred_fallthru
          _
        // Predicated region
        $region17: #{tpu_custom_call.1} parent=11 // pred_check
          %p469 = pneg %p102
        $region18: #{tpu_custom_call.1} parent=11 // pred_check_branch
          %471 = sbr.rel (%p469) target = $region20
        $region19: #{tpu_custom_call.1} parent=11 // pred_region
          %s473 = ssub.s32 8192, 8192
          %474 = vsyncadd [#allocation6], %s473
          %s475 = sshll.u32 [#allocation7], 4
          %s476 = int_to_ptr.vmem [resolvable:$true] %s475
          %481 = dma.hbm_to_vmem [thread:$0]  %s2, 8192, %s476, [#allocation6], 128, 128, 8
        $region20: #{tpu_custom_call.1} parent=11 // pred_fallthru
          _
        // Predicated region
        $region21: #{tpu_custom_call.1} parent=11 // pred_check
          %p482 = pneg %p123
        $region22: #{tpu_custom_call.1} parent=11 // pred_check_branch
          %484 = sbr.rel (%p482) target = $region24
        $region23: #{tpu_custom_call.1} parent=11 // pred_region
          _
        $region24: #{tpu_custom_call.1} parent=11 // pred_fallthru
          _
        // Predicated region
        $region25: #{tpu_custom_call.1} parent=11 // pred_check
          %p485 = pneg %p144
        $region26: #{tpu_custom_call.1} parent=11 // pred_check_branch
          %487 = sbr.rel (%p485) target = $region28
        $region27: #{tpu_custom_call.1} parent=11 // pred_region
          %s489 = ssub.s32 8192, 8192
          %490 = vsyncadd [#allocation9], %s489
          %s491 = sshll.u32 [#allocation8], 4
          %s492 = int_to_ptr.vmem [resolvable:$true] %s491
          %497 = dma.hbm_to_vmem [thread:$0]  %s4, 8192, %s492, [#allocation9], 128, 128, 8
        $region28: #{tpu_custom_call.1} parent=11 // pred_fallthru
          _
        // Predicated region
        $region29: #{tpu_custom_call.1} parent=11 // pred_check
          %p498 = pneg %p165
        $region30: #{tpu_custom_call.1} parent=11 // pred_check_branch
          %500 = sbr.rel (%p498) target = $region32
        $region31: #{tpu_custom_call.1} parent=11 // pred_region
          _
        $region32: #{tpu_custom_call.1} parent=11 // pred_fallthru
          _
        // Predicated region
        $region33: #{tpu_custom_call.1} parent=11 // pred_check
          %p501 = pneg %p186
        $region34: #{tpu_custom_call.1} parent=11 // pred_check_branch
          %503 = sbr.rel (%p501) target = $region36
        $region35: #{tpu_custom_call.1} parent=11 // pred_region
          %s505 = ssub.s32 8192, 8192
          %506 = vsyncadd [#allocation9], %s505
          %s507 = sshll.u32 [#allocation10], 4
          %s508 = int_to_ptr.vmem [resolvable:$true] %s507
          %513 = dma.hbm_to_vmem [thread:$0]  %s6, 8192, %s508, [#allocation9], 128, 128, 8
        $region36: #{tpu_custom_call.1} parent=11 // pred_fallthru
          _
        // Predicated region
        $region37: #{tpu_custom_call.1} parent=11 // pred_check
          %p514 = pneg %p207
        $region38: #{tpu_custom_call.1} parent=11 // pred_check_branch
          %516 = sbr.rel (%p514) target = $region40
        $region39: #{tpu_custom_call.1} parent=11 // pred_region
          _
        $region40: #{tpu_custom_call.1} parent=11 // pred_fallthru
          _
        // Predicated region
        $region41: #{tpu_custom_call.1} parent=11 // pred_check
          %p517 = pneg %p228
        $region42: #{tpu_custom_call.1} parent=11 // pred_check_branch
          %519 = sbr.rel (%p517) target = $region44
        $region43: #{tpu_custom_call.1} parent=11 // pred_region
          %s521 = ssub.s32 8192, 8192
          %522 = vsyncadd [#allocation12], %s521
          %s523 = sshll.u32 [#allocation11], 4
          %s524 = int_to_ptr.vmem [resolvable:$true] %s523
          %529 = dma.hbm_to_vmem [thread:$0]  %s8, 8192, %s524, [#allocation12], 128, 128, 8
        $region44: #{tpu_custom_call.1} parent=11 // pred_fallthru
          _
        // Predicated region
        $region45: #{tpu_custom_call.1} parent=11 // pred_check
          %p530 = pneg %p249
        $region46: #{tpu_custom_call.1} parent=11 // pred_check_branch
          %532 = sbr.rel (%p530) target = $region48
        $region47: #{tpu_custom_call.1} parent=11 // pred_region
          _
        $region48: #{tpu_custom_call.1} parent=11 // pred_fallthru
          _
        // Predicated region
        $region49: #{tpu_custom_call.1} parent=11 // pred_check
          %p533 = pneg %p270
        $region50: #{tpu_custom_call.1} parent=11 // pred_check_branch
          %535 = sbr.rel (%p533) target = $region52
        $region51: #{tpu_custom_call.1} parent=11 // pred_region
          _
        $region52: #{tpu_custom_call.1} parent=11 // pred_fallthru
          _
        // Predicated region
        $region53: #{tpu_custom_call.1} parent=11 // pred_check
          %p536 = pneg %p291
        $region54: #{tpu_custom_call.1} parent=11 // pred_check_branch
          %538 = sbr.rel (%p536) target = $region56
        $region55: #{tpu_custom_call.1} parent=11 // pred_region
          _
        $region56: #{tpu_custom_call.1} parent=11 // pred_fallthru
          _
        // Predicated region
        $region57: #{tpu_custom_call.1} parent=11 // pred_check
          %p539 = pneg %p312
        $region58: #{tpu_custom_call.1} parent=11 // pred_check_branch
          %541 = sbr.rel (%p539) target = $region60
        $region59: #{tpu_custom_call.1} parent=11 // pred_region
          %s543 = ssub.s32 2048, 2048
          %544 = vsyncadd [#allocation12], %s543
          %s545 = sshll.u32 [#allocation13], 4
          %s546 = int_to_ptr.vmem [resolvable:$true] %s545
          %551 = dma.hbm_to_vmem [thread:$0]  %s12, 2048, %s546, [#allocation12], 128, 128, 8
        $region60: #{tpu_custom_call.1} parent=11 // pred_fallthru
          _
        // Predicated region
        $region61: #{tpu_custom_call.1} parent=11 // pred_check
          %p552 = pneg %p333
        $region62: #{tpu_custom_call.1} parent=11 // pred_check_branch
          %554 = sbr.rel (%p552) target = $region64
        $region63: #{tpu_custom_call.1} parent=11 // pred_region
          _
        $region64: #{tpu_custom_call.1} parent=11 // pred_fallthru
          _
        // Predicated region
        $region65: #{tpu_custom_call.1} parent=11 // pred_check
          %p555 = pneg %p354
        $region66: #{tpu_custom_call.1} parent=11 // pred_check_branch
          %557 = sbr.rel (%p555) target = $region68
        $region67: #{tpu_custom_call.1} parent=11 // pred_region
          %s559 = ssub.s32 2048, 2048
          %560 = vsyncadd [#allocation15], %s559
          %s561 = sshll.u32 [#allocation14], 4
          %s562 = int_to_ptr.vmem [resolvable:$true] %s561
          %567 = dma.hbm_to_vmem [thread:$0]  %s14, 2048, %s562, [#allocation15], 128, 128, 8
        $region68: #{tpu_custom_call.1} parent=11 // pred_fallthru
          _
        // Predicated region
        $region69: #{tpu_custom_call.1} parent=11 // pred_check
          %p568 = pneg %p375
        $region70: #{tpu_custom_call.1} parent=11 // pred_check_branch
          %570 = sbr.rel (%p568) target = $region72
        $region71: #{tpu_custom_call.1} parent=11 // pred_region
          _
        $region72: #{tpu_custom_call.1} parent=11 // pred_fallthru
          _
        // Predicated region
        $region73: #{tpu_custom_call.1} parent=11 // pred_check
          %p571 = pneg %p396
        $region74: #{tpu_custom_call.1} parent=11 // pred_check_branch
          %573 = sbr.rel (%p571) target = $region76
        $region75: #{tpu_custom_call.1} parent=11 // pred_region
          _
        $region76: #{tpu_custom_call.1} parent=11 // pred_fallthru
          _
        // Predicated region
        $region77: #{tpu_custom_call.1} parent=11 // pred_check
          %p574 = pneg %p417
        $region78: #{tpu_custom_call.1} parent=11 // pred_check_branch
          %576 = sbr.rel (%p574) target = $region80
        $region79: #{tpu_custom_call.1} parent=11 // pred_region
          _
        $region80: #{tpu_custom_call.1} parent=11 // pred_fallthru
          _
      $region12: #{tpu_custom_call.1} parent=5 // pred_fallthru
        _
      %p577 = scmp.lt.s32.totalorder %s34, 2
      // Predicated region
      $region81: #{tpu_custom_call.1} parent=5 // pred_check
        %p578 = pneg %p577
      $region82: #{tpu_custom_call.1} parent=5 // pred_check_branch
        %580 = sbr.rel (%p578) target = $region84
      $region83: #{tpu_custom_call.1} parent=5 // pred_region
        // Predicated region
        $region85: #{tpu_custom_call.1} parent=83 // pred_check
          %p581 = pneg %p54
        $region86: #{tpu_custom_call.1} parent=83 // pred_check_branch
          %583 = sbr.rel (%p581) target = $region88
        $region87: #{tpu_custom_call.1} parent=83 // pred_region
          %s584 = sand.u32 %s44, 1
          %s585 = scalar_lea.sflag [#allocation3], %s584
          %s586 = sand.u32 %s44, 1
          %s587 = smul.addr %s586, 8
          %s588 = scalar_lea.vmem [#allocation2], %s587
          %s590 = ssub.s32 128, 128
          %591 = vsyncadd %s585, %s590
          %s592 = smul.addr %s34, 128
          %s593 = scalar_lea.hbm %s0, %s592
          %s595 = sshll.u32 %s588, 4
          %s596 = int_to_ptr.vmem [resolvable:$true] %s595
          %598 = dma.hbm_to_vmem [thread:$0]  %s593, 128, %s596, %s585
        $region88: #{tpu_custom_call.1} parent=83 // pred_fallthru
          _
      $region84: #{tpu_custom_call.1} parent=5 // pred_fallthru
        _
      %p599 = scmp.le.s32.totalorder 1, %s34
      %p600 = scmp.lt.s32.totalorder %s34, 3
      %p601 = pnand %p599, %p600
      %p602 = pneg %p601
      // Predicated region
      $region89: #{tpu_custom_call.1} parent=5 // pred_check
        _
      $region90: #{tpu_custom_call.1} parent=5 // pred_check_branch
        %604 = sbr.rel (%p601) target = $region92
      $region91: #{tpu_custom_call.1} parent=5 // pred_region
        %s605 = ssub.s32 %s34, 1
        %s606 = sand.u32 %s47, 1
        %s607 = scalar_lea.sflag [#allocation3], %s606
        %s608 = sand.u32 %s47, 1
        %s609 = smul.addr %s608, 8
        %s610 = scalar_lea.vmem [#allocation2], %s609
        // Predicated region
        $region93: #{tpu_custom_call.1} parent=91 // pred_check
          %p611 = pneg %p60
        $region94: #{tpu_custom_call.1} parent=91 // pred_check_branch
          %613 = sbr.rel (%p611) target = $region96
        $region95: #{tpu_custom_call.1} parent=91 // pred_region
          %614 = dma.done %s607, 128
        $region96: #{tpu_custom_call.1} parent=91 // pred_fallthru
          _
        // Predicated region
        $region97: #{tpu_custom_call.1} parent=91 // pred_check
          %p615 = pneg %p81
        $region98: #{tpu_custom_call.1} parent=91 // pred_check_branch
          %617 = sbr.rel (%p615) target = $region100
        $region99: #{tpu_custom_call.1} parent=91 // pred_region
          %618 = dma.done [#allocation6], 128
        $region100: #{tpu_custom_call.1} parent=91 // pred_fallthru
          _
        // Predicated region
        $region101: #{tpu_custom_call.1} parent=91 // pred_check
          %p619 = pneg %p102
        $region102: #{tpu_custom_call.1} parent=91 // pred_check_branch
          %621 = sbr.rel (%p619) target = $region104
        $region103: #{tpu_custom_call.1} parent=91 // pred_region
          %622 = dma.done [#allocation6], 8192
        $region104: #{tpu_custom_call.1} parent=91 // pred_fallthru
          _
        // Predicated region
        $region105: #{tpu_custom_call.1} parent=91 // pred_check
          %p623 = pneg %p144
        $region106: #{tpu_custom_call.1} parent=91 // pred_check_branch
          %625 = sbr.rel (%p623) target = $region108
        $region107: #{tpu_custom_call.1} parent=91 // pred_region
          %626 = dma.done [#allocation9], 8192
        $region108: #{tpu_custom_call.1} parent=91 // pred_fallthru
          _
        // Predicated region
        $region109: #{tpu_custom_call.1} parent=91 // pred_check
          %p627 = pneg %p186
        $region110: #{tpu_custom_call.1} parent=91 // pred_check_branch
          %629 = sbr.rel (%p627) target = $region112
        $region111: #{tpu_custom_call.1} parent=91 // pred_region
          %630 = dma.done [#allocation9], 8192
        $region112: #{tpu_custom_call.1} parent=91 // pred_fallthru
          _
        // Predicated region
        $region113: #{tpu_custom_call.1} parent=91 // pred_check
          %p631 = pneg %p228
        $region114: #{tpu_custom_call.1} parent=91 // pred_check_branch
          %633 = sbr.rel (%p631) target = $region116
        $region115: #{tpu_custom_call.1} parent=91 // pred_region
          %634 = dma.done [#allocation12], 8192
        $region116: #{tpu_custom_call.1} parent=91 // pred_fallthru
          _
        // Predicated region
        $region117: #{tpu_custom_call.1} parent=91 // pred_check
          %p635 = pneg %p312
        $region118: #{tpu_custom_call.1} parent=91 // pred_check_branch
          %637 = sbr.rel (%p635) target = $region120
        $region119: #{tpu_custom_call.1} parent=91 // pred_region
          %638 = dma.done [#allocation12], 2048
        $region120: #{tpu_custom_call.1} parent=91 // pred_fallthru
          _
        // Predicated region
        $region121: #{tpu_custom_call.1} parent=91 // pred_check
          %p639 = pneg %p354
        $region122: #{tpu_custom_call.1} parent=91 // pred_check_branch
          %641 = sbr.rel (%p639) target = $region124
        $region123: #{tpu_custom_call.1} parent=91 // pred_region
          %642 = dma.done [#allocation15], 2048
        $region124: #{tpu_custom_call.1} parent=91 // pred_fallthru
          _
        %s643 = sand.u32 %s47, 1
        %s644 = scalar_lea.sflag [#allocation3], %s643
        %s645 = sand.u32 %s47, 1
        %s646 = smul.addr %s645, 8
        %s647 = scalar_lea.vmem [#allocation2], %s646
        %p648 = pneg %p60
        %p649 = pneg %p57
        %p650 = pneg %p81
        %p651 = pneg %p78
        %p652 = pneg %p102
        %p653 = pneg %p99
        %p654 = pneg %p123
        %p655 = pneg %p120
        %p656 = pneg %p144
        %p657 = pneg %p141
        %p658 = pneg %p165
        %p659 = pneg %p162
        %p660 = pneg %p186
        %p661 = pneg %p183
        %p662 = pneg %p207
        %p663 = pneg %p204
        %p664 = pneg %p228
        %p665 = pneg %p225
        %p666 = pneg %p249
        %p667 = pneg %p246
        %p668 = pneg %p270
        %p669 = pneg %p267
        %p670 = pneg %p291
        %p671 = pneg %p288
        %p672 = pneg %p312
        %p673 = pneg %p309
        %p674 = pneg %p333
        %p675 = pneg %p330
        %p676 = pneg %p354
        %p677 = pneg %p351
        %p678 = pneg %p375
        %p679 = pneg %p372
        %p680 = pneg %p396
        %p681 = pneg %p393
        %p682 = pneg %p417
        %p683 = pneg %p414
        %p684 = pneg %p443
        %p685 = pneg %p440
        %s686 = sand.u32 %s430, 1
        %s687 = scalar_lea.sflag [#allocation4], %s686
        %s688 = sand.u32 %s430, 1
        %s689 = smul.addr %s688, 8
        %s690 = scalar_lea.vmem [#allocation16], %s689
        %v691 = vld [vmem:[%s610] sm:$0xff]
        %v692 = vld [vmem:[#allocation5] sm:$0xff]
        %v693 = vlaneseq
        %v694 = vand.u32 %v693, 127
        %vm695 = vcmp.lt.s32.totalorder %v694, 32
        %v696 = vld [vmem:[#allocation7] sm:$0xff]
        %v697 = vld [vmem:[#allocation7 + $0x8] sm:$0xff]
        %v698 = vld [vmem:[#allocation7 + $0x10] sm:$0xff]
        %v699 = vld [vmem:[#allocation7 + $0x18] sm:$0xff]
        %v700 = vld [vmem:[#allocation7 + $0x20] sm:$0xff]
        %v701 = vld [vmem:[#allocation7 + $0x28] sm:$0xff]
        %v702 = vld [vmem:[#allocation7 + $0x30] sm:$0xff]
        %v703 = vld [vmem:[#allocation7 + $0x38] sm:$0xff]
        %v704 = vld [vmem:[#allocation7 + $0x40] sm:$0xff]
        %v705 = vld [vmem:[#allocation7 + $0x48] sm:$0xff]
        %v706 = vld [vmem:[#allocation7 + $0x50] sm:$0xff]
        %v707 = vld [vmem:[#allocation7 + $0x58] sm:$0xff]
        %v708 = vld [vmem:[#allocation7 + $0x60] sm:$0xff]
        %v709 = vld [vmem:[#allocation7 + $0x68] sm:$0xff]
        %v710 = vld [vmem:[#allocation7 + $0x70] sm:$0xff]
        %v711 = vld [vmem:[#allocation7 + $0x78] sm:$0xff]
        %v712 = vld [vmem:[%s3] sm:$0x1]
        %v714 = vlaneseq
        %v715 = vshrl.u32 %v714, 7
        %v716 = vsub.s32 0, %v715
        %v717 = vrot.slane %v712, %v716
        %719 = vmatprep.subr.mxu0 0.0
        %720 = vmatpush1.msra.mxu0 %v711
        %721 = vmatprep.subr.mxu0 0.0
        %722 = vmatpush1.msra.mxu0 %v710
        %723 = vmatprep.subr.mxu0 0.0
        %724 = vmatpush1.msra.mxu0 %v709
        %725 = vmatprep.subr.mxu0 0.0
        %726 = vmatpush1.msra.mxu0 %v708
        %727 = vmatprep.subr.mxu0 0.0
        %728 = vmatpush1.msra.mxu0 %v707
        %729 = vmatprep.subr.mxu0 0.0
        %730 = vmatpush1.msra.mxu0 %v706
        %731 = vmatprep.subr.mxu0 0.0
        %732 = vmatpush1.msra.mxu0 %v705
        %733 = vmatprep.subr.mxu0 0.0
        %734 = vmatpush1.msra.mxu0 %v704
        %735 = vmatprep.subr.mxu0 0.0
        %736 = vmatpush1.msra.mxu0 %v703
        %737 = vmatprep.subr.mxu0 0.0
        %738 = vmatpush1.msra.mxu0 %v702
        %739 = vmatprep.subr.mxu0 0.0
        %740 = vmatpush1.msra.mxu0 %v701
        %741 = vmatprep.subr.mxu0 0.0
        %742 = vmatpush1.msra.mxu0 %v700
        %743 = vmatprep.subr.mxu0 0.0
        %744 = vmatpush1.msra.mxu0 %v699
        %745 = vmatprep.subr.mxu0 0.0
        %746 = vmatpush1.msra.mxu0 %v698
        %747 = vmatprep.subr.mxu0 0.0
        %748 = vmatpush1.msra.mxu0 %v697
        %749 = vmatprep.subr.mxu0 0.0
        %750 = vmatpush1.msra.mxu0 %v696
        %751 = vmatprep.subr.mxu0 0.0
        %752 = vmatpush2.msra.mxu0 0.0
        %753 = vmatprep.subr.mxu0 0.0
        %754 = vmatpush2.msra.mxu0 0.0
        %755 = vmatprep.subr.mxu0 0.0
        %756 = vmatpush2.msra.mxu0 0.0
        %757 = vmatprep.subr.mxu0 0.0
        %758 = vmatpush2.msra.mxu0 0.0
        %759 = vmatprep.subr.mxu0 0.0
        %760 = vmatpush2.msra.mxu0 0.0
        %761 = vmatprep.subr.mxu0 0.0
        %762 = vmatpush2.msra.mxu0 0.0
        %763 = vmatprep.subr.mxu0 0.0
        %764 = vmatpush2.msra.mxu0 0.0
        %765 = vmatprep.subr.mxu0 0.0
        %766 = vmatpush2.msra.mxu0 0.0
        %767 = vmatprep.subr.mxu0 0.0
        %768 = vmatpush2.msra.mxu0 0.0
        %769 = vmatprep.subr.mxu0 0.0
        %770 = vmatpush2.msra.mxu0 0.0
        %771 = vmatprep.subr.mxu0 0.0
        %772 = vmatpush2.msra.mxu0 0.0
        %773 = vmatprep.subr.mxu0 0.0
        %774 = vmatpush2.msra.mxu0 0.0
        %775 = vmatprep.subr.mxu0 0.0
        %776 = vmatpush2.msra.mxu0 0.0
        %777 = vmatprep.subr.mxu0 0.0
        %778 = vmatpush2.msra.mxu0 0.0
        %779 = vmatprep.subr.mxu0 0.0
        %780 = vmatpush2.msra.mxu0 0.0
        %781 = vmatprep.subr.mxu0 0.0
        %782 = vmatpush2.msra.mxu0 0.0
        %783 = vmatprep.mubr.f32.mxu0 0.0
        %784 = vmatmul.mubr.f32.gmra.mxu0 %v691
        %v785 = vpop.f32.mrf.mxu0
        %v786 = vadd.f32 %v717, %v785
        %v787 = vpop.f32.mrf.mxu0
        %788 = vdwg.mxu0
        %v789 = vmul.f32 %v786, 0.35355338
        %v790 = vld [vmem:[#allocation8] sm:$0xff]
        %v791 = vld [vmem:[#allocation8 + $0x8] sm:$0xff]
        %v792 = vld [vmem:[#allocation8 + $0x10] sm:$0xff]
        %v793 = vld [vmem:[#allocation8 + $0x18] sm:$0xff]
        %v794 = vld [vmem:[#allocation8 + $0x20] sm:$0xff]
        %v795 = vld [vmem:[#allocation8 + $0x28] sm:$0xff]
        %v796 = vld [vmem:[#allocation8 + $0x30] sm:$0xff]
        %v797 = vld [vmem:[#allocation8 + $0x38] sm:$0xff]
        %v798 = vld [vmem:[#allocation8 + $0x40] sm:$0xff]
        %v799 = vld [vmem:[#allocation8 + $0x48] sm:$0xff]
        %v800 = vld [vmem:[#allocation8 + $0x50] sm:$0xff]
        %v801 = vld [vmem:[#allocation8 + $0x58] sm:$0xff]
        %v802 = vld [vmem:[#allocation8 + $0x60] sm:$0xff]
        %v803 = vld [vmem:[#allocation8 + $0x68] sm:$0xff]
        %v804 = vld [vmem:[#allocation8 + $0x70] sm:$0xff]
        %v805 = vld [vmem:[#allocation8 + $0x78] sm:$0xff]
        %v806 = vld [vmem:[%s5] sm:$0x1]
        %v808 = vlaneseq
        %v809 = vshrl.u32 %v808, 7
        %v810 = vsub.s32 0, %v809
        %v811 = vrot.slane %v806, %v810
        %813 = vmatprep.subr.mxu0 0.0
        %814 = vmatpush1.msra.mxu0 %v805
        %815 = vmatprep.subr.mxu0 0.0
        %816 = vmatpush1.msra.mxu0 %v804
        %817 = vmatprep.subr.mxu0 0.0
        %818 = vmatpush1.msra.mxu0 %v803
        %819 = vmatprep.subr.mxu0 0.0
        %820 = vmatpush1.msra.mxu0 %v802
        %821 = vmatprep.subr.mxu0 0.0
        %822 = vmatpush1.msra.mxu0 %v801
        %823 = vmatprep.subr.mxu0 0.0
        %824 = vmatpush1.msra.mxu0 %v800
        %825 = vmatprep.subr.mxu0 0.0
        %826 = vmatpush1.msra.mxu0 %v799
        %827 = vmatprep.subr.mxu0 0.0
        %828 = vmatpush1.msra.mxu0 %v798
        %829 = vmatprep.subr.mxu0 0.0
        %830 = vmatpush1.msra.mxu0 %v797
        %831 = vmatprep.subr.mxu0 0.0
        %832 = vmatpush1.msra.mxu0 %v796
        %833 = vmatprep.subr.mxu0 0.0
        %834 = vmatpush1.msra.mxu0 %v795
        %835 = vmatprep.subr.mxu0 0.0
        %836 = vmatpush1.msra.mxu0 %v794
        %837 = vmatprep.subr.mxu0 0.0
        %838 = vmatpush1.msra.mxu0 %v793
        %839 = vmatprep.subr.mxu0 0.0
        %840 = vmatpush1.msra.mxu0 %v792
        %841 = vmatprep.subr.mxu0 0.0
        %842 = vmatpush1.msra.mxu0 %v791
        %843 = vmatprep.subr.mxu0 0.0
        %844 = vmatpush1.msra.mxu0 %v790
        %845 = vmatprep.subr.mxu0 0.0
        %846 = vmatpush2.msra.mxu0 0.0
        %847 = vmatprep.subr.mxu0 0.0
        %848 = vmatpush2.msra.mxu0 0.0
        %849 = vmatprep.subr.mxu0 0.0
        %850 = vmatpush2.msra.mxu0 0.0
        %851 = vmatprep.subr.mxu0 0.0
        %852 = vmatpush2.msra.mxu0 0.0
        %853 = vmatprep.subr.mxu0 0.0
        %854 = vmatpush2.msra.mxu0 0.0
        %855 = vmatprep.subr.mxu0 0.0
        %856 = vmatpush2.msra.mxu0 0.0
        %857 = vmatprep.subr.mxu0 0.0
        %858 = vmatpush2.msra.mxu0 0.0
        %859 = vmatprep.subr.mxu0 0.0
        %860 = vmatpush2.msra.mxu0 0.0
        %861 = vmatprep.subr.mxu0 0.0
        %862 = vmatpush2.msra.mxu0 0.0
        %863 = vmatprep.subr.mxu0 0.0
        %864 = vmatpush2.msra.mxu0 0.0
        %865 = vmatprep.subr.mxu0 0.0
        %866 = vmatpush2.msra.mxu0 0.0
        %867 = vmatprep.subr.mxu0 0.0
        %868 = vmatpush2.msra.mxu0 0.0
        %869 = vmatprep.subr.mxu0 0.0
        %870 = vmatpush2.msra.mxu0 0.0
        %871 = vmatprep.subr.mxu0 0.0
        %872 = vmatpush2.msra.mxu0 0.0
        %873 = vmatprep.subr.mxu0 0.0
        %874 = vmatpush2.msra.mxu0 0.0
        %875 = vmatprep.subr.mxu0 0.0
        %876 = vmatpush2.msra.mxu0 0.0
        %877 = vmatprep.mubr.f32.mxu0 0.0
        %878 = vmatmul.mubr.f32.gmra.mxu0 %v691
        %v879 = vpop.f32.mrf.mxu0
        %v880 = vadd.f32 %v811, %v879
        %v881 = vpop.f32.mrf.mxu0
        %882 = vdwg.mxu0
        %v883 = vld [vmem:[#allocation10] sm:$0xff]
        %v884 = vld [vmem:[#allocation10 + $0x8] sm:$0xff]
        %v885 = vld [vmem:[#allocation10 + $0x10] sm:$0xff]
        %v886 = vld [vmem:[#allocation10 + $0x18] sm:$0xff]
        %v887 = vld [vmem:[#allocation10 + $0x20] sm:$0xff]
        %v888 = vld [vmem:[#allocation10 + $0x28] sm:$0xff]
        %v889 = vld [vmem:[#allocation10 + $0x30] sm:$0xff]
        %v890 = vld [vmem:[#allocation10 + $0x38] sm:$0xff]
        %v891 = vld [vmem:[#allocation10 + $0x40] sm:$0xff]
        %v892 = vld [vmem:[#allocation10 + $0x48] sm:$0xff]
        %v893 = vld [vmem:[#allocation10 + $0x50] sm:$0xff]
        %v894 = vld [vmem:[#allocation10 + $0x58] sm:$0xff]
        %v895 = vld [vmem:[#allocation10 + $0x60] sm:$0xff]
        %v896 = vld [vmem:[#allocation10 + $0x68] sm:$0xff]
        %v897 = vld [vmem:[#allocation10 + $0x70] sm:$0xff]
        %v898 = vld [vmem:[#allocation10 + $0x78] sm:$0xff]
        %v899 = vld [vmem:[%s7] sm:$0x1]
        %v901 = vlaneseq
        %v902 = vshrl.u32 %v901, 7
        %v903 = vsub.s32 0, %v902
        %v904 = vrot.slane %v899, %v903
        %906 = vmatprep.subr.mxu0 0.0
        %907 = vmatpush1.msra.mxu0 %v898
        %908 = vmatprep.subr.mxu0 0.0
        %909 = vmatpush1.msra.mxu0 %v897
        %910 = vmatprep.subr.mxu0 0.0
        %911 = vmatpush1.msra.mxu0 %v896
        %912 = vmatprep.subr.mxu0 0.0
        %913 = vmatpush1.msra.mxu0 %v895
        %914 = vmatprep.subr.mxu0 0.0
        %915 = vmatpush1.msra.mxu0 %v894
        %916 = vmatprep.subr.mxu0 0.0
        %917 = vmatpush1.msra.mxu0 %v893
        %918 = vmatprep.subr.mxu0 0.0
        %919 = vmatpush1.msra.mxu0 %v892
        %920 = vmatprep.subr.mxu0 0.0
        %921 = vmatpush1.msra.mxu0 %v891
        %922 = vmatprep.subr.mxu0 0.0
        %923 = vmatpush1.msra.mxu0 %v890
        %924 = vmatprep.subr.mxu0 0.0
        %925 = vmatpush1.msra.mxu0 %v889
        %926 = vmatprep.subr.mxu0 0.0
        %927 = vmatpush1.msra.mxu0 %v888
        %928 = vmatprep.subr.mxu0 0.0
        %929 = vmatpush1.msra.mxu0 %v887
        %930 = vmatprep.subr.mxu0 0.0
        %931 = vmatpush1.msra.mxu0 %v886
        %932 = vmatprep.subr.mxu0 0.0
        %933 = vmatpush1.msra.mxu0 %v885
        %934 = vmatprep.subr.mxu0 0.0
        %935 = vmatpush1.msra.mxu0 %v884
        %936 = vmatprep.subr.mxu0 0.0
        %937 = vmatpush1.msra.mxu0 %v883
        %938 = vmatprep.subr.mxu0 0.0
        %939 = vmatpush2.msra.mxu0 0.0
        %940 = vmatprep.subr.mxu0 0.0
        %941 = vmatpush2.msra.mxu0 0.0
        %942 = vmatprep.subr.mxu0 0.0
        %943 = vmatpush2.msra.mxu0 0.0
        %944 = vmatprep.subr.mxu0 0.0
        %945 = vmatpush2.msra.mxu0 0.0
        %946 = vmatprep.subr.mxu0 0.0
        %947 = vmatpush2.msra.mxu0 0.0
        %948 = vmatprep.subr.mxu0 0.0
        %949 = vmatpush2.msra.mxu0 0.0
        %950 = vmatprep.subr.mxu0 0.0
        %951 = vmatpush2.msra.mxu0 0.0
        %952 = vmatprep.subr.mxu0 0.0
        %953 = vmatpush2.msra.mxu0 0.0
        %954 = vmatprep.subr.mxu0 0.0
        %955 = vmatpush2.msra.mxu0 0.0
        %956 = vmatprep.subr.mxu0 0.0
        %957 = vmatpush2.msra.mxu0 0.0
        %958 = vmatprep.subr.mxu0 0.0
        %959 = vmatpush2.msra.mxu0 0.0
        %960 = vmatprep.subr.mxu0 0.0
        %961 = vmatpush2.msra.mxu0 0.0
        %962 = vmatprep.subr.mxu0 0.0
        %963 = vmatpush2.msra.mxu0 0.0
        %964 = vmatprep.subr.mxu0 0.0
        %965 = vmatpush2.msra.mxu0 0.0
        %966 = vmatprep.subr.mxu0 0.0
        %967 = vmatpush2.msra.mxu0 0.0
        %968 = vmatprep.subr.mxu0 0.0
        %969 = vmatpush2.msra.mxu0 0.0
        %970 = vmatprep.mubr.f32.mxu0 0.0
        %971 = vmatmul.mubr.f32.gmra.mxu0 %v691
        %v972 = vpop.f32.mrf.mxu0
        %v973 = vadd.f32 %v904, %v972
        %v974 = vpop.f32.mrf.mxu0
        %975 = vdwg.mxu0
        %976 = vmatprep.subr.mxu0 0.0
        %977 = vmatpush1.xpose.msra.mxu0 0.0
        %978 = vmatprep.subr.mxu0 0.0
        %979 = vmatpush1.xpose.msra.mxu0 0.0
        %980 = vmatprep.subr.mxu0 0.0
        %981 = vmatpush1.xpose.msra.mxu0 0.0
        %982 = vmatprep.subr.mxu0 0.0
        %983 = vmatpush1.xpose.msra.mxu0 0.0
        %984 = vmatprep.subr.mxu0 0.0
        %985 = vmatpush1.xpose.msra.mxu0 0.0
        %986 = vmatprep.subr.mxu0 0.0
        %987 = vmatpush1.xpose.msra.mxu0 0.0
        %988 = vmatprep.subr.mxu0 0.0
        %989 = vmatpush1.xpose.msra.mxu0 0.0
        %990 = vmatprep.subr.mxu0 0.0
        %991 = vmatpush1.xpose.msra.mxu0 0.0
        %992 = vmatprep.subr.mxu0 0.0
        %993 = vmatpush1.xpose.msra.mxu0 0.0
        %994 = vmatprep.subr.mxu0 0.0
        %995 = vmatpush1.xpose.msra.mxu0 0.0
        %996 = vmatprep.subr.mxu0 0.0
        %997 = vmatpush1.xpose.msra.mxu0 0.0
        %998 = vmatprep.subr.mxu0 0.0
        %999 = vmatpush1.xpose.msra.mxu0 0.0
        %1000 = vmatprep.subr.mxu0 0.0
        %1001 = vmatpush1.xpose.msra.mxu0 0.0
        %1002 = vmatprep.subr.mxu0 0.0
        %1003 = vmatpush1.xpose.msra.mxu0 0.0
        %1004 = vmatprep.subr.mxu0 0.0
        %1005 = vmatpush1.xpose.msra.mxu0 0.0
        %1006 = vmatprep.subr.mxu0 0.0
        %1007 = vmatpush1.xpose.msra.mxu0 %v880
        %1008 = vmatprep.subr.mxu0 0.0
        %1009 = vmatpush2.xpose.msra.mxu0 0.0
        %1010 = vmatprep.subr.mxu0 0.0
        %1011 = vmatpush2.xpose.msra.mxu0 0.0
        %1012 = vmatprep.subr.mxu0 0.0
        %1013 = vmatpush2.xpose.msra.mxu0 0.0
        %1014 = vmatprep.subr.mxu0 0.0
        %1015 = vmatpush2.xpose.msra.mxu0 0.0
        %1016 = vmatprep.subr.mxu0 0.0
        %1017 = vmatpush2.xpose.msra.mxu0 0.0
        %1018 = vmatprep.subr.mxu0 0.0
        %1019 = vmatpush2.xpose.msra.mxu0 0.0
        %1020 = vmatprep.subr.mxu0 0.0
        %1021 = vmatpush2.xpose.msra.mxu0 0.0
        %1022 = vmatprep.subr.mxu0 0.0
        %1023 = vmatpush2.xpose.msra.mxu0 0.0
        %1024 = vmatprep.subr.mxu0 0.0
        %1025 = vmatpush2.xpose.msra.mxu0 0.0
        %1026 = vmatprep.subr.mxu0 0.0
        %1027 = vmatpush2.xpose.msra.mxu0 0.0
        %1028 = vmatprep.subr.mxu0 0.0
        %1029 = vmatpush2.xpose.msra.mxu0 0.0
        %1030 = vmatprep.subr.mxu0 0.0
        %1031 = vmatpush2.xpose.msra.mxu0 0.0
        %1032 = vmatprep.subr.mxu0 0.0
        %1033 = vmatpush2.xpose.msra.mxu0 0.0
        %1034 = vmatprep.subr.mxu0 0.0
        %1035 = vmatpush2.xpose.msra.mxu0 0.0
        %1036 = vmatprep.subr.mxu0 0.0
        %1037 = vmatpush2.xpose.msra.mxu0 0.0
        %1038 = vmatprep.subr.mxu0 0.0
        %1039 = vmatpush2.xpose.msra.mxu0 0.0
        %1040 = vmatprep.mubr.f32.mxu0 0.0
        %1041 = vmatmul.mubr.f32.gmra.mxu0 %v789
        %v1042 = vpop.f32.mrf.mxu0
        %v1043 = vadd.f32 %v692, %v1042
        %v1044 = vpop.f32.mrf.mxu0
        %1045 = vdwg.mxu0
        %vm1046 = vcmask 64512
        %v1047 = vsel %vm1046, %v1043, -inf
        %1048 = vmax.xlane.f32.xlu0 %v1047
        %v1049 = vpop.xlane.xlu0 %1048
        %v1050 = vsub.f32 %v1043, %v1049
        %v1051 = vmul.f32 %v1050, 1.442695
        %v1052 = vpow.pop %v1051
        %v1053 = vsel %vm1046, %v1052, 0.0
        %1054 = vadd.xlane.f32.xlu0 %v1053
        %v1055 = vpop.xlane.xlu0 %1054
        %v1056 = vrcp.pop %v1055
        %v1057 = vmul.f32 %v1052, %v1056
        %v1059 = vsel %vm1046, %v1057, 0
        %1061 = vmatprep.subr.mxu0 0.0
        %1062 = vmatpush1.msra.mxu0 0.0
        %1063 = vmatprep.subr.mxu0 0.0
        %1064 = vmatpush1.msra.mxu0 0.0
        %1065 = vmatprep.subr.mxu0 0.0
        %1066 = vmatpush1.msra.mxu0 0.0
        %1067 = vmatprep.subr.mxu0 0.0
        %1068 = vmatpush1.msra.mxu0 0.0
        %1069 = vmatprep.subr.mxu0 0.0
        %1070 = vmatpush1.msra.mxu0 0.0
        %1071 = vmatprep.subr.mxu0 0.0
        %1072 = vmatpush1.msra.mxu0 0.0
        %1073 = vmatprep.subr.mxu0 0.0
        %1074 = vmatpush1.msra.mxu0 0.0
        %1075 = vmatprep.subr.mxu0 0.0
        %1076 = vmatpush1.msra.mxu0 0.0
        %1077 = vmatprep.subr.mxu0 0.0
        %1078 = vmatpush1.msra.mxu0 0.0
        %1079 = vmatprep.subr.mxu0 0.0
        %1080 = vmatpush1.msra.mxu0 0.0
        %1081 = vmatprep.subr.mxu0 0.0
        %1082 = vmatpush1.msra.mxu0 0.0
        %1083 = vmatprep.subr.mxu0 0.0
        %1084 = vmatpush1.msra.mxu0 0.0
        %1085 = vmatprep.subr.mxu0 0.0
        %1086 = vmatpush1.msra.mxu0 0.0
        %1087 = vmatprep.subr.mxu0 0.0
        %1088 = vmatpush1.msra.mxu0 0.0
        %1089 = vmatprep.subr.mxu0 0.0
        %1090 = vmatpush1.msra.mxu0 0.0
        %1091 = vmatprep.subr.mxu0 0.0
        %1092 = vmatpush1.msra.mxu0 %v973
        %1093 = vmatprep.subr.mxu0 0.0
        %1094 = vmatpush2.msra.mxu0 0.0
        %1095 = vmatprep.subr.mxu0 0.0
        %1096 = vmatpush2.msra.mxu0 0.0
        %1097 = vmatprep.subr.mxu0 0.0
        %1098 = vmatpush2.msra.mxu0 0.0
        %1099 = vmatprep.subr.mxu0 0.0
        %1100 = vmatpush2.msra.mxu0 0.0
        %1101 = vmatprep.subr.mxu0 0.0
        %1102 = vmatpush2.msra.mxu0 0.0
        %1103 = vmatprep.subr.mxu0 0.0
        %1104 = vmatpush2.msra.mxu0 0.0
        %1105 = vmatprep.subr.mxu0 0.0
        %1106 = vmatpush2.msra.mxu0 0.0
        %1107 = vmatprep.subr.mxu0 0.0
        %1108 = vmatpush2.msra.mxu0 0.0
        %1109 = vmatprep.subr.mxu0 0.0
        %1110 = vmatpush2.msra.mxu0 0.0
        %1111 = vmatprep.subr.mxu0 0.0
        %1112 = vmatpush2.msra.mxu0 0.0
        %1113 = vmatprep.subr.mxu0 0.0
        %1114 = vmatpush2.msra.mxu0 0.0
        %1115 = vmatprep.subr.mxu0 0.0
        %1116 = vmatpush2.msra.mxu0 0.0
        %1117 = vmatprep.subr.mxu0 0.0
        %1118 = vmatpush2.msra.mxu0 0.0
        %1119 = vmatprep.subr.mxu0 0.0
        %1120 = vmatpush2.msra.mxu0 0.0
        %1121 = vmatprep.subr.mxu0 0.0
        %1122 = vmatpush2.msra.mxu0 0.0
        %1123 = vmatprep.subr.mxu0 0.0
        %1124 = vmatpush2.msra.mxu0 0.0
        %1125 = vmatprep.mubr.f32.mxu0 0.0
        %1126 = vmatmul.mubr.f32.gmra.mxu0 %v1059
        %v1127 = vpop.f32.mrf.mxu0
        %v1128 = vadd.f32 0.0, %v1127
        %v1129 = vpop.f32.mrf.mxu0
        %1130 = vdwg.mxu0
        %v1131 = vld [vmem:[#allocation11] sm:$0xff]
        %v1132 = vld [vmem:[#allocation11 + $0x8] sm:$0xff]
        %v1133 = vld [vmem:[#allocation11 + $0x10] sm:$0xff]
        %v1134 = vld [vmem:[#allocation11 + $0x18] sm:$0xff]
        %v1135 = vld [vmem:[#allocation11 + $0x20] sm:$0xff]
        %v1136 = vld [vmem:[#allocation11 + $0x28] sm:$0xff]
        %v1137 = vld [vmem:[#allocation11 + $0x30] sm:$0xff]
        %v1138 = vld [vmem:[#allocation11 + $0x38] sm:$0xff]
        %v1139 = vld [vmem:[#allocation11 + $0x40] sm:$0xff]
        %v1140 = vld [vmem:[#allocation11 + $0x48] sm:$0xff]
        %v1141 = vld [vmem:[#allocation11 + $0x50] sm:$0xff]
        %v1142 = vld [vmem:[#allocation11 + $0x58] sm:$0xff]
        %v1143 = vld [vmem:[#allocation11 + $0x60] sm:$0xff]
        %v1144 = vld [vmem:[#allocation11 + $0x68] sm:$0xff]
        %v1145 = vld [vmem:[#allocation11 + $0x70] sm:$0xff]
        %v1146 = vld [vmem:[#allocation11 + $0x78] sm:$0xff]
        %s1147 = scalar_lea.vmem [#allocation7], 128
        %v1148 = vld [vmem:[%s1147] sm:$0xff]
        %v1149 = vld [vmem:[%s1147 + $0x8] sm:$0xff]
        %v1150 = vld [vmem:[%s1147 + $0x10] sm:$0xff]
        %v1151 = vld [vmem:[%s1147 + $0x18] sm:$0xff]
        %v1152 = vld [vmem:[%s1147 + $0x20] sm:$0xff]
        %v1153 = vld [vmem:[%s1147 + $0x28] sm:$0xff]
        %v1154 = vld [vmem:[%s1147 + $0x30] sm:$0xff]
        %v1155 = vld [vmem:[%s1147 + $0x38] sm:$0xff]
        %v1156 = vld [vmem:[%s1147 + $0x40] sm:$0xff]
        %v1157 = vld [vmem:[%s1147 + $0x48] sm:$0xff]
        %v1158 = vld [vmem:[%s1147 + $0x50] sm:$0xff]
        %v1159 = vld [vmem:[%s1147 + $0x58] sm:$0xff]
        %v1160 = vld [vmem:[%s1147 + $0x60] sm:$0xff]
        %v1161 = vld [vmem:[%s1147 + $0x68] sm:$0xff]
        %v1162 = vld [vmem:[%s1147 + $0x70] sm:$0xff]
        %v1163 = vld [vmem:[%s1147 + $0x78] sm:$0xff]
        %s1164 = scalar_lea.vmem %s3, 1
        %v1165 = vld [vmem:[%s1164] sm:$0x1]
        %v1167 = vlaneseq
        %v1168 = vshrl.u32 %v1167, 7
        %v1169 = vsub.s32 0, %v1168
        %v1170 = vrot.slane %v1165, %v1169
        %1172 = vmatprep.subr.mxu0 0.0
        %1173 = vmatpush1.msra.mxu0 %v1163
        %1174 = vmatprep.subr.mxu0 0.0
        %1175 = vmatpush1.msra.mxu0 %v1162
        %1176 = vmatprep.subr.mxu0 0.0
        %1177 = vmatpush1.msra.mxu0 %v1161
        %1178 = vmatprep.subr.mxu0 0.0
        %1179 = vmatpush1.msra.mxu0 %v1160
        %1180 = vmatprep.subr.mxu0 0.0
        %1181 = vmatpush1.msra.mxu0 %v1159
        %1182 = vmatprep.subr.mxu0 0.0
        %1183 = vmatpush1.msra.mxu0 %v1158
        %1184 = vmatprep.subr.mxu0 0.0
        %1185 = vmatpush1.msra.mxu0 %v1157
        %1186 = vmatprep.subr.mxu0 0.0
        %1187 = vmatpush1.msra.mxu0 %v1156
        %1188 = vmatprep.subr.mxu0 0.0
        %1189 = vmatpush1.msra.mxu0 %v1155
        %1190 = vmatprep.subr.mxu0 0.0
        %1191 = vmatpush1.msra.mxu0 %v1154
        %1192 = vmatprep.subr.mxu0 0.0
        %1193 = vmatpush1.msra.mxu0 %v1153
        %1194 = vmatprep.subr.mxu0 0.0
        %1195 = vmatpush1.msra.mxu0 %v1152
        %1196 = vmatprep.subr.mxu0 0.0
        %1197 = vmatpush1.msra.mxu0 %v1151
        %1198 = vmatprep.subr.mxu0 0.0
        %1199 = vmatpush1.msra.mxu0 %v1150
        %1200 = vmatprep.subr.mxu0 0.0
        %1201 = vmatpush1.msra.mxu0 %v1149
        %1202 = vmatprep.subr.mxu0 0.0
        %1203 = vmatpush1.msra.mxu0 %v1148
        %1204 = vmatprep.subr.mxu0 0.0
        %1205 = vmatpush2.msra.mxu0 0.0
        %1206 = vmatprep.subr.mxu0 0.0
        %1207 = vmatpush2.msra.mxu0 0.0
        %1208 = vmatprep.subr.mxu0 0.0
        %1209 = vmatpush2.msra.mxu0 0.0
        %1210 = vmatprep.subr.mxu0 0.0
        %1211 = vmatpush2.msra.mxu0 0.0
        %1212 = vmatprep.subr.mxu0 0.0
        %1213 = vmatpush2.msra.mxu0 0.0
        %1214 = vmatprep.subr.mxu0 0.0
        %1215 = vmatpush2.msra.mxu0 0.0
        %1216 = vmatprep.subr.mxu0 0.0
        %1217 = vmatpush2.msra.mxu0 0.0
        %1218 = vmatprep.subr.mxu0 0.0
        %1219 = vmatpush2.msra.mxu0 0.0
        %1220 = vmatprep.subr.mxu0 0.0
        %1221 = vmatpush2.msra.mxu0 0.0
        %1222 = vmatprep.subr.mxu0 0.0
        %1223 = vmatpush2.msra.mxu0 0.0
        %1224 = vmatprep.subr.mxu0 0.0
        %1225 = vmatpush2.msra.mxu0 0.0
        %1226 = vmatprep.subr.mxu0 0.0
        %1227 = vmatpush2.msra.mxu0 0.0
        %1228 = vmatprep.subr.mxu0 0.0
        %1229 = vmatpush2.msra.mxu0 0.0
        %1230 = vmatprep.subr.mxu0 0.0
        %1231 = vmatpush2.msra.mxu0 0.0
        %1232 = vmatprep.subr.mxu0 0.0
        %1233 = vmatpush2.msra.mxu0 0.0
        %1234 = vmatprep.subr.mxu0 0.0
        %1235 = vmatpush2.msra.mxu0 0.0
        %1236 = vmatprep.mubr.f32.mxu0 0.0
        %1237 = vmatmul.mubr.f32.gmra.mxu0 %v691
        %v1238 = vpop.f32.mrf.mxu0
        %v1239 = vadd.f32 %v1170, %v1238
        %v1240 = vpop.f32.mrf.mxu0
        %1241 = vdwg.mxu0
        %v1242 = vmul.f32 %v1239, 0.35355338
        %s1243 = scalar_lea.vmem [#allocation8], 128
        %v1244 = vld [vmem:[%s1243] sm:$0xff]
        %v1245 = vld [vmem:[%s1243 + $0x8] sm:$0xff]
        %v1246 = vld [vmem:[%s1243 + $0x10] sm:$0xff]
        %v1247 = vld [vmem:[%s1243 + $0x18] sm:$0xff]
        %v1248 = vld [vmem:[%s1243 + $0x20] sm:$0xff]
        %v1249 = vld [vmem:[%s1243 + $0x28] sm:$0xff]
        %v1250 = vld [vmem:[%s1243 + $0x30] sm:$0xff]
        %v1251 = vld [vmem:[%s1243 + $0x38] sm:$0xff]
        %v1252 = vld [vmem:[%s1243 + $0x40] sm:$0xff]
        %v1253 = vld [vmem:[%s1243 + $0x48] sm:$0xff]
        %v1254 = vld [vmem:[%s1243 + $0x50] sm:$0xff]
        %v1255 = vld [vmem:[%s1243 + $0x58] sm:$0xff]
        %v1256 = vld [vmem:[%s1243 + $0x60] sm:$0xff]
        %v1257 = vld [vmem:[%s1243 + $0x68] sm:$0xff]
        %v1258 = vld [vmem:[%s1243 + $0x70] sm:$0xff]
        %v1259 = vld [vmem:[%s1243 + $0x78] sm:$0xff]
        %s1260 = scalar_lea.vmem %s5, 1
        %v1261 = vld [vmem:[%s1260] sm:$0x1]
        %v1263 = vlaneseq
        %v1264 = vshrl.u32 %v1263, 7
        %v1265 = vsub.s32 0, %v1264
        %v1266 = vrot.slane %v1261, %v1265
        %1268 = vmatprep.subr.mxu0 0.0
        %1269 = vmatpush1.msra.mxu0 %v1259
        %1270 = vmatprep.subr.mxu0 0.0
        %1271 = vmatpush1.msra.mxu0 %v1258
        %1272 = vmatprep.subr.mxu0 0.0
        %1273 = vmatpush1.msra.mxu0 %v1257
        %1274 = vmatprep.subr.mxu0 0.0
        %1275 = vmatpush1.msra.mxu0 %v1256
        %1276 = vmatprep.subr.mxu0 0.0
        %1277 = vmatpush1.msra.mxu0 %v1255
        %1278 = vmatprep.subr.mxu0 0.0
        %1279 = vmatpush1.msra.mxu0 %v1254
        %1280 = vmatprep.subr.mxu0 0.0
        %1281 = vmatpush1.msra.mxu0 %v1253
        %1282 = vmatprep.subr.mxu0 0.0
        %1283 = vmatpush1.msra.mxu0 %v1252
        %1284 = vmatprep.subr.mxu0 0.0
        %1285 = vmatpush1.msra.mxu0 %v1251
        %1286 = vmatprep.subr.mxu0 0.0
        %1287 = vmatpush1.msra.mxu0 %v1250
        %1288 = vmatprep.subr.mxu0 0.0
        %1289 = vmatpush1.msra.mxu0 %v1249
        %1290 = vmatprep.subr.mxu0 0.0
        %1291 = vmatpush1.msra.mxu0 %v1248
        %1292 = vmatprep.subr.mxu0 0.0
        %1293 = vmatpush1.msra.mxu0 %v1247
        %1294 = vmatprep.subr.mxu0 0.0
        %1295 = vmatpush1.msra.mxu0 %v1246
        %1296 = vmatprep.subr.mxu0 0.0
        %1297 = vmatpush1.msra.mxu0 %v1245
        %1298 = vmatprep.subr.mxu0 0.0
        %1299 = vmatpush1.msra.mxu0 %v1244
        %1300 = vmatprep.subr.mxu0 0.0
        %1301 = vmatpush2.msra.mxu0 0.0
        %1302 = vmatprep.subr.mxu0 0.0
        %1303 = vmatpush2.msra.mxu0 0.0
        %1304 = vmatprep.subr.mxu0 0.0
        %1305 = vmatpush2.msra.mxu0 0.0
        %1306 = vmatprep.subr.mxu0 0.0
        %1307 = vmatpush2.msra.mxu0 0.0
        %1308 = vmatprep.subr.mxu0 0.0
        %1309 = vmatpush2.msra.mxu0 0.0
        %1310 = vmatprep.subr.mxu0 0.0
        %1311 = vmatpush2.msra.mxu0 0.0
        %1312 = vmatprep.subr.mxu0 0.0
        %1313 = vmatpush2.msra.mxu0 0.0
        %1314 = vmatprep.subr.mxu0 0.0
        %1315 = vmatpush2.msra.mxu0 0.0
        %1316 = vmatprep.subr.mxu0 0.0
        %1317 = vmatpush2.msra.mxu0 0.0
        %1318 = vmatprep.subr.mxu0 0.0
        %1319 = vmatpush2.msra.mxu0 0.0
        %1320 = vmatprep.subr.mxu0 0.0
        %1321 = vmatpush2.msra.mxu0 0.0
        %1322 = vmatprep.subr.mxu0 0.0
        %1323 = vmatpush2.msra.mxu0 0.0
        %1324 = vmatprep.subr.mxu0 0.0
        %1325 = vmatpush2.msra.mxu0 0.0
        %1326 = vmatprep.subr.mxu0 0.0
        %1327 = vmatpush2.msra.mxu0 0.0
        %1328 = vmatprep.subr.mxu0 0.0
        %1329 = vmatpush2.msra.mxu0 0.0
        %1330 = vmatprep.subr.mxu0 0.0
        %1331 = vmatpush2.msra.mxu0 0.0
        %1332 = vmatprep.mubr.f32.mxu0 0.0
        %1333 = vmatmul.mubr.f32.gmra.mxu0 %v691
        %v1334 = vpop.f32.mrf.mxu0
        %v1335 = vadd.f32 %v1266, %v1334
        %v1336 = vpop.f32.mrf.mxu0
        %1337 = vdwg.mxu0
        %s1338 = scalar_lea.vmem [#allocation10], 128
        %v1339 = vld [vmem:[%s1338] sm:$0xff]
        %v1340 = vld [vmem:[%s1338 + $0x8] sm:$0xff]
        %v1341 = vld [vmem:[%s1338 + $0x10] sm:$0xff]
        %v1342 = vld [vmem:[%s1338 + $0x18] sm:$0xff]
        %v1343 = vld [vmem:[%s1338 + $0x20] sm:$0xff]
        %v1344 = vld [vmem:[%s1338 + $0x28] sm:$0xff]
        %v1345 = vld [vmem:[%s1338 + $0x30] sm:$0xff]
        %v1346 = vld [vmem:[%s1338 + $0x38] sm:$0xff]
        %v1347 = vld [vmem:[%s1338 + $0x40] sm:$0xff]
        %v1348 = vld [vmem:[%s1338 + $0x48] sm:$0xff]
        %v1349 = vld [vmem:[%s1338 + $0x50] sm:$0xff]
        %v1350 = vld [vmem:[%s1338 + $0x58] sm:$0xff]
        %v1351 = vld [vmem:[%s1338 + $0x60] sm:$0xff]
        %v1352 = vld [vmem:[%s1338 + $0x68] sm:$0xff]
        %v1353 = vld [vmem:[%s1338 + $0x70] sm:$0xff]
        %v1354 = vld [vmem:[%s1338 + $0x78] sm:$0xff]
        %s1355 = scalar_lea.vmem %s7, 1
        %v1356 = vld [vmem:[%s1355] sm:$0x1]
        %v1358 = vlaneseq
        %v1359 = vshrl.u32 %v1358, 7
        %v1360 = vsub.s32 0, %v1359
        %v1361 = vrot.slane %v1356, %v1360
        %1363 = vmatprep.subr.mxu0 0.0
        %1364 = vmatpush1.msra.mxu0 %v1354
        %1365 = vmatprep.subr.mxu0 0.0
        %1366 = vmatpush1.msra.mxu0 %v1353
        %1367 = vmatprep.subr.mxu0 0.0
        %1368 = vmatpush1.msra.mxu0 %v1352
        %1369 = vmatprep.subr.mxu0 0.0
        %1370 = vmatpush1.msra.mxu0 %v1351
        %1371 = vmatprep.subr.mxu0 0.0
        %1372 = vmatpush1.msra.mxu0 %v1350
        %1373 = vmatprep.subr.mxu0 0.0
        %1374 = vmatpush1.msra.mxu0 %v1349
        %1375 = vmatprep.subr.mxu0 0.0
        %1376 = vmatpush1.msra.mxu0 %v1348
        %1377 = vmatprep.subr.mxu0 0.0
        %1378 = vmatpush1.msra.mxu0 %v1347
        %1379 = vmatprep.subr.mxu0 0.0
        %1380 = vmatpush1.msra.mxu0 %v1346
        %1381 = vmatprep.subr.mxu0 0.0
        %1382 = vmatpush1.msra.mxu0 %v1345
        %1383 = vmatprep.subr.mxu0 0.0
        %1384 = vmatpush1.msra.mxu0 %v1344
        %1385 = vmatprep.subr.mxu0 0.0
        %1386 = vmatpush1.msra.mxu0 %v1343
        %1387 = vmatprep.subr.mxu0 0.0
        %1388 = vmatpush1.msra.mxu0 %v1342
        %1389 = vmatprep.subr.mxu0 0.0
        %1390 = vmatpush1.msra.mxu0 %v1341
        %1391 = vmatprep.subr.mxu0 0.0
        %1392 = vmatpush1.msra.mxu0 %v1340
        %1393 = vmatprep.subr.mxu0 0.0
        %1394 = vmatpush1.msra.mxu0 %v1339
        %1395 = vmatprep.subr.mxu0 0.0
        %1396 = vmatpush2.msra.mxu0 0.0
        %1397 = vmatprep.subr.mxu0 0.0
        %1398 = vmatpush2.msra.mxu0 0.0
        %1399 = vmatprep.subr.mxu0 0.0
        %1400 = vmatpush2.msra.mxu0 0.0
        %1401 = vmatprep.subr.mxu0 0.0
        %1402 = vmatpush2.msra.mxu0 0.0
        %1403 = vmatprep.subr.mxu0 0.0
        %1404 = vmatpush2.msra.mxu0 0.0
        %1405 = vmatprep.subr.mxu0 0.0
        %1406 = vmatpush2.msra.mxu0 0.0
        %1407 = vmatprep.subr.mxu0 0.0
        %1408 = vmatpush2.msra.mxu0 0.0
        %1409 = vmatprep.subr.mxu0 0.0
        %1410 = vmatpush2.msra.mxu0 0.0
        %1411 = vmatprep.subr.mxu0 0.0
        %1412 = vmatpush2.msra.mxu0 0.0
        %1413 = vmatprep.subr.mxu0 0.0
        %1414 = vmatpush2.msra.mxu0 0.0
        %1415 = vmatprep.subr.mxu0 0.0
        %1416 = vmatpush2.msra.mxu0 0.0
        %1417 = vmatprep.subr.mxu0 0.0
        %1418 = vmatpush2.msra.mxu0 0.0
        %1419 = vmatprep.subr.mxu0 0.0
        %1420 = vmatpush2.msra.mxu0 0.0
        %1421 = vmatprep.subr.mxu0 0.0
        %1422 = vmatpush2.msra.mxu0 0.0
        %1423 = vmatprep.subr.mxu0 0.0
        %1424 = vmatpush2.msra.mxu0 0.0
        %1425 = vmatprep.subr.mxu0 0.0
        %1426 = vmatpush2.msra.mxu0 0.0
        %1427 = vmatprep.mubr.f32.mxu0 0.0
        %1428 = vmatmul.mubr.f32.gmra.mxu0 %v691
        %v1429 = vpop.f32.mrf.mxu0
        %v1430 = vadd.f32 %v1361, %v1429
        %v1431 = vpop.f32.mrf.mxu0
        %1432 = vdwg.mxu0
        %1433 = vmatprep.subr.mxu0 0.0
        %1434 = vmatpush1.xpose.msra.mxu0 0.0
        %1435 = vmatprep.subr.mxu0 0.0
        %1436 = vmatpush1.xpose.msra.mxu0 0.0
        %1437 = vmatprep.subr.mxu0 0.0
        %1438 = vmatpush1.xpose.msra.mxu0 0.0
        %1439 = vmatprep.subr.mxu0 0.0
        %1440 = vmatpush1.xpose.msra.mxu0 0.0
        %1441 = vmatprep.subr.mxu0 0.0
        %1442 = vmatpush1.xpose.msra.mxu0 0.0
        %1443 = vmatprep.subr.mxu0 0.0
        %1444 = vmatpush1.xpose.msra.mxu0 0.0
        %1445 = vmatprep.subr.mxu0 0.0
        %1446 = vmatpush1.xpose.msra.mxu0 0.0
        %1447 = vmatprep.subr.mxu0 0.0
        %1448 = vmatpush1.xpose.msra.mxu0 0.0
        %1449 = vmatprep.subr.mxu0 0.0
        %1450 = vmatpush1.xpose.msra.mxu0 0.0
        %1451 = vmatprep.subr.mxu0 0.0
        %1452 = vmatpush1.xpose.msra.mxu0 0.0
        %1453 = vmatprep.subr.mxu0 0.0
        %1454 = vmatpush1.xpose.msra.mxu0 0.0
        %1455 = vmatprep.subr.mxu0 0.0
        %1456 = vmatpush1.xpose.msra.mxu0 0.0
        %1457 = vmatprep.subr.mxu0 0.0
        %1458 = vmatpush1.xpose.msra.mxu0 0.0
        %1459 = vmatprep.subr.mxu0 0.0
        %1460 = vmatpush1.xpose.msra.mxu0 0.0
        %1461 = vmatprep.subr.mxu0 0.0
        %1462 = vmatpush1.xpose.msra.mxu0 0.0
        %1463 = vmatprep.subr.mxu0 0.0
        %1464 = vmatpush1.xpose.msra.mxu0 %v1335
        %1465 = vmatprep.subr.mxu0 0.0
        %1466 = vmatpush2.xpose.msra.mxu0 0.0
        %1467 = vmatprep.subr.mxu0 0.0
        %1468 = vmatpush2.xpose.msra.mxu0 0.0
        %1469 = vmatprep.subr.mxu0 0.0
        %1470 = vmatpush2.xpose.msra.mxu0 0.0
        %1471 = vmatprep.subr.mxu0 0.0
        %1472 = vmatpush2.xpose.msra.mxu0 0.0
        %1473 = vmatprep.subr.mxu0 0.0
        %1474 = vmatpush2.xpose.msra.mxu0 0.0
        %1475 = vmatprep.subr.mxu0 0.0
        %1476 = vmatpush2.xpose.msra.mxu0 0.0
        %1477 = vmatprep.subr.mxu0 0.0
        %1478 = vmatpush2.xpose.msra.mxu0 0.0
        %1479 = vmatprep.subr.mxu0 0.0
        %1480 = vmatpush2.xpose.msra.mxu0 0.0
        %1481 = vmatprep.subr.mxu0 0.0
        %1482 = vmatpush2.xpose.msra.mxu0 0.0
        %1483 = vmatprep.subr.mxu0 0.0
        %1484 = vmatpush2.xpose.msra.mxu0 0.0
        %1485 = vmatprep.subr.mxu0 0.0
        %1486 = vmatpush2.xpose.msra.mxu0 0.0
        %1487 = vmatprep.subr.mxu0 0.0
        %1488 = vmatpush2.xpose.msra.mxu0 0.0
        %1489 = vmatprep.subr.mxu0 0.0
        %1490 = vmatpush2.xpose.msra.mxu0 0.0
        %1491 = vmatprep.subr.mxu0 0.0
        %1492 = vmatpush2.xpose.msra.mxu0 0.0
        %1493 = vmatprep.subr.mxu0 0.0
        %1494 = vmatpush2.xpose.msra.mxu0 0.0
        %1495 = vmatprep.subr.mxu0 0.0
        %1496 = vmatpush2.xpose.msra.mxu0 0.0
        %1497 = vmatprep.mubr.f32.mxu0 0.0
        %1498 = vmatmul.mubr.f32.gmra.mxu0 %v1242
        %v1499 = vpop.f32.mrf.mxu0
        %v1500 = vadd.f32 %v692, %v1499
        %v1501 = vpop.f32.mrf.mxu0
        %1502 = vdwg.mxu0
        %v1503 = vsel %vm1046, %v1500, -inf
        %1504 = vmax.xlane.f32.xlu0 %v1503
        %v1505 = vpop.xlane.xlu0 %1504
        %v1506 = vsub.f32 %v1500, %v1505
        %v1507 = vmul.f32 %v1506, 1.442695
        %v1508 = vpow.pop %v1507
        %v1509 = vsel %vm1046, %v1508, 0.0
        %1510 = vadd.xlane.f32.xlu0 %v1509
        %v1511 = vpop.xlane.xlu0 %1510
        %v1512 = vrcp.pop %v1511
        %v1513 = vmul.f32 %v1508, %v1512
        %v1515 = vsel %vm1046, %v1513, 0
        %1517 = vmatprep.subr.mxu0 0.0
        %1518 = vmatpush1.msra.mxu0 0.0
        %1519 = vmatprep.subr.mxu0 0.0
        %1520 = vmatpush1.msra.mxu0 0.0
        %1521 = vmatprep.subr.mxu0 0.0
        %1522 = vmatpush1.msra.mxu0 0.0
        %1523 = vmatprep.subr.mxu0 0.0
        %1524 = vmatpush1.msra.mxu0 0.0
        %1525 = vmatprep.subr.mxu0 0.0
        %1526 = vmatpush1.msra.mxu0 0.0
        %1527 = vmatprep.subr.mxu0 0.0
        %1528 = vmatpush1.msra.mxu0 0.0
        %1529 = vmatprep.subr.mxu0 0.0
        %1530 = vmatpush1.msra.mxu0 0.0
        %1531 = vmatprep.subr.mxu0 0.0
        %1532 = vmatpush1.msra.mxu0 0.0
        %1533 = vmatprep.subr.mxu0 0.0
        %1534 = vmatpush1.msra.mxu0 0.0
        %1535 = vmatprep.subr.mxu0 0.0
        %1536 = vmatpush1.msra.mxu0 0.0
        %1537 = vmatprep.subr.mxu0 0.0
        %1538 = vmatpush1.msra.mxu0 0.0
        %1539 = vmatprep.subr.mxu0 0.0
        %1540 = vmatpush1.msra.mxu0 0.0
        %1541 = vmatprep.subr.mxu0 0.0
        %1542 = vmatpush1.msra.mxu0 0.0
        %1543 = vmatprep.subr.mxu0 0.0
        %1544 = vmatpush1.msra.mxu0 0.0
        %1545 = vmatprep.subr.mxu0 0.0
        %1546 = vmatpush1.msra.mxu0 0.0
        %1547 = vmatprep.subr.mxu0 0.0
        %1548 = vmatpush1.msra.mxu0 %v1430
        %1549 = vmatprep.subr.mxu0 0.0
        %1550 = vmatpush2.msra.mxu0 0.0
        %1551 = vmatprep.subr.mxu0 0.0
        %1552 = vmatpush2.msra.mxu0 0.0
        %1553 = vmatprep.subr.mxu0 0.0
        %1554 = vmatpush2.msra.mxu0 0.0
        %1555 = vmatprep.subr.mxu0 0.0
        %1556 = vmatpush2.msra.mxu0 0.0
        %1557 = vmatprep.subr.mxu0 0.0
        %1558 = vmatpush2.msra.mxu0 0.0
        %1559 = vmatprep.subr.mxu0 0.0
        %1560 = vmatpush2.msra.mxu0 0.0
        %1561 = vmatprep.subr.mxu0 0.0
        %1562 = vmatpush2.msra.mxu0 0.0
        %1563 = vmatprep.subr.mxu0 0.0
        %1564 = vmatpush2.msra.mxu0 0.0
        %1565 = vmatprep.subr.mxu0 0.0
        %1566 = vmatpush2.msra.mxu0 0.0
        %1567 = vmatprep.subr.mxu0 0.0
        %1568 = vmatpush2.msra.mxu0 0.0
        %1569 = vmatprep.subr.mxu0 0.0
        %1570 = vmatpush2.msra.mxu0 0.0
        %1571 = vmatprep.subr.mxu0 0.0
        %1572 = vmatpush2.msra.mxu0 0.0
        %1573 = vmatprep.subr.mxu0 0.0
        %1574 = vmatpush2.msra.mxu0 0.0
        %1575 = vmatprep.subr.mxu0 0.0
        %1576 = vmatpush2.msra.mxu0 0.0
        %1577 = vmatprep.subr.mxu0 0.0
        %1578 = vmatpush2.msra.mxu0 0.0
        %1579 = vmatprep.subr.mxu0 0.0
        %1580 = vmatpush2.msra.mxu0 0.0
        %1581 = vmatprep.mubr.f32.mxu0 0.0
        %1582 = vmatmul.mubr.f32.gmra.mxu0 %v1515
        %v1583 = vpop.f32.mrf.mxu0
        %v1584 = vadd.f32 0.0, %v1583
        %v1585 = vpop.f32.mrf.mxu0
        %1586 = vdwg.mxu0
        %s1587 = scalar_lea.vmem [#allocation11], 128
        %v1588 = vld [vmem:[%s1587] sm:$0xff]
        %v1589 = vld [vmem:[%s1587 + $0x8] sm:$0xff]
        %v1590 = vld [vmem:[%s1587 + $0x10] sm:$0xff]
        %v1591 = vld [vmem:[%s1587 + $0x18] sm:$0xff]
        %v1592 = vld [vmem:[%s1587 + $0x20] sm:$0xff]
        %v1593 = vld [vmem:[%s1587 + $0x28] sm:$0xff]
        %v1594 = vld [vmem:[%s1587 + $0x30] sm:$0xff]
        %v1595 = vld [vmem:[%s1587 + $0x38] sm:$0xff]
        %v1596 = vld [vmem:[%s1587 + $0x40] sm:$0xff]
        %v1597 = vld [vmem:[%s1587 + $0x48] sm:$0xff]
        %v1598 = vld [vmem:[%s1587 + $0x50] sm:$0xff]
        %v1599 = vld [vmem:[%s1587 + $0x58] sm:$0xff]
        %v1600 = vld [vmem:[%s1587 + $0x60] sm:$0xff]
        %v1601 = vld [vmem:[%s1587 + $0x68] sm:$0xff]
        %v1602 = vld [vmem:[%s1587 + $0x70] sm:$0xff]
        %v1603 = vld [vmem:[%s1587 + $0x78] sm:$0xff]
        %1604 = vmatprep.subr.mxu0 0.0
        %1605 = vmatpush1.msra.mxu0 %v1603
        %1606 = vmatprep.subr.mxu0 0.0
        %1607 = vmatpush1.msra.mxu0 %v1602
        %1608 = vmatprep.subr.mxu0 0.0
        %1609 = vmatpush1.msra.mxu0 %v1601
        %1610 = vmatprep.subr.mxu0 0.0
        %1611 = vmatpush1.msra.mxu0 %v1600
        %1612 = vmatprep.subr.mxu0 0.0
        %1613 = vmatpush1.msra.mxu0 %v1599
        %1614 = vmatprep.subr.mxu0 0.0
        %1615 = vmatpush1.msra.mxu0 %v1598
        %1616 = vmatprep.subr.mxu0 0.0
        %1617 = vmatpush1.msra.mxu0 %v1597
        %1618 = vmatprep.subr.mxu0 0.0
        %1619 = vmatpush1.msra.mxu0 %v1596
        %1620 = vmatprep.subr.mxu0 0.0
        %1621 = vmatpush1.msra.mxu0 %v1595
        %1622 = vmatprep.subr.mxu0 0.0
        %1623 = vmatpush1.msra.mxu0 %v1594
        %1624 = vmatprep.subr.mxu0 0.0
        %1625 = vmatpush1.msra.mxu0 %v1593
        %1626 = vmatprep.subr.mxu0 0.0
        %1627 = vmatpush1.msra.mxu0 %v1592
        %1628 = vmatprep.subr.mxu0 0.0
        %1629 = vmatpush1.msra.mxu0 %v1591
        %1630 = vmatprep.subr.mxu0 0.0
        %1631 = vmatpush1.msra.mxu0 %v1590
        %1632 = vmatprep.subr.mxu0 0.0
        %1633 = vmatpush1.msra.mxu0 %v1589
        %1634 = vmatprep.subr.mxu0 0.0
        %1635 = vmatpush1.msra.mxu0 %v1588
        %1636 = vmatprep.subr.mxu0 0.0
        %1637 = vmatpush2.msra.mxu0 0.0
        %1638 = vmatprep.subr.mxu0 0.0
        %1639 = vmatpush2.msra.mxu0 0.0
        %1640 = vmatprep.subr.mxu0 0.0
        %1641 = vmatpush2.msra.mxu0 0.0
        %1642 = vmatprep.subr.mxu0 0.0
        %1643 = vmatpush2.msra.mxu0 0.0
        %1644 = vmatprep.subr.mxu0 0.0
        %1645 = vmatpush2.msra.mxu0 0.0
        %1646 = vmatprep.subr.mxu0 0.0
        %1647 = vmatpush2.msra.mxu0 0.0
        %1648 = vmatprep.subr.mxu0 0.0
        %1649 = vmatpush2.msra.mxu0 0.0
        %1650 = vmatprep.subr.mxu0 0.0
        %1651 = vmatpush2.msra.mxu0 0.0
        %1652 = vmatprep.subr.mxu0 0.0
        %1653 = vmatpush2.msra.mxu0 0.0
        %1654 = vmatprep.subr.mxu0 0.0
        %1655 = vmatpush2.msra.mxu0 0.0
        %1656 = vmatprep.subr.mxu0 0.0
        %1657 = vmatpush2.msra.mxu0 0.0
        %1658 = vmatprep.subr.mxu0 0.0
        %1659 = vmatpush2.msra.mxu0 0.0
        %1660 = vmatprep.subr.mxu0 0.0
        %1661 = vmatpush2.msra.mxu0 0.0
        %1662 = vmatprep.subr.mxu0 0.0
        %1663 = vmatpush2.msra.mxu0 0.0
        %1664 = vmatprep.subr.mxu0 0.0
        %1665 = vmatpush2.msra.mxu0 0.0
        %1666 = vmatprep.subr.mxu0 0.0
        %1667 = vmatpush2.msra.mxu0 0.0
        %1668 = vmatprep.mubr.f32.mxu0 0.0
        %1669 = vmatmul.mubr.f32.gmra.mxu0 %v1584
        %v1670 = vpop.f32.mrf.mxu0
        %v1671 = vadd.f32 0.0, %v1670
        %v1672 = vpop.f32.mrf.mxu0
        %1673 = vdwg.mxu0
        %1674 = vmatprep.subr.mxu0 0.0
        %1675 = vmatpush1.msra.mxu0 %v1146
        %1676 = vmatprep.subr.mxu0 0.0
        %1677 = vmatpush1.msra.mxu0 %v1145
        %1678 = vmatprep.subr.mxu0 0.0
        %1679 = vmatpush1.msra.mxu0 %v1144
        %1680 = vmatprep.subr.mxu0 0.0
        %1681 = vmatpush1.msra.mxu0 %v1143
        %1682 = vmatprep.subr.mxu0 0.0
        %1683 = vmatpush1.msra.mxu0 %v1142
        %1684 = vmatprep.subr.mxu0 0.0
        %1685 = vmatpush1.msra.mxu0 %v1141
        %1686 = vmatprep.subr.mxu0 0.0
        %1687 = vmatpush1.msra.mxu0 %v1140
        %1688 = vmatprep.subr.mxu0 0.0
        %1689 = vmatpush1.msra.mxu0 %v1139
        %1690 = vmatprep.subr.mxu0 0.0
        %1691 = vmatpush1.msra.mxu0 %v1138
        %1692 = vmatprep.subr.mxu0 0.0
        %1693 = vmatpush1.msra.mxu0 %v1137
        %1694 = vmatprep.subr.mxu0 0.0
        %1695 = vmatpush1.msra.mxu0 %v1136
        %1696 = vmatprep.subr.mxu0 0.0
        %1697 = vmatpush1.msra.mxu0 %v1135
        %1698 = vmatprep.subr.mxu0 0.0
        %1699 = vmatpush1.msra.mxu0 %v1134
        %1700 = vmatprep.subr.mxu0 0.0
        %1701 = vmatpush1.msra.mxu0 %v1133
        %1702 = vmatprep.subr.mxu0 0.0
        %1703 = vmatpush1.msra.mxu0 %v1132
        %1704 = vmatprep.subr.mxu0 0.0
        %1705 = vmatpush1.msra.mxu0 %v1131
        %1706 = vmatprep.subr.mxu0 0.0
        %1707 = vmatpush2.msra.mxu0 0.0
        %1708 = vmatprep.subr.mxu0 0.0
        %1709 = vmatpush2.msra.mxu0 0.0
        %1710 = vmatprep.subr.mxu0 0.0
        %1711 = vmatpush2.msra.mxu0 0.0
        %1712 = vmatprep.subr.mxu0 0.0
        %1713 = vmatpush2.msra.mxu0 0.0
        %1714 = vmatprep.subr.mxu0 0.0
        %1715 = vmatpush2.msra.mxu0 0.0
        %1716 = vmatprep.subr.mxu0 0.0
        %1717 = vmatpush2.msra.mxu0 0.0
        %1718 = vmatprep.subr.mxu0 0.0
        %1719 = vmatpush2.msra.mxu0 0.0
        %1720 = vmatprep.subr.mxu0 0.0
        %1721 = vmatpush2.msra.mxu0 0.0
        %1722 = vmatprep.subr.mxu0 0.0
        %1723 = vmatpush2.msra.mxu0 0.0
        %1724 = vmatprep.subr.mxu0 0.0
        %1725 = vmatpush2.msra.mxu0 0.0
        %1726 = vmatprep.subr.mxu0 0.0
        %1727 = vmatpush2.msra.mxu0 0.0
        %1728 = vmatprep.subr.mxu0 0.0
        %1729 = vmatpush2.msra.mxu0 0.0
        %1730 = vmatprep.subr.mxu0 0.0
        %1731 = vmatpush2.msra.mxu0 0.0
        %1732 = vmatprep.subr.mxu0 0.0
        %1733 = vmatpush2.msra.mxu0 0.0
        %1734 = vmatprep.subr.mxu0 0.0
        %1735 = vmatpush2.msra.mxu0 0.0
        %1736 = vmatprep.subr.mxu0 0.0
        %1737 = vmatpush2.msra.mxu0 0.0
        %1738 = vmatprep.mubr.f32.mxu0 0.0
        %1739 = vmatmul.mubr.f32.gmra.mxu0 %v1128
        %v1740 = vpop.f32.mrf.mxu0
        %v1741 = vadd.f32 %v1671, %v1740
        %v1742 = vpop.f32.mrf.mxu0
        %1743 = vdwg.mxu0
        %s1744 = scalar_lea.vmem [#allocation7], 256
        %v1745 = vld [vmem:[%s1744] sm:$0xff]
        %v1746 = vld [vmem:[%s1744 + $0x8] sm:$0xff]
        %v1747 = vld [vmem:[%s1744 + $0x10] sm:$0xff]
        %v1748 = vld [vmem:[%s1744 + $0x18] sm:$0xff]
        %v1749 = vld [vmem:[%s1744 + $0x20] sm:$0xff]
        %v1750 = vld [vmem:[%s1744 + $0x28] sm:$0xff]
        %v1751 = vld [vmem:[%s1744 + $0x30] sm:$0xff]
        %v1752 = vld [vmem:[%s1744 + $0x38] sm:$0xff]
        %v1753 = vld [vmem:[%s1744 + $0x40] sm:$0xff]
        %v1754 = vld [vmem:[%s1744 + $0x48] sm:$0xff]
        %v1755 = vld [vmem:[%s1744 + $0x50] sm:$0xff]
        %v1756 = vld [vmem:[%s1744 + $0x58] sm:$0xff]
        %v1757 = vld [vmem:[%s1744 + $0x60] sm:$0xff]
        %v1758 = vld [vmem:[%s1744 + $0x68] sm:$0xff]
        %v1759 = vld [vmem:[%s1744 + $0x70] sm:$0xff]
        %v1760 = vld [vmem:[%s1744 + $0x78] sm:$0xff]
        %s1761 = scalar_lea.vmem %s3, 2
        %v1762 = vld [vmem:[%s1761] sm:$0x1]
        %v1764 = vlaneseq
        %v1765 = vshrl.u32 %v1764, 7
        %v1766 = vsub.s32 0, %v1765
        %v1767 = vrot.slane %v1762, %v1766
        %1769 = vmatprep.subr.mxu0 0.0
        %1770 = vmatpush1.msra.mxu0 %v1760
        %1771 = vmatprep.subr.mxu0 0.0
        %1772 = vmatpush1.msra.mxu0 %v1759
        %1773 = vmatprep.subr.mxu0 0.0
        %1774 = vmatpush1.msra.mxu0 %v1758
        %1775 = vmatprep.subr.mxu0 0.0
        %1776 = vmatpush1.msra.mxu0 %v1757
        %1777 = vmatprep.subr.mxu0 0.0
        %1778 = vmatpush1.msra.mxu0 %v1756
        %1779 = vmatprep.subr.mxu0 0.0
        %1780 = vmatpush1.msra.mxu0 %v1755
        %1781 = vmatprep.subr.mxu0 0.0
        %1782 = vmatpush1.msra.mxu0 %v1754
        %1783 = vmatprep.subr.mxu0 0.0
        %1784 = vmatpush1.msra.mxu0 %v1753
        %1785 = vmatprep.subr.mxu0 0.0
        %1786 = vmatpush1.msra.mxu0 %v1752
        %1787 = vmatprep.subr.mxu0 0.0
        %1788 = vmatpush1.msra.mxu0 %v1751
        %1789 = vmatprep.subr.mxu0 0.0
        %1790 = vmatpush1.msra.mxu0 %v1750
        %1791 = vmatprep.subr.mxu0 0.0
        %1792 = vmatpush1.msra.mxu0 %v1749
        %1793 = vmatprep.subr.mxu0 0.0
        %1794 = vmatpush1.msra.mxu0 %v1748
        %1795 = vmatprep.subr.mxu0 0.0
        %1796 = vmatpush1.msra.mxu0 %v1747
        %1797 = vmatprep.subr.mxu0 0.0
        %1798 = vmatpush1.msra.mxu0 %v1746
        %1799 = vmatprep.subr.mxu0 0.0
        %1800 = vmatpush1.msra.mxu0 %v1745
        %1801 = vmatprep.subr.mxu0 0.0
        %1802 = vmatpush2.msra.mxu0 0.0
        %1803 = vmatprep.subr.mxu0 0.0
        %1804 = vmatpush2.msra.mxu0 0.0
        %1805 = vmatprep.subr.mxu0 0.0
        %1806 = vmatpush2.msra.mxu0 0.0
        %1807 = vmatprep.subr.mxu0 0.0
        %1808 = vmatpush2.msra.mxu0 0.0
        %1809 = vmatprep.subr.mxu0 0.0
        %1810 = vmatpush2.msra.mxu0 0.0
        %1811 = vmatprep.subr.mxu0 0.0
        %1812 = vmatpush2.msra.mxu0 0.0
        %1813 = vmatprep.subr.mxu0 0.0
        %1814 = vmatpush2.msra.mxu0 0.0
        %1815 = vmatprep.subr.mxu0 0.0
        %1816 = vmatpush2.msra.mxu0 0.0
        %1817 = vmatprep.subr.mxu0 0.0
        %1818 = vmatpush2.msra.mxu0 0.0
        %1819 = vmatprep.subr.mxu0 0.0
        %1820 = vmatpush2.msra.mxu0 0.0
        %1821 = vmatprep.subr.mxu0 0.0
        %1822 = vmatpush2.msra.mxu0 0.0
        %1823 = vmatprep.subr.mxu0 0.0
        %1824 = vmatpush2.msra.mxu0 0.0
        %1825 = vmatprep.subr.mxu0 0.0
        %1826 = vmatpush2.msra.mxu0 0.0
        %1827 = vmatprep.subr.mxu0 0.0
        %1828 = vmatpush2.msra.mxu0 0.0
        %1829 = vmatprep.subr.mxu0 0.0
        %1830 = vmatpush2.msra.mxu0 0.0
        %1831 = vmatprep.subr.mxu0 0.0
        %1832 = vmatpush2.msra.mxu0 0.0
        %1833 = vmatprep.mubr.f32.mxu0 0.0
        %1834 = vmatmul.mubr.f32.gmra.mxu0 %v691
        %v1835 = vpop.f32.mrf.mxu0
        %v1836 = vadd.f32 %v1767, %v1835
        %v1837 = vpop.f32.mrf.mxu0
        %1838 = vdwg.mxu0
        %v1839 = vmul.f32 %v1836, 0.35355338
        %s1840 = scalar_lea.vmem [#allocation8], 256
        %v1841 = vld [vmem:[%s1840] sm:$0xff]
        %v1842 = vld [vmem:[%s1840 + $0x8] sm:$0xff]
        %v1843 = vld [vmem:[%s1840 + $0x10] sm:$0xff]
        %v1844 = vld [vmem:[%s1840 + $0x18] sm:$0xff]
        %v1845 = vld [vmem:[%s1840 + $0x20] sm:$0xff]
        %v1846 = vld [vmem:[%s1840 + $0x28] sm:$0xff]
        %v1847 = vld [vmem:[%s1840 + $0x30] sm:$0xff]
        %v1848 = vld [vmem:[%s1840 + $0x38] sm:$0xff]
        %v1849 = vld [vmem:[%s1840 + $0x40] sm:$0xff]
        %v1850 = vld [vmem:[%s1840 + $0x48] sm:$0xff]
        %v1851 = vld [vmem:[%s1840 + $0x50] sm:$0xff]
        %v1852 = vld [vmem:[%s1840 + $0x58] sm:$0xff]
        %v1853 = vld [vmem:[%s1840 + $0x60] sm:$0xff]
        %v1854 = vld [vmem:[%s1840 + $0x68] sm:$0xff]
        %v1855 = vld [vmem:[%s1840 + $0x70] sm:$0xff]
        %v1856 = vld [vmem:[%s1840 + $0x78] sm:$0xff]
        %s1857 = scalar_lea.vmem %s5, 2
        %v1858 = vld [vmem:[%s1857] sm:$0x1]
        %v1860 = vlaneseq
        %v1861 = vshrl.u32 %v1860, 7
        %v1862 = vsub.s32 0, %v1861
        %v1863 = vrot.slane %v1858, %v1862
        %1865 = vmatprep.subr.mxu0 0.0
        %1866 = vmatpush1.msra.mxu0 %v1856
        %1867 = vmatprep.subr.mxu0 0.0
        %1868 = vmatpush1.msra.mxu0 %v1855
        %1869 = vmatprep.subr.mxu0 0.0
        %1870 = vmatpush1.msra.mxu0 %v1854
        %1871 = vmatprep.subr.mxu0 0.0
        %1872 = vmatpush1.msra.mxu0 %v1853
        %1873 = vmatprep.subr.mxu0 0.0
        %1874 = vmatpush1.msra.mxu0 %v1852
        %1875 = vmatprep.subr.mxu0 0.0
        %1876 = vmatpush1.msra.mxu0 %v1851
        %1877 = vmatprep.subr.mxu0 0.0
        %1878 = vmatpush1.msra.mxu0 %v1850
        %1879 = vmatprep.subr.mxu0 0.0
        %1880 = vmatpush1.msra.mxu0 %v1849
        %1881 = vmatprep.subr.mxu0 0.0
        %1882 = vmatpush1.msra.mxu0 %v1848
        %1883 = vmatprep.subr.mxu0 0.0
        %1884 = vmatpush1.msra.mxu0 %v1847
        %1885 = vmatprep.subr.mxu0 0.0
        %1886 = vmatpush1.msra.mxu0 %v1846
        %1887 = vmatprep.subr.mxu0 0.0
        %1888 = vmatpush1.msra.mxu0 %v1845
        %1889 = vmatprep.subr.mxu0 0.0
        %1890 = vmatpush1.msra.mxu0 %v1844
        %1891 = vmatprep.subr.mxu0 0.0
        %1892 = vmatpush1.msra.mxu0 %v1843
        %1893 = vmatprep.subr.mxu0 0.0
        %1894 = vmatpush1.msra.mxu0 %v1842
        %1895 = vmatprep.subr.mxu0 0.0
        %1896 = vmatpush1.msra.mxu0 %v1841
        %1897 = vmatprep.subr.mxu0 0.0
        %1898 = vmatpush2.msra.mxu0 0.0
        %1899 = vmatprep.subr.mxu0 0.0
        %1900 = vmatpush2.msra.mxu0 0.0
        %1901 = vmatprep.subr.mxu0 0.0
        %1902 = vmatpush2.msra.mxu0 0.0
        %1903 = vmatprep.subr.mxu0 0.0
        %1904 = vmatpush2.msra.mxu0 0.0
        %1905 = vmatprep.subr.mxu0 0.0
        %1906 = vmatpush2.msra.mxu0 0.0
        %1907 = vmatprep.subr.mxu0 0.0
        %1908 = vmatpush2.msra.mxu0 0.0
        %1909 = vmatprep.subr.mxu0 0.0
        %1910 = vmatpush2.msra.mxu0 0.0
        %1911 = vmatprep.subr.mxu0 0.0
        %1912 = vmatpush2.msra.mxu0 0.0
        %1913 = vmatprep.subr.mxu0 0.0
        %1914 = vmatpush2.msra.mxu0 0.0
        %1915 = vmatprep.subr.mxu0 0.0
        %1916 = vmatpush2.msra.mxu0 0.0
        %1917 = vmatprep.subr.mxu0 0.0
        %1918 = vmatpush2.msra.mxu0 0.0
        %1919 = vmatprep.subr.mxu0 0.0
        %1920 = vmatpush2.msra.mxu0 0.0
        %1921 = vmatprep.subr.mxu0 0.0
        %1922 = vmatpush2.msra.mxu0 0.0
        %1923 = vmatprep.subr.mxu0 0.0
        %1924 = vmatpush2.msra.mxu0 0.0
        %1925 = vmatprep.subr.mxu0 0.0
        %1926 = vmatpush2.msra.mxu0 0.0
        %1927 = vmatprep.subr.mxu0 0.0
        %1928 = vmatpush2.msra.mxu0 0.0
        %1929 = vmatprep.mubr.f32.mxu0 0.0
        %1930 = vmatmul.mubr.f32.gmra.mxu0 %v691
        %v1931 = vpop.f32.mrf.mxu0
        %v1932 = vadd.f32 %v1863, %v1931
        %v1933 = vpop.f32.mrf.mxu0
        %1934 = vdwg.mxu0
        %s1935 = scalar_lea.vmem [#allocation10], 256
        %v1936 = vld [vmem:[%s1935] sm:$0xff]
        %v1937 = vld [vmem:[%s1935 + $0x8] sm:$0xff]
        %v1938 = vld [vmem:[%s1935 + $0x10] sm:$0xff]
        %v1939 = vld [vmem:[%s1935 + $0x18] sm:$0xff]
        %v1940 = vld [vmem:[%s1935 + $0x20] sm:$0xff]
        %v1941 = vld [vmem:[%s1935 + $0x28] sm:$0xff]
        %v1942 = vld [vmem:[%s1935 + $0x30] sm:$0xff]
        %v1943 = vld [vmem:[%s1935 + $0x38] sm:$0xff]
        %v1944 = vld [vmem:[%s1935 + $0x40] sm:$0xff]
        %v1945 = vld [vmem:[%s1935 + $0x48] sm:$0xff]
        %v1946 = vld [vmem:[%s1935 + $0x50] sm:$0xff]
        %v1947 = vld [vmem:[%s1935 + $0x58] sm:$0xff]
        %v1948 = vld [vmem:[%s1935 + $0x60] sm:$0xff]
        %v1949 = vld [vmem:[%s1935 + $0x68] sm:$0xff]
        %v1950 = vld [vmem:[%s1935 + $0x70] sm:$0xff]
        %v1951 = vld [vmem:[%s1935 + $0x78] sm:$0xff]
        %s1952 = scalar_lea.vmem %s7, 2
        %v1953 = vld [vmem:[%s1952] sm:$0x1]
        %v1955 = vlaneseq
        %v1956 = vshrl.u32 %v1955, 7
        %v1957 = vsub.s32 0, %v1956
        %v1958 = vrot.slane %v1953, %v1957
        %1960 = vmatprep.subr.mxu0 0.0
        %1961 = vmatpush1.msra.mxu0 %v1951
        %1962 = vmatprep.subr.mxu0 0.0
        %1963 = vmatpush1.msra.mxu0 %v1950
        %1964 = vmatprep.subr.mxu0 0.0
        %1965 = vmatpush1.msra.mxu0 %v1949
        %1966 = vmatprep.subr.mxu0 0.0
        %1967 = vmatpush1.msra.mxu0 %v1948
        %1968 = vmatprep.subr.mxu0 0.0
        %1969 = vmatpush1.msra.mxu0 %v1947
        %1970 = vmatprep.subr.mxu0 0.0
        %1971 = vmatpush1.msra.mxu0 %v1946
        %1972 = vmatprep.subr.mxu0 0.0
        %1973 = vmatpush1.msra.mxu0 %v1945
        %1974 = vmatprep.subr.mxu0 0.0
        %1975 = vmatpush1.msra.mxu0 %v1944
        %1976 = vmatprep.subr.mxu0 0.0
        %1977 = vmatpush1.msra.mxu0 %v1943
        %1978 = vmatprep.subr.mxu0 0.0
        %1979 = vmatpush1.msra.mxu0 %v1942
        %1980 = vmatprep.subr.mxu0 0.0
        %1981 = vmatpush1.msra.mxu0 %v1941
        %1982 = vmatprep.subr.mxu0 0.0
        %1983 = vmatpush1.msra.mxu0 %v1940
        %1984 = vmatprep.subr.mxu0 0.0
        %1985 = vmatpush1.msra.mxu0 %v1939
        %1986 = vmatprep.subr.mxu0 0.0
        %1987 = vmatpush1.msra.mxu0 %v1938
        %1988 = vmatprep.subr.mxu0 0.0
        %1989 = vmatpush1.msra.mxu0 %v1937
        %1990 = vmatprep.subr.mxu0 0.0
        %1991 = vmatpush1.msra.mxu0 %v1936
        %1992 = vmatprep.subr.mxu0 0.0
        %1993 = vmatpush2.msra.mxu0 0.0
        %1994 = vmatprep.subr.mxu0 0.0
        %1995 = vmatpush2.msra.mxu0 0.0
        %1996 = vmatprep.subr.mxu0 0.0
        %1997 = vmatpush2.msra.mxu0 0.0
        %1998 = vmatprep.subr.mxu0 0.0
        %1999 = vmatpush2.msra.mxu0 0.0
        %2000 = vmatprep.subr.mxu0 0.0
        %2001 = vmatpush2.msra.mxu0 0.0
        %2002 = vmatprep.subr.mxu0 0.0
        %2003 = vmatpush2.msra.mxu0 0.0
        %2004 = vmatprep.subr.mxu0 0.0
        %2005 = vmatpush2.msra.mxu0 0.0
        %2006 = vmatprep.subr.mxu0 0.0
        %2007 = vmatpush2.msra.mxu0 0.0
        %2008 = vmatprep.subr.mxu0 0.0
        %2009 = vmatpush2.msra.mxu0 0.0
        %2010 = vmatprep.subr.mxu0 0.0
        %2011 = vmatpush2.msra.mxu0 0.0
        %2012 = vmatprep.subr.mxu0 0.0
        %2013 = vmatpush2.msra.mxu0 0.0
        %2014 = vmatprep.subr.mxu0 0.0
        %2015 = vmatpush2.msra.mxu0 0.0
        %2016 = vmatprep.subr.mxu0 0.0
        %2017 = vmatpush2.msra.mxu0 0.0
        %2018 = vmatprep.subr.mxu0 0.0
        %2019 = vmatpush2.msra.mxu0 0.0
        %2020 = vmatprep.subr.mxu0 0.0
        %2021 = vmatpush2.msra.mxu0 0.0
        %2022 = vmatprep.subr.mxu0 0.0
        %2023 = vmatpush2.msra.mxu0 0.0
        %2024 = vmatprep.mubr.f32.mxu0 0.0
        %2025 = vmatmul.mubr.f32.gmra.mxu0 %v691
        %v2026 = vpop.f32.mrf.mxu0
        %v2027 = vadd.f32 %v1958, %v2026
        %v2028 = vpop.f32.mrf.mxu0
        %2029 = vdwg.mxu0
        %2030 = vmatprep.subr.mxu0 0.0
        %2031 = vmatpush1.xpose.msra.mxu0 0.0
        %2032 = vmatprep.subr.mxu0 0.0
        %2033 = vmatpush1.xpose.msra.mxu0 0.0
        %2034 = vmatprep.subr.mxu0 0.0
        %2035 = vmatpush1.xpose.msra.mxu0 0.0
        %2036 = vmatprep.subr.mxu0 0.0
        %2037 = vmatpush1.xpose.msra.mxu0 0.0
        %2038 = vmatprep.subr.mxu0 0.0
        %2039 = vmatpush1.xpose.msra.mxu0 0.0
        %2040 = vmatprep.subr.mxu0 0.0
        %2041 = vmatpush1.xpose.msra.mxu0 0.0
        %2042 = vmatprep.subr.mxu0 0.0
        %2043 = vmatpush1.xpose.msra.mxu0 0.0
        %2044 = vmatprep.subr.mxu0 0.0
        %2045 = vmatpush1.xpose.msra.mxu0 0.0
        %2046 = vmatprep.subr.mxu0 0.0
        %2047 = vmatpush1.xpose.msra.mxu0 0.0
        %2048 = vmatprep.subr.mxu0 0.0
        %2049 = vmatpush1.xpose.msra.mxu0 0.0
        %2050 = vmatprep.subr.mxu0 0.0
        %2051 = vmatpush1.xpose.msra.mxu0 0.0
        %2052 = vmatprep.subr.mxu0 0.0
        %2053 = vmatpush1.xpose.msra.mxu0 0.0
        %2054 = vmatprep.subr.mxu0 0.0
        %2055 = vmatpush1.xpose.msra.mxu0 0.0
        %2056 = vmatprep.subr.mxu0 0.0
        %2057 = vmatpush1.xpose.msra.mxu0 0.0
        %2058 = vmatprep.subr.mxu0 0.0
        %2059 = vmatpush1.xpose.msra.mxu0 0.0
        %2060 = vmatprep.subr.mxu0 0.0
        %2061 = vmatpush1.xpose.msra.mxu0 %v1932
        %2062 = vmatprep.subr.mxu0 0.0
        %2063 = vmatpush2.xpose.msra.mxu0 0.0
        %2064 = vmatprep.subr.mxu0 0.0
        %2065 = vmatpush2.xpose.msra.mxu0 0.0
        %2066 = vmatprep.subr.mxu0 0.0
        %2067 = vmatpush2.xpose.msra.mxu0 0.0
        %2068 = vmatprep.subr.mxu0 0.0
        %2069 = vmatpush2.xpose.msra.mxu0 0.0
        %2070 = vmatprep.subr.mxu0 0.0
        %2071 = vmatpush2.xpose.msra.mxu0 0.0
        %2072 = vmatprep.subr.mxu0 0.0
        %2073 = vmatpush2.xpose.msra.mxu0 0.0
        %2074 = vmatprep.subr.mxu0 0.0
        %2075 = vmatpush2.xpose.msra.mxu0 0.0
        %2076 = vmatprep.subr.mxu0 0.0
        %2077 = vmatpush2.xpose.msra.mxu0 0.0
        %2078 = vmatprep.subr.mxu0 0.0
        %2079 = vmatpush2.xpose.msra.mxu0 0.0
        %2080 = vmatprep.subr.mxu0 0.0
        %2081 = vmatpush2.xpose.msra.mxu0 0.0
        %2082 = vmatprep.subr.mxu0 0.0
        %2083 = vmatpush2.xpose.msra.mxu0 0.0
        %2084 = vmatprep.subr.mxu0 0.0
        %2085 = vmatpush2.xpose.msra.mxu0 0.0
        %2086 = vmatprep.subr.mxu0 0.0
        %2087 = vmatpush2.xpose.msra.mxu0 0.0
        %2088 = vmatprep.subr.mxu0 0.0
        %2089 = vmatpush2.xpose.msra.mxu0 0.0
        %2090 = vmatprep.subr.mxu0 0.0
        %2091 = vmatpush2.xpose.msra.mxu0 0.0
        %2092 = vmatprep.subr.mxu0 0.0
        %2093 = vmatpush2.xpose.msra.mxu0 0.0
        %2094 = vmatprep.mubr.f32.mxu0 0.0
        %2095 = vmatmul.mubr.f32.gmra.mxu0 %v1839
        %v2096 = vpop.f32.mrf.mxu0
        %v2097 = vadd.f32 %v692, %v2096
        %v2098 = vpop.f32.mrf.mxu0
        %2099 = vdwg.mxu0
        %v2100 = vsel %vm1046, %v2097, -inf
        %2101 = vmax.xlane.f32.xlu0 %v2100
        %v2102 = vpop.xlane.xlu0 %2101
        %v2103 = vsub.f32 %v2097, %v2102
        %v2104 = vmul.f32 %v2103, 1.442695
        %v2105 = vpow.pop %v2104
        %v2106 = vsel %vm1046, %v2105, 0.0
        %2107 = vadd.xlane.f32.xlu0 %v2106
        %v2108 = vpop.xlane.xlu0 %2107
        %v2109 = vrcp.pop %v2108
        %v2110 = vmul.f32 %v2105, %v2109
        %v2112 = vsel %vm1046, %v2110, 0
        %2114 = vmatprep.subr.mxu0 0.0
        %2115 = vmatpush1.msra.mxu0 0.0
        %2116 = vmatprep.subr.mxu0 0.0
        %2117 = vmatpush1.msra.mxu0 0.0
        %2118 = vmatprep.subr.mxu0 0.0
        %2119 = vmatpush1.msra.mxu0 0.0
        %2120 = vmatprep.subr.mxu0 0.0
        %2121 = vmatpush1.msra.mxu0 0.0
        %2122 = vmatprep.subr.mxu0 0.0
        %2123 = vmatpush1.msra.mxu0 0.0
        %2124 = vmatprep.subr.mxu0 0.0
        %2125 = vmatpush1.msra.mxu0 0.0
        %2126 = vmatprep.subr.mxu0 0.0
        %2127 = vmatpush1.msra.mxu0 0.0
        %2128 = vmatprep.subr.mxu0 0.0
        %2129 = vmatpush1.msra.mxu0 0.0
        %2130 = vmatprep.subr.mxu0 0.0
        %2131 = vmatpush1.msra.mxu0 0.0
        %2132 = vmatprep.subr.mxu0 0.0
        %2133 = vmatpush1.msra.mxu0 0.0
        %2134 = vmatprep.subr.mxu0 0.0
        %2135 = vmatpush1.msra.mxu0 0.0
        %2136 = vmatprep.subr.mxu0 0.0
        %2137 = vmatpush1.msra.mxu0 0.0
        %2138 = vmatprep.subr.mxu0 0.0
        %2139 = vmatpush1.msra.mxu0 0.0
        %2140 = vmatprep.subr.mxu0 0.0
        %2141 = vmatpush1.msra.mxu0 0.0
        %2142 = vmatprep.subr.mxu0 0.0
        %2143 = vmatpush1.msra.mxu0 0.0
        %2144 = vmatprep.subr.mxu0 0.0
        %2145 = vmatpush1.msra.mxu0 %v2027
        %2146 = vmatprep.subr.mxu0 0.0
        %2147 = vmatpush2.msra.mxu0 0.0
        %2148 = vmatprep.subr.mxu0 0.0
        %2149 = vmatpush2.msra.mxu0 0.0
        %2150 = vmatprep.subr.mxu0 0.0
        %2151 = vmatpush2.msra.mxu0 0.0
        %2152 = vmatprep.subr.mxu0 0.0
        %2153 = vmatpush2.msra.mxu0 0.0
        %2154 = vmatprep.subr.mxu0 0.0
        %2155 = vmatpush2.msra.mxu0 0.0
        %2156 = vmatprep.subr.mxu0 0.0
        %2157 = vmatpush2.msra.mxu0 0.0
        %2158 = vmatprep.subr.mxu0 0.0
        %2159 = vmatpush2.msra.mxu0 0.0
        %2160 = vmatprep.subr.mxu0 0.0
        %2161 = vmatpush2.msra.mxu0 0.0
        %2162 = vmatprep.subr.mxu0 0.0
        %2163 = vmatpush2.msra.mxu0 0.0
        %2164 = vmatprep.subr.mxu0 0.0
        %2165 = vmatpush2.msra.mxu0 0.0
        %2166 = vmatprep.subr.mxu0 0.0
        %2167 = vmatpush2.msra.mxu0 0.0
        %2168 = vmatprep.subr.mxu0 0.0
        %2169 = vmatpush2.msra.mxu0 0.0
        %2170 = vmatprep.subr.mxu0 0.0
        %2171 = vmatpush2.msra.mxu0 0.0
        %2172 = vmatprep.subr.mxu0 0.0
        %2173 = vmatpush2.msra.mxu0 0.0
        %2174 = vmatprep.subr.mxu0 0.0
        %2175 = vmatpush2.msra.mxu0 0.0
        %2176 = vmatprep.subr.mxu0 0.0
        %2177 = vmatpush2.msra.mxu0 0.0
        %2178 = vmatprep.mubr.f32.mxu0 0.0
        %2179 = vmatmul.mubr.f32.gmra.mxu0 %v2112
        %v2180 = vpop.f32.mrf.mxu0
        %v2181 = vadd.f32 0.0, %v2180
        %v2182 = vpop.f32.mrf.mxu0
        %2183 = vdwg.mxu0
        %s2184 = scalar_lea.vmem [#allocation11], 256
        %v2185 = vld [vmem:[%s2184] sm:$0xff]
        %v2186 = vld [vmem:[%s2184 + $0x8] sm:$0xff]
        %v2187 = vld [vmem:[%s2184 + $0x10] sm:$0xff]
        %v2188 = vld [vmem:[%s2184 + $0x18] sm:$0xff]
        %v2189 = vld [vmem:[%s2184 + $0x20] sm:$0xff]
        %v2190 = vld [vmem:[%s2184 + $0x28] sm:$0xff]
        %v2191 = vld [vmem:[%s2184 + $0x30] sm:$0xff]
        %v2192 = vld [vmem:[%s2184 + $0x38] sm:$0xff]
        %v2193 = vld [vmem:[%s2184 + $0x40] sm:$0xff]
        %v2194 = vld [vmem:[%s2184 + $0x48] sm:$0xff]
        %v2195 = vld [vmem:[%s2184 + $0x50] sm:$0xff]
        %v2196 = vld [vmem:[%s2184 + $0x58] sm:$0xff]
        %v2197 = vld [vmem:[%s2184 + $0x60] sm:$0xff]
        %v2198 = vld [vmem:[%s2184 + $0x68] sm:$0xff]
        %v2199 = vld [vmem:[%s2184 + $0x70] sm:$0xff]
        %v2200 = vld [vmem:[%s2184 + $0x78] sm:$0xff]
        %2201 = vmatprep.subr.mxu0 0.0
        %2202 = vmatpush1.msra.mxu0 %v2200
        %2203 = vmatprep.subr.mxu0 0.0
        %2204 = vmatpush1.msra.mxu0 %v2199
        %2205 = vmatprep.subr.mxu0 0.0
        %2206 = vmatpush1.msra.mxu0 %v2198
        %2207 = vmatprep.subr.mxu0 0.0
        %2208 = vmatpush1.msra.mxu0 %v2197
        %2209 = vmatprep.subr.mxu0 0.0
        %2210 = vmatpush1.msra.mxu0 %v2196
        %2211 = vmatprep.subr.mxu0 0.0
        %2212 = vmatpush1.msra.mxu0 %v2195
        %2213 = vmatprep.subr.mxu0 0.0
        %2214 = vmatpush1.msra.mxu0 %v2194
        %2215 = vmatprep.subr.mxu0 0.0
        %2216 = vmatpush1.msra.mxu0 %v2193
        %2217 = vmatprep.subr.mxu0 0.0
        %2218 = vmatpush1.msra.mxu0 %v2192
        %2219 = vmatprep.subr.mxu0 0.0
        %2220 = vmatpush1.msra.mxu0 %v2191
        %2221 = vmatprep.subr.mxu0 0.0
        %2222 = vmatpush1.msra.mxu0 %v2190
        %2223 = vmatprep.subr.mxu0 0.0
        %2224 = vmatpush1.msra.mxu0 %v2189
        %2225 = vmatprep.subr.mxu0 0.0
        %2226 = vmatpush1.msra.mxu0 %v2188
        %2227 = vmatprep.subr.mxu0 0.0
        %2228 = vmatpush1.msra.mxu0 %v2187
        %2229 = vmatprep.subr.mxu0 0.0
        %2230 = vmatpush1.msra.mxu0 %v2186
        %2231 = vmatprep.subr.mxu0 0.0
        %2232 = vmatpush1.msra.mxu0 %v2185
        %2233 = vmatprep.subr.mxu0 0.0
        %2234 = vmatpush2.msra.mxu0 0.0
        %2235 = vmatprep.subr.mxu0 0.0
        %2236 = vmatpush2.msra.mxu0 0.0
        %2237 = vmatprep.subr.mxu0 0.0
        %2238 = vmatpush2.msra.mxu0 0.0
        %2239 = vmatprep.subr.mxu0 0.0
        %2240 = vmatpush2.msra.mxu0 0.0
        %2241 = vmatprep.subr.mxu0 0.0
        %2242 = vmatpush2.msra.mxu0 0.0
        %2243 = vmatprep.subr.mxu0 0.0
        %2244 = vmatpush2.msra.mxu0 0.0
        %2245 = vmatprep.subr.mxu0 0.0
        %2246 = vmatpush2.msra.mxu0 0.0
        %2247 = vmatprep.subr.mxu0 0.0
        %2248 = vmatpush2.msra.mxu0 0.0
        %2249 = vmatprep.subr.mxu0 0.0
        %2250 = vmatpush2.msra.mxu0 0.0
        %2251 = vmatprep.subr.mxu0 0.0
        %2252 = vmatpush2.msra.mxu0 0.0
        %2253 = vmatprep.subr.mxu0 0.0
        %2254 = vmatpush2.msra.mxu0 0.0
        %2255 = vmatprep.subr.mxu0 0.0
        %2256 = vmatpush2.msra.mxu0 0.0
        %2257 = vmatprep.subr.mxu0 0.0
        %2258 = vmatpush2.msra.mxu0 0.0
        %2259 = vmatprep.subr.mxu0 0.0
        %2260 = vmatpush2.msra.mxu0 0.0
        %2261 = vmatprep.subr.mxu0 0.0
        %2262 = vmatpush2.msra.mxu0 0.0
        %2263 = vmatprep.subr.mxu0 0.0
        %2264 = vmatpush2.msra.mxu0 0.0
        %2265 = vmatprep.mubr.f32.mxu0 0.0
        %2266 = vmatmul.mubr.f32.gmra.mxu0 %v2181
        %v2267 = vpop.f32.mrf.mxu0
        %v2268 = vadd.f32 0.0, %v2267
        %v2269 = vpop.f32.mrf.mxu0
        %2270 = vdwg.mxu0
        %v2271 = vadd.f32 %v1741, %v2268
        %s2272 = scalar_lea.vmem [#allocation7], 384
        %v2273 = vld [vmem:[%s2272] sm:$0xff]
        %v2274 = vld [vmem:[%s2272 + $0x8] sm:$0xff]
        %v2275 = vld [vmem:[%s2272 + $0x10] sm:$0xff]
        %v2276 = vld [vmem:[%s2272 + $0x18] sm:$0xff]
        %v2277 = vld [vmem:[%s2272 + $0x20] sm:$0xff]
        %v2278 = vld [vmem:[%s2272 + $0x28] sm:$0xff]
        %v2279 = vld [vmem:[%s2272 + $0x30] sm:$0xff]
        %v2280 = vld [vmem:[%s2272 + $0x38] sm:$0xff]
        %v2281 = vld [vmem:[%s2272 + $0x40] sm:$0xff]
        %v2282 = vld [vmem:[%s2272 + $0x48] sm:$0xff]
        %v2283 = vld [vmem:[%s2272 + $0x50] sm:$0xff]
        %v2284 = vld [vmem:[%s2272 + $0x58] sm:$0xff]
        %v2285 = vld [vmem:[%s2272 + $0x60] sm:$0xff]
        %v2286 = vld [vmem:[%s2272 + $0x68] sm:$0xff]
        %v2287 = vld [vmem:[%s2272 + $0x70] sm:$0xff]
        %v2288 = vld [vmem:[%s2272 + $0x78] sm:$0xff]
        %s2289 = scalar_lea.vmem %s3, 3
        %v2290 = vld [vmem:[%s2289] sm:$0x1]
        %v2292 = vlaneseq
        %v2293 = vshrl.u32 %v2292, 7
        %v2294 = vsub.s32 0, %v2293
        %v2295 = vrot.slane %v2290, %v2294
        %2297 = vmatprep.subr.mxu0 0.0
        %2298 = vmatpush1.msra.mxu0 %v2288
        %2299 = vmatprep.subr.mxu0 0.0
        %2300 = vmatpush1.msra.mxu0 %v2287
        %2301 = vmatprep.subr.mxu0 0.0
        %2302 = vmatpush1.msra.mxu0 %v2286
        %2303 = vmatprep.subr.mxu0 0.0
        %2304 = vmatpush1.msra.mxu0 %v2285
        %2305 = vmatprep.subr.mxu0 0.0
        %2306 = vmatpush1.msra.mxu0 %v2284
        %2307 = vmatprep.subr.mxu0 0.0
        %2308 = vmatpush1.msra.mxu0 %v2283
        %2309 = vmatprep.subr.mxu0 0.0
        %2310 = vmatpush1.msra.mxu0 %v2282
        %2311 = vmatprep.subr.mxu0 0.0
        %2312 = vmatpush1.msra.mxu0 %v2281
        %2313 = vmatprep.subr.mxu0 0.0
        %2314 = vmatpush1.msra.mxu0 %v2280
        %2315 = vmatprep.subr.mxu0 0.0
        %2316 = vmatpush1.msra.mxu0 %v2279
        %2317 = vmatprep.subr.mxu0 0.0
        %2318 = vmatpush1.msra.mxu0 %v2278
        %2319 = vmatprep.subr.mxu0 0.0
        %2320 = vmatpush1.msra.mxu0 %v2277
        %2321 = vmatprep.subr.mxu0 0.0
        %2322 = vmatpush1.msra.mxu0 %v2276
        %2323 = vmatprep.subr.mxu0 0.0
        %2324 = vmatpush1.msra.mxu0 %v2275
        %2325 = vmatprep.subr.mxu0 0.0
        %2326 = vmatpush1.msra.mxu0 %v2274
        %2327 = vmatprep.subr.mxu0 0.0
        %2328 = vmatpush1.msra.mxu0 %v2273
        %2329 = vmatprep.subr.mxu0 0.0
        %2330 = vmatpush2.msra.mxu0 0.0
        %2331 = vmatprep.subr.mxu0 0.0
        %2332 = vmatpush2.msra.mxu0 0.0
        %2333 = vmatprep.subr.mxu0 0.0
        %2334 = vmatpush2.msra.mxu0 0.0
        %2335 = vmatprep.subr.mxu0 0.0
        %2336 = vmatpush2.msra.mxu0 0.0
        %2337 = vmatprep.subr.mxu0 0.0
        %2338 = vmatpush2.msra.mxu0 0.0
        %2339 = vmatprep.subr.mxu0 0.0
        %2340 = vmatpush2.msra.mxu0 0.0
        %2341 = vmatprep.subr.mxu0 0.0
        %2342 = vmatpush2.msra.mxu0 0.0
        %2343 = vmatprep.subr.mxu0 0.0
        %2344 = vmatpush2.msra.mxu0 0.0
        %2345 = vmatprep.subr.mxu0 0.0
        %2346 = vmatpush2.msra.mxu0 0.0
        %2347 = vmatprep.subr.mxu0 0.0
        %2348 = vmatpush2.msra.mxu0 0.0
        %2349 = vmatprep.subr.mxu0 0.0
        %2350 = vmatpush2.msra.mxu0 0.0
        %2351 = vmatprep.subr.mxu0 0.0
        %2352 = vmatpush2.msra.mxu0 0.0
        %2353 = vmatprep.subr.mxu0 0.0
        %2354 = vmatpush2.msra.mxu0 0.0
        %2355 = vmatprep.subr.mxu0 0.0
        %2356 = vmatpush2.msra.mxu0 0.0
        %2357 = vmatprep.subr.mxu0 0.0
        %2358 = vmatpush2.msra.mxu0 0.0
        %2359 = vmatprep.subr.mxu0 0.0
        %2360 = vmatpush2.msra.mxu0 0.0
        %2361 = vmatprep.mubr.f32.mxu0 0.0
        %2362 = vmatmul.mubr.f32.gmra.mxu0 %v691
        %v2363 = vpop.f32.mrf.mxu0
        %v2364 = vadd.f32 %v2295, %v2363
        %v2365 = vpop.f32.mrf.mxu0
        %2366 = vdwg.mxu0
        %v2367 = vmul.f32 %v2364, 0.35355338
        %s2368 = scalar_lea.vmem [#allocation8], 384
        %v2369 = vld [vmem:[%s2368] sm:$0xff]
        %v2370 = vld [vmem:[%s2368 + $0x8] sm:$0xff]
        %v2371 = vld [vmem:[%s2368 + $0x10] sm:$0xff]
        %v2372 = vld [vmem:[%s2368 + $0x18] sm:$0xff]
        %v2373 = vld [vmem:[%s2368 + $0x20] sm:$0xff]
        %v2374 = vld [vmem:[%s2368 + $0x28] sm:$0xff]
        %v2375 = vld [vmem:[%s2368 + $0x30] sm:$0xff]
        %v2376 = vld [vmem:[%s2368 + $0x38] sm:$0xff]
        %v2377 = vld [vmem:[%s2368 + $0x40] sm:$0xff]
        %v2378 = vld [vmem:[%s2368 + $0x48] sm:$0xff]
        %v2379 = vld [vmem:[%s2368 + $0x50] sm:$0xff]
        %v2380 = vld [vmem:[%s2368 + $0x58] sm:$0xff]
        %v2381 = vld [vmem:[%s2368 + $0x60] sm:$0xff]
        %v2382 = vld [vmem:[%s2368 + $0x68] sm:$0xff]
        %v2383 = vld [vmem:[%s2368 + $0x70] sm:$0xff]
        %v2384 = vld [vmem:[%s2368 + $0x78] sm:$0xff]
        %s2385 = scalar_lea.vmem %s5, 3
        %v2386 = vld [vmem:[%s2385] sm:$0x1]
        %v2388 = vlaneseq
        %v2389 = vshrl.u32 %v2388, 7
        %v2390 = vsub.s32 0, %v2389
        %v2391 = vrot.slane %v2386, %v2390
        %2393 = vmatprep.subr.mxu0 0.0
        %2394 = vmatpush1.msra.mxu0 %v2384
        %2395 = vmatprep.subr.mxu0 0.0
        %2396 = vmatpush1.msra.mxu0 %v2383
        %2397 = vmatprep.subr.mxu0 0.0
        %2398 = vmatpush1.msra.mxu0 %v2382
        %2399 = vmatprep.subr.mxu0 0.0
        %2400 = vmatpush1.msra.mxu0 %v2381
        %2401 = vmatprep.subr.mxu0 0.0
        %2402 = vmatpush1.msra.mxu0 %v2380
        %2403 = vmatprep.subr.mxu0 0.0
        %2404 = vmatpush1.msra.mxu0 %v2379
        %2405 = vmatprep.subr.mxu0 0.0
        %2406 = vmatpush1.msra.mxu0 %v2378
        %2407 = vmatprep.subr.mxu0 0.0
        %2408 = vmatpush1.msra.mxu0 %v2377
        %2409 = vmatprep.subr.mxu0 0.0
        %2410 = vmatpush1.msra.mxu0 %v2376
        %2411 = vmatprep.subr.mxu0 0.0
        %2412 = vmatpush1.msra.mxu0 %v2375
        %2413 = vmatprep.subr.mxu0 0.0
        %2414 = vmatpush1.msra.mxu0 %v2374
        %2415 = vmatprep.subr.mxu0 0.0
        %2416 = vmatpush1.msra.mxu0 %v2373
        %2417 = vmatprep.subr.mxu0 0.0
        %2418 = vmatpush1.msra.mxu0 %v2372
        %2419 = vmatprep.subr.mxu0 0.0
        %2420 = vmatpush1.msra.mxu0 %v2371
        %2421 = vmatprep.subr.mxu0 0.0
        %2422 = vmatpush1.msra.mxu0 %v2370
        %2423 = vmatprep.subr.mxu0 0.0
        %2424 = vmatpush1.msra.mxu0 %v2369
        %2425 = vmatprep.subr.mxu0 0.0
        %2426 = vmatpush2.msra.mxu0 0.0
        %2427 = vmatprep.subr.mxu0 0.0
        %2428 = vmatpush2.msra.mxu0 0.0
        %2429 = vmatprep.subr.mxu0 0.0
        %2430 = vmatpush2.msra.mxu0 0.0
        %2431 = vmatprep.subr.mxu0 0.0
        %2432 = vmatpush2.msra.mxu0 0.0
        %2433 = vmatprep.subr.mxu0 0.0
        %2434 = vmatpush2.msra.mxu0 0.0
        %2435 = vmatprep.subr.mxu0 0.0
        %2436 = vmatpush2.msra.mxu0 0.0
        %2437 = vmatprep.subr.mxu0 0.0
        %2438 = vmatpush2.msra.mxu0 0.0
        %2439 = vmatprep.subr.mxu0 0.0
        %2440 = vmatpush2.msra.mxu0 0.0
        %2441 = vmatprep.subr.mxu0 0.0
        %2442 = vmatpush2.msra.mxu0 0.0
        %2443 = vmatprep.subr.mxu0 0.0
        %2444 = vmatpush2.msra.mxu0 0.0
        %2445 = vmatprep.subr.mxu0 0.0
        %2446 = vmatpush2.msra.mxu0 0.0
        %2447 = vmatprep.subr.mxu0 0.0
        %2448 = vmatpush2.msra.mxu0 0.0
        %2449 = vmatprep.subr.mxu0 0.0
        %2450 = vmatpush2.msra.mxu0 0.0
        %2451 = vmatprep.subr.mxu0 0.0
        %2452 = vmatpush2.msra.mxu0 0.0
        %2453 = vmatprep.subr.mxu0 0.0
        %2454 = vmatpush2.msra.mxu0 0.0
        %2455 = vmatprep.subr.mxu0 0.0
        %2456 = vmatpush2.msra.mxu0 0.0
        %2457 = vmatprep.mubr.f32.mxu0 0.0
        %2458 = vmatmul.mubr.f32.gmra.mxu0 %v691
        %v2459 = vpop.f32.mrf.mxu0
        %v2460 = vadd.f32 %v2391, %v2459
        %v2461 = vpop.f32.mrf.mxu0
        %2462 = vdwg.mxu0
        %s2463 = scalar_lea.vmem [#allocation10], 384
        %v2464 = vld [vmem:[%s2463] sm:$0xff]
        %v2465 = vld [vmem:[%s2463 + $0x8] sm:$0xff]
        %v2466 = vld [vmem:[%s2463 + $0x10] sm:$0xff]
        %v2467 = vld [vmem:[%s2463 + $0x18] sm:$0xff]
        %v2468 = vld [vmem:[%s2463 + $0x20] sm:$0xff]
        %v2469 = vld [vmem:[%s2463 + $0x28] sm:$0xff]
        %v2470 = vld [vmem:[%s2463 + $0x30] sm:$0xff]
        %v2471 = vld [vmem:[%s2463 + $0x38] sm:$0xff]
        %v2472 = vld [vmem:[%s2463 + $0x40] sm:$0xff]
        %v2473 = vld [vmem:[%s2463 + $0x48] sm:$0xff]
        %v2474 = vld [vmem:[%s2463 + $0x50] sm:$0xff]
        %v2475 = vld [vmem:[%s2463 + $0x58] sm:$0xff]
        %v2476 = vld [vmem:[%s2463 + $0x60] sm:$0xff]
        %v2477 = vld [vmem:[%s2463 + $0x68] sm:$0xff]
        %v2478 = vld [vmem:[%s2463 + $0x70] sm:$0xff]
        %v2479 = vld [vmem:[%s2463 + $0x78] sm:$0xff]
        %s2480 = scalar_lea.vmem %s7, 3
        %v2481 = vld [vmem:[%s2480] sm:$0x1]
        %v2483 = vlaneseq
        %v2484 = vshrl.u32 %v2483, 7
        %v2485 = vsub.s32 0, %v2484
        %v2486 = vrot.slane %v2481, %v2485
        %2488 = vmatprep.subr.mxu0 0.0
        %2489 = vmatpush1.msra.mxu0 %v2479
        %2490 = vmatprep.subr.mxu0 0.0
        %2491 = vmatpush1.msra.mxu0 %v2478
        %2492 = vmatprep.subr.mxu0 0.0
        %2493 = vmatpush1.msra.mxu0 %v2477
        %2494 = vmatprep.subr.mxu0 0.0
        %2495 = vmatpush1.msra.mxu0 %v2476
        %2496 = vmatprep.subr.mxu0 0.0
        %2497 = vmatpush1.msra.mxu0 %v2475
        %2498 = vmatprep.subr.mxu0 0.0
        %2499 = vmatpush1.msra.mxu0 %v2474
        %2500 = vmatprep.subr.mxu0 0.0
        %2501 = vmatpush1.msra.mxu0 %v2473
        %2502 = vmatprep.subr.mxu0 0.0
        %2503 = vmatpush1.msra.mxu0 %v2472
        %2504 = vmatprep.subr.mxu0 0.0
        %2505 = vmatpush1.msra.mxu0 %v2471
        %2506 = vmatprep.subr.mxu0 0.0
        %2507 = vmatpush1.msra.mxu0 %v2470
        %2508 = vmatprep.subr.mxu0 0.0
        %2509 = vmatpush1.msra.mxu0 %v2469
        %2510 = vmatprep.subr.mxu0 0.0
        %2511 = vmatpush1.msra.mxu0 %v2468
        %2512 = vmatprep.subr.mxu0 0.0
        %2513 = vmatpush1.msra.mxu0 %v2467
        %2514 = vmatprep.subr.mxu0 0.0
        %2515 = vmatpush1.msra.mxu0 %v2466
        %2516 = vmatprep.subr.mxu0 0.0
        %2517 = vmatpush1.msra.mxu0 %v2465
        %2518 = vmatprep.subr.mxu0 0.0
        %2519 = vmatpush1.msra.mxu0 %v2464
        %2520 = vmatprep.subr.mxu0 0.0
        %2521 = vmatpush2.msra.mxu0 0.0
        %2522 = vmatprep.subr.mxu0 0.0
        %2523 = vmatpush2.msra.mxu0 0.0
        %2524 = vmatprep.subr.mxu0 0.0
        %2525 = vmatpush2.msra.mxu0 0.0
        %2526 = vmatprep.subr.mxu0 0.0
        %2527 = vmatpush2.msra.mxu0 0.0
        %2528 = vmatprep.subr.mxu0 0.0
        %2529 = vmatpush2.msra.mxu0 0.0
        %2530 = vmatprep.subr.mxu0 0.0
        %2531 = vmatpush2.msra.mxu0 0.0
        %2532 = vmatprep.subr.mxu0 0.0
        %2533 = vmatpush2.msra.mxu0 0.0
        %2534 = vmatprep.subr.mxu0 0.0
        %2535 = vmatpush2.msra.mxu0 0.0
        %2536 = vmatprep.subr.mxu0 0.0
        %2537 = vmatpush2.msra.mxu0 0.0
        %2538 = vmatprep.subr.mxu0 0.0
        %2539 = vmatpush2.msra.mxu0 0.0
        %2540 = vmatprep.subr.mxu0 0.0
        %2541 = vmatpush2.msra.mxu0 0.0
        %2542 = vmatprep.subr.mxu0 0.0
        %2543 = vmatpush2.msra.mxu0 0.0
        %2544 = vmatprep.subr.mxu0 0.0
        %2545 = vmatpush2.msra.mxu0 0.0
        %2546 = vmatprep.subr.mxu0 0.0
        %2547 = vmatpush2.msra.mxu0 0.0
        %2548 = vmatprep.subr.mxu0 0.0
        %2549 = vmatpush2.msra.mxu0 0.0
        %2550 = vmatprep.subr.mxu0 0.0
        %2551 = vmatpush2.msra.mxu0 0.0
        %2552 = vmatprep.mubr.f32.mxu0 0.0
        %2553 = vmatmul.mubr.f32.gmra.mxu0 %v691
        %v2554 = vpop.f32.mrf.mxu0
        %v2555 = vadd.f32 %v2486, %v2554
        %v2556 = vpop.f32.mrf.mxu0
        %2557 = vdwg.mxu0
        %2558 = vmatprep.subr.mxu0 0.0
        %2559 = vmatpush1.xpose.msra.mxu0 0.0
        %2560 = vmatprep.subr.mxu0 0.0
        %2561 = vmatpush1.xpose.msra.mxu0 0.0
        %2562 = vmatprep.subr.mxu0 0.0
        %2563 = vmatpush1.xpose.msra.mxu0 0.0
        %2564 = vmatprep.subr.mxu0 0.0
        %2565 = vmatpush1.xpose.msra.mxu0 0.0
        %2566 = vmatprep.subr.mxu0 0.0
        %2567 = vmatpush1.xpose.msra.mxu0 0.0
        %2568 = vmatprep.subr.mxu0 0.0
        %2569 = vmatpush1.xpose.msra.mxu0 0.0
        %2570 = vmatprep.subr.mxu0 0.0
        %2571 = vmatpush1.xpose.msra.mxu0 0.0
        %2572 = vmatprep.subr.mxu0 0.0
        %2573 = vmatpush1.xpose.msra.mxu0 0.0
        %2574 = vmatprep.subr.mxu0 0.0
        %2575 = vmatpush1.xpose.msra.mxu0 0.0
        %2576 = vmatprep.subr.mxu0 0.0
        %2577 = vmatpush1.xpose.msra.mxu0 0.0
        %2578 = vmatprep.subr.mxu0 0.0
        %2579 = vmatpush1.xpose.msra.mxu0 0.0
        %2580 = vmatprep.subr.mxu0 0.0
        %2581 = vmatpush1.xpose.msra.mxu0 0.0
        %2582 = vmatprep.subr.mxu0 0.0
        %2583 = vmatpush1.xpose.msra.mxu0 0.0
        %2584 = vmatprep.subr.mxu0 0.0
        %2585 = vmatpush1.xpose.msra.mxu0 0.0
        %2586 = vmatprep.subr.mxu0 0.0
        %2587 = vmatpush1.xpose.msra.mxu0 0.0
        %2588 = vmatprep.subr.mxu0 0.0
        %2589 = vmatpush1.xpose.msra.mxu0 %v2460
        %2590 = vmatprep.subr.mxu0 0.0
        %2591 = vmatpush2.xpose.msra.mxu0 0.0
        %2592 = vmatprep.subr.mxu0 0.0
        %2593 = vmatpush2.xpose.msra.mxu0 0.0
        %2594 = vmatprep.subr.mxu0 0.0
        %2595 = vmatpush2.xpose.msra.mxu0 0.0
        %2596 = vmatprep.subr.mxu0 0.0
        %2597 = vmatpush2.xpose.msra.mxu0 0.0
        %2598 = vmatprep.subr.mxu0 0.0
        %2599 = vmatpush2.xpose.msra.mxu0 0.0
        %2600 = vmatprep.subr.mxu0 0.0
        %2601 = vmatpush2.xpose.msra.mxu0 0.0
        %2602 = vmatprep.subr.mxu0 0.0
        %2603 = vmatpush2.xpose.msra.mxu0 0.0
        %2604 = vmatprep.subr.mxu0 0.0
        %2605 = vmatpush2.xpose.msra.mxu0 0.0
        %2606 = vmatprep.subr.mxu0 0.0
        %2607 = vmatpush2.xpose.msra.mxu0 0.0
        %2608 = vmatprep.subr.mxu0 0.0
        %2609 = vmatpush2.xpose.msra.mxu0 0.0
        %2610 = vmatprep.subr.mxu0 0.0
        %2611 = vmatpush2.xpose.msra.mxu0 0.0
        %2612 = vmatprep.subr.mxu0 0.0
        %2613 = vmatpush2.xpose.msra.mxu0 0.0
        %2614 = vmatprep.subr.mxu0 0.0
        %2615 = vmatpush2.xpose.msra.mxu0 0.0
        %2616 = vmatprep.subr.mxu0 0.0
        %2617 = vmatpush2.xpose.msra.mxu0 0.0
        %2618 = vmatprep.subr.mxu0 0.0
        %2619 = vmatpush2.xpose.msra.mxu0 0.0
        %2620 = vmatprep.subr.mxu0 0.0
        %2621 = vmatpush2.xpose.msra.mxu0 0.0
        %2622 = vmatprep.mubr.f32.mxu0 0.0
        %2623 = vmatmul.mubr.f32.gmra.mxu0 %v2367
        %v2624 = vpop.f32.mrf.mxu0
        %v2625 = vadd.f32 %v692, %v2624
        %v2626 = vpop.f32.mrf.mxu0
        %2627 = vdwg.mxu0
        %v2628 = vsel %vm1046, %v2625, -inf
        %2629 = vmax.xlane.f32.xlu0 %v2628
        %v2630 = vpop.xlane.xlu0 %2629
        %v2631 = vsub.f32 %v2625, %v2630
        %v2632 = vmul.f32 %v2631, 1.442695
        %v2633 = vpow.pop %v2632
        %v2634 = vsel %vm1046, %v2633, 0.0
        %2635 = vadd.xlane.f32.xlu0 %v2634
        %v2636 = vpop.xlane.xlu0 %2635
        %v2637 = vrcp.pop %v2636
        %v2638 = vmul.f32 %v2633, %v2637
        %v2640 = vsel %vm1046, %v2638, 0
        %2642 = vmatprep.subr.mxu0 0.0
        %2643 = vmatpush1.msra.mxu0 0.0
        %2644 = vmatprep.subr.mxu0 0.0
        %2645 = vmatpush1.msra.mxu0 0.0
        %2646 = vmatprep.subr.mxu0 0.0
        %2647 = vmatpush1.msra.mxu0 0.0
        %2648 = vmatprep.subr.mxu0 0.0
        %2649 = vmatpush1.msra.mxu0 0.0
        %2650 = vmatprep.subr.mxu0 0.0
        %2651 = vmatpush1.msra.mxu0 0.0
        %2652 = vmatprep.subr.mxu0 0.0
        %2653 = vmatpush1.msra.mxu0 0.0
        %2654 = vmatprep.subr.mxu0 0.0
        %2655 = vmatpush1.msra.mxu0 0.0
        %2656 = vmatprep.subr.mxu0 0.0
        %2657 = vmatpush1.msra.mxu0 0.0
        %2658 = vmatprep.subr.mxu0 0.0
        %2659 = vmatpush1.msra.mxu0 0.0
        %2660 = vmatprep.subr.mxu0 0.0
        %2661 = vmatpush1.msra.mxu0 0.0
        %2662 = vmatprep.subr.mxu0 0.0
        %2663 = vmatpush1.msra.mxu0 0.0
        %2664 = vmatprep.subr.mxu0 0.0
        %2665 = vmatpush1.msra.mxu0 0.0
        %2666 = vmatprep.subr.mxu0 0.0
        %2667 = vmatpush1.msra.mxu0 0.0
        %2668 = vmatprep.subr.mxu0 0.0
        %2669 = vmatpush1.msra.mxu0 0.0
        %2670 = vmatprep.subr.mxu0 0.0
        %2671 = vmatpush1.msra.mxu0 0.0
        %2672 = vmatprep.subr.mxu0 0.0
        %2673 = vmatpush1.msra.mxu0 %v2555
        %2674 = vmatprep.subr.mxu0 0.0
        %2675 = vmatpush2.msra.mxu0 0.0
        %2676 = vmatprep.subr.mxu0 0.0
        %2677 = vmatpush2.msra.mxu0 0.0
        %2678 = vmatprep.subr.mxu0 0.0
        %2679 = vmatpush2.msra.mxu0 0.0
        %2680 = vmatprep.subr.mxu0 0.0
        %2681 = vmatpush2.msra.mxu0 0.0
        %2682 = vmatprep.subr.mxu0 0.0
        %2683 = vmatpush2.msra.mxu0 0.0
        %2684 = vmatprep.subr.mxu0 0.0
        %2685 = vmatpush2.msra.mxu0 0.0
        %2686 = vmatprep.subr.mxu0 0.0
        %2687 = vmatpush2.msra.mxu0 0.0
        %2688 = vmatprep.subr.mxu0 0.0
        %2689 = vmatpush2.msra.mxu0 0.0
        %2690 = vmatprep.subr.mxu0 0.0
        %2691 = vmatpush2.msra.mxu0 0.0
        %2692 = vmatprep.subr.mxu0 0.0
        %2693 = vmatpush2.msra.mxu0 0.0
        %2694 = vmatprep.subr.mxu0 0.0
        %2695 = vmatpush2.msra.mxu0 0.0
        %2696 = vmatprep.subr.mxu0 0.0
        %2697 = vmatpush2.msra.mxu0 0.0
        %2698 = vmatprep.subr.mxu0 0.0
        %2699 = vmatpush2.msra.mxu0 0.0
        %2700 = vmatprep.subr.mxu0 0.0
        %2701 = vmatpush2.msra.mxu0 0.0
        %2702 = vmatprep.subr.mxu0 0.0
        %2703 = vmatpush2.msra.mxu0 0.0
        %2704 = vmatprep.subr.mxu0 0.0
        %2705 = vmatpush2.msra.mxu0 0.0
        %2706 = vmatprep.mubr.f32.mxu0 0.0
        %2707 = vmatmul.mubr.f32.gmra.mxu0 %v2640
        %v2708 = vpop.f32.mrf.mxu0
        %v2709 = vadd.f32 0.0, %v2708
        %v2710 = vpop.f32.mrf.mxu0
        %2711 = vdwg.mxu0
        %s2712 = scalar_lea.vmem [#allocation11], 384
        %v2713 = vld [vmem:[%s2712] sm:$0xff]
        %v2714 = vld [vmem:[%s2712 + $0x8] sm:$0xff]
        %v2715 = vld [vmem:[%s2712 + $0x10] sm:$0xff]
        %v2716 = vld [vmem:[%s2712 + $0x18] sm:$0xff]
        %v2717 = vld [vmem:[%s2712 + $0x20] sm:$0xff]
        %v2718 = vld [vmem:[%s2712 + $0x28] sm:$0xff]
        %v2719 = vld [vmem:[%s2712 + $0x30] sm:$0xff]
        %v2720 = vld [vmem:[%s2712 + $0x38] sm:$0xff]
        %v2721 = vld [vmem:[%s2712 + $0x40] sm:$0xff]
        %v2722 = vld [vmem:[%s2712 + $0x48] sm:$0xff]
        %v2723 = vld [vmem:[%s2712 + $0x50] sm:$0xff]
        %v2724 = vld [vmem:[%s2712 + $0x58] sm:$0xff]
        %v2725 = vld [vmem:[%s2712 + $0x60] sm:$0xff]
        %v2726 = vld [vmem:[%s2712 + $0x68] sm:$0xff]
        %v2727 = vld [vmem:[%s2712 + $0x70] sm:$0xff]
        %v2728 = vld [vmem:[%s2712 + $0x78] sm:$0xff]
        %2729 = vmatprep.subr.mxu0 0.0
        %2730 = vmatpush1.msra.mxu0 %v2728
        %2731 = vmatprep.subr.mxu0 0.0
        %2732 = vmatpush1.msra.mxu0 %v2727
        %2733 = vmatprep.subr.mxu0 0.0
        %2734 = vmatpush1.msra.mxu0 %v2726
        %2735 = vmatprep.subr.mxu0 0.0
        %2736 = vmatpush1.msra.mxu0 %v2725
        %2737 = vmatprep.subr.mxu0 0.0
        %2738 = vmatpush1.msra.mxu0 %v2724
        %2739 = vmatprep.subr.mxu0 0.0
        %2740 = vmatpush1.msra.mxu0 %v2723
        %2741 = vmatprep.subr.mxu0 0.0
        %2742 = vmatpush1.msra.mxu0 %v2722
        %2743 = vmatprep.subr.mxu0 0.0
        %2744 = vmatpush1.msra.mxu0 %v2721
        %2745 = vmatprep.subr.mxu0 0.0
        %2746 = vmatpush1.msra.mxu0 %v2720
        %2747 = vmatprep.subr.mxu0 0.0
        %2748 = vmatpush1.msra.mxu0 %v2719
        %2749 = vmatprep.subr.mxu0 0.0
        %2750 = vmatpush1.msra.mxu0 %v2718
        %2751 = vmatprep.subr.mxu0 0.0
        %2752 = vmatpush1.msra.mxu0 %v2717
        %2753 = vmatprep.subr.mxu0 0.0
        %2754 = vmatpush1.msra.mxu0 %v2716
        %2755 = vmatprep.subr.mxu0 0.0
        %2756 = vmatpush1.msra.mxu0 %v2715
        %2757 = vmatprep.subr.mxu0 0.0
        %2758 = vmatpush1.msra.mxu0 %v2714
        %2759 = vmatprep.subr.mxu0 0.0
        %2760 = vmatpush1.msra.mxu0 %v2713
        %2761 = vmatprep.subr.mxu0 0.0
        %2762 = vmatpush2.msra.mxu0 0.0
        %2763 = vmatprep.subr.mxu0 0.0
        %2764 = vmatpush2.msra.mxu0 0.0
        %2765 = vmatprep.subr.mxu0 0.0
        %2766 = vmatpush2.msra.mxu0 0.0
        %2767 = vmatprep.subr.mxu0 0.0
        %2768 = vmatpush2.msra.mxu0 0.0
        %2769 = vmatprep.subr.mxu0 0.0
        %2770 = vmatpush2.msra.mxu0 0.0
        %2771 = vmatprep.subr.mxu0 0.0
        %2772 = vmatpush2.msra.mxu0 0.0
        %2773 = vmatprep.subr.mxu0 0.0
        %2774 = vmatpush2.msra.mxu0 0.0
        %2775 = vmatprep.subr.mxu0 0.0
        %2776 = vmatpush2.msra.mxu0 0.0
        %2777 = vmatprep.subr.mxu0 0.0
        %2778 = vmatpush2.msra.mxu0 0.0
        %2779 = vmatprep.subr.mxu0 0.0
        %2780 = vmatpush2.msra.mxu0 0.0
        %2781 = vmatprep.subr.mxu0 0.0
        %2782 = vmatpush2.msra.mxu0 0.0
        %2783 = vmatprep.subr.mxu0 0.0
        %2784 = vmatpush2.msra.mxu0 0.0
        %2785 = vmatprep.subr.mxu0 0.0
        %2786 = vmatpush2.msra.mxu0 0.0
        %2787 = vmatprep.subr.mxu0 0.0
        %2788 = vmatpush2.msra.mxu0 0.0
        %2789 = vmatprep.subr.mxu0 0.0
        %2790 = vmatpush2.msra.mxu0 0.0
        %2791 = vmatprep.subr.mxu0 0.0
        %2792 = vmatpush2.msra.mxu0 0.0
        %2793 = vmatprep.mubr.f32.mxu0 0.0
        %2794 = vmatmul.mubr.f32.gmra.mxu0 %v2709
        %v2795 = vpop.f32.mrf.mxu0
        %v2796 = vadd.f32 0.0, %v2795
        %v2797 = vpop.f32.mrf.mxu0
        %2798 = vdwg.mxu0
        %v2799 = vadd.f32 %v2271, %v2796
        %v2800 = vld [vmem:[%s9] sm:$0x1]
        %v2802 = vlaneseq
        %v2803 = vshrl.u32 %v2802, 7
        %v2804 = vsub.s32 0, %v2803
        %v2805 = vrot.slane %v2800, %v2804
        %v2807 = vadd.f32 %v2799, %v2805
        %v2808 = vadd.f32 %v691, %v2807
        %v2809 = vld [vmem:[%s10] sm:$0x1]
        %v2810 = vld [vmem:[%s11] sm:$0x1]
        %v2811 = vsel %vm695, 1, 0
        %vm2812 = vcmp.eq.s32.totalorder %v2811, 1
        %v2813 = vsel %vm2812, %v2808, 0.0
        %2814 = vadd.xlane.f32.xlu0 %v2813
        %v2815 = vpop.xlane.xlu0 %2814
        %v2816 = vmul.f32 %v2815, 0.03125
        %v2817 = vsub.f32 %v2808, %v2816
        %v2818 = vsel %vm2812, %v2817, 0.0
        %v2819 = vmul.f32 %v2818, %v2818
        %2820 = vadd.xlane.f32.xlu0 %v2819
        %v2821 = vpop.xlane.xlu0 %2820
        %v2822 = vmul.f32 %v2821, 0.03125
        %v2823 = vadd.f32 %v2822, 1e-05
        %v2824 = vrsqrt.pop %v2823
        %v2825 = vmul.f32 %v2817, %v2824
        %v2827 = vlaneseq
        %v2828 = vshrl.u32 %v2827, 7
        %v2829 = vsub.s32 0, %v2828
        %v2830 = vrot.slane %v2809, %v2829
        %v2832 = vmul.f32 %v2825, %v2830
        %v2834 = vlaneseq
        %v2835 = vshrl.u32 %v2834, 7
        %v2836 = vsub.s32 0, %v2835
        %v2837 = vrot.slane %v2810, %v2836
        %v2839 = vadd.f32 %v2832, %v2837
        %v2840 = vld [vmem:[#allocation13] sm:$0xff]
        %v2841 = vld [vmem:[#allocation13 + $0x8] sm:$0xff]
        %v2842 = vld [vmem:[#allocation13 + $0x10] sm:$0xff]
        %v2843 = vld [vmem:[#allocation13 + $0x18] sm:$0xff]
        %v2844 = vld [vmem:[#allocation13 + $0x20] sm:$0xff]
        %v2845 = vld [vmem:[#allocation13 + $0x28] sm:$0xff]
        %v2846 = vld [vmem:[#allocation13 + $0x30] sm:$0xff]
        %v2847 = vld [vmem:[#allocation13 + $0x38] sm:$0xff]
        %v2848 = vld [vmem:[#allocation13 + $0x40] sm:$0xff]
        %v2849 = vld [vmem:[#allocation13 + $0x48] sm:$0xff]
        %v2850 = vld [vmem:[#allocation13 + $0x50] sm:$0xff]
        %v2851 = vld [vmem:[#allocation13 + $0x58] sm:$0xff]
        %v2852 = vld [vmem:[#allocation13 + $0x60] sm:$0xff]
        %v2853 = vld [vmem:[#allocation13 + $0x68] sm:$0xff]
        %v2854 = vld [vmem:[#allocation13 + $0x70] sm:$0xff]
        %v2855 = vld [vmem:[#allocation13 + $0x78] sm:$0xff]
        %v2856 = vld [vmem:[%s13] sm:$0x1]
        %v2858 = vlaneseq
        %v2859 = vshrl.u32 %v2858, 7
        %v2860 = vsub.s32 0, %v2859
        %v2861 = vrot.slane %v2856, %v2860
        %2863 = vmatprep.subr.mxu0 0.0
        %2864 = vmatpush1.msra.mxu0 %v2855
        %2865 = vmatprep.subr.mxu0 0.0
        %2866 = vmatpush1.msra.mxu0 %v2854
        %2867 = vmatprep.subr.mxu0 0.0
        %2868 = vmatpush1.msra.mxu0 %v2853
        %2869 = vmatprep.subr.mxu0 0.0
        %2870 = vmatpush1.msra.mxu0 %v2852
        %2871 = vmatprep.subr.mxu0 0.0
        %2872 = vmatpush1.msra.mxu0 %v2851
        %2873 = vmatprep.subr.mxu0 0.0
        %2874 = vmatpush1.msra.mxu0 %v2850
        %2875 = vmatprep.subr.mxu0 0.0
        %2876 = vmatpush1.msra.mxu0 %v2849
        %2877 = vmatprep.subr.mxu0 0.0
        %2878 = vmatpush1.msra.mxu0 %v2848
        %2879 = vmatprep.subr.mxu0 0.0
        %2880 = vmatpush1.msra.mxu0 %v2847
        %2881 = vmatprep.subr.mxu0 0.0
        %2882 = vmatpush1.msra.mxu0 %v2846
        %2883 = vmatprep.subr.mxu0 0.0
        %2884 = vmatpush1.msra.mxu0 %v2845
        %2885 = vmatprep.subr.mxu0 0.0
        %2886 = vmatpush1.msra.mxu0 %v2844
        %2887 = vmatprep.subr.mxu0 0.0
        %2888 = vmatpush1.msra.mxu0 %v2843
        %2889 = vmatprep.subr.mxu0 0.0
        %2890 = vmatpush1.msra.mxu0 %v2842
        %2891 = vmatprep.subr.mxu0 0.0
        %2892 = vmatpush1.msra.mxu0 %v2841
        %2893 = vmatprep.subr.mxu0 0.0
        %2894 = vmatpush1.msra.mxu0 %v2840
        %2895 = vmatprep.subr.mxu0 0.0
        %2896 = vmatpush2.msra.mxu0 0.0
        %2897 = vmatprep.subr.mxu0 0.0
        %2898 = vmatpush2.msra.mxu0 0.0
        %2899 = vmatprep.subr.mxu0 0.0
        %2900 = vmatpush2.msra.mxu0 0.0
        %2901 = vmatprep.subr.mxu0 0.0
        %2902 = vmatpush2.msra.mxu0 0.0
        %2903 = vmatprep.subr.mxu0 0.0
        %2904 = vmatpush2.msra.mxu0 0.0
        %2905 = vmatprep.subr.mxu0 0.0
        %2906 = vmatpush2.msra.mxu0 0.0
        %2907 = vmatprep.subr.mxu0 0.0
        %2908 = vmatpush2.msra.mxu0 0.0
        %2909 = vmatprep.subr.mxu0 0.0
        %2910 = vmatpush2.msra.mxu0 0.0
        %2911 = vmatprep.subr.mxu0 0.0
        %2912 = vmatpush2.msra.mxu0 0.0
        %2913 = vmatprep.subr.mxu0 0.0
        %2914 = vmatpush2.msra.mxu0 0.0
        %2915 = vmatprep.subr.mxu0 0.0
        %2916 = vmatpush2.msra.mxu0 0.0
        %2917 = vmatprep.subr.mxu0 0.0
        %2918 = vmatpush2.msra.mxu0 0.0
        %2919 = vmatprep.subr.mxu0 0.0
        %2920 = vmatpush2.msra.mxu0 0.0
        %2921 = vmatprep.subr.mxu0 0.0
        %2922 = vmatpush2.msra.mxu0 0.0
        %2923 = vmatprep.subr.mxu0 0.0
        %2924 = vmatpush2.msra.mxu0 0.0
        %2925 = vmatprep.subr.mxu0 0.0
        %2926 = vmatpush2.msra.mxu0 0.0
        %2927 = vmatprep.mubr.f32.mxu0 0.0
        %2928 = vmatmul.mubr.f32.gmra.mxu0 %v2839
        %v2929 = vpop.f32.mrf.mxu0
        %v2930 = vadd.f32 %v2861, %v2929
        %v2931 = vpop.f32.mrf.mxu0
        %2932 = vdwg.mxu0
        %v2933 = vmul.f32 %v2930, 0.5
        %v2934 = vmul.f32 %v2930, 0.70710677
        %v2935 = verf.f32.pop %v2934
        %v2936 = vadd.f32 %v2935, 1.0
        %v2937 = vmul.f32 %v2933, %v2936
        %v2938 = vld [vmem:[#allocation14] sm:$0xff]
        %v2939 = vld [vmem:[#allocation14 + $0x8] sm:$0xff]
        %v2940 = vld [vmem:[#allocation14 + $0x10] sm:$0xff]
        %v2941 = vld [vmem:[#allocation14 + $0x18] sm:$0xff]
        %v2942 = vld [vmem:[#allocation14 + $0x20] sm:$0xff]
        %v2943 = vld [vmem:[#allocation14 + $0x28] sm:$0xff]
        %v2944 = vld [vmem:[#allocation14 + $0x30] sm:$0xff]
        %v2945 = vld [vmem:[#allocation14 + $0x38] sm:$0xff]
        %v2946 = vld [vmem:[#allocation14 + $0x40] sm:$0xff]
        %v2947 = vld [vmem:[#allocation14 + $0x48] sm:$0xff]
        %v2948 = vld [vmem:[#allocation14 + $0x50] sm:$0xff]
        %v2949 = vld [vmem:[#allocation14 + $0x58] sm:$0xff]
        %v2950 = vld [vmem:[#allocation14 + $0x60] sm:$0xff]
        %v2951 = vld [vmem:[#allocation14 + $0x68] sm:$0xff]
        %v2952 = vld [vmem:[#allocation14 + $0x70] sm:$0xff]
        %v2953 = vld [vmem:[#allocation14 + $0x78] sm:$0xff]
        %v2954 = vld [vmem:[%s15] sm:$0x1]
        %v2956 = vlaneseq
        %v2957 = vshrl.u32 %v2956, 7
        %v2958 = vsub.s32 0, %v2957
        %v2959 = vrot.slane %v2954, %v2958
        %2961 = vmatprep.subr.mxu0 0.0
        %2962 = vmatpush1.msra.mxu0 %v2953
        %2963 = vmatprep.subr.mxu0 0.0
        %2964 = vmatpush1.msra.mxu0 %v2952
        %2965 = vmatprep.subr.mxu0 0.0
        %2966 = vmatpush1.msra.mxu0 %v2951
        %2967 = vmatprep.subr.mxu0 0.0
        %2968 = vmatpush1.msra.mxu0 %v2950
        %2969 = vmatprep.subr.mxu0 0.0
        %2970 = vmatpush1.msra.mxu0 %v2949
        %2971 = vmatprep.subr.mxu0 0.0
        %2972 = vmatpush1.msra.mxu0 %v2948
        %2973 = vmatprep.subr.mxu0 0.0
        %2974 = vmatpush1.msra.mxu0 %v2947
        %2975 = vmatprep.subr.mxu0 0.0
        %2976 = vmatpush1.msra.mxu0 %v2946
        %2977 = vmatprep.subr.mxu0 0.0
        %2978 = vmatpush1.msra.mxu0 %v2945
        %2979 = vmatprep.subr.mxu0 0.0
        %2980 = vmatpush1.msra.mxu0 %v2944
        %2981 = vmatprep.subr.mxu0 0.0
        %2982 = vmatpush1.msra.mxu0 %v2943
        %2983 = vmatprep.subr.mxu0 0.0
        %2984 = vmatpush1.msra.mxu0 %v2942
        %2985 = vmatprep.subr.mxu0 0.0
        %2986 = vmatpush1.msra.mxu0 %v2941
        %2987 = vmatprep.subr.mxu0 0.0
        %2988 = vmatpush1.msra.mxu0 %v2940
        %2989 = vmatprep.subr.mxu0 0.0
        %2990 = vmatpush1.msra.mxu0 %v2939
        %2991 = vmatprep.subr.mxu0 0.0
        %2992 = vmatpush1.msra.mxu0 %v2938
        %2993 = vmatprep.subr.mxu0 0.0
        %2994 = vmatpush2.msra.mxu0 0.0
        %2995 = vmatprep.subr.mxu0 0.0
        %2996 = vmatpush2.msra.mxu0 0.0
        %2997 = vmatprep.subr.mxu0 0.0
        %2998 = vmatpush2.msra.mxu0 0.0
        %2999 = vmatprep.subr.mxu0 0.0
        %3000 = vmatpush2.msra.mxu0 0.0
        %3001 = vmatprep.subr.mxu0 0.0
        %3002 = vmatpush2.msra.mxu0 0.0
        %3003 = vmatprep.subr.mxu0 0.0
        %3004 = vmatpush2.msra.mxu0 0.0
        %3005 = vmatprep.subr.mxu0 0.0
        %3006 = vmatpush2.msra.mxu0 0.0
        %3007 = vmatprep.subr.mxu0 0.0
        %3008 = vmatpush2.msra.mxu0 0.0
        %3009 = vmatprep.subr.mxu0 0.0
        %3010 = vmatpush2.msra.mxu0 0.0
        %3011 = vmatprep.subr.mxu0 0.0
        %3012 = vmatpush2.msra.mxu0 0.0
        %3013 = vmatprep.subr.mxu0 0.0
        %3014 = vmatpush2.msra.mxu0 0.0
        %3015 = vmatprep.subr.mxu0 0.0
        %3016 = vmatpush2.msra.mxu0 0.0
        %3017 = vmatprep.subr.mxu0 0.0
        %3018 = vmatpush2.msra.mxu0 0.0
        %3019 = vmatprep.subr.mxu0 0.0
        %3020 = vmatpush2.msra.mxu0 0.0
        %3021 = vmatprep.subr.mxu0 0.0
        %3022 = vmatpush2.msra.mxu0 0.0
        %3023 = vmatprep.subr.mxu0 0.0
        %3024 = vmatpush2.msra.mxu0 0.0
        %3025 = vmatprep.mubr.f32.mxu0 0.0
        %3026 = vmatmul.mubr.f32.gmra.mxu0 %v2937
        %v3027 = vpop.f32.mrf.mxu0
        %v3028 = vadd.f32 %v2959, %v3027
        %v3029 = vpop.f32.mrf.mxu0
        %3030 = vdwg.mxu0
        %v3031 = vadd.f32 %v2839, %v3028
        %v3032 = vld [vmem:[%s16] sm:$0x1]
        %v3033 = vld [vmem:[%s17] sm:$0x1]
        %v3034 = vsel %vm2812, %v3031, 0.0
        %3035 = vadd.xlane.f32.xlu0 %v3034
        %v3036 = vpop.xlane.xlu0 %3035
        %v3037 = vmul.f32 %v3036, 0.03125
        %v3038 = vsub.f32 %v3031, %v3037
        %v3039 = vsel %vm2812, %v3038, 0.0
        %v3040 = vmul.f32 %v3039, %v3039
        %3041 = vadd.xlane.f32.xlu0 %v3040
        %v3042 = vpop.xlane.xlu0 %3041
        %v3043 = vmul.f32 %v3042, 0.03125
        %v3044 = vadd.f32 %v3043, 1e-05
        %v3045 = vrsqrt.pop %v3044
        %v3046 = vmul.f32 %v3038, %v3045
        %v3048 = vlaneseq
        %v3049 = vshrl.u32 %v3048, 7
        %v3050 = vsub.s32 0, %v3049
        %v3051 = vrot.slane %v3032, %v3050
        %v3053 = vmul.f32 %v3046, %v3051
        %v3055 = vlaneseq
        %v3056 = vshrl.u32 %v3055, 7
        %v3057 = vsub.s32 0, %v3056
        %v3058 = vrot.slane %v3033, %v3057
        %v3060 = vadd.f32 %v3053, %v3058
        %3061 = vst [vmem:[%s690] sm:$0xff] %v3060
        %s3062 = sand.u32 %s430, 1
        %s3063 = scalar_lea.sflag [#allocation4], %s3062
        %s3064 = sand.u32 %s430, 1
        %s3065 = smul.addr %s3064, 8
        %s3066 = scalar_lea.vmem [#allocation16], %s3065
        // Predicated region
        $region125: #{tpu_custom_call.1} parent=91 // pred_check
          %p3067 = pneg %p440
        $region126: #{tpu_custom_call.1} parent=91 // pred_check_branch
          %3069 = sbr.rel (%p3067) target = $region128
        $region127: #{tpu_custom_call.1} parent=91 // pred_region
          %s3071 = ssub.s32 128, 128
          %3072 = vsyncadd %s3063, %s3071
          %s3073 = smul.addr %s39, 128
          %s3074 = scalar_lea.hbm %s18, %s3073
          %s3076 = sshll.u32 %s3066, 4
          %s3077 = int_to_ptr.vmem [resolvable:$true] %s3076
          %3079 = dma.vmem_to_hbm [thread:$0]  %s3077, 128, %s3074, %s3063
        $region128: #{tpu_custom_call.1} parent=91 // pred_fallthru
          _
      $region92: #{tpu_custom_call.1} parent=5 // pred_fallthru
        _
      %p3080 = scmp.le.s32.totalorder 2, %s34
      // Predicated region
      $region129: #{tpu_custom_call.1} parent=5 // pred_check
        %p3081 = pneg %p3080
      $region130: #{tpu_custom_call.1} parent=5 // pred_check_branch
        %3083 = sbr.rel (%p3081) target = $region132
      $region131: #{tpu_custom_call.1} parent=5 // pred_region
        %s3084 = ssub.s32 %s34, 2
        // Predicated region
        $region133: #{tpu_custom_call.1} parent=131 // pred_check
          %p3085 = pneg %p446
        $region134: #{tpu_custom_call.1} parent=131 // pred_check_branch
          %3087 = sbr.rel (%p3085) target = $region136
        $region135: #{tpu_custom_call.1} parent=131 // pred_region
          %s3088 = sand.u32 %s431, 1
          %s3089 = scalar_lea.sflag [#allocation4], %s3088
          %s3090 = sand.u32 %s431, 1
          %s3091 = smul.addr %s3090, 8
          %s3092 = scalar_lea.vmem [#allocation16], %s3091
          %3093 = dma.done %s3089, 128
        $region136: #{tpu_custom_call.1} parent=131 // pred_fallthru
          _
      $region132: #{tpu_custom_call.1} parent=5 // pred_fallthru
        _
    $region6: #{tpu_custom_call.1} parent=1 // loop_footer
      %s38 = sadd.s32 1, %s34
    $region7: #{tpu_custom_call.1} parent=1 // loop_footer_branch
      %33 = sbr.rel target = $region3
    $region8: #{tpu_custom_call.1} parent=1 // loop_exit
      _
    %3094 = vsyncpa [#allocation3], 1
    %s3095 = scalar_lea.sflag [#allocation3], 1
    %3096 = vsyncpa %s3095, 1
    %3097 = vsyncpa [#allocation6], 1
    %3098 = vsyncpa [#allocation9], 1
    %3099 = vsyncpa [#allocation12], 1
    %3100 = vsyncpa [#allocation15], 1
    %3101 = vsyncpa [#allocation4], 1
    %s3102 = scalar_lea.sflag [#allocation4], 1
    %3103 = vsyncpa %s3102, 1

</llo_original>
